<compile_context>
chip_gen: v7x
topology: tpu7x:2x2x1
jax: 0.10.0
libtpu: 0.0.40
codegen_flags: <defaults>
</compile_context>

<pallas_src>
import jax
import jax.numpy as jnp
from jax.experimental import pallas as pl
from jax.experimental.pallas import tpu as pltpu


LAYER_SIZES = [2700, 1024, 512, 256, 128, 64, 32, 10]
_LANE = 128
_SUBLANE = 8


def _round_up(x, m):
    return ((x + m - 1) // m) * m


# ----------------------------------------------------------------------------
# Fused Pallas kernel: x -> 7 x (matmul + bias [+ ReLU]) entirely in VMEM.
# Refs: (x_ref, w1, b1, w2, b2, ..., w7, b7, o_ref); all full arrays in VMEM.
# ----------------------------------------------------------------------------
def _fused_mlp_kernel(x_ref, *refs):
    o_ref = refs[-1]
    wb_refs = refs[:-1]
    n_layers = len(wb_refs) // 2

    h = x_ref[...]                       # (Mp, K0p) float32
    for i in range(n_layers):
        w = wb_refs[2 * i][...]          # (Kp, Np)  bfloat16 (zero padded)
        b = wb_refs[2 * i + 1][...]      # (1, Np)   float32  (zero padded)
        h = jnp.dot(h.astype(w.dtype), w, preferred_element_type=jnp.float32)
        h = h + b
        if i < n_layers - 1:
            h = jnp.maximum(h, 0.0)      # ReLU on all but the last layer
    o_ref[...] = h.astype(o_ref.dtype)


# ----------------------------------------------------------------------------
# Parameters: torch.nn.Linear-style init, pre-padded ONCE to TPU tile shapes.
# Weights stored (in, out) = transpose of torch's (out, in) layout, bf16.
# Padded rows/cols are zero, so padded activation lanes stay exactly zero
# through bias-add (zero bias pad) and ReLU, and are sliced off at the end.
# ----------------------------------------------------------------------------
def init_params(key, sizes=LAYER_SIZES, weight_dtype=jnp.bfloat16):
    params = []
    for i, (fan_in, fan_out) in enumerate(zip(sizes[:-1], sizes[1:])):
        kw, kb = jax.random.split(jax.random.fold_in(key, i))
        bound = 1.0 / (fan_in ** 0.5)
        w = jax.random.uniform(kw, (fan_in, fan_out), jnp.float32,
                               minval=-bound, maxval=bound)
        b = jax.random.uniform(kb, (fan_out,), jnp.float32,
                               minval=-bound, maxval=bound)
        kp = _round_up(fan_in, _LANE)
        np_ = _round_up(fan_out, _LANE)
        w_p = (jnp.zeros((kp, np_), weight_dtype)
               .at[:fan_in, :fan_out].set(w.astype(weight_dtype)))
        b_p = jnp.zeros((1, np_), jnp.float32).at[0, :fan_out].set(b)
        params.append((w_p, b_p))
    return params


# ----------------------------------------------------------------------------
# Forward: one pallas_call for the whole model.
# ----------------------------------------------------------------------------
def deep_model_forward(padded_params, xb, out_size=10):
    B = xb.shape[0]
    x = xb.reshape(B, -1).astype(jnp.float32)        # xb.view(xb.size(0), -1)

    k0p = padded_params[0][0].shape[0]                # padded in_size (2816)
    np_last = padded_params[-1][0].shape[1]           # padded out_size (128)
    mp = _round_up(max(B, 1), _SUBLANE)

    xp = jnp.zeros((mp, k0p), jnp.float32).at[:B, : x.shape[1]].set(x)

    flat = []
    for w, b in padded_params:
        flat.append(w)
        flat.append(b)

    vmem_spec = pl.BlockSpec(memory_space=pltpu.MemorySpace.VMEM)
    out_p = pl.pallas_call(
        _fused_mlp_kernel,
        out_shape=jax.ShapeDtypeStruct((mp, np_last), jnp.float32),
        in_specs=[vmem_spec] * (1 + len(flat)),
        out_specs=vmem_spec,
        compiler_params=pltpu.CompilerParams(
            vmem_limit_bytes=32 * 1024 * 1024,  # ~7.4 MB resident; headroom on v5e
        ),
    )(xp, *flat)

    return out_p[:B, :out_size]


# ----------------------------------------------------------------------------
# Pure-JAX reference with the identical math (bf16 weights, f32 accumulation).
# ----------------------------------------------------------------------------
def deep_model_reference(padded_params, xb, out_size=10):
    B = xb.shape[0]
    x = xb.reshape(B, -1).astype(jnp.float32)
    k0p = padded_params[0][0].shape[0]
    h = jnp.zeros((B, k0p), jnp.float32).at[:, : x.shape[1]].set(x)
    n_layers = len(padded_params)
    for i, (w, b) in enumerate(padded_params):
        h = jnp.dot(h.astype(w.dtype), w, preferred_element_type=jnp.float32) + b
        if i < n_layers - 1:
            h = jnp.maximum(h, 0.0)
    return h[:, :out_size]


if __name__ == "__main__":
    key = jax.random.PRNGKey(0)
    k_params, k_x = jax.random.split(key)

    params = init_params(k_params)
    # Small batch; NCHW image that flattens to in_size = 3*30*30 = 2700.
    x = jax.random.normal(k_x, (2, 3, 30, 30), jnp.float32)

    fwd = jax.jit(deep_model_forward)
    out = jax.block_until_ready(fwd(params, x))

    ref = deep_model_reference(params, x)
    assert out.shape == (2, 10), out.shape
    max_err = float(jnp.max(jnp.abs(out - ref)))
    assert jnp.allclose(out, ref, atol=1e-3, rtol=1e-3), f"mismatch: {max_err}"

    print("KERNEL_OK")
</pallas_src>

<mosaic_0001>
module attributes {stable_mosaic.version = 11 : i64} {
  func.func @_fused_mlp_kernel(%arg0: memref<8x2816xf32, #tpu.memory_space<vmem>>, %arg1: memref<2816x1024xbf16, #tpu.memory_space<vmem>>, %arg2: memref<1x1024xf32, #tpu.memory_space<vmem>>, %arg3: memref<1024x512xbf16, #tpu.memory_space<vmem>>, %arg4: memref<1x512xf32, #tpu.memory_space<vmem>>, %arg5: memref<512x256xbf16, #tpu.memory_space<vmem>>, %arg6: memref<1x256xf32, #tpu.memory_space<vmem>>, %arg7: memref<256x128xbf16, #tpu.memory_space<vmem>>, %arg8: memref<1x128xf32, #tpu.memory_space<vmem>>, %arg9: memref<128x128xbf16, #tpu.memory_space<vmem>>, %arg10: memref<1x128xf32, #tpu.memory_space<vmem>>, %arg11: memref<128x128xbf16, #tpu.memory_space<vmem>>, %arg12: memref<1x128xf32, #tpu.memory_space<vmem>>, %arg13: memref<128x128xbf16, #tpu.memory_space<vmem>>, %arg14: memref<1x128xf32, #tpu.memory_space<vmem>>, %arg15: memref<8x128xf32, #tpu.memory_space<vmem>>) attributes {dimension_semantics = [], scalar_prefetch = 0 : i64, scratch_operands = 0 : i64, tpu.core_type = #tpu.core_type<tc>} {
    %c0 = arith.constant 0 : index
    %c0_0 = arith.constant 0 : index
    %0 = vector.load %arg0[%c0, %c0_0] : memref<8x2816xf32, #tpu.memory_space<vmem>>, vector<8x2816xf32>
    %c0_1 = arith.constant 0 : index
    %c0_2 = arith.constant 0 : index
    %1 = vector.load %arg1[%c0_1, %c0_2] : memref<2816x1024xbf16, #tpu.memory_space<vmem>>, vector<2816x1024xbf16>
    %c0_3 = arith.constant 0 : index
    %c0_4 = arith.constant 0 : index
    %2 = vector.load %arg2[%c0_3, %c0_4] : memref<1x1024xf32, #tpu.memory_space<vmem>>, vector<1x1024xf32>
    %3 = arith.truncf %0 : vector<8x2816xf32> to vector<8x2816xbf16>
    %cst = arith.constant dense<0.000000e+00> : vector<8x1024xf32>
    %4 = tpu.matmul %3, %1, %cst {dimension_numbers = #tpu.dot_dimension_numbers<[1], [0], [0], [1], [0, 0, 1, 1], [], []>} : vector<8x2816xbf16>, vector<2816x1024xbf16>, vector<8x1024xf32> -> vector<8x1024xf32>
    %5 = vector.broadcast %2 : vector<1x1024xf32> to vector<8x1024xf32>
    %6 = arith.addf %4, %5 : vector<8x1024xf32>
    %cst_5 = arith.constant 0.000000e+00 : f32
    %7 = vector.broadcast %cst_5 : f32 to vector<8x1024xf32>
    %8 = arith.maximumf %6, %7 : vector<8x1024xf32>
    %c0_6 = arith.constant 0 : index
    %c0_7 = arith.constant 0 : index
    %9 = vector.load %arg3[%c0_6, %c0_7] : memref<1024x512xbf16, #tpu.memory_space<vmem>>, vector<1024x512xbf16>
    %c0_8 = arith.constant 0 : index
    %c0_9 = arith.constant 0 : index
    %10 = vector.load %arg4[%c0_8, %c0_9] : memref<1x512xf32, #tpu.memory_space<vmem>>, vector<1x512xf32>
    %11 = arith.truncf %8 : vector<8x1024xf32> to vector<8x1024xbf16>
    %cst_10 = arith.constant dense<0.000000e+00> : vector<8x512xf32>
    %12 = tpu.matmul %11, %9, %cst_10 {dimension_numbers = #tpu.dot_dimension_numbers<[1], [0], [0], [1], [0, 0, 1, 1], [], []>} : vector<8x1024xbf16>, vector<1024x512xbf16>, vector<8x512xf32> -> vector<8x512xf32>
    %13 = vector.broadcast %10 : vector<1x512xf32> to vector<8x512xf32>
    %14 = arith.addf %12, %13 : vector<8x512xf32>
    %cst_11 = arith.constant 0.000000e+00 : f32
    %15 = vector.broadcast %cst_11 : f32 to vector<8x512xf32>
    %16 = arith.maximumf %14, %15 : vector<8x512xf32>
    %c0_12 = arith.constant 0 : index
    %c0_13 = arith.constant 0 : index
    %17 = vector.load %arg5[%c0_12, %c0_13] : memref<512x256xbf16, #tpu.memory_space<vmem>>, vector<512x256xbf16>
    %c0_14 = arith.constant 0 : index
    %c0_15 = arith.constant 0 : index
    %18 = vector.load %arg6[%c0_14, %c0_15] : memref<1x256xf32, #tpu.memory_space<vmem>>, vector<1x256xf32>
    %19 = arith.truncf %16 : vector<8x512xf32> to vector<8x512xbf16>
    %cst_16 = arith.constant dense<0.000000e+00> : vector<8x256xf32>
    %20 = tpu.matmul %19, %17, %cst_16 {dimension_numbers = #tpu.dot_dimension_numbers<[1], [0], [0], [1], [0, 0, 1, 1], [], []>} : vector<8x512xbf16>, vector<512x256xbf16>, vector<8x256xf32> -> vector<8x256xf32>
    %21 = vector.broadcast %18 : vector<1x256xf32> to vector<8x256xf32>
    %22 = arith.addf %20, %21 : vector<8x256xf32>
    %cst_17 = arith.constant 0.000000e+00 : f32
    %23 = vector.broadcast %cst_17 : f32 to vector<8x256xf32>
    %24 = arith.maximumf %22, %23 : vector<8x256xf32>
    %c0_18 = arith.constant 0 : index
    %c0_19 = arith.constant 0 : index
    %25 = vector.load %arg7[%c0_18, %c0_19] : memref<256x128xbf16, #tpu.memory_space<vmem>>, vector<256x128xbf16>
    %c0_20 = arith.constant 0 : index
    %c0_21 = arith.constant 0 : index
    %26 = vector.load %arg8[%c0_20, %c0_21] : memref<1x128xf32, #tpu.memory_space<vmem>>, vector<1x128xf32>
    %27 = arith.truncf %24 : vector<8x256xf32> to vector<8x256xbf16>
    %cst_22 = arith.constant dense<0.000000e+00> : vector<8x128xf32>
    %28 = tpu.matmul %27, %25, %cst_22 {dimension_numbers = #tpu.dot_dimension_numbers<[1], [0], [0], [1], [0, 0, 1, 1], [], []>} : vector<8x256xbf16>, vector<256x128xbf16>, vector<8x128xf32> -> vector<8x128xf32>
    %29 = vector.broadcast %26 : vector<1x128xf32> to vector<8x128xf32>
    %30 = arith.addf %28, %29 : vector<8x128xf32>
    %cst_23 = arith.constant 0.000000e+00 : f32
    %31 = vector.broadcast %cst_23 : f32 to vector<8x128xf32>
    %32 = arith.maximumf %30, %31 : vector<8x128xf32>
    %c0_24 = arith.constant 0 : index
    %c0_25 = arith.constant 0 : index
    %33 = vector.load %arg9[%c0_24, %c0_25] : memref<128x128xbf16, #tpu.memory_space<vmem>>, vector<128x128xbf16>
    %c0_26 = arith.constant 0 : index
    %c0_27 = arith.constant 0 : index
    %34 = vector.load %arg10[%c0_26, %c0_27] : memref<1x128xf32, #tpu.memory_space<vmem>>, vector<1x128xf32>
    %35 = arith.truncf %32 : vector<8x128xf32> to vector<8x128xbf16>
    %cst_28 = arith.constant dense<0.000000e+00> : vector<8x128xf32>
    %36 = tpu.matmul %35, %33, %cst_28 {dimension_numbers = #tpu.dot_dimension_numbers<[1], [0], [0], [1], [0, 0, 1, 1], [], []>} : vector<8x128xbf16>, vector<128x128xbf16>, vector<8x128xf32> -> vector<8x128xf32>
    %37 = vector.broadcast %34 : vector<1x128xf32> to vector<8x128xf32>
    %38 = arith.addf %36, %37 : vector<8x128xf32>
    %cst_29 = arith.constant 0.000000e+00 : f32
    %39 = vector.broadcast %cst_29 : f32 to vector<8x128xf32>
    %40 = arith.maximumf %38, %39 : vector<8x128xf32>
    %c0_30 = arith.constant 0 : index
    %c0_31 = arith.constant 0 : index
    %41 = vector.load %arg11[%c0_30, %c0_31] : memref<128x128xbf16, #tpu.memory_space<vmem>>, vector<128x128xbf16>
    %c0_32 = arith.constant 0 : index
    %c0_33 = arith.constant 0 : index
    %42 = vector.load %arg12[%c0_32, %c0_33] : memref<1x128xf32, #tpu.memory_space<vmem>>, vector<1x128xf32>
    %43 = arith.truncf %40 : vector<8x128xf32> to vector<8x128xbf16>
    %cst_34 = arith.constant dense<0.000000e+00> : vector<8x128xf32>
    %44 = tpu.matmul %43, %41, %cst_34 {dimension_numbers = #tpu.dot_dimension_numbers<[1], [0], [0], [1], [0, 0, 1, 1], [], []>} : vector<8x128xbf16>, vector<128x128xbf16>, vector<8x128xf32> -> vector<8x128xf32>
    %45 = vector.broadcast %42 : vector<1x128xf32> to vector<8x128xf32>
    %46 = arith.addf %44, %45 : vector<8x128xf32>
    %cst_35 = arith.constant 0.000000e+00 : f32
    %47 = vector.broadcast %cst_35 : f32 to vector<8x128xf32>
    %48 = arith.maximumf %46, %47 : vector<8x128xf32>
    %c0_36 = arith.constant 0 : index
    %c0_37 = arith.constant 0 : index
    %49 = vector.load %arg13[%c0_36, %c0_37] : memref<128x128xbf16, #tpu.memory_space<vmem>>, vector<128x128xbf16>
    %c0_38 = arith.constant 0 : index
    %c0_39 = arith.constant 0 : index
    %50 = vector.load %arg14[%c0_38, %c0_39] : memref<1x128xf32, #tpu.memory_space<vmem>>, vector<1x128xf32>
    %51 = arith.truncf %48 : vector<8x128xf32> to vector<8x128xbf16>
    %cst_40 = arith.constant dense<0.000000e+00> : vector<8x128xf32>
    %52 = tpu.matmul %51, %49, %cst_40 {dimension_numbers = #tpu.dot_dimension_numbers<[1], [0], [0], [1], [0, 0, 1, 1], [], []>} : vector<8x128xbf16>, vector<128x128xbf16>, vector<8x128xf32> -> vector<8x128xf32>
    %53 = vector.broadcast %50 : vector<1x128xf32> to vector<8x128xf32>
    %54 = arith.addf %52, %53 : vector<8x128xf32>
    %c0_41 = arith.constant 0 : index
    %c0_42 = arith.constant 0 : index
    %55 = vector.load %arg15[%c0_41, %c0_42] : memref<8x128xf32, #tpu.memory_space<vmem>>, vector<8x128xf32>
    tpu.vector_store %arg15[%c0_41, %c0_42], %54 {strides = array<i32>} : memref<8x128xf32, #tpu.memory_space<vmem>>, vector<8x128xf32>,
    return
  }
}

</mosaic_0001>

<llo_original>
// kernel: deep_model_forward.1
$region0: #{deep_model_forward.1}
  #allocation0 [shape = 'u32[]', space=smem, size = 0x4, offset = 0x4, fixed_abs, tag = 'smem constant byte address 0x4 - core index']
  #allocation1 [shape = 'u32[144,128]{1,0:T(1,128)}', space=vmem, size = 0x12000, scoped, tag = 'internal scratch']
  %s0 = inlined_call_operand.vmem [shape: f32[8,2816], index: 0, kind: input, shape index: {}]
  %s1 = inlined_call_operand.hbm [shape: bf16[2816,1024], index: 1, kind: input, shape index: {}]
  %s2 = inlined_call_operand.hbm [shape: f32[1,1024], index: 2, kind: input, shape index: {}]
  %s3 = inlined_call_operand.hbm [shape: bf16[1024,512], index: 3, kind: input, shape index: {}]
  %s4 = inlined_call_operand.hbm [shape: f32[1,512], index: 4, kind: input, shape index: {}]
  %s5 = inlined_call_operand.hbm [shape: bf16[512,256], index: 5, kind: input, shape index: {}]
  %s6 = inlined_call_operand.hbm [shape: f32[1,256], index: 6, kind: input, shape index: {}]
  %s7 = inlined_call_operand.hbm [shape: bf16[256,128], index: 7, kind: input, shape index: {}]
  %s8 = inlined_call_operand.hbm [shape: f32[1,128], index: 8, kind: input, shape index: {}]
  %s9 = inlined_call_operand.hbm [shape: bf16[128,128], index: 9, kind: input, shape index: {}]
  %s10 = inlined_call_operand.hbm [shape: f32[1,128], index: 10, kind: input, shape index: {}]
  %s11 = inlined_call_operand.hbm [shape: bf16[128,128], index: 11, kind: input, shape index: {}]
  %s12 = inlined_call_operand.hbm [shape: f32[1,128], index: 12, kind: input, shape index: {}]
  %s13 = inlined_call_operand.hbm [shape: bf16[128,128], index: 13, kind: input, shape index: {}]
  %s14 = inlined_call_operand.hbm [shape: f32[1,128], index: 14, kind: input, shape index: {}]
  %s15 = inlined_call_operand.vmem [shape: f32[8,128], index: 15, kind: output, shape index: {}]
  %s16 = sld [smem:[#allocation0]]
  $region126: #{deep_model_forward.1} parent=0
    _
  %s18 = ssub.s32 1, %s16
  %s19 = scalar_select 0, %s18, %s16
  $region1: #{deep_model_forward.1} parent=0
    #allocation2 [shape = 'u8[5767168]{0}', space=vmem, size = 0x580000, scoped, tag = 'input window, operand 1, single buffered']
    #allocation3 [shape = 's32[1]{0}', space=sflag, size = 0x4, scoped, tag = 'scoped memory for deep_model_forward.1']
    #allocation4 [shape = 'u8[4096]{0}', space=vmem, size = 0x1000, scoped, tag = 'input window, operand 2, single buffered']
    #allocation5 [shape = 's32[1]{0}', space=sflag, size = 0x4, scoped, tag = 'scoped memory for deep_model_forward.1']
    #allocation6 [shape = 'u8[1048576]{0}', space=vmem, size = 0x100000, scoped, tag = 'input window, operand 3, single buffered']
    #allocation7 [shape = 'u8[2048]{0}', space=vmem, size = 0x800, scoped, tag = 'input window, operand 4, single buffered']
    #allocation8 [shape = 's32[1]{0}', space=sflag, size = 0x4, scoped, tag = 'scoped memory for deep_model_forward.1']
    #allocation9 [shape = 'u8[262144]{0}', space=vmem, size = 0x40000, scoped, tag = 'input window, operand 5, single buffered']
    #allocation10 [shape = 'u8[1024]{0}', space=vmem, size = 0x400, scoped, tag = 'input window, operand 6, single buffered']
    #allocation11 [shape = 's32[1]{0}', space=sflag, size = 0x4, scoped, tag = 'scoped memory for deep_model_forward.1']
    #allocation12 [shape = 'u8[65536]{0}', space=vmem, size = 0x10000, scoped, tag = 'input window, operand 7, single buffered']
    #allocation13 [shape = 'u8[512]{0}', space=vmem, size = 0x400, scoped, tag = 'input window, operand 8, single buffered']
    #allocation14 [shape = 's32[1]{0}', space=sflag, size = 0x4, scoped, tag = 'scoped memory for deep_model_forward.1']
    #allocation15 [shape = 'u8[32768]{0}', space=vmem, size = 0x8000, scoped, tag = 'input window, operand 9, single buffered']
    #allocation16 [shape = 'u8[512]{0}', space=vmem, size = 0x400, scoped, tag = 'input window, operand 10, single buffered']
    #allocation17 [shape = 's32[1]{0}', space=sflag, size = 0x4, scoped, tag = 'scoped memory for deep_model_forward.1']
    #allocation18 [shape = 'u8[32768]{0}', space=vmem, size = 0x8000, scoped, tag = 'input window, operand 11, single buffered']
    #allocation19 [shape = 'u8[512]{0}', space=vmem, size = 0x400, scoped, tag = 'input window, operand 12, single buffered']
    #allocation20 [shape = 's32[1]{0}', space=sflag, size = 0x4, scoped, tag = 'scoped memory for deep_model_forward.1']
    #allocation21 [shape = 'u8[32768]{0}', space=vmem, size = 0x8000, scoped, tag = 'input window, operand 13, single buffered']
    #allocation22 [shape = 'u8[512]{0}', space=vmem, size = 0x400, scoped, tag = 'input window, operand 14, single buffered']
    #allocation23 [shape = 's32[1]{0}', space=sflag, size = 0x4, scoped, tag = 'scoped memory for deep_model_forward.1']
    %20 = vsyncpa [#allocation3], 0
    %21 = vsyncpa [#allocation5], 0
    %22 = vsyncpa [#allocation8], 0
    %23 = vsyncpa [#allocation11], 0
    %24 = vsyncpa [#allocation14], 0
    %25 = vsyncpa [#allocation17], 0
    %26 = vsyncpa [#allocation20], 0
    %27 = vsyncpa [#allocation23], 0
    // Predicated region
    $region2: #{deep_model_forward.1} parent=1 // pred_check
      _
    $region3: #{deep_model_forward.1} parent=1 // pred_check_branch
      %29 = sbr.rel (0) target = $region5
    $region4: #{deep_model_forward.1} parent=1 // pred_region
      _
    $region5: #{deep_model_forward.1} parent=1 // pred_fallthru
      _
    // Predicated region
    $region6: #{deep_model_forward.1} parent=1 // pred_check
      _
    $region7: #{deep_model_forward.1} parent=1 // pred_check_branch
      %31 = sbr.rel (0) target = $region9
    $region8: #{deep_model_forward.1} parent=1 // pred_region
      %s33 = ssub.s32 180224, 180224
      %34 = vsyncadd [#allocation3], %s33
      %s35 = sshll.u32 [#allocation2], 4
      %s36 = int_to_ptr.vmem [resolvable:$true] %s35
      %41 = dma.hbm_to_vmem [thread:$0]  %s1, 180224, %s36, [#allocation3], 512, 512, 32
    $region9: #{deep_model_forward.1} parent=1 // pred_fallthru
      _
    // Predicated region
    $region10: #{deep_model_forward.1} parent=1 // pred_check
      _
    $region11: #{deep_model_forward.1} parent=1 // pred_check_branch
      %43 = sbr.rel (0) target = $region13
    $region12: #{deep_model_forward.1} parent=1 // pred_region
      %s45 = ssub.s32 128, 128
      %46 = vsyncadd [#allocation5], %s45
      %s48 = sshll.u32 [#allocation4], 4
      %s49 = int_to_ptr.vmem [resolvable:$true] %s48
      %51 = dma.hbm_to_vmem [thread:$0]  %s2, 128, %s49, [#allocation5]
    $region13: #{deep_model_forward.1} parent=1 // pred_fallthru
      _
    // Predicated region
    $region14: #{deep_model_forward.1} parent=1 // pred_check
      _
    $region15: #{deep_model_forward.1} parent=1 // pred_check_branch
      %53 = sbr.rel (0) target = $region17
    $region16: #{deep_model_forward.1} parent=1 // pred_region
      %s55 = ssub.s32 32768, 32768
      %56 = vsyncadd [#allocation5], %s55
      %s57 = sshll.u32 [#allocation6], 4
      %s58 = int_to_ptr.vmem [resolvable:$true] %s57
      %63 = dma.hbm_to_vmem [thread:$0]  %s3, 32768, %s58, [#allocation5], 256, 256, 16
    $region17: #{deep_model_forward.1} parent=1 // pred_fallthru
      _
    // Predicated region
    $region18: #{deep_model_forward.1} parent=1 // pred_check
      _
    $region19: #{deep_model_forward.1} parent=1 // pred_check_branch
      %65 = sbr.rel (0) target = $region21
    $region20: #{deep_model_forward.1} parent=1 // pred_region
      %s67 = ssub.s32 64, 64
      %68 = vsyncadd [#allocation8], %s67
      %s70 = sshll.u32 [#allocation7], 4
      %s71 = int_to_ptr.vmem [resolvable:$true] %s70
      %73 = dma.hbm_to_vmem [thread:$0]  %s4, 64, %s71, [#allocation8]
    $region21: #{deep_model_forward.1} parent=1 // pred_fallthru
      _
    // Predicated region
    $region22: #{deep_model_forward.1} parent=1 // pred_check
      _
    $region23: #{deep_model_forward.1} parent=1 // pred_check_branch
      %75 = sbr.rel (0) target = $region25
    $region24: #{deep_model_forward.1} parent=1 // pred_region
      %s77 = ssub.s32 8192, 8192
      %78 = vsyncadd [#allocation8], %s77
      %s79 = sshll.u32 [#allocation9], 4
      %s80 = int_to_ptr.vmem [resolvable:$true] %s79
      %85 = dma.hbm_to_vmem [thread:$0]  %s5, 8192, %s80, [#allocation8], 128, 128, 8
    $region25: #{deep_model_forward.1} parent=1 // pred_fallthru
      _
    // Predicated region
    $region26: #{deep_model_forward.1} parent=1 // pred_check
      _
    $region27: #{deep_model_forward.1} parent=1 // pred_check_branch
      %87 = sbr.rel (0) target = $region29
    $region28: #{deep_model_forward.1} parent=1 // pred_region
      %s89 = ssub.s32 32, 32
      %90 = vsyncadd [#allocation11], %s89
      %s92 = sshll.u32 [#allocation10], 4
      %s93 = int_to_ptr.vmem [resolvable:$true] %s92
      %95 = dma.hbm_to_vmem [thread:$0]  %s6, 32, %s93, [#allocation11]
    $region29: #{deep_model_forward.1} parent=1 // pred_fallthru
      _
    // Predicated region
    $region30: #{deep_model_forward.1} parent=1 // pred_check
      _
    $region31: #{deep_model_forward.1} parent=1 // pred_check_branch
      %97 = sbr.rel (0) target = $region33
    $region32: #{deep_model_forward.1} parent=1 // pred_region
      %s99 = ssub.s32 2048, 2048
      %100 = vsyncadd [#allocation11], %s99
      %s101 = sshll.u32 [#allocation12], 4
      %s102 = int_to_ptr.vmem [resolvable:$true] %s101
      %107 = dma.hbm_to_vmem [thread:$0]  %s7, 2048, %s102, [#allocation11], 64, 64, 4
    $region33: #{deep_model_forward.1} parent=1 // pred_fallthru
      _
    // Predicated region
    $region34: #{deep_model_forward.1} parent=1 // pred_check
      _
    $region35: #{deep_model_forward.1} parent=1 // pred_check_branch
      %109 = sbr.rel (0) target = $region37
    $region36: #{deep_model_forward.1} parent=1 // pred_region
      %s111 = ssub.s32 16, 16
      %112 = vsyncadd [#allocation14], %s111
      %s114 = sshll.u32 [#allocation13], 4
      %s115 = int_to_ptr.vmem [resolvable:$true] %s114
      %117 = dma.hbm_to_vmem [thread:$0]  %s8, 16, %s115, [#allocation14]
    $region37: #{deep_model_forward.1} parent=1 // pred_fallthru
      _
    // Predicated region
    $region38: #{deep_model_forward.1} parent=1 // pred_check
      _
    $region39: #{deep_model_forward.1} parent=1 // pred_check_branch
      %119 = sbr.rel (0) target = $region41
    $region40: #{deep_model_forward.1} parent=1 // pred_region
      %s121 = ssub.s32 1024, 1024
      %122 = vsyncadd [#allocation14], %s121
      %s123 = sshll.u32 [#allocation15], 4
      %s124 = int_to_ptr.vmem [resolvable:$true] %s123
      %129 = dma.hbm_to_vmem [thread:$0]  %s9, 1024, %s124, [#allocation14], 64, 64, 4
    $region41: #{deep_model_forward.1} parent=1 // pred_fallthru
      _
    // Predicated region
    $region42: #{deep_model_forward.1} parent=1 // pred_check
      _
    $region43: #{deep_model_forward.1} parent=1 // pred_check_branch
      %131 = sbr.rel (0) target = $region45
    $region44: #{deep_model_forward.1} parent=1 // pred_region
      %s133 = ssub.s32 16, 16
      %134 = vsyncadd [#allocation17], %s133
      %s136 = sshll.u32 [#allocation16], 4
      %s137 = int_to_ptr.vmem [resolvable:$true] %s136
      %139 = dma.hbm_to_vmem [thread:$0]  %s10, 16, %s137, [#allocation17]
    $region45: #{deep_model_forward.1} parent=1 // pred_fallthru
      _
    // Predicated region
    $region46: #{deep_model_forward.1} parent=1 // pred_check
      _
    $region47: #{deep_model_forward.1} parent=1 // pred_check_branch
      %141 = sbr.rel (0) target = $region49
    $region48: #{deep_model_forward.1} parent=1 // pred_region
      %s143 = ssub.s32 1024, 1024
      %144 = vsyncadd [#allocation17], %s143
      %s145 = sshll.u32 [#allocation18], 4
      %s146 = int_to_ptr.vmem [resolvable:$true] %s145
      %151 = dma.hbm_to_vmem [thread:$0]  %s11, 1024, %s146, [#allocation17], 64, 64, 4
    $region49: #{deep_model_forward.1} parent=1 // pred_fallthru
      _
    // Predicated region
    $region50: #{deep_model_forward.1} parent=1 // pred_check
      _
    $region51: #{deep_model_forward.1} parent=1 // pred_check_branch
      %153 = sbr.rel (0) target = $region53
    $region52: #{deep_model_forward.1} parent=1 // pred_region
      %s155 = ssub.s32 16, 16
      %156 = vsyncadd [#allocation20], %s155
      %s158 = sshll.u32 [#allocation19], 4
      %s159 = int_to_ptr.vmem [resolvable:$true] %s158
      %161 = dma.hbm_to_vmem [thread:$0]  %s12, 16, %s159, [#allocation20]
    $region53: #{deep_model_forward.1} parent=1 // pred_fallthru
      _
    // Predicated region
    $region54: #{deep_model_forward.1} parent=1 // pred_check
      _
    $region55: #{deep_model_forward.1} parent=1 // pred_check_branch
      %163 = sbr.rel (0) target = $region57
    $region56: #{deep_model_forward.1} parent=1 // pred_region
      %s165 = ssub.s32 1024, 1024
      %166 = vsyncadd [#allocation20], %s165
      %s167 = sshll.u32 [#allocation21], 4
      %s168 = int_to_ptr.vmem [resolvable:$true] %s167
      %173 = dma.hbm_to_vmem [thread:$0]  %s13, 1024, %s168, [#allocation20], 64, 64, 4
    $region57: #{deep_model_forward.1} parent=1 // pred_fallthru
      _
    // Predicated region
    $region58: #{deep_model_forward.1} parent=1 // pred_check
      _
    $region59: #{deep_model_forward.1} parent=1 // pred_check_branch
      %175 = sbr.rel (0) target = $region61
    $region60: #{deep_model_forward.1} parent=1 // pred_region
      %s177 = ssub.s32 16, 16
      %178 = vsyncadd [#allocation23], %s177
      %s180 = sshll.u32 [#allocation22], 4
      %s181 = int_to_ptr.vmem [resolvable:$true] %s180
      %183 = dma.hbm_to_vmem [thread:$0]  %s14, 16, %s181, [#allocation23]
    $region61: #{deep_model_forward.1} parent=1 // pred_fallthru
      _
    // Predicated region
    $region62: #{deep_model_forward.1} parent=1 // pred_check
      _
    $region63: #{deep_model_forward.1} parent=1 // pred_check_branch
      %185 = sbr.rel (0) target = $region65
    $region64: #{deep_model_forward.1} parent=1 // pred_region
      %186 = dma.done [#allocation3], 180224
    $region65: #{deep_model_forward.1} parent=1 // pred_fallthru
      _
    // Predicated region
    $region66: #{deep_model_forward.1} parent=1 // pred_check
      _
    $region67: #{deep_model_forward.1} parent=1 // pred_check_branch
      %188 = sbr.rel (0) target = $region69
    $region68: #{deep_model_forward.1} parent=1 // pred_region
      %189 = dma.done [#allocation5], 128
    $region69: #{deep_model_forward.1} parent=1 // pred_fallthru
      _
    // Predicated region
    $region70: #{deep_model_forward.1} parent=1 // pred_check
      _
    $region71: #{deep_model_forward.1} parent=1 // pred_check_branch
      %191 = sbr.rel (0) target = $region73
    $region72: #{deep_model_forward.1} parent=1 // pred_region
      %192 = dma.done [#allocation5], 32768
    $region73: #{deep_model_forward.1} parent=1 // pred_fallthru
      _
    // Predicated region
    $region74: #{deep_model_forward.1} parent=1 // pred_check
      _
    $region75: #{deep_model_forward.1} parent=1 // pred_check_branch
      %194 = sbr.rel (0) target = $region77
    $region76: #{deep_model_forward.1} parent=1 // pred_region
      %195 = dma.done [#allocation8], 64
    $region77: #{deep_model_forward.1} parent=1 // pred_fallthru
      _
    // Predicated region
    $region78: #{deep_model_forward.1} parent=1 // pred_check
      _
    $region79: #{deep_model_forward.1} parent=1 // pred_check_branch
      %197 = sbr.rel (0) target = $region81
    $region80: #{deep_model_forward.1} parent=1 // pred_region
      %198 = dma.done [#allocation8], 8192
    $region81: #{deep_model_forward.1} parent=1 // pred_fallthru
      _
    // Predicated region
    $region82: #{deep_model_forward.1} parent=1 // pred_check
      _
    $region83: #{deep_model_forward.1} parent=1 // pred_check_branch
      %200 = sbr.rel (0) target = $region85
    $region84: #{deep_model_forward.1} parent=1 // pred_region
      %201 = dma.done [#allocation11], 32
    $region85: #{deep_model_forward.1} parent=1 // pred_fallthru
      _
    // Predicated region
    $region86: #{deep_model_forward.1} parent=1 // pred_check
      _
    $region87: #{deep_model_forward.1} parent=1 // pred_check_branch
      %203 = sbr.rel (0) target = $region89
    $region88: #{deep_model_forward.1} parent=1 // pred_region
      %204 = dma.done [#allocation11], 2048
    $region89: #{deep_model_forward.1} parent=1 // pred_fallthru
      _
    // Predicated region
    $region90: #{deep_model_forward.1} parent=1 // pred_check
      _
    $region91: #{deep_model_forward.1} parent=1 // pred_check_branch
      %206 = sbr.rel (0) target = $region93
    $region92: #{deep_model_forward.1} parent=1 // pred_region
      %207 = dma.done [#allocation14], 16
    $region93: #{deep_model_forward.1} parent=1 // pred_fallthru
      _
    // Predicated region
    $region94: #{deep_model_forward.1} parent=1 // pred_check
      _
    $region95: #{deep_model_forward.1} parent=1 // pred_check_branch
      %209 = sbr.rel (0) target = $region97
    $region96: #{deep_model_forward.1} parent=1 // pred_region
      %210 = dma.done [#allocation14], 1024
    $region97: #{deep_model_forward.1} parent=1 // pred_fallthru
      _
    // Predicated region
    $region98: #{deep_model_forward.1} parent=1 // pred_check
      _
    $region99: #{deep_model_forward.1} parent=1 // pred_check_branch
      %212 = sbr.rel (0) target = $region101
    $region100: #{deep_model_forward.1} parent=1 // pred_region
      %213 = dma.done [#allocation17], 16
    $region101: #{deep_model_forward.1} parent=1 // pred_fallthru
      _
    // Predicated region
    $region102: #{deep_model_forward.1} parent=1 // pred_check
      _
    $region103: #{deep_model_forward.1} parent=1 // pred_check_branch
      %215 = sbr.rel (0) target = $region105
    $region104: #{deep_model_forward.1} parent=1 // pred_region
      %216 = dma.done [#allocation17], 1024
    $region105: #{deep_model_forward.1} parent=1 // pred_fallthru
      _
    // Predicated region
    $region106: #{deep_model_forward.1} parent=1 // pred_check
      _
    $region107: #{deep_model_forward.1} parent=1 // pred_check_branch
      %218 = sbr.rel (0) target = $region109
    $region108: #{deep_model_forward.1} parent=1 // pred_region
      %219 = dma.done [#allocation20], 16
    $region109: #{deep_model_forward.1} parent=1 // pred_fallthru
      _
    // Predicated region
    $region110: #{deep_model_forward.1} parent=1 // pred_check
      _
    $region111: #{deep_model_forward.1} parent=1 // pred_check_branch
      %221 = sbr.rel (0) target = $region113
    $region112: #{deep_model_forward.1} parent=1 // pred_region
      %222 = dma.done [#allocation20], 1024
    $region113: #{deep_model_forward.1} parent=1 // pred_fallthru
      _
    // Predicated region
    $region114: #{deep_model_forward.1} parent=1 // pred_check
      _
    $region115: #{deep_model_forward.1} parent=1 // pred_check_branch
      %224 = sbr.rel (0) target = $region117
    $region116: #{deep_model_forward.1} parent=1 // pred_region
      %225 = dma.done [#allocation23], 16
    $region117: #{deep_model_forward.1} parent=1 // pred_fallthru
      _
    %v227 = vld [vmem:[%s0] sm:$0xff]
    %v228 = vld [vmem:[%s0 + $0x8] sm:$0xff]
    %v229 = vld [vmem:[%s0 + $0x10] sm:$0xff]
    %v230 = vld [vmem:[%s0 + $0x18] sm:$0xff]
    %v231 = vld [vmem:[%s0 + $0x20] sm:$0xff]
    %v232 = vld [vmem:[%s0 + $0x28] sm:$0xff]
    %v233 = vld [vmem:[%s0 + $0x30] sm:$0xff]
    %v234 = vld [vmem:[%s0 + $0x38] sm:$0xff]
    %v235 = vld [vmem:[%s0 + $0x40] sm:$0xff]
    %v236 = vld [vmem:[%s0 + $0x48] sm:$0xff]
    %v237 = vld [vmem:[%s0 + $0x50] sm:$0xff]
    %v238 = vld [vmem:[%s0 + $0x58] sm:$0xff]
    %v239 = vld [vmem:[%s0 + $0x60] sm:$0xff]
    %v240 = vld [vmem:[%s0 + $0x68] sm:$0xff]
    %v241 = vld [vmem:[%s0 + $0x70] sm:$0xff]
    %v242 = vld [vmem:[%s0 + $0x78] sm:$0xff]
    %v243 = vld [vmem:[%s0 + $0x80] sm:$0xff]
    %v244 = vld [vmem:[%s0 + $0x88] sm:$0xff]
    %v245 = vld [vmem:[%s0 + $0x90] sm:$0xff]
    %v246 = vld [vmem:[%s0 + $0x98] sm:$0xff]
    %v247 = vld [vmem:[%s0 + $0xa0] sm:$0xff]
    %v248 = vld [vmem:[%s0 + $0xa8] sm:$0xff]
    %v249 = vld [vmem:[#allocation2] sm:$0xff]
    %v250 = vld [vmem:[#allocation2 + $0x8] sm:$0xff]
    %v251 = vld [vmem:[#allocation2 + $0x10] sm:$0xff]
    %v252 = vld [vmem:[#allocation2 + $0x18] sm:$0xff]
    %v253 = vld [vmem:[#allocation2 + $0x20] sm:$0xff]
    %v254 = vld [vmem:[#allocation2 + $0x28] sm:$0xff]
    %v255 = vld [vmem:[#allocation2 + $0x30] sm:$0xff]
    %v256 = vld [vmem:[#allocation2 + $0x38] sm:$0xff]
    %v257 = vld [vmem:[#allocation2 + $0x40] sm:$0xff]
    %v258 = vld [vmem:[#allocation2 + $0x48] sm:$0xff]
    %v259 = vld [vmem:[#allocation2 + $0x50] sm:$0xff]
    %v260 = vld [vmem:[#allocation2 + $0x58] sm:$0xff]
    %v261 = vld [vmem:[#allocation2 + $0x60] sm:$0xff]
    %v262 = vld [vmem:[#allocation2 + $0x68] sm:$0xff]
    %v263 = vld [vmem:[#allocation2 + $0x70] sm:$0xff]
    %v264 = vld [vmem:[#allocation2 + $0x78] sm:$0xff]
    %v265 = vld [vmem:[#allocation2 + $0x80] sm:$0xff]
    %v266 = vld [vmem:[#allocation2 + $0x88] sm:$0xff]
    %v267 = vld [vmem:[#allocation2 + $0x90] sm:$0xff]
    %v268 = vld [vmem:[#allocation2 + $0x98] sm:$0xff]
    %v269 = vld [vmem:[#allocation2 + $0xa0] sm:$0xff]
    %v270 = vld [vmem:[#allocation2 + $0xa8] sm:$0xff]
    %v271 = vld [vmem:[#allocation2 + $0xb0] sm:$0xff]
    %v272 = vld [vmem:[#allocation2 + $0xb8] sm:$0xff]
    %v273 = vld [vmem:[#allocation2 + $0xc0] sm:$0xff]
    %v274 = vld [vmem:[#allocation2 + $0xc8] sm:$0xff]
    %v275 = vld [vmem:[#allocation2 + $0xd0] sm:$0xff]
    %v276 = vld [vmem:[#allocation2 + $0xd8] sm:$0xff]
    %v277 = vld [vmem:[#allocation2 + $0xe0] sm:$0xff]
    %v278 = vld [vmem:[#allocation2 + $0xe8] sm:$0xff]
    %v279 = vld [vmem:[#allocation2 + $0xf0] sm:$0xff]
    %v280 = vld [vmem:[#allocation2 + $0xf8] sm:$0xff]
    %v281 = vld [vmem:[#allocation2 + $0x100] sm:$0xff]
    %v282 = vld [vmem:[#allocation2 + $0x108] sm:$0xff]
    %v283 = vld [vmem:[#allocation2 + $0x110] sm:$0xff]
    %v284 = vld [vmem:[#allocation2 + $0x118] sm:$0xff]
    %v285 = vld [vmem:[#allocation2 + $0x120] sm:$0xff]
    %v286 = vld [vmem:[#allocation2 + $0x128] sm:$0xff]
    %v287 = vld [vmem:[#allocation2 + $0x130] sm:$0xff]
    %v288 = vld [vmem:[#allocation2 + $0x138] sm:$0xff]
    %v289 = vld [vmem:[#allocation2 + $0x140] sm:$0xff]
    %v290 = vld [vmem:[#allocation2 + $0x148] sm:$0xff]
    %v291 = vld [vmem:[#allocation2 + $0x150] sm:$0xff]
    %v292 = vld [vmem:[#allocation2 + $0x158] sm:$0xff]
    %v293 = vld [vmem:[#allocation2 + $0x160] sm:$0xff]
    %v294 = vld [vmem:[#allocation2 + $0x168] sm:$0xff]
    %v295 = vld [vmem:[#allocation2 + $0x170] sm:$0xff]
    %v296 = vld [vmem:[#allocation2 + $0x178] sm:$0xff]
    %v297 = vld [vmem:[#allocation2 + $0x180] sm:$0xff]
    %v298 = vld [vmem:[#allocation2 + $0x188] sm:$0xff]
    %v299 = vld [vmem:[#allocation2 + $0x190] sm:$0xff]
    %v300 = vld [vmem:[#allocation2 + $0x198] sm:$0xff]
    %v301 = vld [vmem:[#allocation2 + $0x1a0] sm:$0xff]
    %v302 = vld [vmem:[#allocation2 + $0x1a8] sm:$0xff]
    %v303 = vld [vmem:[#allocation2 + $0x1b0] sm:$0xff]
    %v304 = vld [vmem:[#allocation2 + $0x1b8] sm:$0xff]
    %v305 = vld [vmem:[#allocation2 + $0x1c0] sm:$0xff]
    %v306 = vld [vmem:[#allocation2 + $0x1c8] sm:$0xff]
    %v307 = vld [vmem:[#allocation2 + $0x1d0] sm:$0xff]
    %v308 = vld [vmem:[#allocation2 + $0x1d8] sm:$0xff]
    %v309 = vld [vmem:[#allocation2 + $0x1e0] sm:$0xff]
    %v310 = vld [vmem:[#allocation2 + $0x1e8] sm:$0xff]
    %v311 = vld [vmem:[#allocation2 + $0x1f0] sm:$0xff]
    %v312 = vld [vmem:[#allocation2 + $0x1f8] sm:$0xff]
    %v313 = vld [vmem:[#allocation2 + $0x200] sm:$0xff]
    %v314 = vld [vmem:[#allocation2 + $0x208] sm:$0xff]
    %v315 = vld [vmem:[#allocation2 + $0x210] sm:$0xff]
    %v316 = vld [vmem:[#allocation2 + $0x218] sm:$0xff]
    %v317 = vld [vmem:[#allocation2 + $0x220] sm:$0xff]
    %v318 = vld [vmem:[#allocation2 + $0x228] sm:$0xff]
    %v319 = vld [vmem:[#allocation2 + $0x230] sm:$0xff]
    %v320 = vld [vmem:[#allocation2 + $0x238] sm:$0xff]
    %v321 = vld [vmem:[#allocation2 + $0x240] sm:$0xff]
    %v322 = vld [vmem:[#allocation2 + $0x248] sm:$0xff]
    %v323 = vld [vmem:[#allocation2 + $0x250] sm:$0xff]
    %v324 = vld [vmem:[#allocation2 + $0x258] sm:$0xff]
    %v325 = vld [vmem:[#allocation2 + $0x260] sm:$0xff]
    %v326 = vld [vmem:[#allocation2 + $0x268] sm:$0xff]
    %v327 = vld [vmem:[#allocation2 + $0x270] sm:$0xff]
    %v328 = vld [vmem:[#allocation2 + $0x278] sm:$0xff]
    %v329 = vld [vmem:[#allocation2 + $0x280] sm:$0xff]
    %v330 = vld [vmem:[#allocation2 + $0x288] sm:$0xff]
    %v331 = vld [vmem:[#allocation2 + $0x290] sm:$0xff]
    %v332 = vld [vmem:[#allocation2 + $0x298] sm:$0xff]
    %v333 = vld [vmem:[#allocation2 + $0x2a0] sm:$0xff]
    %v334 = vld [vmem:[#allocation2 + $0x2a8] sm:$0xff]
    %v335 = vld [vmem:[#allocation2 + $0x2b0] sm:$0xff]
    %v336 = vld [vmem:[#allocation2 + $0x2b8] sm:$0xff]
    %v337 = vld [vmem:[#allocation2 + $0x2c0] sm:$0xff]
    %v338 = vld [vmem:[#allocation2 + $0x2c8] sm:$0xff]
    %v339 = vld [vmem:[#allocation2 + $0x2d0] sm:$0xff]
    %v340 = vld [vmem:[#allocation2 + $0x2d8] sm:$0xff]
    %v341 = vld [vmem:[#allocation2 + $0x2e0] sm:$0xff]
    %v342 = vld [vmem:[#allocation2 + $0x2e8] sm:$0xff]
    %v343 = vld [vmem:[#allocation2 + $0x2f0] sm:$0xff]
    %v344 = vld [vmem:[#allocation2 + $0x2f8] sm:$0xff]
    %v345 = vld [vmem:[#allocation2 + $0x300] sm:$0xff]
    %v346 = vld [vmem:[#allocation2 + $0x308] sm:$0xff]
    %v347 = vld [vmem:[#allocation2 + $0x310] sm:$0xff]
    %v348 = vld [vmem:[#allocation2 + $0x318] sm:$0xff]
    %v349 = vld [vmem:[#allocation2 + $0x320] sm:$0xff]
    %v350 = vld [vmem:[#allocation2 + $0x328] sm:$0xff]
    %v351 = vld [vmem:[#allocation2 + $0x330] sm:$0xff]
    %v352 = vld [vmem:[#allocation2 + $0x338] sm:$0xff]
    %v353 = vld [vmem:[#allocation2 + $0x340] sm:$0xff]
    %v354 = vld [vmem:[#allocation2 + $0x348] sm:$0xff]
    %v355 = vld [vmem:[#allocation2 + $0x350] sm:$0xff]
    %v356 = vld [vmem:[#allocation2 + $0x358] sm:$0xff]
    %v357 = vld [vmem:[#allocation2 + $0x360] sm:$0xff]
    %v358 = vld [vmem:[#allocation2 + $0x368] sm:$0xff]
    %v359 = vld [vmem:[#allocation2 + $0x370] sm:$0xff]
    %v360 = vld [vmem:[#allocation2 + $0x378] sm:$0xff]
    %v361 = vld [vmem:[#allocation2 + $0x380] sm:$0xff]
    %v362 = vld [vmem:[#allocation2 + $0x388] sm:$0xff]
    %v363 = vld [vmem:[#allocation2 + $0x390] sm:$0xff]
    %v364 = vld [vmem:[#allocation2 + $0x398] sm:$0xff]
    %v365 = vld [vmem:[#allocation2 + $0x3a0] sm:$0xff]
    %v366 = vld [vmem:[#allocation2 + $0x3a8] sm:$0xff]
    %v367 = vld [vmem:[#allocation2 + $0x3b0] sm:$0xff]
    %v368 = vld [vmem:[#allocation2 + $0x3b8] sm:$0xff]
    %v369 = vld [vmem:[#allocation2 + $0x3c0] sm:$0xff]
    %v370 = vld [vmem:[#allocation2 + $0x3c8] sm:$0xff]
    %v371 = vld [vmem:[#allocation2 + $0x3d0] sm:$0xff]
    %v372 = vld [vmem:[#allocation2 + $0x3d8] sm:$0xff]
    %v373 = vld [vmem:[#allocation2 + $0x3e0] sm:$0xff]
    %v374 = vld [vmem:[#allocation2 + $0x3e8] sm:$0xff]
    %v375 = vld [vmem:[#allocation2 + $0x3f0] sm:$0xff]
    %v376 = vld [vmem:[#allocation2 + $0x3f8] sm:$0xff]
    %v377 = vld [vmem:[#allocation2 + $0x400] sm:$0xff]
    %v378 = vld [vmem:[#allocation2 + $0x408] sm:$0xff]
    %v379 = vld [vmem:[#allocation2 + $0x410] sm:$0xff]
    %v380 = vld [vmem:[#allocation2 + $0x418] sm:$0xff]
    %v381 = vld [vmem:[#allocation2 + $0x420] sm:$0xff]
    %v382 = vld [vmem:[#allocation2 + $0x428] sm:$0xff]
    %v383 = vld [vmem:[#allocation2 + $0x430] sm:$0xff]
    %v384 = vld [vmem:[#allocation2 + $0x438] sm:$0xff]
    %v385 = vld [vmem:[#allocation2 + $0x440] sm:$0xff]
    %v386 = vld [vmem:[#allocation2 + $0x448] sm:$0xff]
    %v387 = vld [vmem:[#allocation2 + $0x450] sm:$0xff]
    %v388 = vld [vmem:[#allocation2 + $0x458] sm:$0xff]
    %v389 = vld [vmem:[#allocation2 + $0x460] sm:$0xff]
    %v390 = vld [vmem:[#allocation2 + $0x468] sm:$0xff]
    %v391 = vld [vmem:[#allocation2 + $0x470] sm:$0xff]
    %v392 = vld [vmem:[#allocation2 + $0x478] sm:$0xff]
    %v393 = vld [vmem:[#allocation2 + $0x480] sm:$0xff]
    %v394 = vld [vmem:[#allocation2 + $0x488] sm:$0xff]
    %v395 = vld [vmem:[#allocation2 + $0x490] sm:$0xff]
    %v396 = vld [vmem:[#allocation2 + $0x498] sm:$0xff]
    %v397 = vld [vmem:[#allocation2 + $0x4a0] sm:$0xff]
    %v398 = vld [vmem:[#allocation2 + $0x4a8] sm:$0xff]
    %v399 = vld [vmem:[#allocation2 + $0x4b0] sm:$0xff]
    %v400 = vld [vmem:[#allocation2 + $0x4b8] sm:$0xff]
    %v401 = vld [vmem:[#allocation2 + $0x4c0] sm:$0xff]
    %v402 = vld [vmem:[#allocation2 + $0x4c8] sm:$0xff]
    %v403 = vld [vmem:[#allocation2 + $0x4d0] sm:$0xff]
    %v404 = vld [vmem:[#allocation2 + $0x4d8] sm:$0xff]
    %v405 = vld [vmem:[#allocation2 + $0x4e0] sm:$0xff]
    %v406 = vld [vmem:[#allocation2 + $0x4e8] sm:$0xff]
    %v407 = vld [vmem:[#allocation2 + $0x4f0] sm:$0xff]
    %v408 = vld [vmem:[#allocation2 + $0x4f8] sm:$0xff]
    %v409 = vld [vmem:[#allocation2 + $0x500] sm:$0xff]
    %v410 = vld [vmem:[#allocation2 + $0x508] sm:$0xff]
    %v411 = vld [vmem:[#allocation2 + $0x510] sm:$0xff]
    %v412 = vld [vmem:[#allocation2 + $0x518] sm:$0xff]
    %v413 = vld [vmem:[#allocation2 + $0x520] sm:$0xff]
    %v414 = vld [vmem:[#allocation2 + $0x528] sm:$0xff]
    %v415 = vld [vmem:[#allocation2 + $0x530] sm:$0xff]
    %v416 = vld [vmem:[#allocation2 + $0x538] sm:$0xff]
    %v417 = vld [vmem:[#allocation2 + $0x540] sm:$0xff]
    %v418 = vld [vmem:[#allocation2 + $0x548] sm:$0xff]
    %v419 = vld [vmem:[#allocation2 + $0x550] sm:$0xff]
    %v420 = vld [vmem:[#allocation2 + $0x558] sm:$0xff]
    %v421 = vld [vmem:[#allocation2 + $0x560] sm:$0xff]
    %v422 = vld [vmem:[#allocation2 + $0x568] sm:$0xff]
    %v423 = vld [vmem:[#allocation2 + $0x570] sm:$0xff]
    %v424 = vld [vmem:[#allocation2 + $0x578] sm:$0xff]
    %v425 = vld [vmem:[#allocation2 + $0x580] sm:$0xff]
    %v426 = vld [vmem:[#allocation2 + $0x588] sm:$0xff]
    %v427 = vld [vmem:[#allocation2 + $0x590] sm:$0xff]
    %v428 = vld [vmem:[#allocation2 + $0x598] sm:$0xff]
    %v429 = vld [vmem:[#allocation2 + $0x5a0] sm:$0xff]
    %v430 = vld [vmem:[#allocation2 + $0x5a8] sm:$0xff]
    %v431 = vld [vmem:[#allocation2 + $0x5b0] sm:$0xff]
    %v432 = vld [vmem:[#allocation2 + $0x5b8] sm:$0xff]
    %v433 = vld [vmem:[#allocation2 + $0x5c0] sm:$0xff]
    %v434 = vld [vmem:[#allocation2 + $0x5c8] sm:$0xff]
    %v435 = vld [vmem:[#allocation2 + $0x5d0] sm:$0xff]
    %v436 = vld [vmem:[#allocation2 + $0x5d8] sm:$0xff]
    %v437 = vld [vmem:[#allocation2 + $0x5e0] sm:$0xff]
    %v438 = vld [vmem:[#allocation2 + $0x5e8] sm:$0xff]
    %v439 = vld [vmem:[#allocation2 + $0x5f0] sm:$0xff]
    %v440 = vld [vmem:[#allocation2 + $0x5f8] sm:$0xff]
    %v441 = vld [vmem:[#allocation2 + $0x600] sm:$0xff]
    %v442 = vld [vmem:[#allocation2 + $0x608] sm:$0xff]
    %v443 = vld [vmem:[#allocation2 + $0x610] sm:$0xff]
    %v444 = vld [vmem:[#allocation2 + $0x618] sm:$0xff]
    %v445 = vld [vmem:[#allocation2 + $0x620] sm:$0xff]
    %v446 = vld [vmem:[#allocation2 + $0x628] sm:$0xff]
    %v447 = vld [vmem:[#allocation2 + $0x630] sm:$0xff]
    %v448 = vld [vmem:[#allocation2 + $0x638] sm:$0xff]
    %v449 = vld [vmem:[#allocation2 + $0x640] sm:$0xff]
    %v450 = vld [vmem:[#allocation2 + $0x648] sm:$0xff]
    %v451 = vld [vmem:[#allocation2 + $0x650] sm:$0xff]
    %v452 = vld [vmem:[#allocation2 + $0x658] sm:$0xff]
    %v453 = vld [vmem:[#allocation2 + $0x660] sm:$0xff]
    %v454 = vld [vmem:[#allocation2 + $0x668] sm:$0xff]
    %v455 = vld [vmem:[#allocation2 + $0x670] sm:$0xff]
    %v456 = vld [vmem:[#allocation2 + $0x678] sm:$0xff]
    %v457 = vld [vmem:[#allocation2 + $0x680] sm:$0xff]
    %v458 = vld [vmem:[#allocation2 + $0x688] sm:$0xff]
    %v459 = vld [vmem:[#allocation2 + $0x690] sm:$0xff]
    %v460 = vld [vmem:[#allocation2 + $0x698] sm:$0xff]
    %v461 = vld [vmem:[#allocation2 + $0x6a0] sm:$0xff]
    %v462 = vld [vmem:[#allocation2 + $0x6a8] sm:$0xff]
    %v463 = vld [vmem:[#allocation2 + $0x6b0] sm:$0xff]
    %v464 = vld [vmem:[#allocation2 + $0x6b8] sm:$0xff]
    %v465 = vld [vmem:[#allocation2 + $0x6c0] sm:$0xff]
    %v466 = vld [vmem:[#allocation2 + $0x6c8] sm:$0xff]
    %v467 = vld [vmem:[#allocation2 + $0x6d0] sm:$0xff]
    %v468 = vld [vmem:[#allocation2 + $0x6d8] sm:$0xff]
    %v469 = vld [vmem:[#allocation2 + $0x6e0] sm:$0xff]
    %v470 = vld [vmem:[#allocation2 + $0x6e8] sm:$0xff]
    %v471 = vld [vmem:[#allocation2 + $0x6f0] sm:$0xff]
    %v472 = vld [vmem:[#allocation2 + $0x6f8] sm:$0xff]
    %v473 = vld [vmem:[#allocation2 + $0x700] sm:$0xff]
    %v474 = vld [vmem:[#allocation2 + $0x708] sm:$0xff]
    %v475 = vld [vmem:[#allocation2 + $0x710] sm:$0xff]
    %v476 = vld [vmem:[#allocation2 + $0x718] sm:$0xff]
    %v477 = vld [vmem:[#allocation2 + $0x720] sm:$0xff]
    %v478 = vld [vmem:[#allocation2 + $0x728] sm:$0xff]
    %v479 = vld [vmem:[#allocation2 + $0x730] sm:$0xff]
    %v480 = vld [vmem:[#allocation2 + $0x738] sm:$0xff]
    %v481 = vld [vmem:[#allocation2 + $0x740] sm:$0xff]
    %v482 = vld [vmem:[#allocation2 + $0x748] sm:$0xff]
    %v483 = vld [vmem:[#allocation2 + $0x750] sm:$0xff]
    %v484 = vld [vmem:[#allocation2 + $0x758] sm:$0xff]
    %v485 = vld [vmem:[#allocation2 + $0x760] sm:$0xff]
    %v486 = vld [vmem:[#allocation2 + $0x768] sm:$0xff]
    %v487 = vld [vmem:[#allocation2 + $0x770] sm:$0xff]
    %v488 = vld [vmem:[#allocation2 + $0x778] sm:$0xff]
    %v489 = vld [vmem:[#allocation2 + $0x780] sm:$0xff]
    %v490 = vld [vmem:[#allocation2 + $0x788] sm:$0xff]
    %v491 = vld [vmem:[#allocation2 + $0x790] sm:$0xff]
    %v492 = vld [vmem:[#allocation2 + $0x798] sm:$0xff]
    %v493 = vld [vmem:[#allocation2 + $0x7a0] sm:$0xff]
    %v494 = vld [vmem:[#allocation2 + $0x7a8] sm:$0xff]
    %v495 = vld [vmem:[#allocation2 + $0x7b0] sm:$0xff]
    %v496 = vld [vmem:[#allocation2 + $0x7b8] sm:$0xff]
    %v497 = vld [vmem:[#allocation2 + $0x7c0] sm:$0xff]
    %v498 = vld [vmem:[#allocation2 + $0x7c8] sm:$0xff]
    %v499 = vld [vmem:[#allocation2 + $0x7d0] sm:$0xff]
    %v500 = vld [vmem:[#allocation2 + $0x7d8] sm:$0xff]
    %v501 = vld [vmem:[#allocation2 + $0x7e0] sm:$0xff]
    %v502 = vld [vmem:[#allocation2 + $0x7e8] sm:$0xff]
    %v503 = vld [vmem:[#allocation2 + $0x7f0] sm:$0xff]
    %v504 = vld [vmem:[#allocation2 + $0x7f8] sm:$0xff]
    %v505 = vld [vmem:[#allocation2 + $0x800] sm:$0xff]
    %v506 = vld [vmem:[#allocation2 + $0x808] sm:$0xff]
    %v507 = vld [vmem:[#allocation2 + $0x810] sm:$0xff]
    %v508 = vld [vmem:[#allocation2 + $0x818] sm:$0xff]
    %v509 = vld [vmem:[#allocation2 + $0x820] sm:$0xff]
    %v510 = vld [vmem:[#allocation2 + $0x828] sm:$0xff]
    %v511 = vld [vmem:[#allocation2 + $0x830] sm:$0xff]
    %v512 = vld [vmem:[#allocation2 + $0x838] sm:$0xff]
    %v513 = vld [vmem:[#allocation2 + $0x840] sm:$0xff]
    %v514 = vld [vmem:[#allocation2 + $0x848] sm:$0xff]
    %v515 = vld [vmem:[#allocation2 + $0x850] sm:$0xff]
    %v516 = vld [vmem:[#allocation2 + $0x858] sm:$0xff]
    %v517 = vld [vmem:[#allocation2 + $0x860] sm:$0xff]
    %v518 = vld [vmem:[#allocation2 + $0x868] sm:$0xff]
    %v519 = vld [vmem:[#allocation2 + $0x870] sm:$0xff]
    %v520 = vld [vmem:[#allocation2 + $0x878] sm:$0xff]
    %v521 = vld [vmem:[#allocation2 + $0x880] sm:$0xff]
    %v522 = vld [vmem:[#allocation2 + $0x888] sm:$0xff]
    %v523 = vld [vmem:[#allocation2 + $0x890] sm:$0xff]
    %v524 = vld [vmem:[#allocation2 + $0x898] sm:$0xff]
    %v525 = vld [vmem:[#allocation2 + $0x8a0] sm:$0xff]
    %v526 = vld [vmem:[#allocation2 + $0x8a8] sm:$0xff]
    %v527 = vld [vmem:[#allocation2 + $0x8b0] sm:$0xff]
    %v528 = vld [vmem:[#allocation2 + $0x8b8] sm:$0xff]
    %v529 = vld [vmem:[#allocation2 + $0x8c0] sm:$0xff]
    %v530 = vld [vmem:[#allocation2 + $0x8c8] sm:$0xff]
    %v531 = vld [vmem:[#allocation2 + $0x8d0] sm:$0xff]
    %v532 = vld [vmem:[#allocation2 + $0x8d8] sm:$0xff]
    %v533 = vld [vmem:[#allocation2 + $0x8e0] sm:$0xff]
    %v534 = vld [vmem:[#allocation2 + $0x8e8] sm:$0xff]
    %v535 = vld [vmem:[#allocation2 + $0x8f0] sm:$0xff]
    %v536 = vld [vmem:[#allocation2 + $0x8f8] sm:$0xff]
    %v537 = vld [vmem:[#allocation2 + $0x900] sm:$0xff]
    %v538 = vld [vmem:[#allocation2 + $0x908] sm:$0xff]
    %v539 = vld [vmem:[#allocation2 + $0x910] sm:$0xff]
    %v540 = vld [vmem:[#allocation2 + $0x918] sm:$0xff]
    %v541 = vld [vmem:[#allocation2 + $0x920] sm:$0xff]
    %v542 = vld [vmem:[#allocation2 + $0x928] sm:$0xff]
    %v543 = vld [vmem:[#allocation2 + $0x930] sm:$0xff]
    %v544 = vld [vmem:[#allocation2 + $0x938] sm:$0xff]
    %v545 = vld [vmem:[#allocation2 + $0x940] sm:$0xff]
    %v546 = vld [vmem:[#allocation2 + $0x948] sm:$0xff]
    %v547 = vld [vmem:[#allocation2 + $0x950] sm:$0xff]
    %v548 = vld [vmem:[#allocation2 + $0x958] sm:$0xff]
    %v549 = vld [vmem:[#allocation2 + $0x960] sm:$0xff]
    %v550 = vld [vmem:[#allocation2 + $0x968] sm:$0xff]
    %v551 = vld [vmem:[#allocation2 + $0x970] sm:$0xff]
    %v552 = vld [vmem:[#allocation2 + $0x978] sm:$0xff]
    %v553 = vld [vmem:[#allocation2 + $0x980] sm:$0xff]
    %v554 = vld [vmem:[#allocation2 + $0x988] sm:$0xff]
    %v555 = vld [vmem:[#allocation2 + $0x990] sm:$0xff]
    %v556 = vld [vmem:[#allocation2 + $0x998] sm:$0xff]
    %v557 = vld [vmem:[#allocation2 + $0x9a0] sm:$0xff]
    %v558 = vld [vmem:[#allocation2 + $0x9a8] sm:$0xff]
    %v559 = vld [vmem:[#allocation2 + $0x9b0] sm:$0xff]
    %v560 = vld [vmem:[#allocation2 + $0x9b8] sm:$0xff]
    %v561 = vld [vmem:[#allocation2 + $0x9c0] sm:$0xff]
    %v562 = vld [vmem:[#allocation2 + $0x9c8] sm:$0xff]
    %v563 = vld [vmem:[#allocation2 + $0x9d0] sm:$0xff]
    %v564 = vld [vmem:[#allocation2 + $0x9d8] sm:$0xff]
    %v565 = vld [vmem:[#allocation2 + $0x9e0] sm:$0xff]
    %v566 = vld [vmem:[#allocation2 + $0x9e8] sm:$0xff]
    %v567 = vld [vmem:[#allocation2 + $0x9f0] sm:$0xff]
    %v568 = vld [vmem:[#allocation2 + $0x9f8] sm:$0xff]
    %v569 = vld [vmem:[#allocation2 + $0xa00] sm:$0xff]
    %v570 = vld [vmem:[#allocation2 + $0xa08] sm:$0xff]
    %v571 = vld [vmem:[#allocation2 + $0xa10] sm:$0xff]
    %v572 = vld [vmem:[#allocation2 + $0xa18] sm:$0xff]
    %v573 = vld [vmem:[#allocation2 + $0xa20] sm:$0xff]
    %v574 = vld [vmem:[#allocation2 + $0xa28] sm:$0xff]
    %v575 = vld [vmem:[#allocation2 + $0xa30] sm:$0xff]
    %v576 = vld [vmem:[#allocation2 + $0xa38] sm:$0xff]
    %v577 = vld [vmem:[#allocation2 + $0xa40] sm:$0xff]
    %v578 = vld [vmem:[#allocation2 + $0xa48] sm:$0xff]
    %v579 = vld [vmem:[#allocation2 + $0xa50] sm:$0xff]
    %v580 = vld [vmem:[#allocation2 + $0xa58] sm:$0xff]
    %v581 = vld [vmem:[#allocation2 + $0xa60] sm:$0xff]
    %v582 = vld [vmem:[#allocation2 + $0xa68] sm:$0xff]
    %v583 = vld [vmem:[#allocation2 + $0xa70] sm:$0xff]
    %v584 = vld [vmem:[#allocation2 + $0xa78] sm:$0xff]
    %v585 = vld [vmem:[#allocation2 + $0xa80] sm:$0xff]
    %v586 = vld [vmem:[#allocation2 + $0xa88] sm:$0xff]
    %v587 = vld [vmem:[#allocation2 + $0xa90] sm:$0xff]
    %v588 = vld [vmem:[#allocation2 + $0xa98] sm:$0xff]
    %v589 = vld [vmem:[#allocation2 + $0xaa0] sm:$0xff]
    %v590 = vld [vmem:[#allocation2 + $0xaa8] sm:$0xff]
    %v591 = vld [vmem:[#allocation2 + $0xab0] sm:$0xff]
    %v592 = vld [vmem:[#allocation2 + $0xab8] sm:$0xff]
    %v593 = vld [vmem:[#allocation2 + $0xac0] sm:$0xff]
    %v594 = vld [vmem:[#allocation2 + $0xac8] sm:$0xff]
    %v595 = vld [vmem:[#allocation2 + $0xad0] sm:$0xff]
    %v596 = vld [vmem:[#allocation2 + $0xad8] sm:$0xff]
    %v597 = vld [vmem:[#allocation2 + $0xae0] sm:$0xff]
    %v598 = vld [vmem:[#allocation2 + $0xae8] sm:$0xff]
    %v599 = vld [vmem:[#allocation2 + $0xaf0] sm:$0xff]
    %v600 = vld [vmem:[#allocation2 + $0xaf8] sm:$0xff]
    %v601 = vld [vmem:[#allocation2 + $0xb00] sm:$0xff]
    %v602 = vld [vmem:[#allocation2 + $0xb08] sm:$0xff]
    %v603 = vld [vmem:[#allocation2 + $0xb10] sm:$0xff]
    %v604 = vld [vmem:[#allocation2 + $0xb18] sm:$0xff]
    %v605 = vld [vmem:[#allocation2 + $0xb20] sm:$0xff]
    %v606 = vld [vmem:[#allocation2 + $0xb28] sm:$0xff]
    %v607 = vld [vmem:[#allocation2 + $0xb30] sm:$0xff]
    %v608 = vld [vmem:[#allocation2 + $0xb38] sm:$0xff]
    %v609 = vld [vmem:[#allocation2 + $0xb40] sm:$0xff]
    %v610 = vld [vmem:[#allocation2 + $0xb48] sm:$0xff]
    %v611 = vld [vmem:[#allocation2 + $0xb50] sm:$0xff]
    %v612 = vld [vmem:[#allocation2 + $0xb58] sm:$0xff]
    %v613 = vld [vmem:[#allocation2 + $0xb60] sm:$0xff]
    %v614 = vld [vmem:[#allocation2 + $0xb68] sm:$0xff]
    %v615 = vld [vmem:[#allocation2 + $0xb70] sm:$0xff]
    %v616 = vld [vmem:[#allocation2 + $0xb78] sm:$0xff]
    %v617 = vld [vmem:[#allocation2 + $0xb80] sm:$0xff]
    %v618 = vld [vmem:[#allocation2 + $0xb88] sm:$0xff]
    %v619 = vld [vmem:[#allocation2 + $0xb90] sm:$0xff]
    %v620 = vld [vmem:[#allocation2 + $0xb98] sm:$0xff]
    %v621 = vld [vmem:[#allocation2 + $0xba0] sm:$0xff]
    %v622 = vld [vmem:[#allocation2 + $0xba8] sm:$0xff]
    %v623 = vld [vmem:[#allocation2 + $0xbb0] sm:$0xff]
    %v624 = vld [vmem:[#allocation2 + $0xbb8] sm:$0xff]
    %v625 = vld [vmem:[#allocation2 + $0xbc0] sm:$0xff]
    %v626 = vld [vmem:[#allocation2 + $0xbc8] sm:$0xff]
    %v627 = vld [vmem:[#allocation2 + $0xbd0] sm:$0xff]
    %v628 = vld [vmem:[#allocation2 + $0xbd8] sm:$0xff]
    %v629 = vld [vmem:[#allocation2 + $0xbe0] sm:$0xff]
    %v630 = vld [vmem:[#allocation2 + $0xbe8] sm:$0xff]
    %v631 = vld [vmem:[#allocation2 + $0xbf0] sm:$0xff]
    %v632 = vld [vmem:[#allocation2 + $0xbf8] sm:$0xff]
    %v633 = vld [vmem:[#allocation2 + $0xc00] sm:$0xff]
    %v634 = vld [vmem:[#allocation2 + $0xc08] sm:$0xff]
    %v635 = vld [vmem:[#allocation2 + $0xc10] sm:$0xff]
    %v636 = vld [vmem:[#allocation2 + $0xc18] sm:$0xff]
    %v637 = vld [vmem:[#allocation2 + $0xc20] sm:$0xff]
    %v638 = vld [vmem:[#allocation2 + $0xc28] sm:$0xff]
    %v639 = vld [vmem:[#allocation2 + $0xc30] sm:$0xff]
    %v640 = vld [vmem:[#allocation2 + $0xc38] sm:$0xff]
    %v641 = vld [vmem:[#allocation2 + $0xc40] sm:$0xff]
    %v642 = vld [vmem:[#allocation2 + $0xc48] sm:$0xff]
    %v643 = vld [vmem:[#allocation2 + $0xc50] sm:$0xff]
    %v644 = vld [vmem:[#allocation2 + $0xc58] sm:$0xff]
    %v645 = vld [vmem:[#allocation2 + $0xc60] sm:$0xff]
    %v646 = vld [vmem:[#allocation2 + $0xc68] sm:$0xff]
    %v647 = vld [vmem:[#allocation2 + $0xc70] sm:$0xff]
    %v648 = vld [vmem:[#allocation2 + $0xc78] sm:$0xff]
    %v649 = vld [vmem:[#allocation2 + $0xc80] sm:$0xff]
    %v650 = vld [vmem:[#allocation2 + $0xc88] sm:$0xff]
    %v651 = vld [vmem:[#allocation2 + $0xc90] sm:$0xff]
    %v652 = vld [vmem:[#allocation2 + $0xc98] sm:$0xff]
    %v653 = vld [vmem:[#allocation2 + $0xca0] sm:$0xff]
    %v654 = vld [vmem:[#allocation2 + $0xca8] sm:$0xff]
    %v655 = vld [vmem:[#allocation2 + $0xcb0] sm:$0xff]
    %v656 = vld [vmem:[#allocation2 + $0xcb8] sm:$0xff]
    %v657 = vld [vmem:[#allocation2 + $0xcc0] sm:$0xff]
    %v658 = vld [vmem:[#allocation2 + $0xcc8] sm:$0xff]
    %v659 = vld [vmem:[#allocation2 + $0xcd0] sm:$0xff]
    %v660 = vld [vmem:[#allocation2 + $0xcd8] sm:$0xff]
    %v661 = vld [vmem:[#allocation2 + $0xce0] sm:$0xff]
    %v662 = vld [vmem:[#allocation2 + $0xce8] sm:$0xff]
    %v663 = vld [vmem:[#allocation2 + $0xcf0] sm:$0xff]
    %v664 = vld [vmem:[#allocation2 + $0xcf8] sm:$0xff]
    %v665 = vld [vmem:[#allocation2 + $0xd00] sm:$0xff]
    %v666 = vld [vmem:[#allocation2 + $0xd08] sm:$0xff]
    %v667 = vld [vmem:[#allocation2 + $0xd10] sm:$0xff]
    %v668 = vld [vmem:[#allocation2 + $0xd18] sm:$0xff]
    %v669 = vld [vmem:[#allocation2 + $0xd20] sm:$0xff]
    %v670 = vld [vmem:[#allocation2 + $0xd28] sm:$0xff]
    %v671 = vld [vmem:[#allocation2 + $0xd30] sm:$0xff]
    %v672 = vld [vmem:[#allocation2 + $0xd38] sm:$0xff]
    %v673 = vld [vmem:[#allocation2 + $0xd40] sm:$0xff]
    %v674 = vld [vmem:[#allocation2 + $0xd48] sm:$0xff]
    %v675 = vld [vmem:[#allocation2 + $0xd50] sm:$0xff]
    %v676 = vld [vmem:[#allocation2 + $0xd58] sm:$0xff]
    %v677 = vld [vmem:[#allocation2 + $0xd60] sm:$0xff]
    %v678 = vld [vmem:[#allocation2 + $0xd68] sm:$0xff]
    %v679 = vld [vmem:[#allocation2 + $0xd70] sm:$0xff]
    %v680 = vld [vmem:[#allocation2 + $0xd78] sm:$0xff]
    %v681 = vld [vmem:[#allocation2 + $0xd80] sm:$0xff]
    %v682 = vld [vmem:[#allocation2 + $0xd88] sm:$0xff]
    %v683 = vld [vmem:[#allocation2 + $0xd90] sm:$0xff]
    %v684 = vld [vmem:[#allocation2 + $0xd98] sm:$0xff]
    %v685 = vld [vmem:[#allocation2 + $0xda0] sm:$0xff]
    %v686 = vld [vmem:[#allocation2 + $0xda8] sm:$0xff]
    %v687 = vld [vmem:[#allocation2 + $0xdb0] sm:$0xff]
    %v688 = vld [vmem:[#allocation2 + $0xdb8] sm:$0xff]
    %v689 = vld [vmem:[#allocation2 + $0xdc0] sm:$0xff]
    %v690 = vld [vmem:[#allocation2 + $0xdc8] sm:$0xff]
    %v691 = vld [vmem:[#allocation2 + $0xdd0] sm:$0xff]
    %v692 = vld [vmem:[#allocation2 + $0xdd8] sm:$0xff]
    %v693 = vld [vmem:[#allocation2 + $0xde0] sm:$0xff]
    %v694 = vld [vmem:[#allocation2 + $0xde8] sm:$0xff]
    %v695 = vld [vmem:[#allocation2 + $0xdf0] sm:$0xff]
    %v696 = vld [vmem:[#allocation2 + $0xdf8] sm:$0xff]
    %v697 = vld [vmem:[#allocation2 + $0xe00] sm:$0xff]
    %v698 = vld [vmem:[#allocation2 + $0xe08] sm:$0xff]
    %v699 = vld [vmem:[#allocation2 + $0xe10] sm:$0xff]
    %v700 = vld [vmem:[#allocation2 + $0xe18] sm:$0xff]
    %v701 = vld [vmem:[#allocation2 + $0xe20] sm:$0xff]
    %v702 = vld [vmem:[#allocation2 + $0xe28] sm:$0xff]
    %v703 = vld [vmem:[#allocation2 + $0xe30] sm:$0xff]
    %v704 = vld [vmem:[#allocation2 + $0xe38] sm:$0xff]
    %v705 = vld [vmem:[#allocation2 + $0xe40] sm:$0xff]
    %v706 = vld [vmem:[#allocation2 + $0xe48] sm:$0xff]
    %v707 = vld [vmem:[#allocation2 + $0xe50] sm:$0xff]
    %v708 = vld [vmem:[#allocation2 + $0xe58] sm:$0xff]
    %v709 = vld [vmem:[#allocation2 + $0xe60] sm:$0xff]
    %v710 = vld [vmem:[#allocation2 + $0xe68] sm:$0xff]
    %v711 = vld [vmem:[#allocation2 + $0xe70] sm:$0xff]
    %v712 = vld [vmem:[#allocation2 + $0xe78] sm:$0xff]
    %v713 = vld [vmem:[#allocation2 + $0xe80] sm:$0xff]
    %v714 = vld [vmem:[#allocation2 + $0xe88] sm:$0xff]
    %v715 = vld [vmem:[#allocation2 + $0xe90] sm:$0xff]
    %v716 = vld [vmem:[#allocation2 + $0xe98] sm:$0xff]
    %v717 = vld [vmem:[#allocation2 + $0xea0] sm:$0xff]
    %v718 = vld [vmem:[#allocation2 + $0xea8] sm:$0xff]
    %v719 = vld [vmem:[#allocation2 + $0xeb0] sm:$0xff]
    %v720 = vld [vmem:[#allocation2 + $0xeb8] sm:$0xff]
    %v721 = vld [vmem:[#allocation2 + $0xec0] sm:$0xff]
    %v722 = vld [vmem:[#allocation2 + $0xec8] sm:$0xff]
    %v723 = vld [vmem:[#allocation2 + $0xed0] sm:$0xff]
    %v724 = vld [vmem:[#allocation2 + $0xed8] sm:$0xff]
    %v725 = vld [vmem:[#allocation2 + $0xee0] sm:$0xff]
    %v726 = vld [vmem:[#allocation2 + $0xee8] sm:$0xff]
    %v727 = vld [vmem:[#allocation2 + $0xef0] sm:$0xff]
    %v728 = vld [vmem:[#allocation2 + $0xef8] sm:$0xff]
    %v729 = vld [vmem:[#allocation2 + $0xf00] sm:$0xff]
    %v730 = vld [vmem:[#allocation2 + $0xf08] sm:$0xff]
    %v731 = vld [vmem:[#allocation2 + $0xf10] sm:$0xff]
    %v732 = vld [vmem:[#allocation2 + $0xf18] sm:$0xff]
    %v733 = vld [vmem:[#allocation2 + $0xf20] sm:$0xff]
    %v734 = vld [vmem:[#allocation2 + $0xf28] sm:$0xff]
    %v735 = vld [vmem:[#allocation2 + $0xf30] sm:$0xff]
    %v736 = vld [vmem:[#allocation2 + $0xf38] sm:$0xff]
    %v737 = vld [vmem:[#allocation2 + $0xf40] sm:$0xff]
    %v738 = vld [vmem:[#allocation2 + $0xf48] sm:$0xff]
    %v739 = vld [vmem:[#allocation2 + $0xf50] sm:$0xff]
    %v740 = vld [vmem:[#allocation2 + $0xf58] sm:$0xff]
    %v741 = vld [vmem:[#allocation2 + $0xf60] sm:$0xff]
    %v742 = vld [vmem:[#allocation2 + $0xf68] sm:$0xff]
    %v743 = vld [vmem:[#allocation2 + $0xf70] sm:$0xff]
    %v744 = vld [vmem:[#allocation2 + $0xf78] sm:$0xff]
    %v745 = vld [vmem:[#allocation2 + $0xf80] sm:$0xff]
    %v746 = vld [vmem:[#allocation2 + $0xf88] sm:$0xff]
    %v747 = vld [vmem:[#allocation2 + $0xf90] sm:$0xff]
    %v748 = vld [vmem:[#allocation2 + $0xf98] sm:$0xff]
    %v749 = vld [vmem:[#allocation2 + $0xfa0] sm:$0xff]
    %v750 = vld [vmem:[#allocation2 + $0xfa8] sm:$0xff]
    %v751 = vld [vmem:[#allocation2 + $0xfb0] sm:$0xff]
    %v752 = vld [vmem:[#allocation2 + $0xfb8] sm:$0xff]
    %v753 = vld [vmem:[#allocation2 + $0xfc0] sm:$0xff]
    %v754 = vld [vmem:[#allocation2 + $0xfc8] sm:$0xff]
    %v755 = vld [vmem:[#allocation2 + $0xfd0] sm:$0xff]
    %v756 = vld [vmem:[#allocation2 + $0xfd8] sm:$0xff]
    %v757 = vld [vmem:[#allocation2 + $0xfe0] sm:$0xff]
    %v758 = vld [vmem:[#allocation2 + $0xfe8] sm:$0xff]
    %v759 = vld [vmem:[#allocation2 + $0xff0] sm:$0xff]
    %v760 = vld [vmem:[#allocation2 + $0xff8] sm:$0xff]
    %v761 = vld [vmem:[#allocation2 + $0x1000] sm:$0xff]
    %v762 = vld [vmem:[#allocation2 + $0x1008] sm:$0xff]
    %v763 = vld [vmem:[#allocation2 + $0x1010] sm:$0xff]
    %v764 = vld [vmem:[#allocation2 + $0x1018] sm:$0xff]
    %v765 = vld [vmem:[#allocation2 + $0x1020] sm:$0xff]
    %v766 = vld [vmem:[#allocation2 + $0x1028] sm:$0xff]
    %v767 = vld [vmem:[#allocation2 + $0x1030] sm:$0xff]
    %v768 = vld [vmem:[#allocation2 + $0x1038] sm:$0xff]
    %v769 = vld [vmem:[#allocation2 + $0x1040] sm:$0xff]
    %v770 = vld [vmem:[#allocation2 + $0x1048] sm:$0xff]
    %v771 = vld [vmem:[#allocation2 + $0x1050] sm:$0xff]
    %v772 = vld [vmem:[#allocation2 + $0x1058] sm:$0xff]
    %v773 = vld [vmem:[#allocation2 + $0x1060] sm:$0xff]
    %v774 = vld [vmem:[#allocation2 + $0x1068] sm:$0xff]
    %v775 = vld [vmem:[#allocation2 + $0x1070] sm:$0xff]
    %v776 = vld [vmem:[#allocation2 + $0x1078] sm:$0xff]
    %v777 = vld [vmem:[#allocation2 + $0x1080] sm:$0xff]
    %v778 = vld [vmem:[#allocation2 + $0x1088] sm:$0xff]
    %v779 = vld [vmem:[#allocation2 + $0x1090] sm:$0xff]
    %v780 = vld [vmem:[#allocation2 + $0x1098] sm:$0xff]
    %v781 = vld [vmem:[#allocation2 + $0x10a0] sm:$0xff]
    %v782 = vld [vmem:[#allocation2 + $0x10a8] sm:$0xff]
    %v783 = vld [vmem:[#allocation2 + $0x10b0] sm:$0xff]
    %v784 = vld [vmem:[#allocation2 + $0x10b8] sm:$0xff]
    %v785 = vld [vmem:[#allocation2 + $0x10c0] sm:$0xff]
    %v786 = vld [vmem:[#allocation2 + $0x10c8] sm:$0xff]
    %v787 = vld [vmem:[#allocation2 + $0x10d0] sm:$0xff]
    %v788 = vld [vmem:[#allocation2 + $0x10d8] sm:$0xff]
    %v789 = vld [vmem:[#allocation2 + $0x10e0] sm:$0xff]
    %v790 = vld [vmem:[#allocation2 + $0x10e8] sm:$0xff]
    %v791 = vld [vmem:[#allocation2 + $0x10f0] sm:$0xff]
    %v792 = vld [vmem:[#allocation2 + $0x10f8] sm:$0xff]
    %v793 = vld [vmem:[#allocation2 + $0x1100] sm:$0xff]
    %v794 = vld [vmem:[#allocation2 + $0x1108] sm:$0xff]
    %v795 = vld [vmem:[#allocation2 + $0x1110] sm:$0xff]
    %v796 = vld [vmem:[#allocation2 + $0x1118] sm:$0xff]
    %v797 = vld [vmem:[#allocation2 + $0x1120] sm:$0xff]
    %v798 = vld [vmem:[#allocation2 + $0x1128] sm:$0xff]
    %v799 = vld [vmem:[#allocation2 + $0x1130] sm:$0xff]
    %v800 = vld [vmem:[#allocation2 + $0x1138] sm:$0xff]
    %v801 = vld [vmem:[#allocation2 + $0x1140] sm:$0xff]
    %v802 = vld [vmem:[#allocation2 + $0x1148] sm:$0xff]
    %v803 = vld [vmem:[#allocation2 + $0x1150] sm:$0xff]
    %v804 = vld [vmem:[#allocation2 + $0x1158] sm:$0xff]
    %v805 = vld [vmem:[#allocation2 + $0x1160] sm:$0xff]
    %v806 = vld [vmem:[#allocation2 + $0x1168] sm:$0xff]
    %v807 = vld [vmem:[#allocation2 + $0x1170] sm:$0xff]
    %v808 = vld [vmem:[#allocation2 + $0x1178] sm:$0xff]
    %v809 = vld [vmem:[#allocation2 + $0x1180] sm:$0xff]
    %v810 = vld [vmem:[#allocation2 + $0x1188] sm:$0xff]
    %v811 = vld [vmem:[#allocation2 + $0x1190] sm:$0xff]
    %v812 = vld [vmem:[#allocation2 + $0x1198] sm:$0xff]
    %v813 = vld [vmem:[#allocation2 + $0x11a0] sm:$0xff]
    %v814 = vld [vmem:[#allocation2 + $0x11a8] sm:$0xff]
    %v815 = vld [vmem:[#allocation2 + $0x11b0] sm:$0xff]
    %v816 = vld [vmem:[#allocation2 + $0x11b8] sm:$0xff]
    %v817 = vld [vmem:[#allocation2 + $0x11c0] sm:$0xff]
    %v818 = vld [vmem:[#allocation2 + $0x11c8] sm:$0xff]
    %v819 = vld [vmem:[#allocation2 + $0x11d0] sm:$0xff]
    %v820 = vld [vmem:[#allocation2 + $0x11d8] sm:$0xff]
    %v821 = vld [vmem:[#allocation2 + $0x11e0] sm:$0xff]
    %v822 = vld [vmem:[#allocation2 + $0x11e8] sm:$0xff]
    %v823 = vld [vmem:[#allocation2 + $0x11f0] sm:$0xff]
    %v824 = vld [vmem:[#allocation2 + $0x11f8] sm:$0xff]
    %v825 = vld [vmem:[#allocation2 + $0x1200] sm:$0xff]
    %v826 = vld [vmem:[#allocation2 + $0x1208] sm:$0xff]
    %v827 = vld [vmem:[#allocation2 + $0x1210] sm:$0xff]
    %v828 = vld [vmem:[#allocation2 + $0x1218] sm:$0xff]
    %v829 = vld [vmem:[#allocation2 + $0x1220] sm:$0xff]
    %v830 = vld [vmem:[#allocation2 + $0x1228] sm:$0xff]
    %v831 = vld [vmem:[#allocation2 + $0x1230] sm:$0xff]
    %v832 = vld [vmem:[#allocation2 + $0x1238] sm:$0xff]
    %v833 = vld [vmem:[#allocation2 + $0x1240] sm:$0xff]
    %v834 = vld [vmem:[#allocation2 + $0x1248] sm:$0xff]
    %v835 = vld [vmem:[#allocation2 + $0x1250] sm:$0xff]
    %v836 = vld [vmem:[#allocation2 + $0x1258] sm:$0xff]
    %v837 = vld [vmem:[#allocation2 + $0x1260] sm:$0xff]
    %v838 = vld [vmem:[#allocation2 + $0x1268] sm:$0xff]
    %v839 = vld [vmem:[#allocation2 + $0x1270] sm:$0xff]
    %v840 = vld [vmem:[#allocation2 + $0x1278] sm:$0xff]
    %v841 = vld [vmem:[#allocation2 + $0x1280] sm:$0xff]
    %v842 = vld [vmem:[#allocation2 + $0x1288] sm:$0xff]
    %v843 = vld [vmem:[#allocation2 + $0x1290] sm:$0xff]
    %v844 = vld [vmem:[#allocation2 + $0x1298] sm:$0xff]
    %v845 = vld [vmem:[#allocation2 + $0x12a0] sm:$0xff]
    %v846 = vld [vmem:[#allocation2 + $0x12a8] sm:$0xff]
    %v847 = vld [vmem:[#allocation2 + $0x12b0] sm:$0xff]
    %v848 = vld [vmem:[#allocation2 + $0x12b8] sm:$0xff]
    %v849 = vld [vmem:[#allocation2 + $0x12c0] sm:$0xff]
    %v850 = vld [vmem:[#allocation2 + $0x12c8] sm:$0xff]
    %v851 = vld [vmem:[#allocation2 + $0x12d0] sm:$0xff]
    %v852 = vld [vmem:[#allocation2 + $0x12d8] sm:$0xff]
    %v853 = vld [vmem:[#allocation2 + $0x12e0] sm:$0xff]
    %v854 = vld [vmem:[#allocation2 + $0x12e8] sm:$0xff]
    %v855 = vld [vmem:[#allocation2 + $0x12f0] sm:$0xff]
    %v856 = vld [vmem:[#allocation2 + $0x12f8] sm:$0xff]
    %v857 = vld [vmem:[#allocation2 + $0x1300] sm:$0xff]
    %v858 = vld [vmem:[#allocation2 + $0x1308] sm:$0xff]
    %v859 = vld [vmem:[#allocation2 + $0x1310] sm:$0xff]
    %v860 = vld [vmem:[#allocation2 + $0x1318] sm:$0xff]
    %v861 = vld [vmem:[#allocation2 + $0x1320] sm:$0xff]
    %v862 = vld [vmem:[#allocation2 + $0x1328] sm:$0xff]
    %v863 = vld [vmem:[#allocation2 + $0x1330] sm:$0xff]
    %v864 = vld [vmem:[#allocation2 + $0x1338] sm:$0xff]
    %v865 = vld [vmem:[#allocation2 + $0x1340] sm:$0xff]
    %v866 = vld [vmem:[#allocation2 + $0x1348] sm:$0xff]
    %v867 = vld [vmem:[#allocation2 + $0x1350] sm:$0xff]
    %v868 = vld [vmem:[#allocation2 + $0x1358] sm:$0xff]
    %v869 = vld [vmem:[#allocation2 + $0x1360] sm:$0xff]
    %v870 = vld [vmem:[#allocation2 + $0x1368] sm:$0xff]
    %v871 = vld [vmem:[#allocation2 + $0x1370] sm:$0xff]
    %v872 = vld [vmem:[#allocation2 + $0x1378] sm:$0xff]
    %v873 = vld [vmem:[#allocation2 + $0x1380] sm:$0xff]
    %v874 = vld [vmem:[#allocation2 + $0x1388] sm:$0xff]
    %v875 = vld [vmem:[#allocation2 + $0x1390] sm:$0xff]
    %v876 = vld [vmem:[#allocation2 + $0x1398] sm:$0xff]
    %v877 = vld [vmem:[#allocation2 + $0x13a0] sm:$0xff]
    %v878 = vld [vmem:[#allocation2 + $0x13a8] sm:$0xff]
    %v879 = vld [vmem:[#allocation2 + $0x13b0] sm:$0xff]
    %v880 = vld [vmem:[#allocation2 + $0x13b8] sm:$0xff]
    %v881 = vld [vmem:[#allocation2 + $0x13c0] sm:$0xff]
    %v882 = vld [vmem:[#allocation2 + $0x13c8] sm:$0xff]
    %v883 = vld [vmem:[#allocation2 + $0x13d0] sm:$0xff]
    %v884 = vld [vmem:[#allocation2 + $0x13d8] sm:$0xff]
    %v885 = vld [vmem:[#allocation2 + $0x13e0] sm:$0xff]
    %v886 = vld [vmem:[#allocation2 + $0x13e8] sm:$0xff]
    %v887 = vld [vmem:[#allocation2 + $0x13f0] sm:$0xff]
    %v888 = vld [vmem:[#allocation2 + $0x13f8] sm:$0xff]
    %v889 = vld [vmem:[#allocation2 + $0x1400] sm:$0xff]
    %v890 = vld [vmem:[#allocation2 + $0x1408] sm:$0xff]
    %v891 = vld [vmem:[#allocation2 + $0x1410] sm:$0xff]
    %v892 = vld [vmem:[#allocation2 + $0x1418] sm:$0xff]
    %v893 = vld [vmem:[#allocation2 + $0x1420] sm:$0xff]
    %v894 = vld [vmem:[#allocation2 + $0x1428] sm:$0xff]
    %v895 = vld [vmem:[#allocation2 + $0x1430] sm:$0xff]
    %v896 = vld [vmem:[#allocation2 + $0x1438] sm:$0xff]
    %v897 = vld [vmem:[#allocation2 + $0x1440] sm:$0xff]
    %v898 = vld [vmem:[#allocation2 + $0x1448] sm:$0xff]
    %v899 = vld [vmem:[#allocation2 + $0x1450] sm:$0xff]
    %v900 = vld [vmem:[#allocation2 + $0x1458] sm:$0xff]
    %v901 = vld [vmem:[#allocation2 + $0x1460] sm:$0xff]
    %v902 = vld [vmem:[#allocation2 + $0x1468] sm:$0xff]
    %v903 = vld [vmem:[#allocation2 + $0x1470] sm:$0xff]
    %v904 = vld [vmem:[#allocation2 + $0x1478] sm:$0xff]
    %v905 = vld [vmem:[#allocation2 + $0x1480] sm:$0xff]
    %v906 = vld [vmem:[#allocation2 + $0x1488] sm:$0xff]
    %v907 = vld [vmem:[#allocation2 + $0x1490] sm:$0xff]
    %v908 = vld [vmem:[#allocation2 + $0x1498] sm:$0xff]
    %v909 = vld [vmem:[#allocation2 + $0x14a0] sm:$0xff]
    %v910 = vld [vmem:[#allocation2 + $0x14a8] sm:$0xff]
    %v911 = vld [vmem:[#allocation2 + $0x14b0] sm:$0xff]
    %v912 = vld [vmem:[#allocation2 + $0x14b8] sm:$0xff]
    %v913 = vld [vmem:[#allocation2 + $0x14c0] sm:$0xff]
    %v914 = vld [vmem:[#allocation2 + $0x14c8] sm:$0xff]
    %v915 = vld [vmem:[#allocation2 + $0x14d0] sm:$0xff]
    %v916 = vld [vmem:[#allocation2 + $0x14d8] sm:$0xff]
    %v917 = vld [vmem:[#allocation2 + $0x14e0] sm:$0xff]
    %v918 = vld [vmem:[#allocation2 + $0x14e8] sm:$0xff]
    %v919 = vld [vmem:[#allocation2 + $0x14f0] sm:$0xff]
    %v920 = vld [vmem:[#allocation2 + $0x14f8] sm:$0xff]
    %v921 = vld [vmem:[#allocation2 + $0x1500] sm:$0xff]
    %v922 = vld [vmem:[#allocation2 + $0x1508] sm:$0xff]
    %v923 = vld [vmem:[#allocation2 + $0x1510] sm:$0xff]
    %v924 = vld [vmem:[#allocation2 + $0x1518] sm:$0xff]
    %v925 = vld [vmem:[#allocation2 + $0x1520] sm:$0xff]
    %v926 = vld [vmem:[#allocation2 + $0x1528] sm:$0xff]
    %v927 = vld [vmem:[#allocation2 + $0x1530] sm:$0xff]
    %v928 = vld [vmem:[#allocation2 + $0x1538] sm:$0xff]
    %v929 = vld [vmem:[#allocation2 + $0x1540] sm:$0xff]
    %v930 = vld [vmem:[#allocation2 + $0x1548] sm:$0xff]
    %v931 = vld [vmem:[#allocation2 + $0x1550] sm:$0xff]
    %v932 = vld [vmem:[#allocation2 + $0x1558] sm:$0xff]
    %v933 = vld [vmem:[#allocation2 + $0x1560] sm:$0xff]
    %v934 = vld [vmem:[#allocation2 + $0x1568] sm:$0xff]
    %v935 = vld [vmem:[#allocation2 + $0x1570] sm:$0xff]
    %v936 = vld [vmem:[#allocation2 + $0x1578] sm:$0xff]
    %v937 = vld [vmem:[#allocation2 + $0x1580] sm:$0xff]
    %v938 = vld [vmem:[#allocation2 + $0x1588] sm:$0xff]
    %v939 = vld [vmem:[#allocation2 + $0x1590] sm:$0xff]
    %v940 = vld [vmem:[#allocation2 + $0x1598] sm:$0xff]
    %v941 = vld [vmem:[#allocation2 + $0x15a0] sm:$0xff]
    %v942 = vld [vmem:[#allocation2 + $0x15a8] sm:$0xff]
    %v943 = vld [vmem:[#allocation2 + $0x15b0] sm:$0xff]
    %v944 = vld [vmem:[#allocation2 + $0x15b8] sm:$0xff]
    %v945 = vld [vmem:[#allocation2 + $0x15c0] sm:$0xff]
    %v946 = vld [vmem:[#allocation2 + $0x15c8] sm:$0xff]
    %v947 = vld [vmem:[#allocation2 + $0x15d0] sm:$0xff]
    %v948 = vld [vmem:[#allocation2 + $0x15d8] sm:$0xff]
    %v949 = vld [vmem:[#allocation2 + $0x15e0] sm:$0xff]
    %v950 = vld [vmem:[#allocation2 + $0x15e8] sm:$0xff]
    %v951 = vld [vmem:[#allocation2 + $0x15f0] sm:$0xff]
    %v952 = vld [vmem:[#allocation2 + $0x15f8] sm:$0xff]
    %v953 = vld [vmem:[#allocation2 + $0x1600] sm:$0xff]
    %v954 = vld [vmem:[#allocation2 + $0x1608] sm:$0xff]
    %v955 = vld [vmem:[#allocation2 + $0x1610] sm:$0xff]
    %v956 = vld [vmem:[#allocation2 + $0x1618] sm:$0xff]
    %v957 = vld [vmem:[#allocation2 + $0x1620] sm:$0xff]
    %v958 = vld [vmem:[#allocation2 + $0x1628] sm:$0xff]
    %v959 = vld [vmem:[#allocation2 + $0x1630] sm:$0xff]
    %v960 = vld [vmem:[#allocation2 + $0x1638] sm:$0xff]
    %v961 = vld [vmem:[#allocation2 + $0x1640] sm:$0xff]
    %v962 = vld [vmem:[#allocation2 + $0x1648] sm:$0xff]
    %v963 = vld [vmem:[#allocation2 + $0x1650] sm:$0xff]
    %v964 = vld [vmem:[#allocation2 + $0x1658] sm:$0xff]
    %v965 = vld [vmem:[#allocation2 + $0x1660] sm:$0xff]
    %v966 = vld [vmem:[#allocation2 + $0x1668] sm:$0xff]
    %v967 = vld [vmem:[#allocation2 + $0x1670] sm:$0xff]
    %v968 = vld [vmem:[#allocation2 + $0x1678] sm:$0xff]
    %v969 = vld [vmem:[#allocation2 + $0x1680] sm:$0xff]
    %v970 = vld [vmem:[#allocation2 + $0x1688] sm:$0xff]
    %v971 = vld [vmem:[#allocation2 + $0x1690] sm:$0xff]
    %v972 = vld [vmem:[#allocation2 + $0x1698] sm:$0xff]
    %v973 = vld [vmem:[#allocation2 + $0x16a0] sm:$0xff]
    %v974 = vld [vmem:[#allocation2 + $0x16a8] sm:$0xff]
    %v975 = vld [vmem:[#allocation2 + $0x16b0] sm:$0xff]
    %v976 = vld [vmem:[#allocation2 + $0x16b8] sm:$0xff]
    %v977 = vld [vmem:[#allocation2 + $0x16c0] sm:$0xff]
    %v978 = vld [vmem:[#allocation2 + $0x16c8] sm:$0xff]
    %v979 = vld [vmem:[#allocation2 + $0x16d0] sm:$0xff]
    %v980 = vld [vmem:[#allocation2 + $0x16d8] sm:$0xff]
    %v981 = vld [vmem:[#allocation2 + $0x16e0] sm:$0xff]
    %v982 = vld [vmem:[#allocation2 + $0x16e8] sm:$0xff]
    %v983 = vld [vmem:[#allocation2 + $0x16f0] sm:$0xff]
    %v984 = vld [vmem:[#allocation2 + $0x16f8] sm:$0xff]
    %v985 = vld [vmem:[#allocation2 + $0x1700] sm:$0xff]
    %v986 = vld [vmem:[#allocation2 + $0x1708] sm:$0xff]
    %v987 = vld [vmem:[#allocation2 + $0x1710] sm:$0xff]
    %v988 = vld [vmem:[#allocation2 + $0x1718] sm:$0xff]
    %v989 = vld [vmem:[#allocation2 + $0x1720] sm:$0xff]
    %v990 = vld [vmem:[#allocation2 + $0x1728] sm:$0xff]
    %v991 = vld [vmem:[#allocation2 + $0x1730] sm:$0xff]
    %v992 = vld [vmem:[#allocation2 + $0x1738] sm:$0xff]
    %v993 = vld [vmem:[#allocation2 + $0x1740] sm:$0xff]
    %v994 = vld [vmem:[#allocation2 + $0x1748] sm:$0xff]
    %v995 = vld [vmem:[#allocation2 + $0x1750] sm:$0xff]
    %v996 = vld [vmem:[#allocation2 + $0x1758] sm:$0xff]
    %v997 = vld [vmem:[#allocation2 + $0x1760] sm:$0xff]
    %v998 = vld [vmem:[#allocation2 + $0x1768] sm:$0xff]
    %v999 = vld [vmem:[#allocation2 + $0x1770] sm:$0xff]
    %v1000 = vld [vmem:[#allocation2 + $0x1778] sm:$0xff]
    %v1001 = vld [vmem:[#allocation2 + $0x1780] sm:$0xff]
    %v1002 = vld [vmem:[#allocation2 + $0x1788] sm:$0xff]
    %v1003 = vld [vmem:[#allocation2 + $0x1790] sm:$0xff]
    %v1004 = vld [vmem:[#allocation2 + $0x1798] sm:$0xff]
    %v1005 = vld [vmem:[#allocation2 + $0x17a0] sm:$0xff]
    %v1006 = vld [vmem:[#allocation2 + $0x17a8] sm:$0xff]
    %v1007 = vld [vmem:[#allocation2 + $0x17b0] sm:$0xff]
    %v1008 = vld [vmem:[#allocation2 + $0x17b8] sm:$0xff]
    %v1009 = vld [vmem:[#allocation2 + $0x17c0] sm:$0xff]
    %v1010 = vld [vmem:[#allocation2 + $0x17c8] sm:$0xff]
    %v1011 = vld [vmem:[#allocation2 + $0x17d0] sm:$0xff]
    %v1012 = vld [vmem:[#allocation2 + $0x17d8] sm:$0xff]
    %v1013 = vld [vmem:[#allocation2 + $0x17e0] sm:$0xff]
    %v1014 = vld [vmem:[#allocation2 + $0x17e8] sm:$0xff]
    %v1015 = vld [vmem:[#allocation2 + $0x17f0] sm:$0xff]
    %v1016 = vld [vmem:[#allocation2 + $0x17f8] sm:$0xff]
    %v1017 = vld [vmem:[#allocation2 + $0x1800] sm:$0xff]
    %v1018 = vld [vmem:[#allocation2 + $0x1808] sm:$0xff]
    %v1019 = vld [vmem:[#allocation2 + $0x1810] sm:$0xff]
    %v1020 = vld [vmem:[#allocation2 + $0x1818] sm:$0xff]
    %v1021 = vld [vmem:[#allocation2 + $0x1820] sm:$0xff]
    %v1022 = vld [vmem:[#allocation2 + $0x1828] sm:$0xff]
    %v1023 = vld [vmem:[#allocation2 + $0x1830] sm:$0xff]
    %v1024 = vld [vmem:[#allocation2 + $0x1838] sm:$0xff]
    %v1025 = vld [vmem:[#allocation2 + $0x1840] sm:$0xff]
    %v1026 = vld [vmem:[#allocation2 + $0x1848] sm:$0xff]
    %v1027 = vld [vmem:[#allocation2 + $0x1850] sm:$0xff]
    %v1028 = vld [vmem:[#allocation2 + $0x1858] sm:$0xff]
    %v1029 = vld [vmem:[#allocation2 + $0x1860] sm:$0xff]
    %v1030 = vld [vmem:[#allocation2 + $0x1868] sm:$0xff]
    %v1031 = vld [vmem:[#allocation2 + $0x1870] sm:$0xff]
    %v1032 = vld [vmem:[#allocation2 + $0x1878] sm:$0xff]
    %v1033 = vld [vmem:[#allocation2 + $0x1880] sm:$0xff]
    %v1034 = vld [vmem:[#allocation2 + $0x1888] sm:$0xff]
    %v1035 = vld [vmem:[#allocation2 + $0x1890] sm:$0xff]
    %v1036 = vld [vmem:[#allocation2 + $0x1898] sm:$0xff]
    %v1037 = vld [vmem:[#allocation2 + $0x18a0] sm:$0xff]
    %v1038 = vld [vmem:[#allocation2 + $0x18a8] sm:$0xff]
    %v1039 = vld [vmem:[#allocation2 + $0x18b0] sm:$0xff]
    %v1040 = vld [vmem:[#allocation2 + $0x18b8] sm:$0xff]
    %v1041 = vld [vmem:[#allocation2 + $0x18c0] sm:$0xff]
    %v1042 = vld [vmem:[#allocation2 + $0x18c8] sm:$0xff]
    %v1043 = vld [vmem:[#allocation2 + $0x18d0] sm:$0xff]
    %v1044 = vld [vmem:[#allocation2 + $0x18d8] sm:$0xff]
    %v1045 = vld [vmem:[#allocation2 + $0x18e0] sm:$0xff]
    %v1046 = vld [vmem:[#allocation2 + $0x18e8] sm:$0xff]
    %v1047 = vld [vmem:[#allocation2 + $0x18f0] sm:$0xff]
    %v1048 = vld [vmem:[#allocation2 + $0x18f8] sm:$0xff]
    %v1049 = vld [vmem:[#allocation2 + $0x1900] sm:$0xff]
    %v1050 = vld [vmem:[#allocation2 + $0x1908] sm:$0xff]
    %v1051 = vld [vmem:[#allocation2 + $0x1910] sm:$0xff]
    %v1052 = vld [vmem:[#allocation2 + $0x1918] sm:$0xff]
    %v1053 = vld [vmem:[#allocation2 + $0x1920] sm:$0xff]
    %v1054 = vld [vmem:[#allocation2 + $0x1928] sm:$0xff]
    %v1055 = vld [vmem:[#allocation2 + $0x1930] sm:$0xff]
    %v1056 = vld [vmem:[#allocation2 + $0x1938] sm:$0xff]
    %v1057 = vld [vmem:[#allocation2 + $0x1940] sm:$0xff]
    %v1058 = vld [vmem:[#allocation2 + $0x1948] sm:$0xff]
    %v1059 = vld [vmem:[#allocation2 + $0x1950] sm:$0xff]
    %v1060 = vld [vmem:[#allocation2 + $0x1958] sm:$0xff]
    %v1061 = vld [vmem:[#allocation2 + $0x1960] sm:$0xff]
    %v1062 = vld [vmem:[#allocation2 + $0x1968] sm:$0xff]
    %v1063 = vld [vmem:[#allocation2 + $0x1970] sm:$0xff]
    %v1064 = vld [vmem:[#allocation2 + $0x1978] sm:$0xff]
    %v1065 = vld [vmem:[#allocation2 + $0x1980] sm:$0xff]
    %v1066 = vld [vmem:[#allocation2 + $0x1988] sm:$0xff]
    %v1067 = vld [vmem:[#allocation2 + $0x1990] sm:$0xff]
    %v1068 = vld [vmem:[#allocation2 + $0x1998] sm:$0xff]
    %v1069 = vld [vmem:[#allocation2 + $0x19a0] sm:$0xff]
    %v1070 = vld [vmem:[#allocation2 + $0x19a8] sm:$0xff]
    %v1071 = vld [vmem:[#allocation2 + $0x19b0] sm:$0xff]
    %v1072 = vld [vmem:[#allocation2 + $0x19b8] sm:$0xff]
    %v1073 = vld [vmem:[#allocation2 + $0x19c0] sm:$0xff]
    %v1074 = vld [vmem:[#allocation2 + $0x19c8] sm:$0xff]
    %v1075 = vld [vmem:[#allocation2 + $0x19d0] sm:$0xff]
    %v1076 = vld [vmem:[#allocation2 + $0x19d8] sm:$0xff]
    %v1077 = vld [vmem:[#allocation2 + $0x19e0] sm:$0xff]
    %v1078 = vld [vmem:[#allocation2 + $0x19e8] sm:$0xff]
    %v1079 = vld [vmem:[#allocation2 + $0x19f0] sm:$0xff]
    %v1080 = vld [vmem:[#allocation2 + $0x19f8] sm:$0xff]
    %v1081 = vld [vmem:[#allocation2 + $0x1a00] sm:$0xff]
    %v1082 = vld [vmem:[#allocation2 + $0x1a08] sm:$0xff]
    %v1083 = vld [vmem:[#allocation2 + $0x1a10] sm:$0xff]
    %v1084 = vld [vmem:[#allocation2 + $0x1a18] sm:$0xff]
    %v1085 = vld [vmem:[#allocation2 + $0x1a20] sm:$0xff]
    %v1086 = vld [vmem:[#allocation2 + $0x1a28] sm:$0xff]
    %v1087 = vld [vmem:[#allocation2 + $0x1a30] sm:$0xff]
    %v1088 = vld [vmem:[#allocation2 + $0x1a38] sm:$0xff]
    %v1089 = vld [vmem:[#allocation2 + $0x1a40] sm:$0xff]
    %v1090 = vld [vmem:[#allocation2 + $0x1a48] sm:$0xff]
    %v1091 = vld [vmem:[#allocation2 + $0x1a50] sm:$0xff]
    %v1092 = vld [vmem:[#allocation2 + $0x1a58] sm:$0xff]
    %v1093 = vld [vmem:[#allocation2 + $0x1a60] sm:$0xff]
    %v1094 = vld [vmem:[#allocation2 + $0x1a68] sm:$0xff]
    %v1095 = vld [vmem:[#allocation2 + $0x1a70] sm:$0xff]
    %v1096 = vld [vmem:[#allocation2 + $0x1a78] sm:$0xff]
    %v1097 = vld [vmem:[#allocation2 + $0x1a80] sm:$0xff]
    %v1098 = vld [vmem:[#allocation2 + $0x1a88] sm:$0xff]
    %v1099 = vld [vmem:[#allocation2 + $0x1a90] sm:$0xff]
    %v1100 = vld [vmem:[#allocation2 + $0x1a98] sm:$0xff]
    %v1101 = vld [vmem:[#allocation2 + $0x1aa0] sm:$0xff]
    %v1102 = vld [vmem:[#allocation2 + $0x1aa8] sm:$0xff]
    %v1103 = vld [vmem:[#allocation2 + $0x1ab0] sm:$0xff]
    %v1104 = vld [vmem:[#allocation2 + $0x1ab8] sm:$0xff]
    %v1105 = vld [vmem:[#allocation2 + $0x1ac0] sm:$0xff]
    %v1106 = vld [vmem:[#allocation2 + $0x1ac8] sm:$0xff]
    %v1107 = vld [vmem:[#allocation2 + $0x1ad0] sm:$0xff]
    %v1108 = vld [vmem:[#allocation2 + $0x1ad8] sm:$0xff]
    %v1109 = vld [vmem:[#allocation2 + $0x1ae0] sm:$0xff]
    %v1110 = vld [vmem:[#allocation2 + $0x1ae8] sm:$0xff]
    %v1111 = vld [vmem:[#allocation2 + $0x1af0] sm:$0xff]
    %v1112 = vld [vmem:[#allocation2 + $0x1af8] sm:$0xff]
    %v1113 = vld [vmem:[#allocation2 + $0x1b00] sm:$0xff]
    %v1114 = vld [vmem:[#allocation2 + $0x1b08] sm:$0xff]
    %v1115 = vld [vmem:[#allocation2 + $0x1b10] sm:$0xff]
    %v1116 = vld [vmem:[#allocation2 + $0x1b18] sm:$0xff]
    %v1117 = vld [vmem:[#allocation2 + $0x1b20] sm:$0xff]
    %v1118 = vld [vmem:[#allocation2 + $0x1b28] sm:$0xff]
    %v1119 = vld [vmem:[#allocation2 + $0x1b30] sm:$0xff]
    %v1120 = vld [vmem:[#allocation2 + $0x1b38] sm:$0xff]
    %v1121 = vld [vmem:[#allocation2 + $0x1b40] sm:$0xff]
    %v1122 = vld [vmem:[#allocation2 + $0x1b48] sm:$0xff]
    %v1123 = vld [vmem:[#allocation2 + $0x1b50] sm:$0xff]
    %v1124 = vld [vmem:[#allocation2 + $0x1b58] sm:$0xff]
    %v1125 = vld [vmem:[#allocation2 + $0x1b60] sm:$0xff]
    %v1126 = vld [vmem:[#allocation2 + $0x1b68] sm:$0xff]
    %v1127 = vld [vmem:[#allocation2 + $0x1b70] sm:$0xff]
    %v1128 = vld [vmem:[#allocation2 + $0x1b78] sm:$0xff]
    %v1129 = vld [vmem:[#allocation2 + $0x1b80] sm:$0xff]
    %v1130 = vld [vmem:[#allocation2 + $0x1b88] sm:$0xff]
    %v1131 = vld [vmem:[#allocation2 + $0x1b90] sm:$0xff]
    %v1132 = vld [vmem:[#allocation2 + $0x1b98] sm:$0xff]
    %v1133 = vld [vmem:[#allocation2 + $0x1ba0] sm:$0xff]
    %v1134 = vld [vmem:[#allocation2 + $0x1ba8] sm:$0xff]
    %v1135 = vld [vmem:[#allocation2 + $0x1bb0] sm:$0xff]
    %v1136 = vld [vmem:[#allocation2 + $0x1bb8] sm:$0xff]
    %v1137 = vld [vmem:[#allocation2 + $0x1bc0] sm:$0xff]
    %v1138 = vld [vmem:[#allocation2 + $0x1bc8] sm:$0xff]
    %v1139 = vld [vmem:[#allocation2 + $0x1bd0] sm:$0xff]
    %v1140 = vld [vmem:[#allocation2 + $0x1bd8] sm:$0xff]
    %v1141 = vld [vmem:[#allocation2 + $0x1be0] sm:$0xff]
    %v1142 = vld [vmem:[#allocation2 + $0x1be8] sm:$0xff]
    %v1143 = vld [vmem:[#allocation2 + $0x1bf0] sm:$0xff]
    %v1144 = vld [vmem:[#allocation2 + $0x1bf8] sm:$0xff]
    %v1145 = vld [vmem:[#allocation2 + $0x1c00] sm:$0xff]
    %v1146 = vld [vmem:[#allocation2 + $0x1c08] sm:$0xff]
    %v1147 = vld [vmem:[#allocation2 + $0x1c10] sm:$0xff]
    %v1148 = vld [vmem:[#allocation2 + $0x1c18] sm:$0xff]
    %v1149 = vld [vmem:[#allocation2 + $0x1c20] sm:$0xff]
    %v1150 = vld [vmem:[#allocation2 + $0x1c28] sm:$0xff]
    %v1151 = vld [vmem:[#allocation2 + $0x1c30] sm:$0xff]
    %v1152 = vld [vmem:[#allocation2 + $0x1c38] sm:$0xff]
    %v1153 = vld [vmem:[#allocation2 + $0x1c40] sm:$0xff]
    %v1154 = vld [vmem:[#allocation2 + $0x1c48] sm:$0xff]
    %v1155 = vld [vmem:[#allocation2 + $0x1c50] sm:$0xff]
    %v1156 = vld [vmem:[#allocation2 + $0x1c58] sm:$0xff]
    %v1157 = vld [vmem:[#allocation2 + $0x1c60] sm:$0xff]
    %v1158 = vld [vmem:[#allocation2 + $0x1c68] sm:$0xff]
    %v1159 = vld [vmem:[#allocation2 + $0x1c70] sm:$0xff]
    %v1160 = vld [vmem:[#allocation2 + $0x1c78] sm:$0xff]
    %v1161 = vld [vmem:[#allocation2 + $0x1c80] sm:$0xff]
    %v1162 = vld [vmem:[#allocation2 + $0x1c88] sm:$0xff]
    %v1163 = vld [vmem:[#allocation2 + $0x1c90] sm:$0xff]
    %v1164 = vld [vmem:[#allocation2 + $0x1c98] sm:$0xff]
    %v1165 = vld [vmem:[#allocation2 + $0x1ca0] sm:$0xff]
    %v1166 = vld [vmem:[#allocation2 + $0x1ca8] sm:$0xff]
    %v1167 = vld [vmem:[#allocation2 + $0x1cb0] sm:$0xff]
    %v1168 = vld [vmem:[#allocation2 + $0x1cb8] sm:$0xff]
    %v1169 = vld [vmem:[#allocation2 + $0x1cc0] sm:$0xff]
    %v1170 = vld [vmem:[#allocation2 + $0x1cc8] sm:$0xff]
    %v1171 = vld [vmem:[#allocation2 + $0x1cd0] sm:$0xff]
    %v1172 = vld [vmem:[#allocation2 + $0x1cd8] sm:$0xff]
    %v1173 = vld [vmem:[#allocation2 + $0x1ce0] sm:$0xff]
    %v1174 = vld [vmem:[#allocation2 + $0x1ce8] sm:$0xff]
    %v1175 = vld [vmem:[#allocation2 + $0x1cf0] sm:$0xff]
    %v1176 = vld [vmem:[#allocation2 + $0x1cf8] sm:$0xff]
    %v1177 = vld [vmem:[#allocation2 + $0x1d00] sm:$0xff]
    %v1178 = vld [vmem:[#allocation2 + $0x1d08] sm:$0xff]
    %v1179 = vld [vmem:[#allocation2 + $0x1d10] sm:$0xff]
    %v1180 = vld [vmem:[#allocation2 + $0x1d18] sm:$0xff]
    %v1181 = vld [vmem:[#allocation2 + $0x1d20] sm:$0xff]
    %v1182 = vld [vmem:[#allocation2 + $0x1d28] sm:$0xff]
    %v1183 = vld [vmem:[#allocation2 + $0x1d30] sm:$0xff]
    %v1184 = vld [vmem:[#allocation2 + $0x1d38] sm:$0xff]
    %v1185 = vld [vmem:[#allocation2 + $0x1d40] sm:$0xff]
    %v1186 = vld [vmem:[#allocation2 + $0x1d48] sm:$0xff]
    %v1187 = vld [vmem:[#allocation2 + $0x1d50] sm:$0xff]
    %v1188 = vld [vmem:[#allocation2 + $0x1d58] sm:$0xff]
    %v1189 = vld [vmem:[#allocation2 + $0x1d60] sm:$0xff]
    %v1190 = vld [vmem:[#allocation2 + $0x1d68] sm:$0xff]
    %v1191 = vld [vmem:[#allocation2 + $0x1d70] sm:$0xff]
    %v1192 = vld [vmem:[#allocation2 + $0x1d78] sm:$0xff]
    %v1193 = vld [vmem:[#allocation2 + $0x1d80] sm:$0xff]
    %v1194 = vld [vmem:[#allocation2 + $0x1d88] sm:$0xff]
    %v1195 = vld [vmem:[#allocation2 + $0x1d90] sm:$0xff]
    %v1196 = vld [vmem:[#allocation2 + $0x1d98] sm:$0xff]
    %v1197 = vld [vmem:[#allocation2 + $0x1da0] sm:$0xff]
    %v1198 = vld [vmem:[#allocation2 + $0x1da8] sm:$0xff]
    %v1199 = vld [vmem:[#allocation2 + $0x1db0] sm:$0xff]
    %v1200 = vld [vmem:[#allocation2 + $0x1db8] sm:$0xff]
    %v1201 = vld [vmem:[#allocation2 + $0x1dc0] sm:$0xff]
    %v1202 = vld [vmem:[#allocation2 + $0x1dc8] sm:$0xff]
    %v1203 = vld [vmem:[#allocation2 + $0x1dd0] sm:$0xff]
    %v1204 = vld [vmem:[#allocation2 + $0x1dd8] sm:$0xff]
    %v1205 = vld [vmem:[#allocation2 + $0x1de0] sm:$0xff]
    %v1206 = vld [vmem:[#allocation2 + $0x1de8] sm:$0xff]
    %v1207 = vld [vmem:[#allocation2 + $0x1df0] sm:$0xff]
    %v1208 = vld [vmem:[#allocation2 + $0x1df8] sm:$0xff]
    %v1209 = vld [vmem:[#allocation2 + $0x1e00] sm:$0xff]
    %v1210 = vld [vmem:[#allocation2 + $0x1e08] sm:$0xff]
    %v1211 = vld [vmem:[#allocation2 + $0x1e10] sm:$0xff]
    %v1212 = vld [vmem:[#allocation2 + $0x1e18] sm:$0xff]
    %v1213 = vld [vmem:[#allocation2 + $0x1e20] sm:$0xff]
    %v1214 = vld [vmem:[#allocation2 + $0x1e28] sm:$0xff]
    %v1215 = vld [vmem:[#allocation2 + $0x1e30] sm:$0xff]
    %v1216 = vld [vmem:[#allocation2 + $0x1e38] sm:$0xff]
    %v1217 = vld [vmem:[#allocation2 + $0x1e40] sm:$0xff]
    %v1218 = vld [vmem:[#allocation2 + $0x1e48] sm:$0xff]
    %v1219 = vld [vmem:[#allocation2 + $0x1e50] sm:$0xff]
    %v1220 = vld [vmem:[#allocation2 + $0x1e58] sm:$0xff]
    %v1221 = vld [vmem:[#allocation2 + $0x1e60] sm:$0xff]
    %v1222 = vld [vmem:[#allocation2 + $0x1e68] sm:$0xff]
    %v1223 = vld [vmem:[#allocation2 + $0x1e70] sm:$0xff]
    %v1224 = vld [vmem:[#allocation2 + $0x1e78] sm:$0xff]
    %v1225 = vld [vmem:[#allocation2 + $0x1e80] sm:$0xff]
    %v1226 = vld [vmem:[#allocation2 + $0x1e88] sm:$0xff]
    %v1227 = vld [vmem:[#allocation2 + $0x1e90] sm:$0xff]
    %v1228 = vld [vmem:[#allocation2 + $0x1e98] sm:$0xff]
    %v1229 = vld [vmem:[#allocation2 + $0x1ea0] sm:$0xff]
    %v1230 = vld [vmem:[#allocation2 + $0x1ea8] sm:$0xff]
    %v1231 = vld [vmem:[#allocation2 + $0x1eb0] sm:$0xff]
    %v1232 = vld [vmem:[#allocation2 + $0x1eb8] sm:$0xff]
    %v1233 = vld [vmem:[#allocation2 + $0x1ec0] sm:$0xff]
    %v1234 = vld [vmem:[#allocation2 + $0x1ec8] sm:$0xff]
    %v1235 = vld [vmem:[#allocation2 + $0x1ed0] sm:$0xff]
    %v1236 = vld [vmem:[#allocation2 + $0x1ed8] sm:$0xff]
    %v1237 = vld [vmem:[#allocation2 + $0x1ee0] sm:$0xff]
    %v1238 = vld [vmem:[#allocation2 + $0x1ee8] sm:$0xff]
    %v1239 = vld [vmem:[#allocation2 + $0x1ef0] sm:$0xff]
    %v1240 = vld [vmem:[#allocation2 + $0x1ef8] sm:$0xff]
    %v1241 = vld [vmem:[#allocation2 + $0x1f00] sm:$0xff]
    %v1242 = vld [vmem:[#allocation2 + $0x1f08] sm:$0xff]
    %v1243 = vld [vmem:[#allocation2 + $0x1f10] sm:$0xff]
    %v1244 = vld [vmem:[#allocation2 + $0x1f18] sm:$0xff]
    %v1245 = vld [vmem:[#allocation2 + $0x1f20] sm:$0xff]
    %v1246 = vld [vmem:[#allocation2 + $0x1f28] sm:$0xff]
    %v1247 = vld [vmem:[#allocation2 + $0x1f30] sm:$0xff]
    %v1248 = vld [vmem:[#allocation2 + $0x1f38] sm:$0xff]
    %v1249 = vld [vmem:[#allocation2 + $0x1f40] sm:$0xff]
    %v1250 = vld [vmem:[#allocation2 + $0x1f48] sm:$0xff]
    %v1251 = vld [vmem:[#allocation2 + $0x1f50] sm:$0xff]
    %v1252 = vld [vmem:[#allocation2 + $0x1f58] sm:$0xff]
    %v1253 = vld [vmem:[#allocation2 + $0x1f60] sm:$0xff]
    %v1254 = vld [vmem:[#allocation2 + $0x1f68] sm:$0xff]
    %v1255 = vld [vmem:[#allocation2 + $0x1f70] sm:$0xff]
    %v1256 = vld [vmem:[#allocation2 + $0x1f78] sm:$0xff]
    %v1257 = vld [vmem:[#allocation2 + $0x1f80] sm:$0xff]
    %v1258 = vld [vmem:[#allocation2 + $0x1f88] sm:$0xff]
    %v1259 = vld [vmem:[#allocation2 + $0x1f90] sm:$0xff]
    %v1260 = vld [vmem:[#allocation2 + $0x1f98] sm:$0xff]
    %v1261 = vld [vmem:[#allocation2 + $0x1fa0] sm:$0xff]
    %v1262 = vld [vmem:[#allocation2 + $0x1fa8] sm:$0xff]
    %v1263 = vld [vmem:[#allocation2 + $0x1fb0] sm:$0xff]
    %v1264 = vld [vmem:[#allocation2 + $0x1fb8] sm:$0xff]
    %v1265 = vld [vmem:[#allocation2 + $0x1fc0] sm:$0xff]
    %v1266 = vld [vmem:[#allocation2 + $0x1fc8] sm:$0xff]
    %v1267 = vld [vmem:[#allocation2 + $0x1fd0] sm:$0xff]
    %v1268 = vld [vmem:[#allocation2 + $0x1fd8] sm:$0xff]
    %v1269 = vld [vmem:[#allocation2 + $0x1fe0] sm:$0xff]
    %v1270 = vld [vmem:[#allocation2 + $0x1fe8] sm:$0xff]
    %v1271 = vld [vmem:[#allocation2 + $0x1ff0] sm:$0xff]
    %v1272 = vld [vmem:[#allocation2 + $0x1ff8] sm:$0xff]
    %v1273 = vld [vmem:[#allocation2 + $0x2000] sm:$0xff]
    %v1274 = vld [vmem:[#allocation2 + $0x2008] sm:$0xff]
    %v1275 = vld [vmem:[#allocation2 + $0x2010] sm:$0xff]
    %v1276 = vld [vmem:[#allocation2 + $0x2018] sm:$0xff]
    %v1277 = vld [vmem:[#allocation2 + $0x2020] sm:$0xff]
    %v1278 = vld [vmem:[#allocation2 + $0x2028] sm:$0xff]
    %v1279 = vld [vmem:[#allocation2 + $0x2030] sm:$0xff]
    %v1280 = vld [vmem:[#allocation2 + $0x2038] sm:$0xff]
    %v1281 = vld [vmem:[#allocation2 + $0x2040] sm:$0xff]
    %v1282 = vld [vmem:[#allocation2 + $0x2048] sm:$0xff]
    %v1283 = vld [vmem:[#allocation2 + $0x2050] sm:$0xff]
    %v1284 = vld [vmem:[#allocation2 + $0x2058] sm:$0xff]
    %v1285 = vld [vmem:[#allocation2 + $0x2060] sm:$0xff]
    %v1286 = vld [vmem:[#allocation2 + $0x2068] sm:$0xff]
    %v1287 = vld [vmem:[#allocation2 + $0x2070] sm:$0xff]
    %v1288 = vld [vmem:[#allocation2 + $0x2078] sm:$0xff]
    %v1289 = vld [vmem:[#allocation2 + $0x2080] sm:$0xff]
    %v1290 = vld [vmem:[#allocation2 + $0x2088] sm:$0xff]
    %v1291 = vld [vmem:[#allocation2 + $0x2090] sm:$0xff]
    %v1292 = vld [vmem:[#allocation2 + $0x2098] sm:$0xff]
    %v1293 = vld [vmem:[#allocation2 + $0x20a0] sm:$0xff]
    %v1294 = vld [vmem:[#allocation2 + $0x20a8] sm:$0xff]
    %v1295 = vld [vmem:[#allocation2 + $0x20b0] sm:$0xff]
    %v1296 = vld [vmem:[#allocation2 + $0x20b8] sm:$0xff]
    %v1297 = vld [vmem:[#allocation2 + $0x20c0] sm:$0xff]
    %v1298 = vld [vmem:[#allocation2 + $0x20c8] sm:$0xff]
    %v1299 = vld [vmem:[#allocation2 + $0x20d0] sm:$0xff]
    %v1300 = vld [vmem:[#allocation2 + $0x20d8] sm:$0xff]
    %v1301 = vld [vmem:[#allocation2 + $0x20e0] sm:$0xff]
    %v1302 = vld [vmem:[#allocation2 + $0x20e8] sm:$0xff]
    %v1303 = vld [vmem:[#allocation2 + $0x20f0] sm:$0xff]
    %v1304 = vld [vmem:[#allocation2 + $0x20f8] sm:$0xff]
    %v1305 = vld [vmem:[#allocation2 + $0x2100] sm:$0xff]
    %v1306 = vld [vmem:[#allocation2 + $0x2108] sm:$0xff]
    %v1307 = vld [vmem:[#allocation2 + $0x2110] sm:$0xff]
    %v1308 = vld [vmem:[#allocation2 + $0x2118] sm:$0xff]
    %v1309 = vld [vmem:[#allocation2 + $0x2120] sm:$0xff]
    %v1310 = vld [vmem:[#allocation2 + $0x2128] sm:$0xff]
    %v1311 = vld [vmem:[#allocation2 + $0x2130] sm:$0xff]
    %v1312 = vld [vmem:[#allocation2 + $0x2138] sm:$0xff]
    %v1313 = vld [vmem:[#allocation2 + $0x2140] sm:$0xff]
    %v1314 = vld [vmem:[#allocation2 + $0x2148] sm:$0xff]
    %v1315 = vld [vmem:[#allocation2 + $0x2150] sm:$0xff]
    %v1316 = vld [vmem:[#allocation2 + $0x2158] sm:$0xff]
    %v1317 = vld [vmem:[#allocation2 + $0x2160] sm:$0xff]
    %v1318 = vld [vmem:[#allocation2 + $0x2168] sm:$0xff]
    %v1319 = vld [vmem:[#allocation2 + $0x2170] sm:$0xff]
    %v1320 = vld [vmem:[#allocation2 + $0x2178] sm:$0xff]
    %v1321 = vld [vmem:[#allocation2 + $0x2180] sm:$0xff]
    %v1322 = vld [vmem:[#allocation2 + $0x2188] sm:$0xff]
    %v1323 = vld [vmem:[#allocation2 + $0x2190] sm:$0xff]
    %v1324 = vld [vmem:[#allocation2 + $0x2198] sm:$0xff]
    %v1325 = vld [vmem:[#allocation2 + $0x21a0] sm:$0xff]
    %v1326 = vld [vmem:[#allocation2 + $0x21a8] sm:$0xff]
    %v1327 = vld [vmem:[#allocation2 + $0x21b0] sm:$0xff]
    %v1328 = vld [vmem:[#allocation2 + $0x21b8] sm:$0xff]
    %v1329 = vld [vmem:[#allocation2 + $0x21c0] sm:$0xff]
    %v1330 = vld [vmem:[#allocation2 + $0x21c8] sm:$0xff]
    %v1331 = vld [vmem:[#allocation2 + $0x21d0] sm:$0xff]
    %v1332 = vld [vmem:[#allocation2 + $0x21d8] sm:$0xff]
    %v1333 = vld [vmem:[#allocation2 + $0x21e0] sm:$0xff]
    %v1334 = vld [vmem:[#allocation2 + $0x21e8] sm:$0xff]
    %v1335 = vld [vmem:[#allocation2 + $0x21f0] sm:$0xff]
    %v1336 = vld [vmem:[#allocation2 + $0x21f8] sm:$0xff]
    %v1337 = vld [vmem:[#allocation2 + $0x2200] sm:$0xff]
    %v1338 = vld [vmem:[#allocation2 + $0x2208] sm:$0xff]
    %v1339 = vld [vmem:[#allocation2 + $0x2210] sm:$0xff]
    %v1340 = vld [vmem:[#allocation2 + $0x2218] sm:$0xff]
    %v1341 = vld [vmem:[#allocation2 + $0x2220] sm:$0xff]
    %v1342 = vld [vmem:[#allocation2 + $0x2228] sm:$0xff]
    %v1343 = vld [vmem:[#allocation2 + $0x2230] sm:$0xff]
    %v1344 = vld [vmem:[#allocation2 + $0x2238] sm:$0xff]
    %v1345 = vld [vmem:[#allocation2 + $0x2240] sm:$0xff]
    %v1346 = vld [vmem:[#allocation2 + $0x2248] sm:$0xff]
    %v1347 = vld [vmem:[#allocation2 + $0x2250] sm:$0xff]
    %v1348 = vld [vmem:[#allocation2 + $0x2258] sm:$0xff]
    %v1349 = vld [vmem:[#allocation2 + $0x2260] sm:$0xff]
    %v1350 = vld [vmem:[#allocation2 + $0x2268] sm:$0xff]
    %v1351 = vld [vmem:[#allocation2 + $0x2270] sm:$0xff]
    %v1352 = vld [vmem:[#allocation2 + $0x2278] sm:$0xff]
    %v1353 = vld [vmem:[#allocation2 + $0x2280] sm:$0xff]
    %v1354 = vld [vmem:[#allocation2 + $0x2288] sm:$0xff]
    %v1355 = vld [vmem:[#allocation2 + $0x2290] sm:$0xff]
    %v1356 = vld [vmem:[#allocation2 + $0x2298] sm:$0xff]
    %v1357 = vld [vmem:[#allocation2 + $0x22a0] sm:$0xff]
    %v1358 = vld [vmem:[#allocation2 + $0x22a8] sm:$0xff]
    %v1359 = vld [vmem:[#allocation2 + $0x22b0] sm:$0xff]
    %v1360 = vld [vmem:[#allocation2 + $0x22b8] sm:$0xff]
    %v1361 = vld [vmem:[#allocation2 + $0x22c0] sm:$0xff]
    %v1362 = vld [vmem:[#allocation2 + $0x22c8] sm:$0xff]
    %v1363 = vld [vmem:[#allocation2 + $0x22d0] sm:$0xff]
    %v1364 = vld [vmem:[#allocation2 + $0x22d8] sm:$0xff]
    %v1365 = vld [vmem:[#allocation2 + $0x22e0] sm:$0xff]
    %v1366 = vld [vmem:[#allocation2 + $0x22e8] sm:$0xff]
    %v1367 = vld [vmem:[#allocation2 + $0x22f0] sm:$0xff]
    %v1368 = vld [vmem:[#allocation2 + $0x22f8] sm:$0xff]
    %v1369 = vld [vmem:[#allocation2 + $0x2300] sm:$0xff]
    %v1370 = vld [vmem:[#allocation2 + $0x2308] sm:$0xff]
    %v1371 = vld [vmem:[#allocation2 + $0x2310] sm:$0xff]
    %v1372 = vld [vmem:[#allocation2 + $0x2318] sm:$0xff]
    %v1373 = vld [vmem:[#allocation2 + $0x2320] sm:$0xff]
    %v1374 = vld [vmem:[#allocation2 + $0x2328] sm:$0xff]
    %v1375 = vld [vmem:[#allocation2 + $0x2330] sm:$0xff]
    %v1376 = vld [vmem:[#allocation2 + $0x2338] sm:$0xff]
    %v1377 = vld [vmem:[#allocation2 + $0x2340] sm:$0xff]
    %v1378 = vld [vmem:[#allocation2 + $0x2348] sm:$0xff]
    %v1379 = vld [vmem:[#allocation2 + $0x2350] sm:$0xff]
    %v1380 = vld [vmem:[#allocation2 + $0x2358] sm:$0xff]
    %v1381 = vld [vmem:[#allocation2 + $0x2360] sm:$0xff]
    %v1382 = vld [vmem:[#allocation2 + $0x2368] sm:$0xff]
    %v1383 = vld [vmem:[#allocation2 + $0x2370] sm:$0xff]
    %v1384 = vld [vmem:[#allocation2 + $0x2378] sm:$0xff]
    %v1385 = vld [vmem:[#allocation2 + $0x2380] sm:$0xff]
    %v1386 = vld [vmem:[#allocation2 + $0x2388] sm:$0xff]
    %v1387 = vld [vmem:[#allocation2 + $0x2390] sm:$0xff]
    %v1388 = vld [vmem:[#allocation2 + $0x2398] sm:$0xff]
    %v1389 = vld [vmem:[#allocation2 + $0x23a0] sm:$0xff]
    %v1390 = vld [vmem:[#allocation2 + $0x23a8] sm:$0xff]
    %v1391 = vld [vmem:[#allocation2 + $0x23b0] sm:$0xff]
    %v1392 = vld [vmem:[#allocation2 + $0x23b8] sm:$0xff]
    %v1393 = vld [vmem:[#allocation2 + $0x23c0] sm:$0xff]
    %v1394 = vld [vmem:[#allocation2 + $0x23c8] sm:$0xff]
    %v1395 = vld [vmem:[#allocation2 + $0x23d0] sm:$0xff]
    %v1396 = vld [vmem:[#allocation2 + $0x23d8] sm:$0xff]
    %v1397 = vld [vmem:[#allocation2 + $0x23e0] sm:$0xff]
    %v1398 = vld [vmem:[#allocation2 + $0x23e8] sm:$0xff]
    %v1399 = vld [vmem:[#allocation2 + $0x23f0] sm:$0xff]
    %v1400 = vld [vmem:[#allocation2 + $0x23f8] sm:$0xff]
    %v1401 = vld [vmem:[#allocation2 + $0x2400] sm:$0xff]
    %v1402 = vld [vmem:[#allocation2 + $0x2408] sm:$0xff]
    %v1403 = vld [vmem:[#allocation2 + $0x2410] sm:$0xff]
    %v1404 = vld [vmem:[#allocation2 + $0x2418] sm:$0xff]
    %v1405 = vld [vmem:[#allocation2 + $0x2420] sm:$0xff]
    %v1406 = vld [vmem:[#allocation2 + $0x2428] sm:$0xff]
    %v1407 = vld [vmem:[#allocation2 + $0x2430] sm:$0xff]
    %v1408 = vld [vmem:[#allocation2 + $0x2438] sm:$0xff]
    %v1409 = vld [vmem:[#allocation2 + $0x2440] sm:$0xff]
    %v1410 = vld [vmem:[#allocation2 + $0x2448] sm:$0xff]
    %v1411 = vld [vmem:[#allocation2 + $0x2450] sm:$0xff]
    %v1412 = vld [vmem:[#allocation2 + $0x2458] sm:$0xff]
    %v1413 = vld [vmem:[#allocation2 + $0x2460] sm:$0xff]
    %v1414 = vld [vmem:[#allocation2 + $0x2468] sm:$0xff]
    %v1415 = vld [vmem:[#allocation2 + $0x2470] sm:$0xff]
    %v1416 = vld [vmem:[#allocation2 + $0x2478] sm:$0xff]
    %v1417 = vld [vmem:[#allocation2 + $0x2480] sm:$0xff]
    %v1418 = vld [vmem:[#allocation2 + $0x2488] sm:$0xff]
    %v1419 = vld [vmem:[#allocation2 + $0x2490] sm:$0xff]
    %v1420 = vld [vmem:[#allocation2 + $0x2498] sm:$0xff]
    %v1421 = vld [vmem:[#allocation2 + $0x24a0] sm:$0xff]
    %v1422 = vld [vmem:[#allocation2 + $0x24a8] sm:$0xff]
    %v1423 = vld [vmem:[#allocation2 + $0x24b0] sm:$0xff]
    %v1424 = vld [vmem:[#allocation2 + $0x24b8] sm:$0xff]
    %v1425 = vld [vmem:[#allocation2 + $0x24c0] sm:$0xff]
    %v1426 = vld [vmem:[#allocation2 + $0x24c8] sm:$0xff]
    %v1427 = vld [vmem:[#allocation2 + $0x24d0] sm:$0xff]
    %v1428 = vld [vmem:[#allocation2 + $0x24d8] sm:$0xff]
    %v1429 = vld [vmem:[#allocation2 + $0x24e0] sm:$0xff]
    %v1430 = vld [vmem:[#allocation2 + $0x24e8] sm:$0xff]
    %v1431 = vld [vmem:[#allocation2 + $0x24f0] sm:$0xff]
    %v1432 = vld [vmem:[#allocation2 + $0x24f8] sm:$0xff]
    %v1433 = vld [vmem:[#allocation2 + $0x2500] sm:$0xff]
    %v1434 = vld [vmem:[#allocation2 + $0x2508] sm:$0xff]
    %v1435 = vld [vmem:[#allocation2 + $0x2510] sm:$0xff]
    %v1436 = vld [vmem:[#allocation2 + $0x2518] sm:$0xff]
    %v1437 = vld [vmem:[#allocation2 + $0x2520] sm:$0xff]
    %v1438 = vld [vmem:[#allocation2 + $0x2528] sm:$0xff]
    %v1439 = vld [vmem:[#allocation2 + $0x2530] sm:$0xff]
    %v1440 = vld [vmem:[#allocation2 + $0x2538] sm:$0xff]
    %v1441 = vld [vmem:[#allocation2 + $0x2540] sm:$0xff]
    %v1442 = vld [vmem:[#allocation2 + $0x2548] sm:$0xff]
    %v1443 = vld [vmem:[#allocation2 + $0x2550] sm:$0xff]
    %v1444 = vld [vmem:[#allocation2 + $0x2558] sm:$0xff]
    %v1445 = vld [vmem:[#allocation2 + $0x2560] sm:$0xff]
    %v1446 = vld [vmem:[#allocation2 + $0x2568] sm:$0xff]
    %v1447 = vld [vmem:[#allocation2 + $0x2570] sm:$0xff]
    %v1448 = vld [vmem:[#allocation2 + $0x2578] sm:$0xff]
    %v1449 = vld [vmem:[#allocation2 + $0x2580] sm:$0xff]
    %v1450 = vld [vmem:[#allocation2 + $0x2588] sm:$0xff]
    %v1451 = vld [vmem:[#allocation2 + $0x2590] sm:$0xff]
    %v1452 = vld [vmem:[#allocation2 + $0x2598] sm:$0xff]
    %v1453 = vld [vmem:[#allocation2 + $0x25a0] sm:$0xff]
    %v1454 = vld [vmem:[#allocation2 + $0x25a8] sm:$0xff]
    %v1455 = vld [vmem:[#allocation2 + $0x25b0] sm:$0xff]
    %v1456 = vld [vmem:[#allocation2 + $0x25b8] sm:$0xff]
    %v1457 = vld [vmem:[#allocation2 + $0x25c0] sm:$0xff]
    %v1458 = vld [vmem:[#allocation2 + $0x25c8] sm:$0xff]
    %v1459 = vld [vmem:[#allocation2 + $0x25d0] sm:$0xff]
    %v1460 = vld [vmem:[#allocation2 + $0x25d8] sm:$0xff]
    %v1461 = vld [vmem:[#allocation2 + $0x25e0] sm:$0xff]
    %v1462 = vld [vmem:[#allocation2 + $0x25e8] sm:$0xff]
    %v1463 = vld [vmem:[#allocation2 + $0x25f0] sm:$0xff]
    %v1464 = vld [vmem:[#allocation2 + $0x25f8] sm:$0xff]
    %v1465 = vld [vmem:[#allocation2 + $0x2600] sm:$0xff]
    %v1466 = vld [vmem:[#allocation2 + $0x2608] sm:$0xff]
    %v1467 = vld [vmem:[#allocation2 + $0x2610] sm:$0xff]
    %v1468 = vld [vmem:[#allocation2 + $0x2618] sm:$0xff]
    %v1469 = vld [vmem:[#allocation2 + $0x2620] sm:$0xff]
    %v1470 = vld [vmem:[#allocation2 + $0x2628] sm:$0xff]
    %v1471 = vld [vmem:[#allocation2 + $0x2630] sm:$0xff]
    %v1472 = vld [vmem:[#allocation2 + $0x2638] sm:$0xff]
    %v1473 = vld [vmem:[#allocation2 + $0x2640] sm:$0xff]
    %v1474 = vld [vmem:[#allocation2 + $0x2648] sm:$0xff]
    %v1475 = vld [vmem:[#allocation2 + $0x2650] sm:$0xff]
    %v1476 = vld [vmem:[#allocation2 + $0x2658] sm:$0xff]
    %v1477 = vld [vmem:[#allocation2 + $0x2660] sm:$0xff]
    %v1478 = vld [vmem:[#allocation2 + $0x2668] sm:$0xff]
    %v1479 = vld [vmem:[#allocation2 + $0x2670] sm:$0xff]
    %v1480 = vld [vmem:[#allocation2 + $0x2678] sm:$0xff]
    %v1481 = vld [vmem:[#allocation2 + $0x2680] sm:$0xff]
    %v1482 = vld [vmem:[#allocation2 + $0x2688] sm:$0xff]
    %v1483 = vld [vmem:[#allocation2 + $0x2690] sm:$0xff]
    %v1484 = vld [vmem:[#allocation2 + $0x2698] sm:$0xff]
    %v1485 = vld [vmem:[#allocation2 + $0x26a0] sm:$0xff]
    %v1486 = vld [vmem:[#allocation2 + $0x26a8] sm:$0xff]
    %v1487 = vld [vmem:[#allocation2 + $0x26b0] sm:$0xff]
    %v1488 = vld [vmem:[#allocation2 + $0x26b8] sm:$0xff]
    %v1489 = vld [vmem:[#allocation2 + $0x26c0] sm:$0xff]
    %v1490 = vld [vmem:[#allocation2 + $0x26c8] sm:$0xff]
    %v1491 = vld [vmem:[#allocation2 + $0x26d0] sm:$0xff]
    %v1492 = vld [vmem:[#allocation2 + $0x26d8] sm:$0xff]
    %v1493 = vld [vmem:[#allocation2 + $0x26e0] sm:$0xff]
    %v1494 = vld [vmem:[#allocation2 + $0x26e8] sm:$0xff]
    %v1495 = vld [vmem:[#allocation2 + $0x26f0] sm:$0xff]
    %v1496 = vld [vmem:[#allocation2 + $0x26f8] sm:$0xff]
    %v1497 = vld [vmem:[#allocation2 + $0x2700] sm:$0xff]
    %v1498 = vld [vmem:[#allocation2 + $0x2708] sm:$0xff]
    %v1499 = vld [vmem:[#allocation2 + $0x2710] sm:$0xff]
    %v1500 = vld [vmem:[#allocation2 + $0x2718] sm:$0xff]
    %v1501 = vld [vmem:[#allocation2 + $0x2720] sm:$0xff]
    %v1502 = vld [vmem:[#allocation2 + $0x2728] sm:$0xff]
    %v1503 = vld [vmem:[#allocation2 + $0x2730] sm:$0xff]
    %v1504 = vld [vmem:[#allocation2 + $0x2738] sm:$0xff]
    %v1505 = vld [vmem:[#allocation2 + $0x2740] sm:$0xff]
    %v1506 = vld [vmem:[#allocation2 + $0x2748] sm:$0xff]
    %v1507 = vld [vmem:[#allocation2 + $0x2750] sm:$0xff]
    %v1508 = vld [vmem:[#allocation2 + $0x2758] sm:$0xff]
    %v1509 = vld [vmem:[#allocation2 + $0x2760] sm:$0xff]
    %v1510 = vld [vmem:[#allocation2 + $0x2768] sm:$0xff]
    %v1511 = vld [vmem:[#allocation2 + $0x2770] sm:$0xff]
    %v1512 = vld [vmem:[#allocation2 + $0x2778] sm:$0xff]
    %v1513 = vld [vmem:[#allocation2 + $0x2780] sm:$0xff]
    %v1514 = vld [vmem:[#allocation2 + $0x2788] sm:$0xff]
    %v1515 = vld [vmem:[#allocation2 + $0x2790] sm:$0xff]
    %v1516 = vld [vmem:[#allocation2 + $0x2798] sm:$0xff]
    %v1517 = vld [vmem:[#allocation2 + $0x27a0] sm:$0xff]
    %v1518 = vld [vmem:[#allocation2 + $0x27a8] sm:$0xff]
    %v1519 = vld [vmem:[#allocation2 + $0x27b0] sm:$0xff]
    %v1520 = vld [vmem:[#allocation2 + $0x27b8] sm:$0xff]
    %v1521 = vld [vmem:[#allocation2 + $0x27c0] sm:$0xff]
    %v1522 = vld [vmem:[#allocation2 + $0x27c8] sm:$0xff]
    %v1523 = vld [vmem:[#allocation2 + $0x27d0] sm:$0xff]
    %v1524 = vld [vmem:[#allocation2 + $0x27d8] sm:$0xff]
    %v1525 = vld [vmem:[#allocation2 + $0x27e0] sm:$0xff]
    %v1526 = vld [vmem:[#allocation2 + $0x27e8] sm:$0xff]
    %v1527 = vld [vmem:[#allocation2 + $0x27f0] sm:$0xff]
    %v1528 = vld [vmem:[#allocation2 + $0x27f8] sm:$0xff]
    %v1529 = vld [vmem:[#allocation2 + $0x2800] sm:$0xff]
    %v1530 = vld [vmem:[#allocation2 + $0x2808] sm:$0xff]
    %v1531 = vld [vmem:[#allocation2 + $0x2810] sm:$0xff]
    %v1532 = vld [vmem:[#allocation2 + $0x2818] sm:$0xff]
    %v1533 = vld [vmem:[#allocation2 + $0x2820] sm:$0xff]
    %v1534 = vld [vmem:[#allocation2 + $0x2828] sm:$0xff]
    %v1535 = vld [vmem:[#allocation2 + $0x2830] sm:$0xff]
    %v1536 = vld [vmem:[#allocation2 + $0x2838] sm:$0xff]
    %v1537 = vld [vmem:[#allocation2 + $0x2840] sm:$0xff]
    %v1538 = vld [vmem:[#allocation2 + $0x2848] sm:$0xff]
    %v1539 = vld [vmem:[#allocation2 + $0x2850] sm:$0xff]
    %v1540 = vld [vmem:[#allocation2 + $0x2858] sm:$0xff]
    %v1541 = vld [vmem:[#allocation2 + $0x2860] sm:$0xff]
    %v1542 = vld [vmem:[#allocation2 + $0x2868] sm:$0xff]
    %v1543 = vld [vmem:[#allocation2 + $0x2870] sm:$0xff]
    %v1544 = vld [vmem:[#allocation2 + $0x2878] sm:$0xff]
    %v1545 = vld [vmem:[#allocation2 + $0x2880] sm:$0xff]
    %v1546 = vld [vmem:[#allocation2 + $0x2888] sm:$0xff]
    %v1547 = vld [vmem:[#allocation2 + $0x2890] sm:$0xff]
    %v1548 = vld [vmem:[#allocation2 + $0x2898] sm:$0xff]
    %v1549 = vld [vmem:[#allocation2 + $0x28a0] sm:$0xff]
    %v1550 = vld [vmem:[#allocation2 + $0x28a8] sm:$0xff]
    %v1551 = vld [vmem:[#allocation2 + $0x28b0] sm:$0xff]
    %v1552 = vld [vmem:[#allocation2 + $0x28b8] sm:$0xff]
    %v1553 = vld [vmem:[#allocation2 + $0x28c0] sm:$0xff]
    %v1554 = vld [vmem:[#allocation2 + $0x28c8] sm:$0xff]
    %v1555 = vld [vmem:[#allocation2 + $0x28d0] sm:$0xff]
    %v1556 = vld [vmem:[#allocation2 + $0x28d8] sm:$0xff]
    %v1557 = vld [vmem:[#allocation2 + $0x28e0] sm:$0xff]
    %v1558 = vld [vmem:[#allocation2 + $0x28e8] sm:$0xff]
    %v1559 = vld [vmem:[#allocation2 + $0x28f0] sm:$0xff]
    %v1560 = vld [vmem:[#allocation2 + $0x28f8] sm:$0xff]
    %v1561 = vld [vmem:[#allocation2 + $0x2900] sm:$0xff]
    %v1562 = vld [vmem:[#allocation2 + $0x2908] sm:$0xff]
    %v1563 = vld [vmem:[#allocation2 + $0x2910] sm:$0xff]
    %v1564 = vld [vmem:[#allocation2 + $0x2918] sm:$0xff]
    %v1565 = vld [vmem:[#allocation2 + $0x2920] sm:$0xff]
    %v1566 = vld [vmem:[#allocation2 + $0x2928] sm:$0xff]
    %v1567 = vld [vmem:[#allocation2 + $0x2930] sm:$0xff]
    %v1568 = vld [vmem:[#allocation2 + $0x2938] sm:$0xff]
    %v1569 = vld [vmem:[#allocation2 + $0x2940] sm:$0xff]
    %v1570 = vld [vmem:[#allocation2 + $0x2948] sm:$0xff]
    %v1571 = vld [vmem:[#allocation2 + $0x2950] sm:$0xff]
    %v1572 = vld [vmem:[#allocation2 + $0x2958] sm:$0xff]
    %v1573 = vld [vmem:[#allocation2 + $0x2960] sm:$0xff]
    %v1574 = vld [vmem:[#allocation2 + $0x2968] sm:$0xff]
    %v1575 = vld [vmem:[#allocation2 + $0x2970] sm:$0xff]
    %v1576 = vld [vmem:[#allocation2 + $0x2978] sm:$0xff]
    %v1577 = vld [vmem:[#allocation2 + $0x2980] sm:$0xff]
    %v1578 = vld [vmem:[#allocation2 + $0x2988] sm:$0xff]
    %v1579 = vld [vmem:[#allocation2 + $0x2990] sm:$0xff]
    %v1580 = vld [vmem:[#allocation2 + $0x2998] sm:$0xff]
    %v1581 = vld [vmem:[#allocation2 + $0x29a0] sm:$0xff]
    %v1582 = vld [vmem:[#allocation2 + $0x29a8] sm:$0xff]
    %v1583 = vld [vmem:[#allocation2 + $0x29b0] sm:$0xff]
    %v1584 = vld [vmem:[#allocation2 + $0x29b8] sm:$0xff]
    %v1585 = vld [vmem:[#allocation2 + $0x29c0] sm:$0xff]
    %v1586 = vld [vmem:[#allocation2 + $0x29c8] sm:$0xff]
    %v1587 = vld [vmem:[#allocation2 + $0x29d0] sm:$0xff]
    %v1588 = vld [vmem:[#allocation2 + $0x29d8] sm:$0xff]
    %v1589 = vld [vmem:[#allocation2 + $0x29e0] sm:$0xff]
    %v1590 = vld [vmem:[#allocation2 + $0x29e8] sm:$0xff]
    %v1591 = vld [vmem:[#allocation2 + $0x29f0] sm:$0xff]
    %v1592 = vld [vmem:[#allocation2 + $0x29f8] sm:$0xff]
    %v1593 = vld [vmem:[#allocation2 + $0x2a00] sm:$0xff]
    %v1594 = vld [vmem:[#allocation2 + $0x2a08] sm:$0xff]
    %v1595 = vld [vmem:[#allocation2 + $0x2a10] sm:$0xff]
    %v1596 = vld [vmem:[#allocation2 + $0x2a18] sm:$0xff]
    %v1597 = vld [vmem:[#allocation2 + $0x2a20] sm:$0xff]
    %v1598 = vld [vmem:[#allocation2 + $0x2a28] sm:$0xff]
    %v1599 = vld [vmem:[#allocation2 + $0x2a30] sm:$0xff]
    %v1600 = vld [vmem:[#allocation2 + $0x2a38] sm:$0xff]
    %v1601 = vld [vmem:[#allocation2 + $0x2a40] sm:$0xff]
    %v1602 = vld [vmem:[#allocation2 + $0x2a48] sm:$0xff]
    %v1603 = vld [vmem:[#allocation2 + $0x2a50] sm:$0xff]
    %v1604 = vld [vmem:[#allocation2 + $0x2a58] sm:$0xff]
    %v1605 = vld [vmem:[#allocation2 + $0x2a60] sm:$0xff]
    %v1606 = vld [vmem:[#allocation2 + $0x2a68] sm:$0xff]
    %v1607 = vld [vmem:[#allocation2 + $0x2a70] sm:$0xff]
    %v1608 = vld [vmem:[#allocation2 + $0x2a78] sm:$0xff]
    %v1609 = vld [vmem:[#allocation2 + $0x2a80] sm:$0xff]
    %v1610 = vld [vmem:[#allocation2 + $0x2a88] sm:$0xff]
    %v1611 = vld [vmem:[#allocation2 + $0x2a90] sm:$0xff]
    %v1612 = vld [vmem:[#allocation2 + $0x2a98] sm:$0xff]
    %v1613 = vld [vmem:[#allocation2 + $0x2aa0] sm:$0xff]
    %v1614 = vld [vmem:[#allocation2 + $0x2aa8] sm:$0xff]
    %v1615 = vld [vmem:[#allocation2 + $0x2ab0] sm:$0xff]
    %v1616 = vld [vmem:[#allocation2 + $0x2ab8] sm:$0xff]
    %v1617 = vld [vmem:[#allocation2 + $0x2ac0] sm:$0xff]
    %v1618 = vld [vmem:[#allocation2 + $0x2ac8] sm:$0xff]
    %v1619 = vld [vmem:[#allocation2 + $0x2ad0] sm:$0xff]
    %v1620 = vld [vmem:[#allocation2 + $0x2ad8] sm:$0xff]
    %v1621 = vld [vmem:[#allocation2 + $0x2ae0] sm:$0xff]
    %v1622 = vld [vmem:[#allocation2 + $0x2ae8] sm:$0xff]
    %v1623 = vld [vmem:[#allocation2 + $0x2af0] sm:$0xff]
    %v1624 = vld [vmem:[#allocation2 + $0x2af8] sm:$0xff]
    %v1625 = vld [vmem:[#allocation2 + $0x2b00] sm:$0xff]
    %v1626 = vld [vmem:[#allocation2 + $0x2b08] sm:$0xff]
    %v1627 = vld [vmem:[#allocation2 + $0x2b10] sm:$0xff]
    %v1628 = vld [vmem:[#allocation2 + $0x2b18] sm:$0xff]
    %v1629 = vld [vmem:[#allocation2 + $0x2b20] sm:$0xff]
    %v1630 = vld [vmem:[#allocation2 + $0x2b28] sm:$0xff]
    %v1631 = vld [vmem:[#allocation2 + $0x2b30] sm:$0xff]
    %v1632 = vld [vmem:[#allocation2 + $0x2b38] sm:$0xff]
    %v1633 = vld [vmem:[#allocation2 + $0x2b40] sm:$0xff]
    %v1634 = vld [vmem:[#allocation2 + $0x2b48] sm:$0xff]
    %v1635 = vld [vmem:[#allocation2 + $0x2b50] sm:$0xff]
    %v1636 = vld [vmem:[#allocation2 + $0x2b58] sm:$0xff]
    %v1637 = vld [vmem:[#allocation2 + $0x2b60] sm:$0xff]
    %v1638 = vld [vmem:[#allocation2 + $0x2b68] sm:$0xff]
    %v1639 = vld [vmem:[#allocation2 + $0x2b70] sm:$0xff]
    %v1640 = vld [vmem:[#allocation2 + $0x2b78] sm:$0xff]
    %v1641 = vld [vmem:[#allocation2 + $0x2b80] sm:$0xff]
    %v1642 = vld [vmem:[#allocation2 + $0x2b88] sm:$0xff]
    %v1643 = vld [vmem:[#allocation2 + $0x2b90] sm:$0xff]
    %v1644 = vld [vmem:[#allocation2 + $0x2b98] sm:$0xff]
    %v1645 = vld [vmem:[#allocation2 + $0x2ba0] sm:$0xff]
    %v1646 = vld [vmem:[#allocation2 + $0x2ba8] sm:$0xff]
    %v1647 = vld [vmem:[#allocation2 + $0x2bb0] sm:$0xff]
    %v1648 = vld [vmem:[#allocation2 + $0x2bb8] sm:$0xff]
    %v1649 = vld [vmem:[#allocation2 + $0x2bc0] sm:$0xff]
    %v1650 = vld [vmem:[#allocation2 + $0x2bc8] sm:$0xff]
    %v1651 = vld [vmem:[#allocation2 + $0x2bd0] sm:$0xff]
    %v1652 = vld [vmem:[#allocation2 + $0x2bd8] sm:$0xff]
    %v1653 = vld [vmem:[#allocation2 + $0x2be0] sm:$0xff]
    %v1654 = vld [vmem:[#allocation2 + $0x2be8] sm:$0xff]
    %v1655 = vld [vmem:[#allocation2 + $0x2bf0] sm:$0xff]
    %v1656 = vld [vmem:[#allocation2 + $0x2bf8] sm:$0xff]
    %v1657 = vld [vmem:[#allocation4] sm:$0xff]
    %v1658 = vpack.c.bf16 %v227, %v227
    %v1659 = vpack.c.bf16 %v228, %v228
    %v1660 = vpack.c.bf16 %v229, %v229
    %v1661 = vpack.c.bf16 %v230, %v230
    %v1662 = vpack.c.bf16 %v231, %v231
    %v1663 = vpack.c.bf16 %v232, %v232
    %v1664 = vpack.c.bf16 %v233, %v233
    %v1665 = vpack.c.bf16 %v234, %v234
    %v1666 = vpack.c.bf16 %v235, %v235
    %v1667 = vpack.c.bf16 %v236, %v236
    %v1668 = vpack.c.bf16 %v237, %v237
    %v1669 = vpack.c.bf16 %v238, %v238
    %v1670 = vpack.c.bf16 %v239, %v239
    %v1671 = vpack.c.bf16 %v240, %v240
    %v1672 = vpack.c.bf16 %v241, %v241
    %v1673 = vpack.c.bf16 %v242, %v242
    %v1674 = vpack.c.bf16 %v243, %v243
    %v1675 = vpack.c.bf16 %v244, %v244
    %v1676 = vpack.c.bf16 %v245, %v245
    %v1677 = vpack.c.bf16 %v246, %v246
    %v1678 = vpack.c.bf16 %v247, %v247
    %v1679 = vpack.c.bf16 %v248, %v248
    %v1681 = vlaneseq
    %v1682 = vshrl.u32 %v1681, 7
    %v1683 = vsub.s32 0, %v1682
    %v1684 = vrot.slane %v1657, %v1683
    %v1685 = vlaneseq
    %v1686 = vshrl.u32 %v1685, 7
    %v1687 = vsub.s32 1, %v1686
    %v1688 = vrot.slane %v1657, %v1687
    %v1689 = vlaneseq
    %v1690 = vshrl.u32 %v1689, 7
    %v1691 = vsub.s32 2, %v1690
    %v1692 = vrot.slane %v1657, %v1691
    %v1693 = vlaneseq
    %v1694 = vshrl.u32 %v1693, 7
    %v1695 = vsub.s32 3, %v1694
    %v1696 = vrot.slane %v1657, %v1695
    %v1697 = vlaneseq
    %v1698 = vshrl.u32 %v1697, 7
    %v1699 = vsub.s32 4, %v1698
    %v1700 = vrot.slane %v1657, %v1699
    %v1701 = vlaneseq
    %v1702 = vshrl.u32 %v1701, 7
    %v1703 = vsub.s32 5, %v1702
    %v1704 = vrot.slane %v1657, %v1703
    %v1705 = vlaneseq
    %v1706 = vshrl.u32 %v1705, 7
    %v1707 = vsub.s32 6, %v1706
    %v1708 = vrot.slane %v1657, %v1707
    %v1709 = vlaneseq
    %v1710 = vshrl.u32 %v1709, 7
    %v1711 = vsub.s32 7, %v1710
    %v1712 = vrot.slane %v1657, %v1711
    %v3129 = vunpack.c.l.b16 %v249
    %v3130 = vunpack.c.h.b16 %v249
    %v3131 = vunpack.c.l.b16 %v250
    %v3132 = vunpack.c.h.b16 %v250
    %v3133 = vunpack.c.l.b16 %v251
    %v3134 = vunpack.c.h.b16 %v251
    %v3135 = vunpack.c.l.b16 %v252
    %v3136 = vunpack.c.h.b16 %v252
    %v3137 = vunpack.c.l.b16 %v253
    %v3138 = vunpack.c.h.b16 %v253
    %v3139 = vunpack.c.l.b16 %v254
    %v3140 = vunpack.c.h.b16 %v254
    %v3141 = vunpack.c.l.b16 %v255
    %v3142 = vunpack.c.h.b16 %v255
    %v3143 = vunpack.c.l.b16 %v256
    %v3144 = vunpack.c.h.b16 %v256
    %v3145 = vunpack.c.l.b16 %v257
    %v3146 = vunpack.c.h.b16 %v257
    %v3147 = vunpack.c.l.b16 %v258
    %v3148 = vunpack.c.h.b16 %v258
    %v3149 = vunpack.c.l.b16 %v259
    %v3150 = vunpack.c.h.b16 %v259
    %v3151 = vunpack.c.l.b16 %v260
    %v3152 = vunpack.c.h.b16 %v260
    %v3153 = vunpack.c.l.b16 %v261
    %v3154 = vunpack.c.h.b16 %v261
    %v3155 = vunpack.c.l.b16 %v262
    %v3156 = vunpack.c.h.b16 %v262
    %v3157 = vunpack.c.l.b16 %v263
    %v3158 = vunpack.c.h.b16 %v263
    %v3159 = vunpack.c.l.b16 %v264
    %v3160 = vunpack.c.h.b16 %v264
    %v3161 = vunpack.c.l.b16 %v265
    %v3162 = vunpack.c.h.b16 %v265
    %v3163 = vunpack.c.l.b16 %v266
    %v3164 = vunpack.c.h.b16 %v266
    %v3165 = vunpack.c.l.b16 %v267
    %v3166 = vunpack.c.h.b16 %v267
    %v3167 = vunpack.c.l.b16 %v268
    %v3168 = vunpack.c.h.b16 %v268
    %v3169 = vunpack.c.l.b16 %v269
    %v3170 = vunpack.c.h.b16 %v269
    %v3171 = vunpack.c.l.b16 %v270
    %v3172 = vunpack.c.h.b16 %v270
    %v3173 = vunpack.c.l.b16 %v271
    %v3174 = vunpack.c.h.b16 %v271
    %v3175 = vunpack.c.l.b16 %v272
    %v3176 = vunpack.c.h.b16 %v272
    %v3177 = vunpack.c.l.b16 %v273
    %v3178 = vunpack.c.h.b16 %v273
    %v3179 = vunpack.c.l.b16 %v274
    %v3180 = vunpack.c.h.b16 %v274
    %v3181 = vunpack.c.l.b16 %v275
    %v3182 = vunpack.c.h.b16 %v275
    %v3183 = vunpack.c.l.b16 %v276
    %v3184 = vunpack.c.h.b16 %v276
    %v3185 = vunpack.c.l.b16 %v277
    %v3186 = vunpack.c.h.b16 %v277
    %v3187 = vunpack.c.l.b16 %v278
    %v3188 = vunpack.c.h.b16 %v278
    %v3189 = vunpack.c.l.b16 %v279
    %v3190 = vunpack.c.h.b16 %v279
    %v3191 = vunpack.c.l.b16 %v280
    %v3192 = vunpack.c.h.b16 %v280
    %v3193 = vunpack.c.l.b16 %v281
    %v3194 = vunpack.c.h.b16 %v281
    %v3195 = vunpack.c.l.b16 %v282
    %v3196 = vunpack.c.h.b16 %v282
    %v3197 = vunpack.c.l.b16 %v283
    %v3198 = vunpack.c.h.b16 %v283
    %v3199 = vunpack.c.l.b16 %v284
    %v3200 = vunpack.c.h.b16 %v284
    %v3201 = vunpack.c.l.b16 %v285
    %v3202 = vunpack.c.h.b16 %v285
    %v3203 = vunpack.c.l.b16 %v286
    %v3204 = vunpack.c.h.b16 %v286
    %v3205 = vunpack.c.l.b16 %v287
    %v3206 = vunpack.c.h.b16 %v287
    %v3207 = vunpack.c.l.b16 %v288
    %v3208 = vunpack.c.h.b16 %v288
    %v3209 = vunpack.c.l.b16 %v289
    %v3210 = vunpack.c.h.b16 %v289
    %v3211 = vunpack.c.l.b16 %v290
    %v3212 = vunpack.c.h.b16 %v290
    %v3213 = vunpack.c.l.b16 %v291
    %v3214 = vunpack.c.h.b16 %v291
    %v3215 = vunpack.c.l.b16 %v292
    %v3216 = vunpack.c.h.b16 %v292
    %v3217 = vunpack.c.l.b16 %v293
    %v3218 = vunpack.c.h.b16 %v293
    %v3219 = vunpack.c.l.b16 %v294
    %v3220 = vunpack.c.h.b16 %v294
    %v3221 = vunpack.c.l.b16 %v295
    %v3222 = vunpack.c.h.b16 %v295
    %v3223 = vunpack.c.l.b16 %v296
    %v3224 = vunpack.c.h.b16 %v296
    %v3225 = vunpack.c.l.b16 %v297
    %v3226 = vunpack.c.h.b16 %v297
    %v3227 = vunpack.c.l.b16 %v298
    %v3228 = vunpack.c.h.b16 %v298
    %v3229 = vunpack.c.l.b16 %v299
    %v3230 = vunpack.c.h.b16 %v299
    %v3231 = vunpack.c.l.b16 %v300
    %v3232 = vunpack.c.h.b16 %v300
    %v3233 = vunpack.c.l.b16 %v301
    %v3234 = vunpack.c.h.b16 %v301
    %v3235 = vunpack.c.l.b16 %v302
    %v3236 = vunpack.c.h.b16 %v302
    %v3237 = vunpack.c.l.b16 %v303
    %v3238 = vunpack.c.h.b16 %v303
    %v3239 = vunpack.c.l.b16 %v304
    %v3240 = vunpack.c.h.b16 %v304
    %v3241 = vunpack.c.l.b16 %v305
    %v3242 = vunpack.c.h.b16 %v305
    %v3243 = vunpack.c.l.b16 %v306
    %v3244 = vunpack.c.h.b16 %v306
    %v3245 = vunpack.c.l.b16 %v307
    %v3246 = vunpack.c.h.b16 %v307
    %v3247 = vunpack.c.l.b16 %v308
    %v3248 = vunpack.c.h.b16 %v308
    %v3249 = vunpack.c.l.b16 %v309
    %v3250 = vunpack.c.h.b16 %v309
    %v3251 = vunpack.c.l.b16 %v310
    %v3252 = vunpack.c.h.b16 %v310
    %v3253 = vunpack.c.l.b16 %v311
    %v3254 = vunpack.c.h.b16 %v311
    %v3255 = vunpack.c.l.b16 %v312
    %v3256 = vunpack.c.h.b16 %v312
    %v3257 = vunpack.c.l.b16 %v313
    %v3258 = vunpack.c.h.b16 %v313
    %v3259 = vunpack.c.l.b16 %v314
    %v3260 = vunpack.c.h.b16 %v314
    %v3261 = vunpack.c.l.b16 %v315
    %v3262 = vunpack.c.h.b16 %v315
    %v3263 = vunpack.c.l.b16 %v316
    %v3264 = vunpack.c.h.b16 %v316
    %v3265 = vunpack.c.l.b16 %v317
    %v3266 = vunpack.c.h.b16 %v317
    %v3267 = vunpack.c.l.b16 %v318
    %v3268 = vunpack.c.h.b16 %v318
    %v3269 = vunpack.c.l.b16 %v319
    %v3270 = vunpack.c.h.b16 %v319
    %v3271 = vunpack.c.l.b16 %v320
    %v3272 = vunpack.c.h.b16 %v320
    %v3273 = vunpack.c.l.b16 %v321
    %v3274 = vunpack.c.h.b16 %v321
    %v3275 = vunpack.c.l.b16 %v322
    %v3276 = vunpack.c.h.b16 %v322
    %v3277 = vunpack.c.l.b16 %v323
    %v3278 = vunpack.c.h.b16 %v323
    %v3279 = vunpack.c.l.b16 %v324
    %v3280 = vunpack.c.h.b16 %v324
    %v3281 = vunpack.c.l.b16 %v325
    %v3282 = vunpack.c.h.b16 %v325
    %v3283 = vunpack.c.l.b16 %v326
    %v3284 = vunpack.c.h.b16 %v326
    %v3285 = vunpack.c.l.b16 %v327
    %v3286 = vunpack.c.h.b16 %v327
    %v3287 = vunpack.c.l.b16 %v328
    %v3288 = vunpack.c.h.b16 %v328
    %v3289 = vunpack.c.l.b16 %v329
    %v3290 = vunpack.c.h.b16 %v329
    %v3291 = vunpack.c.l.b16 %v330
    %v3292 = vunpack.c.h.b16 %v330
    %v3293 = vunpack.c.l.b16 %v331
    %v3294 = vunpack.c.h.b16 %v331
    %v3295 = vunpack.c.l.b16 %v332
    %v3296 = vunpack.c.h.b16 %v332
    %v3297 = vunpack.c.l.b16 %v333
    %v3298 = vunpack.c.h.b16 %v333
    %v3299 = vunpack.c.l.b16 %v334
    %v3300 = vunpack.c.h.b16 %v334
    %v3301 = vunpack.c.l.b16 %v335
    %v3302 = vunpack.c.h.b16 %v335
    %v3303 = vunpack.c.l.b16 %v336
    %v3304 = vunpack.c.h.b16 %v336
    %v3305 = vunpack.c.l.b16 %v337
    %v3306 = vunpack.c.h.b16 %v337
    %v3307 = vunpack.c.l.b16 %v338
    %v3308 = vunpack.c.h.b16 %v338
    %v3309 = vunpack.c.l.b16 %v339
    %v3310 = vunpack.c.h.b16 %v339
    %v3311 = vunpack.c.l.b16 %v340
    %v3312 = vunpack.c.h.b16 %v340
    %v3313 = vunpack.c.l.b16 %v341
    %v3314 = vunpack.c.h.b16 %v341
    %v3315 = vunpack.c.l.b16 %v342
    %v3316 = vunpack.c.h.b16 %v342
    %v3317 = vunpack.c.l.b16 %v343
    %v3318 = vunpack.c.h.b16 %v343
    %v3319 = vunpack.c.l.b16 %v344
    %v3320 = vunpack.c.h.b16 %v344
    %v3321 = vunpack.c.l.b16 %v345
    %v3322 = vunpack.c.h.b16 %v345
    %v3323 = vunpack.c.l.b16 %v346
    %v3324 = vunpack.c.h.b16 %v346
    %v3325 = vunpack.c.l.b16 %v347
    %v3326 = vunpack.c.h.b16 %v347
    %v3327 = vunpack.c.l.b16 %v348
    %v3328 = vunpack.c.h.b16 %v348
    %v3329 = vunpack.c.l.b16 %v349
    %v3330 = vunpack.c.h.b16 %v349
    %v3331 = vunpack.c.l.b16 %v350
    %v3332 = vunpack.c.h.b16 %v350
    %v3333 = vunpack.c.l.b16 %v351
    %v3334 = vunpack.c.h.b16 %v351
    %v3335 = vunpack.c.l.b16 %v352
    %v3336 = vunpack.c.h.b16 %v352
    %v3337 = vunpack.c.l.b16 %v353
    %v3338 = vunpack.c.h.b16 %v353
    %v3339 = vunpack.c.l.b16 %v354
    %v3340 = vunpack.c.h.b16 %v354
    %v3341 = vunpack.c.l.b16 %v355
    %v3342 = vunpack.c.h.b16 %v355
    %v3343 = vunpack.c.l.b16 %v356
    %v3344 = vunpack.c.h.b16 %v356
    %v3345 = vunpack.c.l.b16 %v357
    %v3346 = vunpack.c.h.b16 %v357
    %v3347 = vunpack.c.l.b16 %v358
    %v3348 = vunpack.c.h.b16 %v358
    %v3349 = vunpack.c.l.b16 %v359
    %v3350 = vunpack.c.h.b16 %v359
    %v3351 = vunpack.c.l.b16 %v360
    %v3352 = vunpack.c.h.b16 %v360
    %v3353 = vunpack.c.l.b16 %v361
    %v3354 = vunpack.c.h.b16 %v361
    %v3355 = vunpack.c.l.b16 %v362
    %v3356 = vunpack.c.h.b16 %v362
    %v3357 = vunpack.c.l.b16 %v363
    %v3358 = vunpack.c.h.b16 %v363
    %v3359 = vunpack.c.l.b16 %v364
    %v3360 = vunpack.c.h.b16 %v364
    %v3361 = vunpack.c.l.b16 %v365
    %v3362 = vunpack.c.h.b16 %v365
    %v3363 = vunpack.c.l.b16 %v366
    %v3364 = vunpack.c.h.b16 %v366
    %v3365 = vunpack.c.l.b16 %v367
    %v3366 = vunpack.c.h.b16 %v367
    %v3367 = vunpack.c.l.b16 %v368
    %v3368 = vunpack.c.h.b16 %v368
    %v3369 = vunpack.c.l.b16 %v369
    %v3370 = vunpack.c.h.b16 %v369
    %v3371 = vunpack.c.l.b16 %v370
    %v3372 = vunpack.c.h.b16 %v370
    %v3373 = vunpack.c.l.b16 %v371
    %v3374 = vunpack.c.h.b16 %v371
    %v3375 = vunpack.c.l.b16 %v372
    %v3376 = vunpack.c.h.b16 %v372
    %v3377 = vunpack.c.l.b16 %v373
    %v3378 = vunpack.c.h.b16 %v373
    %v3379 = vunpack.c.l.b16 %v374
    %v3380 = vunpack.c.h.b16 %v374
    %v3381 = vunpack.c.l.b16 %v375
    %v3382 = vunpack.c.h.b16 %v375
    %v3383 = vunpack.c.l.b16 %v376
    %v3384 = vunpack.c.h.b16 %v376
    %v3385 = vunpack.c.l.b16 %v377
    %v3386 = vunpack.c.h.b16 %v377
    %v3387 = vunpack.c.l.b16 %v378
    %v3388 = vunpack.c.h.b16 %v378
    %v3389 = vunpack.c.l.b16 %v379
    %v3390 = vunpack.c.h.b16 %v379
    %v3391 = vunpack.c.l.b16 %v380
    %v3392 = vunpack.c.h.b16 %v380
    %v3393 = vunpack.c.l.b16 %v381
    %v3394 = vunpack.c.h.b16 %v381
    %v3395 = vunpack.c.l.b16 %v382
    %v3396 = vunpack.c.h.b16 %v382
    %v3397 = vunpack.c.l.b16 %v383
    %v3398 = vunpack.c.h.b16 %v383
    %v3399 = vunpack.c.l.b16 %v384
    %v3400 = vunpack.c.h.b16 %v384
    %v3401 = vunpack.c.l.b16 %v385
    %v3402 = vunpack.c.h.b16 %v385
    %v3403 = vunpack.c.l.b16 %v386
    %v3404 = vunpack.c.h.b16 %v386
    %v3405 = vunpack.c.l.b16 %v387
    %v3406 = vunpack.c.h.b16 %v387
    %v3407 = vunpack.c.l.b16 %v388
    %v3408 = vunpack.c.h.b16 %v388
    %v3409 = vunpack.c.l.b16 %v389
    %v3410 = vunpack.c.h.b16 %v389
    %v3411 = vunpack.c.l.b16 %v390
    %v3412 = vunpack.c.h.b16 %v390
    %v3413 = vunpack.c.l.b16 %v391
    %v3414 = vunpack.c.h.b16 %v391
    %v3415 = vunpack.c.l.b16 %v392
    %v3416 = vunpack.c.h.b16 %v392
    %v3417 = vunpack.c.l.b16 %v393
    %v3418 = vunpack.c.h.b16 %v393
    %v3419 = vunpack.c.l.b16 %v394
    %v3420 = vunpack.c.h.b16 %v394
    %v3421 = vunpack.c.l.b16 %v395
    %v3422 = vunpack.c.h.b16 %v395
    %v3423 = vunpack.c.l.b16 %v396
    %v3424 = vunpack.c.h.b16 %v396
    %v3425 = vunpack.c.l.b16 %v397
    %v3426 = vunpack.c.h.b16 %v397
    %v3427 = vunpack.c.l.b16 %v398
    %v3428 = vunpack.c.h.b16 %v398
    %v3429 = vunpack.c.l.b16 %v399
    %v3430 = vunpack.c.h.b16 %v399
    %v3431 = vunpack.c.l.b16 %v400
    %v3432 = vunpack.c.h.b16 %v400
    %v3433 = vunpack.c.l.b16 %v401
    %v3434 = vunpack.c.h.b16 %v401
    %v3435 = vunpack.c.l.b16 %v402
    %v3436 = vunpack.c.h.b16 %v402
    %v3437 = vunpack.c.l.b16 %v403
    %v3438 = vunpack.c.h.b16 %v403
    %v3439 = vunpack.c.l.b16 %v404
    %v3440 = vunpack.c.h.b16 %v404
    %v3441 = vunpack.c.l.b16 %v405
    %v3442 = vunpack.c.h.b16 %v405
    %v3443 = vunpack.c.l.b16 %v406
    %v3444 = vunpack.c.h.b16 %v406
    %v3445 = vunpack.c.l.b16 %v407
    %v3446 = vunpack.c.h.b16 %v407
    %v3447 = vunpack.c.l.b16 %v408
    %v3448 = vunpack.c.h.b16 %v408
    %v3449 = vunpack.c.l.b16 %v409
    %v3450 = vunpack.c.h.b16 %v409
    %v3451 = vunpack.c.l.b16 %v410
    %v3452 = vunpack.c.h.b16 %v410
    %v3453 = vunpack.c.l.b16 %v411
    %v3454 = vunpack.c.h.b16 %v411
    %v3455 = vunpack.c.l.b16 %v412
    %v3456 = vunpack.c.h.b16 %v412
    %v3457 = vunpack.c.l.b16 %v413
    %v3458 = vunpack.c.h.b16 %v413
    %v3459 = vunpack.c.l.b16 %v414
    %v3460 = vunpack.c.h.b16 %v414
    %v3461 = vunpack.c.l.b16 %v415
    %v3462 = vunpack.c.h.b16 %v415
    %v3463 = vunpack.c.l.b16 %v416
    %v3464 = vunpack.c.h.b16 %v416
    %v3465 = vunpack.c.l.b16 %v417
    %v3466 = vunpack.c.h.b16 %v417
    %v3467 = vunpack.c.l.b16 %v418
    %v3468 = vunpack.c.h.b16 %v418
    %v3469 = vunpack.c.l.b16 %v419
    %v3470 = vunpack.c.h.b16 %v419
    %v3471 = vunpack.c.l.b16 %v420
    %v3472 = vunpack.c.h.b16 %v420
    %v3473 = vunpack.c.l.b16 %v421
    %v3474 = vunpack.c.h.b16 %v421
    %v3475 = vunpack.c.l.b16 %v422
    %v3476 = vunpack.c.h.b16 %v422
    %v3477 = vunpack.c.l.b16 %v423
    %v3478 = vunpack.c.h.b16 %v423
    %v3479 = vunpack.c.l.b16 %v424
    %v3480 = vunpack.c.h.b16 %v424
    %v3481 = vunpack.c.l.b16 %v425
    %v3482 = vunpack.c.h.b16 %v425
    %v3483 = vunpack.c.l.b16 %v426
    %v3484 = vunpack.c.h.b16 %v426
    %v3485 = vunpack.c.l.b16 %v427
    %v3486 = vunpack.c.h.b16 %v427
    %v3487 = vunpack.c.l.b16 %v428
    %v3488 = vunpack.c.h.b16 %v428
    %v3489 = vunpack.c.l.b16 %v429
    %v3490 = vunpack.c.h.b16 %v429
    %v3491 = vunpack.c.l.b16 %v430
    %v3492 = vunpack.c.h.b16 %v430
    %v3493 = vunpack.c.l.b16 %v431
    %v3494 = vunpack.c.h.b16 %v431
    %v3495 = vunpack.c.l.b16 %v432
    %v3496 = vunpack.c.h.b16 %v432
    %v3497 = vunpack.c.l.b16 %v433
    %v3498 = vunpack.c.h.b16 %v433
    %v3499 = vunpack.c.l.b16 %v434
    %v3500 = vunpack.c.h.b16 %v434
    %v3501 = vunpack.c.l.b16 %v435
    %v3502 = vunpack.c.h.b16 %v435
    %v3503 = vunpack.c.l.b16 %v436
    %v3504 = vunpack.c.h.b16 %v436
    %v3505 = vunpack.c.l.b16 %v437
    %v3506 = vunpack.c.h.b16 %v437
    %v3507 = vunpack.c.l.b16 %v438
    %v3508 = vunpack.c.h.b16 %v438
    %v3509 = vunpack.c.l.b16 %v439
    %v3510 = vunpack.c.h.b16 %v439
    %v3511 = vunpack.c.l.b16 %v440
    %v3512 = vunpack.c.h.b16 %v440
    %v3513 = vunpack.c.l.b16 %v441
    %v3514 = vunpack.c.h.b16 %v441
    %v3515 = vunpack.c.l.b16 %v442
    %v3516 = vunpack.c.h.b16 %v442
    %v3517 = vunpack.c.l.b16 %v443
    %v3518 = vunpack.c.h.b16 %v443
    %v3519 = vunpack.c.l.b16 %v444
    %v3520 = vunpack.c.h.b16 %v444
    %v3521 = vunpack.c.l.b16 %v445
    %v3522 = vunpack.c.h.b16 %v445
    %v3523 = vunpack.c.l.b16 %v446
    %v3524 = vunpack.c.h.b16 %v446
    %v3525 = vunpack.c.l.b16 %v447
    %v3526 = vunpack.c.h.b16 %v447
    %v3527 = vunpack.c.l.b16 %v448
    %v3528 = vunpack.c.h.b16 %v448
    %v3529 = vunpack.c.l.b16 %v449
    %v3530 = vunpack.c.h.b16 %v449
    %v3531 = vunpack.c.l.b16 %v450
    %v3532 = vunpack.c.h.b16 %v450
    %v3533 = vunpack.c.l.b16 %v451
    %v3534 = vunpack.c.h.b16 %v451
    %v3535 = vunpack.c.l.b16 %v452
    %v3536 = vunpack.c.h.b16 %v452
    %v3537 = vunpack.c.l.b16 %v453
    %v3538 = vunpack.c.h.b16 %v453
    %v3539 = vunpack.c.l.b16 %v454
    %v3540 = vunpack.c.h.b16 %v454
    %v3541 = vunpack.c.l.b16 %v455
    %v3542 = vunpack.c.h.b16 %v455
    %v3543 = vunpack.c.l.b16 %v456
    %v3544 = vunpack.c.h.b16 %v456
    %v3545 = vunpack.c.l.b16 %v457
    %v3546 = vunpack.c.h.b16 %v457
    %v3547 = vunpack.c.l.b16 %v458
    %v3548 = vunpack.c.h.b16 %v458
    %v3549 = vunpack.c.l.b16 %v459
    %v3550 = vunpack.c.h.b16 %v459
    %v3551 = vunpack.c.l.b16 %v460
    %v3552 = vunpack.c.h.b16 %v460
    %v3553 = vunpack.c.l.b16 %v461
    %v3554 = vunpack.c.h.b16 %v461
    %v3555 = vunpack.c.l.b16 %v462
    %v3556 = vunpack.c.h.b16 %v462
    %v3557 = vunpack.c.l.b16 %v463
    %v3558 = vunpack.c.h.b16 %v463
    %v3559 = vunpack.c.l.b16 %v464
    %v3560 = vunpack.c.h.b16 %v464
    %v3561 = vunpack.c.l.b16 %v465
    %v3562 = vunpack.c.h.b16 %v465
    %v3563 = vunpack.c.l.b16 %v466
    %v3564 = vunpack.c.h.b16 %v466
    %v3565 = vunpack.c.l.b16 %v467
    %v3566 = vunpack.c.h.b16 %v467
    %v3567 = vunpack.c.l.b16 %v468
    %v3568 = vunpack.c.h.b16 %v468
    %v3569 = vunpack.c.l.b16 %v469
    %v3570 = vunpack.c.h.b16 %v469
    %v3571 = vunpack.c.l.b16 %v470
    %v3572 = vunpack.c.h.b16 %v470
    %v3573 = vunpack.c.l.b16 %v471
    %v3574 = vunpack.c.h.b16 %v471
    %v3575 = vunpack.c.l.b16 %v472
    %v3576 = vunpack.c.h.b16 %v472
    %v3577 = vunpack.c.l.b16 %v473
    %v3578 = vunpack.c.h.b16 %v473
    %v3579 = vunpack.c.l.b16 %v474
    %v3580 = vunpack.c.h.b16 %v474
    %v3581 = vunpack.c.l.b16 %v475
    %v3582 = vunpack.c.h.b16 %v475
    %v3583 = vunpack.c.l.b16 %v476
    %v3584 = vunpack.c.h.b16 %v476
    %v3585 = vunpack.c.l.b16 %v477
    %v3586 = vunpack.c.h.b16 %v477
    %v3587 = vunpack.c.l.b16 %v478
    %v3588 = vunpack.c.h.b16 %v478
    %v3589 = vunpack.c.l.b16 %v479
    %v3590 = vunpack.c.h.b16 %v479
    %v3591 = vunpack.c.l.b16 %v480
    %v3592 = vunpack.c.h.b16 %v480
    %v3593 = vunpack.c.l.b16 %v481
    %v3594 = vunpack.c.h.b16 %v481
    %v3595 = vunpack.c.l.b16 %v482
    %v3596 = vunpack.c.h.b16 %v482
    %v3597 = vunpack.c.l.b16 %v483
    %v3598 = vunpack.c.h.b16 %v483
    %v3599 = vunpack.c.l.b16 %v484
    %v3600 = vunpack.c.h.b16 %v484
    %v3601 = vunpack.c.l.b16 %v485
    %v3602 = vunpack.c.h.b16 %v485
    %v3603 = vunpack.c.l.b16 %v486
    %v3604 = vunpack.c.h.b16 %v486
    %v3605 = vunpack.c.l.b16 %v487
    %v3606 = vunpack.c.h.b16 %v487
    %v3607 = vunpack.c.l.b16 %v488
    %v3608 = vunpack.c.h.b16 %v488
    %v3609 = vunpack.c.l.b16 %v489
    %v3610 = vunpack.c.h.b16 %v489
    %v3611 = vunpack.c.l.b16 %v490
    %v3612 = vunpack.c.h.b16 %v490
    %v3613 = vunpack.c.l.b16 %v491
    %v3614 = vunpack.c.h.b16 %v491
    %v3615 = vunpack.c.l.b16 %v492
    %v3616 = vunpack.c.h.b16 %v492
    %v3617 = vunpack.c.l.b16 %v493
    %v3618 = vunpack.c.h.b16 %v493
    %v3619 = vunpack.c.l.b16 %v494
    %v3620 = vunpack.c.h.b16 %v494
    %v3621 = vunpack.c.l.b16 %v495
    %v3622 = vunpack.c.h.b16 %v495
    %v3623 = vunpack.c.l.b16 %v496
    %v3624 = vunpack.c.h.b16 %v496
    %v3625 = vunpack.c.l.b16 %v497
    %v3626 = vunpack.c.h.b16 %v497
    %v3627 = vunpack.c.l.b16 %v498
    %v3628 = vunpack.c.h.b16 %v498
    %v3629 = vunpack.c.l.b16 %v499
    %v3630 = vunpack.c.h.b16 %v499
    %v3631 = vunpack.c.l.b16 %v500
    %v3632 = vunpack.c.h.b16 %v500
    %v3633 = vunpack.c.l.b16 %v501
    %v3634 = vunpack.c.h.b16 %v501
    %v3635 = vunpack.c.l.b16 %v502
    %v3636 = vunpack.c.h.b16 %v502
    %v3637 = vunpack.c.l.b16 %v503
    %v3638 = vunpack.c.h.b16 %v503
    %v3639 = vunpack.c.l.b16 %v504
    %v3640 = vunpack.c.h.b16 %v504
    %v3641 = vunpack.c.l.b16 %v505
    %v3642 = vunpack.c.h.b16 %v505
    %v3643 = vunpack.c.l.b16 %v506
    %v3644 = vunpack.c.h.b16 %v506
    %v3645 = vunpack.c.l.b16 %v507
    %v3646 = vunpack.c.h.b16 %v507
    %v3647 = vunpack.c.l.b16 %v508
    %v3648 = vunpack.c.h.b16 %v508
    %v3649 = vunpack.c.l.b16 %v509
    %v3650 = vunpack.c.h.b16 %v509
    %v3651 = vunpack.c.l.b16 %v510
    %v3652 = vunpack.c.h.b16 %v510
    %v3653 = vunpack.c.l.b16 %v511
    %v3654 = vunpack.c.h.b16 %v511
    %v3655 = vunpack.c.l.b16 %v512
    %v3656 = vunpack.c.h.b16 %v512
    %v3657 = vunpack.c.l.b16 %v513
    %v3658 = vunpack.c.h.b16 %v513
    %v3659 = vunpack.c.l.b16 %v514
    %v3660 = vunpack.c.h.b16 %v514
    %v3661 = vunpack.c.l.b16 %v515
    %v3662 = vunpack.c.h.b16 %v515
    %v3663 = vunpack.c.l.b16 %v516
    %v3664 = vunpack.c.h.b16 %v516
    %v3665 = vunpack.c.l.b16 %v517
    %v3666 = vunpack.c.h.b16 %v517
    %v3667 = vunpack.c.l.b16 %v518
    %v3668 = vunpack.c.h.b16 %v518
    %v3669 = vunpack.c.l.b16 %v519
    %v3670 = vunpack.c.h.b16 %v519
    %v3671 = vunpack.c.l.b16 %v520
    %v3672 = vunpack.c.h.b16 %v520
    %v3673 = vunpack.c.l.b16 %v521
    %v3674 = vunpack.c.h.b16 %v521
    %v3675 = vunpack.c.l.b16 %v522
    %v3676 = vunpack.c.h.b16 %v522
    %v3677 = vunpack.c.l.b16 %v523
    %v3678 = vunpack.c.h.b16 %v523
    %v3679 = vunpack.c.l.b16 %v524
    %v3680 = vunpack.c.h.b16 %v524
    %v3681 = vunpack.c.l.b16 %v525
    %v3682 = vunpack.c.h.b16 %v525
    %v3683 = vunpack.c.l.b16 %v526
    %v3684 = vunpack.c.h.b16 %v526
    %v3685 = vunpack.c.l.b16 %v527
    %v3686 = vunpack.c.h.b16 %v527
    %v3687 = vunpack.c.l.b16 %v528
    %v3688 = vunpack.c.h.b16 %v528
    %v3689 = vunpack.c.l.b16 %v529
    %v3690 = vunpack.c.h.b16 %v529
    %v3691 = vunpack.c.l.b16 %v530
    %v3692 = vunpack.c.h.b16 %v530
    %v3693 = vunpack.c.l.b16 %v531
    %v3694 = vunpack.c.h.b16 %v531
    %v3695 = vunpack.c.l.b16 %v532
    %v3696 = vunpack.c.h.b16 %v532
    %v3697 = vunpack.c.l.b16 %v533
    %v3698 = vunpack.c.h.b16 %v533
    %v3699 = vunpack.c.l.b16 %v534
    %v3700 = vunpack.c.h.b16 %v534
    %v3701 = vunpack.c.l.b16 %v535
    %v3702 = vunpack.c.h.b16 %v535
    %v3703 = vunpack.c.l.b16 %v536
    %v3704 = vunpack.c.h.b16 %v536
    %v3705 = vunpack.c.l.b16 %v537
    %v3706 = vunpack.c.h.b16 %v537
    %v3707 = vunpack.c.l.b16 %v538
    %v3708 = vunpack.c.h.b16 %v538
    %v3709 = vunpack.c.l.b16 %v539
    %v3710 = vunpack.c.h.b16 %v539
    %v3711 = vunpack.c.l.b16 %v540
    %v3712 = vunpack.c.h.b16 %v540
    %v3713 = vunpack.c.l.b16 %v541
    %v3714 = vunpack.c.h.b16 %v541
    %v3715 = vunpack.c.l.b16 %v542
    %v3716 = vunpack.c.h.b16 %v542
    %v3717 = vunpack.c.l.b16 %v543
    %v3718 = vunpack.c.h.b16 %v543
    %v3719 = vunpack.c.l.b16 %v544
    %v3720 = vunpack.c.h.b16 %v544
    %v3721 = vunpack.c.l.b16 %v545
    %v3722 = vunpack.c.h.b16 %v545
    %v3723 = vunpack.c.l.b16 %v546
    %v3724 = vunpack.c.h.b16 %v546
    %v3725 = vunpack.c.l.b16 %v547
    %v3726 = vunpack.c.h.b16 %v547
    %v3727 = vunpack.c.l.b16 %v548
    %v3728 = vunpack.c.h.b16 %v548
    %v3729 = vunpack.c.l.b16 %v549
    %v3730 = vunpack.c.h.b16 %v549
    %v3731 = vunpack.c.l.b16 %v550
    %v3732 = vunpack.c.h.b16 %v550
    %v3733 = vunpack.c.l.b16 %v551
    %v3734 = vunpack.c.h.b16 %v551
    %v3735 = vunpack.c.l.b16 %v552
    %v3736 = vunpack.c.h.b16 %v552
    %v3737 = vunpack.c.l.b16 %v553
    %v3738 = vunpack.c.h.b16 %v553
    %v3739 = vunpack.c.l.b16 %v554
    %v3740 = vunpack.c.h.b16 %v554
    %v3741 = vunpack.c.l.b16 %v555
    %v3742 = vunpack.c.h.b16 %v555
    %v3743 = vunpack.c.l.b16 %v556
    %v3744 = vunpack.c.h.b16 %v556
    %v3745 = vunpack.c.l.b16 %v557
    %v3746 = vunpack.c.h.b16 %v557
    %v3747 = vunpack.c.l.b16 %v558
    %v3748 = vunpack.c.h.b16 %v558
    %v3749 = vunpack.c.l.b16 %v559
    %v3750 = vunpack.c.h.b16 %v559
    %v3751 = vunpack.c.l.b16 %v560
    %v3752 = vunpack.c.h.b16 %v560
    %v3753 = vunpack.c.l.b16 %v561
    %v3754 = vunpack.c.h.b16 %v561
    %v3755 = vunpack.c.l.b16 %v562
    %v3756 = vunpack.c.h.b16 %v562
    %v3757 = vunpack.c.l.b16 %v563
    %v3758 = vunpack.c.h.b16 %v563
    %v3759 = vunpack.c.l.b16 %v564
    %v3760 = vunpack.c.h.b16 %v564
    %v3761 = vunpack.c.l.b16 %v565
    %v3762 = vunpack.c.h.b16 %v565
    %v3763 = vunpack.c.l.b16 %v566
    %v3764 = vunpack.c.h.b16 %v566
    %v3765 = vunpack.c.l.b16 %v567
    %v3766 = vunpack.c.h.b16 %v567
    %v3767 = vunpack.c.l.b16 %v568
    %v3768 = vunpack.c.h.b16 %v568
    %v3769 = vunpack.c.l.b16 %v569
    %v3770 = vunpack.c.h.b16 %v569
    %v3771 = vunpack.c.l.b16 %v570
    %v3772 = vunpack.c.h.b16 %v570
    %v3773 = vunpack.c.l.b16 %v571
    %v3774 = vunpack.c.h.b16 %v571
    %v3775 = vunpack.c.l.b16 %v572
    %v3776 = vunpack.c.h.b16 %v572
    %v3777 = vunpack.c.l.b16 %v573
    %v3778 = vunpack.c.h.b16 %v573
    %v3779 = vunpack.c.l.b16 %v574
    %v3780 = vunpack.c.h.b16 %v574
    %v3781 = vunpack.c.l.b16 %v575
    %v3782 = vunpack.c.h.b16 %v575
    %v3783 = vunpack.c.l.b16 %v576
    %v3784 = vunpack.c.h.b16 %v576
    %v3785 = vunpack.c.l.b16 %v577
    %v3786 = vunpack.c.h.b16 %v577
    %v3787 = vunpack.c.l.b16 %v578
    %v3788 = vunpack.c.h.b16 %v578
    %v3789 = vunpack.c.l.b16 %v579
    %v3790 = vunpack.c.h.b16 %v579
    %v3791 = vunpack.c.l.b16 %v580
    %v3792 = vunpack.c.h.b16 %v580
    %v3793 = vunpack.c.l.b16 %v581
    %v3794 = vunpack.c.h.b16 %v581
    %v3795 = vunpack.c.l.b16 %v582
    %v3796 = vunpack.c.h.b16 %v582
    %v3797 = vunpack.c.l.b16 %v583
    %v3798 = vunpack.c.h.b16 %v583
    %v3799 = vunpack.c.l.b16 %v584
    %v3800 = vunpack.c.h.b16 %v584
    %v3801 = vunpack.c.l.b16 %v585
    %v3802 = vunpack.c.h.b16 %v585
    %v3803 = vunpack.c.l.b16 %v586
    %v3804 = vunpack.c.h.b16 %v586
    %v3805 = vunpack.c.l.b16 %v587
    %v3806 = vunpack.c.h.b16 %v587
    %v3807 = vunpack.c.l.b16 %v588
    %v3808 = vunpack.c.h.b16 %v588
    %v3809 = vunpack.c.l.b16 %v589
    %v3810 = vunpack.c.h.b16 %v589
    %v3811 = vunpack.c.l.b16 %v590
    %v3812 = vunpack.c.h.b16 %v590
    %v3813 = vunpack.c.l.b16 %v591
    %v3814 = vunpack.c.h.b16 %v591
    %v3815 = vunpack.c.l.b16 %v592
    %v3816 = vunpack.c.h.b16 %v592
    %v3817 = vunpack.c.l.b16 %v593
    %v3818 = vunpack.c.h.b16 %v593
    %v3819 = vunpack.c.l.b16 %v594
    %v3820 = vunpack.c.h.b16 %v594
    %v3821 = vunpack.c.l.b16 %v595
    %v3822 = vunpack.c.h.b16 %v595
    %v3823 = vunpack.c.l.b16 %v596
    %v3824 = vunpack.c.h.b16 %v596
    %v3825 = vunpack.c.l.b16 %v597
    %v3826 = vunpack.c.h.b16 %v597
    %v3827 = vunpack.c.l.b16 %v598
    %v3828 = vunpack.c.h.b16 %v598
    %v3829 = vunpack.c.l.b16 %v599
    %v3830 = vunpack.c.h.b16 %v599
    %v3831 = vunpack.c.l.b16 %v600
    %v3832 = vunpack.c.h.b16 %v600
    %v3833 = vunpack.c.l.b16 %v601
    %v3834 = vunpack.c.h.b16 %v601
    %v3835 = vunpack.c.l.b16 %v602
    %v3836 = vunpack.c.h.b16 %v602
    %v3837 = vunpack.c.l.b16 %v603
    %v3838 = vunpack.c.h.b16 %v603
    %v3839 = vunpack.c.l.b16 %v604
    %v3840 = vunpack.c.h.b16 %v604
    %v3841 = vunpack.c.l.b16 %v605
    %v3842 = vunpack.c.h.b16 %v605
    %v3843 = vunpack.c.l.b16 %v606
    %v3844 = vunpack.c.h.b16 %v606
    %v3845 = vunpack.c.l.b16 %v607
    %v3846 = vunpack.c.h.b16 %v607
    %v3847 = vunpack.c.l.b16 %v608
    %v3848 = vunpack.c.h.b16 %v608
    %v3849 = vunpack.c.l.b16 %v609
    %v3850 = vunpack.c.h.b16 %v609
    %v3851 = vunpack.c.l.b16 %v610
    %v3852 = vunpack.c.h.b16 %v610
    %v3853 = vunpack.c.l.b16 %v611
    %v3854 = vunpack.c.h.b16 %v611
    %v3855 = vunpack.c.l.b16 %v612
    %v3856 = vunpack.c.h.b16 %v612
    %v3857 = vunpack.c.l.b16 %v613
    %v3858 = vunpack.c.h.b16 %v613
    %v3859 = vunpack.c.l.b16 %v614
    %v3860 = vunpack.c.h.b16 %v614
    %v3861 = vunpack.c.l.b16 %v615
    %v3862 = vunpack.c.h.b16 %v615
    %v3863 = vunpack.c.l.b16 %v616
    %v3864 = vunpack.c.h.b16 %v616
    %v3865 = vunpack.c.l.b16 %v617
    %v3866 = vunpack.c.h.b16 %v617
    %v3867 = vunpack.c.l.b16 %v618
    %v3868 = vunpack.c.h.b16 %v618
    %v3869 = vunpack.c.l.b16 %v619
    %v3870 = vunpack.c.h.b16 %v619
    %v3871 = vunpack.c.l.b16 %v620
    %v3872 = vunpack.c.h.b16 %v620
    %v3873 = vunpack.c.l.b16 %v621
    %v3874 = vunpack.c.h.b16 %v621
    %v3875 = vunpack.c.l.b16 %v622
    %v3876 = vunpack.c.h.b16 %v622
    %v3877 = vunpack.c.l.b16 %v623
    %v3878 = vunpack.c.h.b16 %v623
    %v3879 = vunpack.c.l.b16 %v624
    %v3880 = vunpack.c.h.b16 %v624
    %v3881 = vunpack.c.l.b16 %v625
    %v3882 = vunpack.c.h.b16 %v625
    %v3883 = vunpack.c.l.b16 %v626
    %v3884 = vunpack.c.h.b16 %v626
    %v3885 = vunpack.c.l.b16 %v627
    %v3886 = vunpack.c.h.b16 %v627
    %v3887 = vunpack.c.l.b16 %v628
    %v3888 = vunpack.c.h.b16 %v628
    %v3889 = vunpack.c.l.b16 %v629
    %v3890 = vunpack.c.h.b16 %v629
    %v3891 = vunpack.c.l.b16 %v630
    %v3892 = vunpack.c.h.b16 %v630
    %v3893 = vunpack.c.l.b16 %v631
    %v3894 = vunpack.c.h.b16 %v631
    %v3895 = vunpack.c.l.b16 %v632
    %v3896 = vunpack.c.h.b16 %v632
    %v3897 = vunpack.c.l.b16 %v633
    %v3898 = vunpack.c.h.b16 %v633
    %v3899 = vunpack.c.l.b16 %v634
    %v3900 = vunpack.c.h.b16 %v634
    %v3901 = vunpack.c.l.b16 %v635
    %v3902 = vunpack.c.h.b16 %v635
    %v3903 = vunpack.c.l.b16 %v636
    %v3904 = vunpack.c.h.b16 %v636
    %v3905 = vunpack.c.l.b16 %v637
    %v3906 = vunpack.c.h.b16 %v637
    %v3907 = vunpack.c.l.b16 %v638
    %v3908 = vunpack.c.h.b16 %v638
    %v3909 = vunpack.c.l.b16 %v639
    %v3910 = vunpack.c.h.b16 %v639
    %v3911 = vunpack.c.l.b16 %v640
    %v3912 = vunpack.c.h.b16 %v640
    %v3913 = vunpack.c.l.b16 %v641
    %v3914 = vunpack.c.h.b16 %v641
    %v3915 = vunpack.c.l.b16 %v642
    %v3916 = vunpack.c.h.b16 %v642
    %v3917 = vunpack.c.l.b16 %v643
    %v3918 = vunpack.c.h.b16 %v643
    %v3919 = vunpack.c.l.b16 %v644
    %v3920 = vunpack.c.h.b16 %v644
    %v3921 = vunpack.c.l.b16 %v645
    %v3922 = vunpack.c.h.b16 %v645
    %v3923 = vunpack.c.l.b16 %v646
    %v3924 = vunpack.c.h.b16 %v646
    %v3925 = vunpack.c.l.b16 %v647
    %v3926 = vunpack.c.h.b16 %v647
    %v3927 = vunpack.c.l.b16 %v648
    %v3928 = vunpack.c.h.b16 %v648
    %v3929 = vunpack.c.l.b16 %v649
    %v3930 = vunpack.c.h.b16 %v649
    %v3931 = vunpack.c.l.b16 %v650
    %v3932 = vunpack.c.h.b16 %v650
    %v3933 = vunpack.c.l.b16 %v651
    %v3934 = vunpack.c.h.b16 %v651
    %v3935 = vunpack.c.l.b16 %v652
    %v3936 = vunpack.c.h.b16 %v652
    %v3937 = vunpack.c.l.b16 %v653
    %v3938 = vunpack.c.h.b16 %v653
    %v3939 = vunpack.c.l.b16 %v654
    %v3940 = vunpack.c.h.b16 %v654
    %v3941 = vunpack.c.l.b16 %v655
    %v3942 = vunpack.c.h.b16 %v655
    %v3943 = vunpack.c.l.b16 %v656
    %v3944 = vunpack.c.h.b16 %v656
    %v3945 = vunpack.c.l.b16 %v657
    %v3946 = vunpack.c.h.b16 %v657
    %v3947 = vunpack.c.l.b16 %v658
    %v3948 = vunpack.c.h.b16 %v658
    %v3949 = vunpack.c.l.b16 %v659
    %v3950 = vunpack.c.h.b16 %v659
    %v3951 = vunpack.c.l.b16 %v660
    %v3952 = vunpack.c.h.b16 %v660
    %v3953 = vunpack.c.l.b16 %v661
    %v3954 = vunpack.c.h.b16 %v661
    %v3955 = vunpack.c.l.b16 %v662
    %v3956 = vunpack.c.h.b16 %v662
    %v3957 = vunpack.c.l.b16 %v663
    %v3958 = vunpack.c.h.b16 %v663
    %v3959 = vunpack.c.l.b16 %v664
    %v3960 = vunpack.c.h.b16 %v664
    %v3961 = vunpack.c.l.b16 %v665
    %v3962 = vunpack.c.h.b16 %v665
    %v3963 = vunpack.c.l.b16 %v666
    %v3964 = vunpack.c.h.b16 %v666
    %v3965 = vunpack.c.l.b16 %v667
    %v3966 = vunpack.c.h.b16 %v667
    %v3967 = vunpack.c.l.b16 %v668
    %v3968 = vunpack.c.h.b16 %v668
    %v3969 = vunpack.c.l.b16 %v669
    %v3970 = vunpack.c.h.b16 %v669
    %v3971 = vunpack.c.l.b16 %v670
    %v3972 = vunpack.c.h.b16 %v670
    %v3973 = vunpack.c.l.b16 %v671
    %v3974 = vunpack.c.h.b16 %v671
    %v3975 = vunpack.c.l.b16 %v672
    %v3976 = vunpack.c.h.b16 %v672
    %v3977 = vunpack.c.l.b16 %v673
    %v3978 = vunpack.c.h.b16 %v673
    %v3979 = vunpack.c.l.b16 %v674
    %v3980 = vunpack.c.h.b16 %v674
    %v3981 = vunpack.c.l.b16 %v675
    %v3982 = vunpack.c.h.b16 %v675
    %v3983 = vunpack.c.l.b16 %v676
    %v3984 = vunpack.c.h.b16 %v676
    %v3985 = vunpack.c.l.b16 %v677
    %v3986 = vunpack.c.h.b16 %v677
    %v3987 = vunpack.c.l.b16 %v678
    %v3988 = vunpack.c.h.b16 %v678
    %v3989 = vunpack.c.l.b16 %v679
    %v3990 = vunpack.c.h.b16 %v679
    %v3991 = vunpack.c.l.b16 %v680
    %v3992 = vunpack.c.h.b16 %v680
    %v3993 = vunpack.c.l.b16 %v681
    %v3994 = vunpack.c.h.b16 %v681
    %v3995 = vunpack.c.l.b16 %v682
    %v3996 = vunpack.c.h.b16 %v682
    %v3997 = vunpack.c.l.b16 %v683
    %v3998 = vunpack.c.h.b16 %v683
    %v3999 = vunpack.c.l.b16 %v684
    %v4000 = vunpack.c.h.b16 %v684
    %v4001 = vunpack.c.l.b16 %v685
    %v4002 = vunpack.c.h.b16 %v685
    %v4003 = vunpack.c.l.b16 %v686
    %v4004 = vunpack.c.h.b16 %v686
    %v4005 = vunpack.c.l.b16 %v687
    %v4006 = vunpack.c.h.b16 %v687
    %v4007 = vunpack.c.l.b16 %v688
    %v4008 = vunpack.c.h.b16 %v688
    %v4009 = vunpack.c.l.b16 %v689
    %v4010 = vunpack.c.h.b16 %v689
    %v4011 = vunpack.c.l.b16 %v690
    %v4012 = vunpack.c.h.b16 %v690
    %v4013 = vunpack.c.l.b16 %v691
    %v4014 = vunpack.c.h.b16 %v691
    %v4015 = vunpack.c.l.b16 %v692
    %v4016 = vunpack.c.h.b16 %v692
    %v4017 = vunpack.c.l.b16 %v693
    %v4018 = vunpack.c.h.b16 %v693
    %v4019 = vunpack.c.l.b16 %v694
    %v4020 = vunpack.c.h.b16 %v694
    %v4021 = vunpack.c.l.b16 %v695
    %v4022 = vunpack.c.h.b16 %v695
    %v4023 = vunpack.c.l.b16 %v696
    %v4024 = vunpack.c.h.b16 %v696
    %v4025 = vunpack.c.l.b16 %v697
    %v4026 = vunpack.c.h.b16 %v697
    %v4027 = vunpack.c.l.b16 %v698
    %v4028 = vunpack.c.h.b16 %v698
    %v4029 = vunpack.c.l.b16 %v699
    %v4030 = vunpack.c.h.b16 %v699
    %v4031 = vunpack.c.l.b16 %v700
    %v4032 = vunpack.c.h.b16 %v700
    %v4033 = vunpack.c.l.b16 %v701
    %v4034 = vunpack.c.h.b16 %v701
    %v4035 = vunpack.c.l.b16 %v702
    %v4036 = vunpack.c.h.b16 %v702
    %v4037 = vunpack.c.l.b16 %v703
    %v4038 = vunpack.c.h.b16 %v703
    %v4039 = vunpack.c.l.b16 %v704
    %v4040 = vunpack.c.h.b16 %v704
    %v4041 = vunpack.c.l.b16 %v705
    %v4042 = vunpack.c.h.b16 %v705
    %v4043 = vunpack.c.l.b16 %v706
    %v4044 = vunpack.c.h.b16 %v706
    %v4045 = vunpack.c.l.b16 %v707
    %v4046 = vunpack.c.h.b16 %v707
    %v4047 = vunpack.c.l.b16 %v708
    %v4048 = vunpack.c.h.b16 %v708
    %v4049 = vunpack.c.l.b16 %v709
    %v4050 = vunpack.c.h.b16 %v709
    %v4051 = vunpack.c.l.b16 %v710
    %v4052 = vunpack.c.h.b16 %v710
    %v4053 = vunpack.c.l.b16 %v711
    %v4054 = vunpack.c.h.b16 %v711
    %v4055 = vunpack.c.l.b16 %v712
    %v4056 = vunpack.c.h.b16 %v712
    %v4057 = vunpack.c.l.b16 %v713
    %v4058 = vunpack.c.h.b16 %v713
    %v4059 = vunpack.c.l.b16 %v714
    %v4060 = vunpack.c.h.b16 %v714
    %v4061 = vunpack.c.l.b16 %v715
    %v4062 = vunpack.c.h.b16 %v715
    %v4063 = vunpack.c.l.b16 %v716
    %v4064 = vunpack.c.h.b16 %v716
    %v4065 = vunpack.c.l.b16 %v717
    %v4066 = vunpack.c.h.b16 %v717
    %v4067 = vunpack.c.l.b16 %v718
    %v4068 = vunpack.c.h.b16 %v718
    %v4069 = vunpack.c.l.b16 %v719
    %v4070 = vunpack.c.h.b16 %v719
    %v4071 = vunpack.c.l.b16 %v720
    %v4072 = vunpack.c.h.b16 %v720
    %v4073 = vunpack.c.l.b16 %v721
    %v4074 = vunpack.c.h.b16 %v721
    %v4075 = vunpack.c.l.b16 %v722
    %v4076 = vunpack.c.h.b16 %v722
    %v4077 = vunpack.c.l.b16 %v723
    %v4078 = vunpack.c.h.b16 %v723
    %v4079 = vunpack.c.l.b16 %v724
    %v4080 = vunpack.c.h.b16 %v724
    %v4081 = vunpack.c.l.b16 %v725
    %v4082 = vunpack.c.h.b16 %v725
    %v4083 = vunpack.c.l.b16 %v726
    %v4084 = vunpack.c.h.b16 %v726
    %v4085 = vunpack.c.l.b16 %v727
    %v4086 = vunpack.c.h.b16 %v727
    %v4087 = vunpack.c.l.b16 %v728
    %v4088 = vunpack.c.h.b16 %v728
    %v4089 = vunpack.c.l.b16 %v729
    %v4090 = vunpack.c.h.b16 %v729
    %v4091 = vunpack.c.l.b16 %v730
    %v4092 = vunpack.c.h.b16 %v730
    %v4093 = vunpack.c.l.b16 %v731
    %v4094 = vunpack.c.h.b16 %v731
    %v4095 = vunpack.c.l.b16 %v732
    %v4096 = vunpack.c.h.b16 %v732
    %v4097 = vunpack.c.l.b16 %v733
    %v4098 = vunpack.c.h.b16 %v733
    %v4099 = vunpack.c.l.b16 %v734
    %v4100 = vunpack.c.h.b16 %v734
    %v4101 = vunpack.c.l.b16 %v735
    %v4102 = vunpack.c.h.b16 %v735
    %v4103 = vunpack.c.l.b16 %v736
    %v4104 = vunpack.c.h.b16 %v736
    %v4105 = vunpack.c.l.b16 %v737
    %v4106 = vunpack.c.h.b16 %v737
    %v4107 = vunpack.c.l.b16 %v738
    %v4108 = vunpack.c.h.b16 %v738
    %v4109 = vunpack.c.l.b16 %v739
    %v4110 = vunpack.c.h.b16 %v739
    %v4111 = vunpack.c.l.b16 %v740
    %v4112 = vunpack.c.h.b16 %v740
    %v4113 = vunpack.c.l.b16 %v741
    %v4114 = vunpack.c.h.b16 %v741
    %v4115 = vunpack.c.l.b16 %v742
    %v4116 = vunpack.c.h.b16 %v742
    %v4117 = vunpack.c.l.b16 %v743
    %v4118 = vunpack.c.h.b16 %v743
    %v4119 = vunpack.c.l.b16 %v744
    %v4120 = vunpack.c.h.b16 %v744
    %v4121 = vunpack.c.l.b16 %v745
    %v4122 = vunpack.c.h.b16 %v745
    %v4123 = vunpack.c.l.b16 %v746
    %v4124 = vunpack.c.h.b16 %v746
    %v4125 = vunpack.c.l.b16 %v747
    %v4126 = vunpack.c.h.b16 %v747
    %v4127 = vunpack.c.l.b16 %v748
    %v4128 = vunpack.c.h.b16 %v748
    %v4129 = vunpack.c.l.b16 %v749
    %v4130 = vunpack.c.h.b16 %v749
    %v4131 = vunpack.c.l.b16 %v750
    %v4132 = vunpack.c.h.b16 %v750
    %v4133 = vunpack.c.l.b16 %v751
    %v4134 = vunpack.c.h.b16 %v751
    %v4135 = vunpack.c.l.b16 %v752
    %v4136 = vunpack.c.h.b16 %v752
    %v4137 = vunpack.c.l.b16 %v753
    %v4138 = vunpack.c.h.b16 %v753
    %v4139 = vunpack.c.l.b16 %v754
    %v4140 = vunpack.c.h.b16 %v754
    %v4141 = vunpack.c.l.b16 %v755
    %v4142 = vunpack.c.h.b16 %v755
    %v4143 = vunpack.c.l.b16 %v756
    %v4144 = vunpack.c.h.b16 %v756
    %v4145 = vunpack.c.l.b16 %v757
    %v4146 = vunpack.c.h.b16 %v757
    %v4147 = vunpack.c.l.b16 %v758
    %v4148 = vunpack.c.h.b16 %v758
    %v4149 = vunpack.c.l.b16 %v759
    %v4150 = vunpack.c.h.b16 %v759
    %v4151 = vunpack.c.l.b16 %v760
    %v4152 = vunpack.c.h.b16 %v760
    %v4153 = vunpack.c.l.b16 %v761
    %v4154 = vunpack.c.h.b16 %v761
    %v4155 = vunpack.c.l.b16 %v762
    %v4156 = vunpack.c.h.b16 %v762
    %v4157 = vunpack.c.l.b16 %v763
    %v4158 = vunpack.c.h.b16 %v763
    %v4159 = vunpack.c.l.b16 %v764
    %v4160 = vunpack.c.h.b16 %v764
    %v4161 = vunpack.c.l.b16 %v765
    %v4162 = vunpack.c.h.b16 %v765
    %v4163 = vunpack.c.l.b16 %v766
    %v4164 = vunpack.c.h.b16 %v766
    %v4165 = vunpack.c.l.b16 %v767
    %v4166 = vunpack.c.h.b16 %v767
    %v4167 = vunpack.c.l.b16 %v768
    %v4168 = vunpack.c.h.b16 %v768
    %v4169 = vunpack.c.l.b16 %v769
    %v4170 = vunpack.c.h.b16 %v769
    %v4171 = vunpack.c.l.b16 %v770
    %v4172 = vunpack.c.h.b16 %v770
    %v4173 = vunpack.c.l.b16 %v771
    %v4174 = vunpack.c.h.b16 %v771
    %v4175 = vunpack.c.l.b16 %v772
    %v4176 = vunpack.c.h.b16 %v772
    %v4177 = vunpack.c.l.b16 %v773
    %v4178 = vunpack.c.h.b16 %v773
    %v4179 = vunpack.c.l.b16 %v774
    %v4180 = vunpack.c.h.b16 %v774
    %v4181 = vunpack.c.l.b16 %v775
    %v4182 = vunpack.c.h.b16 %v775
    %v4183 = vunpack.c.l.b16 %v776
    %v4184 = vunpack.c.h.b16 %v776
    %v4185 = vunpack.c.l.b16 %v777
    %v4186 = vunpack.c.h.b16 %v777
    %v4187 = vunpack.c.l.b16 %v778
    %v4188 = vunpack.c.h.b16 %v778
    %v4189 = vunpack.c.l.b16 %v779
    %v4190 = vunpack.c.h.b16 %v779
    %v4191 = vunpack.c.l.b16 %v780
    %v4192 = vunpack.c.h.b16 %v780
    %v4193 = vunpack.c.l.b16 %v781
    %v4194 = vunpack.c.h.b16 %v781
    %v4195 = vunpack.c.l.b16 %v782
    %v4196 = vunpack.c.h.b16 %v782
    %v4197 = vunpack.c.l.b16 %v783
    %v4198 = vunpack.c.h.b16 %v783
    %v4199 = vunpack.c.l.b16 %v784
    %v4200 = vunpack.c.h.b16 %v784
    %v4201 = vunpack.c.l.b16 %v785
    %v4202 = vunpack.c.h.b16 %v785
    %v4203 = vunpack.c.l.b16 %v786
    %v4204 = vunpack.c.h.b16 %v786
    %v4205 = vunpack.c.l.b16 %v787
    %v4206 = vunpack.c.h.b16 %v787
    %v4207 = vunpack.c.l.b16 %v788
    %v4208 = vunpack.c.h.b16 %v788
    %v4209 = vunpack.c.l.b16 %v789
    %v4210 = vunpack.c.h.b16 %v789
    %v4211 = vunpack.c.l.b16 %v790
    %v4212 = vunpack.c.h.b16 %v790
    %v4213 = vunpack.c.l.b16 %v791
    %v4214 = vunpack.c.h.b16 %v791
    %v4215 = vunpack.c.l.b16 %v792
    %v4216 = vunpack.c.h.b16 %v792
    %v4217 = vunpack.c.l.b16 %v793
    %v4218 = vunpack.c.h.b16 %v793
    %v4219 = vunpack.c.l.b16 %v794
    %v4220 = vunpack.c.h.b16 %v794
    %v4221 = vunpack.c.l.b16 %v795
    %v4222 = vunpack.c.h.b16 %v795
    %v4223 = vunpack.c.l.b16 %v796
    %v4224 = vunpack.c.h.b16 %v796
    %v4225 = vunpack.c.l.b16 %v797
    %v4226 = vunpack.c.h.b16 %v797
    %v4227 = vunpack.c.l.b16 %v798
    %v4228 = vunpack.c.h.b16 %v798
    %v4229 = vunpack.c.l.b16 %v799
    %v4230 = vunpack.c.h.b16 %v799
    %v4231 = vunpack.c.l.b16 %v800
    %v4232 = vunpack.c.h.b16 %v800
    %v4233 = vunpack.c.l.b16 %v801
    %v4234 = vunpack.c.h.b16 %v801
    %v4235 = vunpack.c.l.b16 %v802
    %v4236 = vunpack.c.h.b16 %v802
    %v4237 = vunpack.c.l.b16 %v803
    %v4238 = vunpack.c.h.b16 %v803
    %v4239 = vunpack.c.l.b16 %v804
    %v4240 = vunpack.c.h.b16 %v804
    %v4241 = vunpack.c.l.b16 %v805
    %v4242 = vunpack.c.h.b16 %v805
    %v4243 = vunpack.c.l.b16 %v806
    %v4244 = vunpack.c.h.b16 %v806
    %v4245 = vunpack.c.l.b16 %v807
    %v4246 = vunpack.c.h.b16 %v807
    %v4247 = vunpack.c.l.b16 %v808
    %v4248 = vunpack.c.h.b16 %v808
    %v4249 = vunpack.c.l.b16 %v809
    %v4250 = vunpack.c.h.b16 %v809
    %v4251 = vunpack.c.l.b16 %v810
    %v4252 = vunpack.c.h.b16 %v810
    %v4253 = vunpack.c.l.b16 %v811
    %v4254 = vunpack.c.h.b16 %v811
    %v4255 = vunpack.c.l.b16 %v812
    %v4256 = vunpack.c.h.b16 %v812
    %v4257 = vunpack.c.l.b16 %v813
    %v4258 = vunpack.c.h.b16 %v813
    %v4259 = vunpack.c.l.b16 %v814
    %v4260 = vunpack.c.h.b16 %v814
    %v4261 = vunpack.c.l.b16 %v815
    %v4262 = vunpack.c.h.b16 %v815
    %v4263 = vunpack.c.l.b16 %v816
    %v4264 = vunpack.c.h.b16 %v816
    %v4265 = vunpack.c.l.b16 %v817
    %v4266 = vunpack.c.h.b16 %v817
    %v4267 = vunpack.c.l.b16 %v818
    %v4268 = vunpack.c.h.b16 %v818
    %v4269 = vunpack.c.l.b16 %v819
    %v4270 = vunpack.c.h.b16 %v819
    %v4271 = vunpack.c.l.b16 %v820
    %v4272 = vunpack.c.h.b16 %v820
    %v4273 = vunpack.c.l.b16 %v821
    %v4274 = vunpack.c.h.b16 %v821
    %v4275 = vunpack.c.l.b16 %v822
    %v4276 = vunpack.c.h.b16 %v822
    %v4277 = vunpack.c.l.b16 %v823
    %v4278 = vunpack.c.h.b16 %v823
    %v4279 = vunpack.c.l.b16 %v824
    %v4280 = vunpack.c.h.b16 %v824
    %v4281 = vunpack.c.l.b16 %v825
    %v4282 = vunpack.c.h.b16 %v825
    %v4283 = vunpack.c.l.b16 %v826
    %v4284 = vunpack.c.h.b16 %v826
    %v4285 = vunpack.c.l.b16 %v827
    %v4286 = vunpack.c.h.b16 %v827
    %v4287 = vunpack.c.l.b16 %v828
    %v4288 = vunpack.c.h.b16 %v828
    %v4289 = vunpack.c.l.b16 %v829
    %v4290 = vunpack.c.h.b16 %v829
    %v4291 = vunpack.c.l.b16 %v830
    %v4292 = vunpack.c.h.b16 %v830
    %v4293 = vunpack.c.l.b16 %v831
    %v4294 = vunpack.c.h.b16 %v831
    %v4295 = vunpack.c.l.b16 %v832
    %v4296 = vunpack.c.h.b16 %v832
    %v4297 = vunpack.c.l.b16 %v833
    %v4298 = vunpack.c.h.b16 %v833
    %v4299 = vunpack.c.l.b16 %v834
    %v4300 = vunpack.c.h.b16 %v834
    %v4301 = vunpack.c.l.b16 %v835
    %v4302 = vunpack.c.h.b16 %v835
    %v4303 = vunpack.c.l.b16 %v836
    %v4304 = vunpack.c.h.b16 %v836
    %v4305 = vunpack.c.l.b16 %v837
    %v4306 = vunpack.c.h.b16 %v837
    %v4307 = vunpack.c.l.b16 %v838
    %v4308 = vunpack.c.h.b16 %v838
    %v4309 = vunpack.c.l.b16 %v839
    %v4310 = vunpack.c.h.b16 %v839
    %v4311 = vunpack.c.l.b16 %v840
    %v4312 = vunpack.c.h.b16 %v840
    %v4313 = vunpack.c.l.b16 %v841
    %v4314 = vunpack.c.h.b16 %v841
    %v4315 = vunpack.c.l.b16 %v842
    %v4316 = vunpack.c.h.b16 %v842
    %v4317 = vunpack.c.l.b16 %v843
    %v4318 = vunpack.c.h.b16 %v843
    %v4319 = vunpack.c.l.b16 %v844
    %v4320 = vunpack.c.h.b16 %v844
    %v4321 = vunpack.c.l.b16 %v845
    %v4322 = vunpack.c.h.b16 %v845
    %v4323 = vunpack.c.l.b16 %v846
    %v4324 = vunpack.c.h.b16 %v846
    %v4325 = vunpack.c.l.b16 %v847
    %v4326 = vunpack.c.h.b16 %v847
    %v4327 = vunpack.c.l.b16 %v848
    %v4328 = vunpack.c.h.b16 %v848
    %v4329 = vunpack.c.l.b16 %v849
    %v4330 = vunpack.c.h.b16 %v849
    %v4331 = vunpack.c.l.b16 %v850
    %v4332 = vunpack.c.h.b16 %v850
    %v4333 = vunpack.c.l.b16 %v851
    %v4334 = vunpack.c.h.b16 %v851
    %v4335 = vunpack.c.l.b16 %v852
    %v4336 = vunpack.c.h.b16 %v852
    %v4337 = vunpack.c.l.b16 %v853
    %v4338 = vunpack.c.h.b16 %v853
    %v4339 = vunpack.c.l.b16 %v854
    %v4340 = vunpack.c.h.b16 %v854
    %v4341 = vunpack.c.l.b16 %v855
    %v4342 = vunpack.c.h.b16 %v855
    %v4343 = vunpack.c.l.b16 %v856
    %v4344 = vunpack.c.h.b16 %v856
    %v4345 = vunpack.c.l.b16 %v857
    %v4346 = vunpack.c.h.b16 %v857
    %v4347 = vunpack.c.l.b16 %v858
    %v4348 = vunpack.c.h.b16 %v858
    %v4349 = vunpack.c.l.b16 %v859
    %v4350 = vunpack.c.h.b16 %v859
    %v4351 = vunpack.c.l.b16 %v860
    %v4352 = vunpack.c.h.b16 %v860
    %v4353 = vunpack.c.l.b16 %v861
    %v4354 = vunpack.c.h.b16 %v861
    %v4355 = vunpack.c.l.b16 %v862
    %v4356 = vunpack.c.h.b16 %v862
    %v4357 = vunpack.c.l.b16 %v863
    %v4358 = vunpack.c.h.b16 %v863
    %v4359 = vunpack.c.l.b16 %v864
    %v4360 = vunpack.c.h.b16 %v864
    %v4361 = vunpack.c.l.b16 %v865
    %v4362 = vunpack.c.h.b16 %v865
    %v4363 = vunpack.c.l.b16 %v866
    %v4364 = vunpack.c.h.b16 %v866
    %v4365 = vunpack.c.l.b16 %v867
    %v4366 = vunpack.c.h.b16 %v867
    %v4367 = vunpack.c.l.b16 %v868
    %v4368 = vunpack.c.h.b16 %v868
    %v4369 = vunpack.c.l.b16 %v869
    %v4370 = vunpack.c.h.b16 %v869
    %v4371 = vunpack.c.l.b16 %v870
    %v4372 = vunpack.c.h.b16 %v870
    %v4373 = vunpack.c.l.b16 %v871
    %v4374 = vunpack.c.h.b16 %v871
    %v4375 = vunpack.c.l.b16 %v872
    %v4376 = vunpack.c.h.b16 %v872
    %v4377 = vunpack.c.l.b16 %v873
    %v4378 = vunpack.c.h.b16 %v873
    %v4379 = vunpack.c.l.b16 %v874
    %v4380 = vunpack.c.h.b16 %v874
    %v4381 = vunpack.c.l.b16 %v875
    %v4382 = vunpack.c.h.b16 %v875
    %v4383 = vunpack.c.l.b16 %v876
    %v4384 = vunpack.c.h.b16 %v876
    %v4385 = vunpack.c.l.b16 %v877
    %v4386 = vunpack.c.h.b16 %v877
    %v4387 = vunpack.c.l.b16 %v878
    %v4388 = vunpack.c.h.b16 %v878
    %v4389 = vunpack.c.l.b16 %v879
    %v4390 = vunpack.c.h.b16 %v879
    %v4391 = vunpack.c.l.b16 %v880
    %v4392 = vunpack.c.h.b16 %v880
    %v4393 = vunpack.c.l.b16 %v881
    %v4394 = vunpack.c.h.b16 %v881
    %v4395 = vunpack.c.l.b16 %v882
    %v4396 = vunpack.c.h.b16 %v882
    %v4397 = vunpack.c.l.b16 %v883
    %v4398 = vunpack.c.h.b16 %v883
    %v4399 = vunpack.c.l.b16 %v884
    %v4400 = vunpack.c.h.b16 %v884
    %v4401 = vunpack.c.l.b16 %v885
    %v4402 = vunpack.c.h.b16 %v885
    %v4403 = vunpack.c.l.b16 %v886
    %v4404 = vunpack.c.h.b16 %v886
    %v4405 = vunpack.c.l.b16 %v887
    %v4406 = vunpack.c.h.b16 %v887
    %v4407 = vunpack.c.l.b16 %v888
    %v4408 = vunpack.c.h.b16 %v888
    %v4409 = vunpack.c.l.b16 %v889
    %v4410 = vunpack.c.h.b16 %v889
    %v4411 = vunpack.c.l.b16 %v890
    %v4412 = vunpack.c.h.b16 %v890
    %v4413 = vunpack.c.l.b16 %v891
    %v4414 = vunpack.c.h.b16 %v891
    %v4415 = vunpack.c.l.b16 %v892
    %v4416 = vunpack.c.h.b16 %v892
    %v4417 = vunpack.c.l.b16 %v893
    %v4418 = vunpack.c.h.b16 %v893
    %v4419 = vunpack.c.l.b16 %v894
    %v4420 = vunpack.c.h.b16 %v894
    %v4421 = vunpack.c.l.b16 %v895
    %v4422 = vunpack.c.h.b16 %v895
    %v4423 = vunpack.c.l.b16 %v896
    %v4424 = vunpack.c.h.b16 %v896
    %v4425 = vunpack.c.l.b16 %v897
    %v4426 = vunpack.c.h.b16 %v897
    %v4427 = vunpack.c.l.b16 %v898
    %v4428 = vunpack.c.h.b16 %v898
    %v4429 = vunpack.c.l.b16 %v899
    %v4430 = vunpack.c.h.b16 %v899
    %v4431 = vunpack.c.l.b16 %v900
    %v4432 = vunpack.c.h.b16 %v900
    %v4433 = vunpack.c.l.b16 %v901
    %v4434 = vunpack.c.h.b16 %v901
    %v4435 = vunpack.c.l.b16 %v902
    %v4436 = vunpack.c.h.b16 %v902
    %v4437 = vunpack.c.l.b16 %v903
    %v4438 = vunpack.c.h.b16 %v903
    %v4439 = vunpack.c.l.b16 %v904
    %v4440 = vunpack.c.h.b16 %v904
    %v4441 = vunpack.c.l.b16 %v905
    %v4442 = vunpack.c.h.b16 %v905
    %v4443 = vunpack.c.l.b16 %v906
    %v4444 = vunpack.c.h.b16 %v906
    %v4445 = vunpack.c.l.b16 %v907
    %v4446 = vunpack.c.h.b16 %v907
    %v4447 = vunpack.c.l.b16 %v908
    %v4448 = vunpack.c.h.b16 %v908
    %v4449 = vunpack.c.l.b16 %v909
    %v4450 = vunpack.c.h.b16 %v909
    %v4451 = vunpack.c.l.b16 %v910
    %v4452 = vunpack.c.h.b16 %v910
    %v4453 = vunpack.c.l.b16 %v911
    %v4454 = vunpack.c.h.b16 %v911
    %v4455 = vunpack.c.l.b16 %v912
    %v4456 = vunpack.c.h.b16 %v912
    %v4457 = vunpack.c.l.b16 %v913
    %v4458 = vunpack.c.h.b16 %v913
    %v4459 = vunpack.c.l.b16 %v914
    %v4460 = vunpack.c.h.b16 %v914
    %v4461 = vunpack.c.l.b16 %v915
    %v4462 = vunpack.c.h.b16 %v915
    %v4463 = vunpack.c.l.b16 %v916
    %v4464 = vunpack.c.h.b16 %v916
    %v4465 = vunpack.c.l.b16 %v917
    %v4466 = vunpack.c.h.b16 %v917
    %v4467 = vunpack.c.l.b16 %v918
    %v4468 = vunpack.c.h.b16 %v918
    %v4469 = vunpack.c.l.b16 %v919
    %v4470 = vunpack.c.h.b16 %v919
    %v4471 = vunpack.c.l.b16 %v920
    %v4472 = vunpack.c.h.b16 %v920
    %v4473 = vunpack.c.l.b16 %v921
    %v4474 = vunpack.c.h.b16 %v921
    %v4475 = vunpack.c.l.b16 %v922
    %v4476 = vunpack.c.h.b16 %v922
    %v4477 = vunpack.c.l.b16 %v923
    %v4478 = vunpack.c.h.b16 %v923
    %v4479 = vunpack.c.l.b16 %v924
    %v4480 = vunpack.c.h.b16 %v924
    %v4481 = vunpack.c.l.b16 %v925
    %v4482 = vunpack.c.h.b16 %v925
    %v4483 = vunpack.c.l.b16 %v926
    %v4484 = vunpack.c.h.b16 %v926
    %v4485 = vunpack.c.l.b16 %v927
    %v4486 = vunpack.c.h.b16 %v927
    %v4487 = vunpack.c.l.b16 %v928
    %v4488 = vunpack.c.h.b16 %v928
    %v4489 = vunpack.c.l.b16 %v929
    %v4490 = vunpack.c.h.b16 %v929
    %v4491 = vunpack.c.l.b16 %v930
    %v4492 = vunpack.c.h.b16 %v930
    %v4493 = vunpack.c.l.b16 %v931
    %v4494 = vunpack.c.h.b16 %v931
    %v4495 = vunpack.c.l.b16 %v932
    %v4496 = vunpack.c.h.b16 %v932
    %v4497 = vunpack.c.l.b16 %v933
    %v4498 = vunpack.c.h.b16 %v933
    %v4499 = vunpack.c.l.b16 %v934
    %v4500 = vunpack.c.h.b16 %v934
    %v4501 = vunpack.c.l.b16 %v935
    %v4502 = vunpack.c.h.b16 %v935
    %v4503 = vunpack.c.l.b16 %v936
    %v4504 = vunpack.c.h.b16 %v936
    %v4505 = vunpack.c.l.b16 %v937
    %v4506 = vunpack.c.h.b16 %v937
    %v4507 = vunpack.c.l.b16 %v938
    %v4508 = vunpack.c.h.b16 %v938
    %v4509 = vunpack.c.l.b16 %v939
    %v4510 = vunpack.c.h.b16 %v939
    %v4511 = vunpack.c.l.b16 %v940
    %v4512 = vunpack.c.h.b16 %v940
    %v4513 = vunpack.c.l.b16 %v941
    %v4514 = vunpack.c.h.b16 %v941
    %v4515 = vunpack.c.l.b16 %v942
    %v4516 = vunpack.c.h.b16 %v942
    %v4517 = vunpack.c.l.b16 %v943
    %v4518 = vunpack.c.h.b16 %v943
    %v4519 = vunpack.c.l.b16 %v944
    %v4520 = vunpack.c.h.b16 %v944
    %v4521 = vunpack.c.l.b16 %v945
    %v4522 = vunpack.c.h.b16 %v945
    %v4523 = vunpack.c.l.b16 %v946
    %v4524 = vunpack.c.h.b16 %v946
    %v4525 = vunpack.c.l.b16 %v947
    %v4526 = vunpack.c.h.b16 %v947
    %v4527 = vunpack.c.l.b16 %v948
    %v4528 = vunpack.c.h.b16 %v948
    %v4529 = vunpack.c.l.b16 %v949
    %v4530 = vunpack.c.h.b16 %v949
    %v4531 = vunpack.c.l.b16 %v950
    %v4532 = vunpack.c.h.b16 %v950
    %v4533 = vunpack.c.l.b16 %v951
    %v4534 = vunpack.c.h.b16 %v951
    %v4535 = vunpack.c.l.b16 %v952
    %v4536 = vunpack.c.h.b16 %v952
    %v4537 = vunpack.c.l.b16 %v953
    %v4538 = vunpack.c.h.b16 %v953
    %v4539 = vunpack.c.l.b16 %v954
    %v4540 = vunpack.c.h.b16 %v954
    %v4541 = vunpack.c.l.b16 %v955
    %v4542 = vunpack.c.h.b16 %v955
    %v4543 = vunpack.c.l.b16 %v956
    %v4544 = vunpack.c.h.b16 %v956
    %v4545 = vunpack.c.l.b16 %v957
    %v4546 = vunpack.c.h.b16 %v957
    %v4547 = vunpack.c.l.b16 %v958
    %v4548 = vunpack.c.h.b16 %v958
    %v4549 = vunpack.c.l.b16 %v959
    %v4550 = vunpack.c.h.b16 %v959
    %v4551 = vunpack.c.l.b16 %v960
    %v4552 = vunpack.c.h.b16 %v960
    %v4553 = vunpack.c.l.b16 %v961
    %v4554 = vunpack.c.h.b16 %v961
    %v4555 = vunpack.c.l.b16 %v962
    %v4556 = vunpack.c.h.b16 %v962
    %v4557 = vunpack.c.l.b16 %v963
    %v4558 = vunpack.c.h.b16 %v963
    %v4559 = vunpack.c.l.b16 %v964
    %v4560 = vunpack.c.h.b16 %v964
    %v4561 = vunpack.c.l.b16 %v965
    %v4562 = vunpack.c.h.b16 %v965
    %v4563 = vunpack.c.l.b16 %v966
    %v4564 = vunpack.c.h.b16 %v966
    %v4565 = vunpack.c.l.b16 %v967
    %v4566 = vunpack.c.h.b16 %v967
    %v4567 = vunpack.c.l.b16 %v968
    %v4568 = vunpack.c.h.b16 %v968
    %v4569 = vunpack.c.l.b16 %v969
    %v4570 = vunpack.c.h.b16 %v969
    %v4571 = vunpack.c.l.b16 %v970
    %v4572 = vunpack.c.h.b16 %v970
    %v4573 = vunpack.c.l.b16 %v971
    %v4574 = vunpack.c.h.b16 %v971
    %v4575 = vunpack.c.l.b16 %v972
    %v4576 = vunpack.c.h.b16 %v972
    %v4577 = vunpack.c.l.b16 %v973
    %v4578 = vunpack.c.h.b16 %v973
    %v4579 = vunpack.c.l.b16 %v974
    %v4580 = vunpack.c.h.b16 %v974
    %v4581 = vunpack.c.l.b16 %v975
    %v4582 = vunpack.c.h.b16 %v975
    %v4583 = vunpack.c.l.b16 %v976
    %v4584 = vunpack.c.h.b16 %v976
    %v4585 = vunpack.c.l.b16 %v977
    %v4586 = vunpack.c.h.b16 %v977
    %v4587 = vunpack.c.l.b16 %v978
    %v4588 = vunpack.c.h.b16 %v978
    %v4589 = vunpack.c.l.b16 %v979
    %v4590 = vunpack.c.h.b16 %v979
    %v4591 = vunpack.c.l.b16 %v980
    %v4592 = vunpack.c.h.b16 %v980
    %v4593 = vunpack.c.l.b16 %v981
    %v4594 = vunpack.c.h.b16 %v981
    %v4595 = vunpack.c.l.b16 %v982
    %v4596 = vunpack.c.h.b16 %v982
    %v4597 = vunpack.c.l.b16 %v983
    %v4598 = vunpack.c.h.b16 %v983
    %v4599 = vunpack.c.l.b16 %v984
    %v4600 = vunpack.c.h.b16 %v984
    %v4601 = vunpack.c.l.b16 %v985
    %v4602 = vunpack.c.h.b16 %v985
    %v4603 = vunpack.c.l.b16 %v986
    %v4604 = vunpack.c.h.b16 %v986
    %v4605 = vunpack.c.l.b16 %v987
    %v4606 = vunpack.c.h.b16 %v987
    %v4607 = vunpack.c.l.b16 %v988
    %v4608 = vunpack.c.h.b16 %v988
    %v4609 = vunpack.c.l.b16 %v989
    %v4610 = vunpack.c.h.b16 %v989
    %v4611 = vunpack.c.l.b16 %v990
    %v4612 = vunpack.c.h.b16 %v990
    %v4613 = vunpack.c.l.b16 %v991
    %v4614 = vunpack.c.h.b16 %v991
    %v4615 = vunpack.c.l.b16 %v992
    %v4616 = vunpack.c.h.b16 %v992
    %v4617 = vunpack.c.l.b16 %v993
    %v4618 = vunpack.c.h.b16 %v993
    %v4619 = vunpack.c.l.b16 %v994
    %v4620 = vunpack.c.h.b16 %v994
    %v4621 = vunpack.c.l.b16 %v995
    %v4622 = vunpack.c.h.b16 %v995
    %v4623 = vunpack.c.l.b16 %v996
    %v4624 = vunpack.c.h.b16 %v996
    %v4625 = vunpack.c.l.b16 %v997
    %v4626 = vunpack.c.h.b16 %v997
    %v4627 = vunpack.c.l.b16 %v998
    %v4628 = vunpack.c.h.b16 %v998
    %v4629 = vunpack.c.l.b16 %v999
    %v4630 = vunpack.c.h.b16 %v999
    %v4631 = vunpack.c.l.b16 %v1000
    %v4632 = vunpack.c.h.b16 %v1000
    %v4633 = vunpack.c.l.b16 %v1001
    %v4634 = vunpack.c.h.b16 %v1001
    %v4635 = vunpack.c.l.b16 %v1002
    %v4636 = vunpack.c.h.b16 %v1002
    %v4637 = vunpack.c.l.b16 %v1003
    %v4638 = vunpack.c.h.b16 %v1003
    %v4639 = vunpack.c.l.b16 %v1004
    %v4640 = vunpack.c.h.b16 %v1004
    %v4641 = vunpack.c.l.b16 %v1005
    %v4642 = vunpack.c.h.b16 %v1005
    %v4643 = vunpack.c.l.b16 %v1006
    %v4644 = vunpack.c.h.b16 %v1006
    %v4645 = vunpack.c.l.b16 %v1007
    %v4646 = vunpack.c.h.b16 %v1007
    %v4647 = vunpack.c.l.b16 %v1008
    %v4648 = vunpack.c.h.b16 %v1008
    %v4649 = vunpack.c.l.b16 %v1009
    %v4650 = vunpack.c.h.b16 %v1009
    %v4651 = vunpack.c.l.b16 %v1010
    %v4652 = vunpack.c.h.b16 %v1010
    %v4653 = vunpack.c.l.b16 %v1011
    %v4654 = vunpack.c.h.b16 %v1011
    %v4655 = vunpack.c.l.b16 %v1012
    %v4656 = vunpack.c.h.b16 %v1012
    %v4657 = vunpack.c.l.b16 %v1013
    %v4658 = vunpack.c.h.b16 %v1013
    %v4659 = vunpack.c.l.b16 %v1014
    %v4660 = vunpack.c.h.b16 %v1014
    %v4661 = vunpack.c.l.b16 %v1015
    %v4662 = vunpack.c.h.b16 %v1015
    %v4663 = vunpack.c.l.b16 %v1016
    %v4664 = vunpack.c.h.b16 %v1016
    %v4665 = vunpack.c.l.b16 %v1017
    %v4666 = vunpack.c.h.b16 %v1017
    %v4667 = vunpack.c.l.b16 %v1018
    %v4668 = vunpack.c.h.b16 %v1018
    %v4669 = vunpack.c.l.b16 %v1019
    %v4670 = vunpack.c.h.b16 %v1019
    %v4671 = vunpack.c.l.b16 %v1020
    %v4672 = vunpack.c.h.b16 %v1020
    %v4673 = vunpack.c.l.b16 %v1021
    %v4674 = vunpack.c.h.b16 %v1021
    %v4675 = vunpack.c.l.b16 %v1022
    %v4676 = vunpack.c.h.b16 %v1022
    %v4677 = vunpack.c.l.b16 %v1023
    %v4678 = vunpack.c.h.b16 %v1023
    %v4679 = vunpack.c.l.b16 %v1024
    %v4680 = vunpack.c.h.b16 %v1024
    %v4681 = vunpack.c.l.b16 %v1025
    %v4682 = vunpack.c.h.b16 %v1025
    %v4683 = vunpack.c.l.b16 %v1026
    %v4684 = vunpack.c.h.b16 %v1026
    %v4685 = vunpack.c.l.b16 %v1027
    %v4686 = vunpack.c.h.b16 %v1027
    %v4687 = vunpack.c.l.b16 %v1028
    %v4688 = vunpack.c.h.b16 %v1028
    %v4689 = vunpack.c.l.b16 %v1029
    %v4690 = vunpack.c.h.b16 %v1029
    %v4691 = vunpack.c.l.b16 %v1030
    %v4692 = vunpack.c.h.b16 %v1030
    %v4693 = vunpack.c.l.b16 %v1031
    %v4694 = vunpack.c.h.b16 %v1031
    %v4695 = vunpack.c.l.b16 %v1032
    %v4696 = vunpack.c.h.b16 %v1032
    %v4697 = vunpack.c.l.b16 %v1033
    %v4698 = vunpack.c.h.b16 %v1033
    %v4699 = vunpack.c.l.b16 %v1034
    %v4700 = vunpack.c.h.b16 %v1034
    %v4701 = vunpack.c.l.b16 %v1035
    %v4702 = vunpack.c.h.b16 %v1035
    %v4703 = vunpack.c.l.b16 %v1036
    %v4704 = vunpack.c.h.b16 %v1036
    %v4705 = vunpack.c.l.b16 %v1037
    %v4706 = vunpack.c.h.b16 %v1037
    %v4707 = vunpack.c.l.b16 %v1038
    %v4708 = vunpack.c.h.b16 %v1038
    %v4709 = vunpack.c.l.b16 %v1039
    %v4710 = vunpack.c.h.b16 %v1039
    %v4711 = vunpack.c.l.b16 %v1040
    %v4712 = vunpack.c.h.b16 %v1040
    %v4713 = vunpack.c.l.b16 %v1041
    %v4714 = vunpack.c.h.b16 %v1041
    %v4715 = vunpack.c.l.b16 %v1042
    %v4716 = vunpack.c.h.b16 %v1042
    %v4717 = vunpack.c.l.b16 %v1043
    %v4718 = vunpack.c.h.b16 %v1043
    %v4719 = vunpack.c.l.b16 %v1044
    %v4720 = vunpack.c.h.b16 %v1044
    %v4721 = vunpack.c.l.b16 %v1045
    %v4722 = vunpack.c.h.b16 %v1045
    %v4723 = vunpack.c.l.b16 %v1046
    %v4724 = vunpack.c.h.b16 %v1046
    %v4725 = vunpack.c.l.b16 %v1047
    %v4726 = vunpack.c.h.b16 %v1047
    %v4727 = vunpack.c.l.b16 %v1048
    %v4728 = vunpack.c.h.b16 %v1048
    %v4729 = vunpack.c.l.b16 %v1049
    %v4730 = vunpack.c.h.b16 %v1049
    %v4731 = vunpack.c.l.b16 %v1050
    %v4732 = vunpack.c.h.b16 %v1050
    %v4733 = vunpack.c.l.b16 %v1051
    %v4734 = vunpack.c.h.b16 %v1051
    %v4735 = vunpack.c.l.b16 %v1052
    %v4736 = vunpack.c.h.b16 %v1052
    %v4737 = vunpack.c.l.b16 %v1053
    %v4738 = vunpack.c.h.b16 %v1053
    %v4739 = vunpack.c.l.b16 %v1054
    %v4740 = vunpack.c.h.b16 %v1054
    %v4741 = vunpack.c.l.b16 %v1055
    %v4742 = vunpack.c.h.b16 %v1055
    %v4743 = vunpack.c.l.b16 %v1056
    %v4744 = vunpack.c.h.b16 %v1056
    %v4745 = vunpack.c.l.b16 %v1057
    %v4746 = vunpack.c.h.b16 %v1057
    %v4747 = vunpack.c.l.b16 %v1058
    %v4748 = vunpack.c.h.b16 %v1058
    %v4749 = vunpack.c.l.b16 %v1059
    %v4750 = vunpack.c.h.b16 %v1059
    %v4751 = vunpack.c.l.b16 %v1060
    %v4752 = vunpack.c.h.b16 %v1060
    %v4753 = vunpack.c.l.b16 %v1061
    %v4754 = vunpack.c.h.b16 %v1061
    %v4755 = vunpack.c.l.b16 %v1062
    %v4756 = vunpack.c.h.b16 %v1062
    %v4757 = vunpack.c.l.b16 %v1063
    %v4758 = vunpack.c.h.b16 %v1063
    %v4759 = vunpack.c.l.b16 %v1064
    %v4760 = vunpack.c.h.b16 %v1064
    %v4761 = vunpack.c.l.b16 %v1065
    %v4762 = vunpack.c.h.b16 %v1065
    %v4763 = vunpack.c.l.b16 %v1066
    %v4764 = vunpack.c.h.b16 %v1066
    %v4765 = vunpack.c.l.b16 %v1067
    %v4766 = vunpack.c.h.b16 %v1067
    %v4767 = vunpack.c.l.b16 %v1068
    %v4768 = vunpack.c.h.b16 %v1068
    %v4769 = vunpack.c.l.b16 %v1069
    %v4770 = vunpack.c.h.b16 %v1069
    %v4771 = vunpack.c.l.b16 %v1070
    %v4772 = vunpack.c.h.b16 %v1070
    %v4773 = vunpack.c.l.b16 %v1071
    %v4774 = vunpack.c.h.b16 %v1071
    %v4775 = vunpack.c.l.b16 %v1072
    %v4776 = vunpack.c.h.b16 %v1072
    %v4777 = vunpack.c.l.b16 %v1073
    %v4778 = vunpack.c.h.b16 %v1073
    %v4779 = vunpack.c.l.b16 %v1074
    %v4780 = vunpack.c.h.b16 %v1074
    %v4781 = vunpack.c.l.b16 %v1075
    %v4782 = vunpack.c.h.b16 %v1075
    %v4783 = vunpack.c.l.b16 %v1076
    %v4784 = vunpack.c.h.b16 %v1076
    %v4785 = vunpack.c.l.b16 %v1077
    %v4786 = vunpack.c.h.b16 %v1077
    %v4787 = vunpack.c.l.b16 %v1078
    %v4788 = vunpack.c.h.b16 %v1078
    %v4789 = vunpack.c.l.b16 %v1079
    %v4790 = vunpack.c.h.b16 %v1079
    %v4791 = vunpack.c.l.b16 %v1080
    %v4792 = vunpack.c.h.b16 %v1080
    %v4793 = vunpack.c.l.b16 %v1081
    %v4794 = vunpack.c.h.b16 %v1081
    %v4795 = vunpack.c.l.b16 %v1082
    %v4796 = vunpack.c.h.b16 %v1082
    %v4797 = vunpack.c.l.b16 %v1083
    %v4798 = vunpack.c.h.b16 %v1083
    %v4799 = vunpack.c.l.b16 %v1084
    %v4800 = vunpack.c.h.b16 %v1084
    %v4801 = vunpack.c.l.b16 %v1085
    %v4802 = vunpack.c.h.b16 %v1085
    %v4803 = vunpack.c.l.b16 %v1086
    %v4804 = vunpack.c.h.b16 %v1086
    %v4805 = vunpack.c.l.b16 %v1087
    %v4806 = vunpack.c.h.b16 %v1087
    %v4807 = vunpack.c.l.b16 %v1088
    %v4808 = vunpack.c.h.b16 %v1088
    %v4809 = vunpack.c.l.b16 %v1089
    %v4810 = vunpack.c.h.b16 %v1089
    %v4811 = vunpack.c.l.b16 %v1090
    %v4812 = vunpack.c.h.b16 %v1090
    %v4813 = vunpack.c.l.b16 %v1091
    %v4814 = vunpack.c.h.b16 %v1091
    %v4815 = vunpack.c.l.b16 %v1092
    %v4816 = vunpack.c.h.b16 %v1092
    %v4817 = vunpack.c.l.b16 %v1093
    %v4818 = vunpack.c.h.b16 %v1093
    %v4819 = vunpack.c.l.b16 %v1094
    %v4820 = vunpack.c.h.b16 %v1094
    %v4821 = vunpack.c.l.b16 %v1095
    %v4822 = vunpack.c.h.b16 %v1095
    %v4823 = vunpack.c.l.b16 %v1096
    %v4824 = vunpack.c.h.b16 %v1096
    %v4825 = vunpack.c.l.b16 %v1097
    %v4826 = vunpack.c.h.b16 %v1097
    %v4827 = vunpack.c.l.b16 %v1098
    %v4828 = vunpack.c.h.b16 %v1098
    %v4829 = vunpack.c.l.b16 %v1099
    %v4830 = vunpack.c.h.b16 %v1099
    %v4831 = vunpack.c.l.b16 %v1100
    %v4832 = vunpack.c.h.b16 %v1100
    %v4833 = vunpack.c.l.b16 %v1101
    %v4834 = vunpack.c.h.b16 %v1101
    %v4835 = vunpack.c.l.b16 %v1102
    %v4836 = vunpack.c.h.b16 %v1102
    %v4837 = vunpack.c.l.b16 %v1103
    %v4838 = vunpack.c.h.b16 %v1103
    %v4839 = vunpack.c.l.b16 %v1104
    %v4840 = vunpack.c.h.b16 %v1104
    %v4841 = vunpack.c.l.b16 %v1105
    %v4842 = vunpack.c.h.b16 %v1105
    %v4843 = vunpack.c.l.b16 %v1106
    %v4844 = vunpack.c.h.b16 %v1106
    %v4845 = vunpack.c.l.b16 %v1107
    %v4846 = vunpack.c.h.b16 %v1107
    %v4847 = vunpack.c.l.b16 %v1108
    %v4848 = vunpack.c.h.b16 %v1108
    %v4849 = vunpack.c.l.b16 %v1109
    %v4850 = vunpack.c.h.b16 %v1109
    %v4851 = vunpack.c.l.b16 %v1110
    %v4852 = vunpack.c.h.b16 %v1110
    %v4853 = vunpack.c.l.b16 %v1111
    %v4854 = vunpack.c.h.b16 %v1111
    %v4855 = vunpack.c.l.b16 %v1112
    %v4856 = vunpack.c.h.b16 %v1112
    %v4857 = vunpack.c.l.b16 %v1113
    %v4858 = vunpack.c.h.b16 %v1113
    %v4859 = vunpack.c.l.b16 %v1114
    %v4860 = vunpack.c.h.b16 %v1114
    %v4861 = vunpack.c.l.b16 %v1115
    %v4862 = vunpack.c.h.b16 %v1115
    %v4863 = vunpack.c.l.b16 %v1116
    %v4864 = vunpack.c.h.b16 %v1116
    %v4865 = vunpack.c.l.b16 %v1117
    %v4866 = vunpack.c.h.b16 %v1117
    %v4867 = vunpack.c.l.b16 %v1118
    %v4868 = vunpack.c.h.b16 %v1118
    %v4869 = vunpack.c.l.b16 %v1119
    %v4870 = vunpack.c.h.b16 %v1119
    %v4871 = vunpack.c.l.b16 %v1120
    %v4872 = vunpack.c.h.b16 %v1120
    %v4873 = vunpack.c.l.b16 %v1121
    %v4874 = vunpack.c.h.b16 %v1121
    %v4875 = vunpack.c.l.b16 %v1122
    %v4876 = vunpack.c.h.b16 %v1122
    %v4877 = vunpack.c.l.b16 %v1123
    %v4878 = vunpack.c.h.b16 %v1123
    %v4879 = vunpack.c.l.b16 %v1124
    %v4880 = vunpack.c.h.b16 %v1124
    %v4881 = vunpack.c.l.b16 %v1125
    %v4882 = vunpack.c.h.b16 %v1125
    %v4883 = vunpack.c.l.b16 %v1126
    %v4884 = vunpack.c.h.b16 %v1126
    %v4885 = vunpack.c.l.b16 %v1127
    %v4886 = vunpack.c.h.b16 %v1127
    %v4887 = vunpack.c.l.b16 %v1128
    %v4888 = vunpack.c.h.b16 %v1128
    %v4889 = vunpack.c.l.b16 %v1129
    %v4890 = vunpack.c.h.b16 %v1129
    %v4891 = vunpack.c.l.b16 %v1130
    %v4892 = vunpack.c.h.b16 %v1130
    %v4893 = vunpack.c.l.b16 %v1131
    %v4894 = vunpack.c.h.b16 %v1131
    %v4895 = vunpack.c.l.b16 %v1132
    %v4896 = vunpack.c.h.b16 %v1132
    %v4897 = vunpack.c.l.b16 %v1133
    %v4898 = vunpack.c.h.b16 %v1133
    %v4899 = vunpack.c.l.b16 %v1134
    %v4900 = vunpack.c.h.b16 %v1134
    %v4901 = vunpack.c.l.b16 %v1135
    %v4902 = vunpack.c.h.b16 %v1135
    %v4903 = vunpack.c.l.b16 %v1136
    %v4904 = vunpack.c.h.b16 %v1136
    %v4905 = vunpack.c.l.b16 %v1137
    %v4906 = vunpack.c.h.b16 %v1137
    %v4907 = vunpack.c.l.b16 %v1138
    %v4908 = vunpack.c.h.b16 %v1138
    %v4909 = vunpack.c.l.b16 %v1139
    %v4910 = vunpack.c.h.b16 %v1139
    %v4911 = vunpack.c.l.b16 %v1140
    %v4912 = vunpack.c.h.b16 %v1140
    %v4913 = vunpack.c.l.b16 %v1141
    %v4914 = vunpack.c.h.b16 %v1141
    %v4915 = vunpack.c.l.b16 %v1142
    %v4916 = vunpack.c.h.b16 %v1142
    %v4917 = vunpack.c.l.b16 %v1143
    %v4918 = vunpack.c.h.b16 %v1143
    %v4919 = vunpack.c.l.b16 %v1144
    %v4920 = vunpack.c.h.b16 %v1144
    %v4921 = vunpack.c.l.b16 %v1145
    %v4922 = vunpack.c.h.b16 %v1145
    %v4923 = vunpack.c.l.b16 %v1146
    %v4924 = vunpack.c.h.b16 %v1146
    %v4925 = vunpack.c.l.b16 %v1147
    %v4926 = vunpack.c.h.b16 %v1147
    %v4927 = vunpack.c.l.b16 %v1148
    %v4928 = vunpack.c.h.b16 %v1148
    %v4929 = vunpack.c.l.b16 %v1149
    %v4930 = vunpack.c.h.b16 %v1149
    %v4931 = vunpack.c.l.b16 %v1150
    %v4932 = vunpack.c.h.b16 %v1150
    %v4933 = vunpack.c.l.b16 %v1151
    %v4934 = vunpack.c.h.b16 %v1151
    %v4935 = vunpack.c.l.b16 %v1152
    %v4936 = vunpack.c.h.b16 %v1152
    %v4937 = vunpack.c.l.b16 %v1153
    %v4938 = vunpack.c.h.b16 %v1153
    %v4939 = vunpack.c.l.b16 %v1154
    %v4940 = vunpack.c.h.b16 %v1154
    %v4941 = vunpack.c.l.b16 %v1155
    %v4942 = vunpack.c.h.b16 %v1155
    %v4943 = vunpack.c.l.b16 %v1156
    %v4944 = vunpack.c.h.b16 %v1156
    %v4945 = vunpack.c.l.b16 %v1157
    %v4946 = vunpack.c.h.b16 %v1157
    %v4947 = vunpack.c.l.b16 %v1158
    %v4948 = vunpack.c.h.b16 %v1158
    %v4949 = vunpack.c.l.b16 %v1159
    %v4950 = vunpack.c.h.b16 %v1159
    %v4951 = vunpack.c.l.b16 %v1160
    %v4952 = vunpack.c.h.b16 %v1160
    %v4953 = vunpack.c.l.b16 %v1161
    %v4954 = vunpack.c.h.b16 %v1161
    %v4955 = vunpack.c.l.b16 %v1162
    %v4956 = vunpack.c.h.b16 %v1162
    %v4957 = vunpack.c.l.b16 %v1163
    %v4958 = vunpack.c.h.b16 %v1163
    %v4959 = vunpack.c.l.b16 %v1164
    %v4960 = vunpack.c.h.b16 %v1164
    %v4961 = vunpack.c.l.b16 %v1165
    %v4962 = vunpack.c.h.b16 %v1165
    %v4963 = vunpack.c.l.b16 %v1166
    %v4964 = vunpack.c.h.b16 %v1166
    %v4965 = vunpack.c.l.b16 %v1167
    %v4966 = vunpack.c.h.b16 %v1167
    %v4967 = vunpack.c.l.b16 %v1168
    %v4968 = vunpack.c.h.b16 %v1168
    %v4969 = vunpack.c.l.b16 %v1169
    %v4970 = vunpack.c.h.b16 %v1169
    %v4971 = vunpack.c.l.b16 %v1170
    %v4972 = vunpack.c.h.b16 %v1170
    %v4973 = vunpack.c.l.b16 %v1171
    %v4974 = vunpack.c.h.b16 %v1171
    %v4975 = vunpack.c.l.b16 %v1172
    %v4976 = vunpack.c.h.b16 %v1172
    %v4977 = vunpack.c.l.b16 %v1173
    %v4978 = vunpack.c.h.b16 %v1173
    %v4979 = vunpack.c.l.b16 %v1174
    %v4980 = vunpack.c.h.b16 %v1174
    %v4981 = vunpack.c.l.b16 %v1175
    %v4982 = vunpack.c.h.b16 %v1175
    %v4983 = vunpack.c.l.b16 %v1176
    %v4984 = vunpack.c.h.b16 %v1176
    %v4985 = vunpack.c.l.b16 %v1177
    %v4986 = vunpack.c.h.b16 %v1177
    %v4987 = vunpack.c.l.b16 %v1178
    %v4988 = vunpack.c.h.b16 %v1178
    %v4989 = vunpack.c.l.b16 %v1179
    %v4990 = vunpack.c.h.b16 %v1179
    %v4991 = vunpack.c.l.b16 %v1180
    %v4992 = vunpack.c.h.b16 %v1180
    %v4993 = vunpack.c.l.b16 %v1181
    %v4994 = vunpack.c.h.b16 %v1181
    %v4995 = vunpack.c.l.b16 %v1182
    %v4996 = vunpack.c.h.b16 %v1182
    %v4997 = vunpack.c.l.b16 %v1183
    %v4998 = vunpack.c.h.b16 %v1183
    %v4999 = vunpack.c.l.b16 %v1184
    %v5000 = vunpack.c.h.b16 %v1184
    %v5001 = vunpack.c.l.b16 %v1185
    %v5002 = vunpack.c.h.b16 %v1185
    %v5003 = vunpack.c.l.b16 %v1186
    %v5004 = vunpack.c.h.b16 %v1186
    %v5005 = vunpack.c.l.b16 %v1187
    %v5006 = vunpack.c.h.b16 %v1187
    %v5007 = vunpack.c.l.b16 %v1188
    %v5008 = vunpack.c.h.b16 %v1188
    %v5009 = vunpack.c.l.b16 %v1189
    %v5010 = vunpack.c.h.b16 %v1189
    %v5011 = vunpack.c.l.b16 %v1190
    %v5012 = vunpack.c.h.b16 %v1190
    %v5013 = vunpack.c.l.b16 %v1191
    %v5014 = vunpack.c.h.b16 %v1191
    %v5015 = vunpack.c.l.b16 %v1192
    %v5016 = vunpack.c.h.b16 %v1192
    %v5017 = vunpack.c.l.b16 %v1193
    %v5018 = vunpack.c.h.b16 %v1193
    %v5019 = vunpack.c.l.b16 %v1194
    %v5020 = vunpack.c.h.b16 %v1194
    %v5021 = vunpack.c.l.b16 %v1195
    %v5022 = vunpack.c.h.b16 %v1195
    %v5023 = vunpack.c.l.b16 %v1196
    %v5024 = vunpack.c.h.b16 %v1196
    %v5025 = vunpack.c.l.b16 %v1197
    %v5026 = vunpack.c.h.b16 %v1197
    %v5027 = vunpack.c.l.b16 %v1198
    %v5028 = vunpack.c.h.b16 %v1198
    %v5029 = vunpack.c.l.b16 %v1199
    %v5030 = vunpack.c.h.b16 %v1199
    %v5031 = vunpack.c.l.b16 %v1200
    %v5032 = vunpack.c.h.b16 %v1200
    %v5033 = vunpack.c.l.b16 %v1201
    %v5034 = vunpack.c.h.b16 %v1201
    %v5035 = vunpack.c.l.b16 %v1202
    %v5036 = vunpack.c.h.b16 %v1202
    %v5037 = vunpack.c.l.b16 %v1203
    %v5038 = vunpack.c.h.b16 %v1203
    %v5039 = vunpack.c.l.b16 %v1204
    %v5040 = vunpack.c.h.b16 %v1204
    %v5041 = vunpack.c.l.b16 %v1205
    %v5042 = vunpack.c.h.b16 %v1205
    %v5043 = vunpack.c.l.b16 %v1206
    %v5044 = vunpack.c.h.b16 %v1206
    %v5045 = vunpack.c.l.b16 %v1207
    %v5046 = vunpack.c.h.b16 %v1207
    %v5047 = vunpack.c.l.b16 %v1208
    %v5048 = vunpack.c.h.b16 %v1208
    %v5049 = vunpack.c.l.b16 %v1209
    %v5050 = vunpack.c.h.b16 %v1209
    %v5051 = vunpack.c.l.b16 %v1210
    %v5052 = vunpack.c.h.b16 %v1210
    %v5053 = vunpack.c.l.b16 %v1211
    %v5054 = vunpack.c.h.b16 %v1211
    %v5055 = vunpack.c.l.b16 %v1212
    %v5056 = vunpack.c.h.b16 %v1212
    %v5057 = vunpack.c.l.b16 %v1213
    %v5058 = vunpack.c.h.b16 %v1213
    %v5059 = vunpack.c.l.b16 %v1214
    %v5060 = vunpack.c.h.b16 %v1214
    %v5061 = vunpack.c.l.b16 %v1215
    %v5062 = vunpack.c.h.b16 %v1215
    %v5063 = vunpack.c.l.b16 %v1216
    %v5064 = vunpack.c.h.b16 %v1216
    %v5065 = vunpack.c.l.b16 %v1217
    %v5066 = vunpack.c.h.b16 %v1217
    %v5067 = vunpack.c.l.b16 %v1218
    %v5068 = vunpack.c.h.b16 %v1218
    %v5069 = vunpack.c.l.b16 %v1219
    %v5070 = vunpack.c.h.b16 %v1219
    %v5071 = vunpack.c.l.b16 %v1220
    %v5072 = vunpack.c.h.b16 %v1220
    %v5073 = vunpack.c.l.b16 %v1221
    %v5074 = vunpack.c.h.b16 %v1221
    %v5075 = vunpack.c.l.b16 %v1222
    %v5076 = vunpack.c.h.b16 %v1222
    %v5077 = vunpack.c.l.b16 %v1223
    %v5078 = vunpack.c.h.b16 %v1223
    %v5079 = vunpack.c.l.b16 %v1224
    %v5080 = vunpack.c.h.b16 %v1224
    %v5081 = vunpack.c.l.b16 %v1225
    %v5082 = vunpack.c.h.b16 %v1225
    %v5083 = vunpack.c.l.b16 %v1226
    %v5084 = vunpack.c.h.b16 %v1226
    %v5085 = vunpack.c.l.b16 %v1227
    %v5086 = vunpack.c.h.b16 %v1227
    %v5087 = vunpack.c.l.b16 %v1228
    %v5088 = vunpack.c.h.b16 %v1228
    %v5089 = vunpack.c.l.b16 %v1229
    %v5090 = vunpack.c.h.b16 %v1229
    %v5091 = vunpack.c.l.b16 %v1230
    %v5092 = vunpack.c.h.b16 %v1230
    %v5093 = vunpack.c.l.b16 %v1231
    %v5094 = vunpack.c.h.b16 %v1231
    %v5095 = vunpack.c.l.b16 %v1232
    %v5096 = vunpack.c.h.b16 %v1232
    %v5097 = vunpack.c.l.b16 %v1233
    %v5098 = vunpack.c.h.b16 %v1233
    %v5099 = vunpack.c.l.b16 %v1234
    %v5100 = vunpack.c.h.b16 %v1234
    %v5101 = vunpack.c.l.b16 %v1235
    %v5102 = vunpack.c.h.b16 %v1235
    %v5103 = vunpack.c.l.b16 %v1236
    %v5104 = vunpack.c.h.b16 %v1236
    %v5105 = vunpack.c.l.b16 %v1237
    %v5106 = vunpack.c.h.b16 %v1237
    %v5107 = vunpack.c.l.b16 %v1238
    %v5108 = vunpack.c.h.b16 %v1238
    %v5109 = vunpack.c.l.b16 %v1239
    %v5110 = vunpack.c.h.b16 %v1239
    %v5111 = vunpack.c.l.b16 %v1240
    %v5112 = vunpack.c.h.b16 %v1240
    %v5113 = vunpack.c.l.b16 %v1241
    %v5114 = vunpack.c.h.b16 %v1241
    %v5115 = vunpack.c.l.b16 %v1242
    %v5116 = vunpack.c.h.b16 %v1242
    %v5117 = vunpack.c.l.b16 %v1243
    %v5118 = vunpack.c.h.b16 %v1243
    %v5119 = vunpack.c.l.b16 %v1244
    %v5120 = vunpack.c.h.b16 %v1244
    %v5121 = vunpack.c.l.b16 %v1245
    %v5122 = vunpack.c.h.b16 %v1245
    %v5123 = vunpack.c.l.b16 %v1246
    %v5124 = vunpack.c.h.b16 %v1246
    %v5125 = vunpack.c.l.b16 %v1247
    %v5126 = vunpack.c.h.b16 %v1247
    %v5127 = vunpack.c.l.b16 %v1248
    %v5128 = vunpack.c.h.b16 %v1248
    %v5129 = vunpack.c.l.b16 %v1249
    %v5130 = vunpack.c.h.b16 %v1249
    %v5131 = vunpack.c.l.b16 %v1250
    %v5132 = vunpack.c.h.b16 %v1250
    %v5133 = vunpack.c.l.b16 %v1251
    %v5134 = vunpack.c.h.b16 %v1251
    %v5135 = vunpack.c.l.b16 %v1252
    %v5136 = vunpack.c.h.b16 %v1252
    %v5137 = vunpack.c.l.b16 %v1253
    %v5138 = vunpack.c.h.b16 %v1253
    %v5139 = vunpack.c.l.b16 %v1254
    %v5140 = vunpack.c.h.b16 %v1254
    %v5141 = vunpack.c.l.b16 %v1255
    %v5142 = vunpack.c.h.b16 %v1255
    %v5143 = vunpack.c.l.b16 %v1256
    %v5144 = vunpack.c.h.b16 %v1256
    %v5145 = vunpack.c.l.b16 %v1257
    %v5146 = vunpack.c.h.b16 %v1257
    %v5147 = vunpack.c.l.b16 %v1258
    %v5148 = vunpack.c.h.b16 %v1258
    %v5149 = vunpack.c.l.b16 %v1259
    %v5150 = vunpack.c.h.b16 %v1259
    %v5151 = vunpack.c.l.b16 %v1260
    %v5152 = vunpack.c.h.b16 %v1260
    %v5153 = vunpack.c.l.b16 %v1261
    %v5154 = vunpack.c.h.b16 %v1261
    %v5155 = vunpack.c.l.b16 %v1262
    %v5156 = vunpack.c.h.b16 %v1262
    %v5157 = vunpack.c.l.b16 %v1263
    %v5158 = vunpack.c.h.b16 %v1263
    %v5159 = vunpack.c.l.b16 %v1264
    %v5160 = vunpack.c.h.b16 %v1264
    %v5161 = vunpack.c.l.b16 %v1265
    %v5162 = vunpack.c.h.b16 %v1265
    %v5163 = vunpack.c.l.b16 %v1266
    %v5164 = vunpack.c.h.b16 %v1266
    %v5165 = vunpack.c.l.b16 %v1267
    %v5166 = vunpack.c.h.b16 %v1267
    %v5167 = vunpack.c.l.b16 %v1268
    %v5168 = vunpack.c.h.b16 %v1268
    %v5169 = vunpack.c.l.b16 %v1269
    %v5170 = vunpack.c.h.b16 %v1269
    %v5171 = vunpack.c.l.b16 %v1270
    %v5172 = vunpack.c.h.b16 %v1270
    %v5173 = vunpack.c.l.b16 %v1271
    %v5174 = vunpack.c.h.b16 %v1271
    %v5175 = vunpack.c.l.b16 %v1272
    %v5176 = vunpack.c.h.b16 %v1272
    %v5177 = vunpack.c.l.b16 %v1273
    %v5178 = vunpack.c.h.b16 %v1273
    %v5179 = vunpack.c.l.b16 %v1274
    %v5180 = vunpack.c.h.b16 %v1274
    %v5181 = vunpack.c.l.b16 %v1275
    %v5182 = vunpack.c.h.b16 %v1275
    %v5183 = vunpack.c.l.b16 %v1276
    %v5184 = vunpack.c.h.b16 %v1276
    %v5185 = vunpack.c.l.b16 %v1277
    %v5186 = vunpack.c.h.b16 %v1277
    %v5187 = vunpack.c.l.b16 %v1278
    %v5188 = vunpack.c.h.b16 %v1278
    %v5189 = vunpack.c.l.b16 %v1279
    %v5190 = vunpack.c.h.b16 %v1279
    %v5191 = vunpack.c.l.b16 %v1280
    %v5192 = vunpack.c.h.b16 %v1280
    %v5193 = vunpack.c.l.b16 %v1281
    %v5194 = vunpack.c.h.b16 %v1281
    %v5195 = vunpack.c.l.b16 %v1282
    %v5196 = vunpack.c.h.b16 %v1282
    %v5197 = vunpack.c.l.b16 %v1283
    %v5198 = vunpack.c.h.b16 %v1283
    %v5199 = vunpack.c.l.b16 %v1284
    %v5200 = vunpack.c.h.b16 %v1284
    %v5201 = vunpack.c.l.b16 %v1285
    %v5202 = vunpack.c.h.b16 %v1285
    %v5203 = vunpack.c.l.b16 %v1286
    %v5204 = vunpack.c.h.b16 %v1286
    %v5205 = vunpack.c.l.b16 %v1287
    %v5206 = vunpack.c.h.b16 %v1287
    %v5207 = vunpack.c.l.b16 %v1288
    %v5208 = vunpack.c.h.b16 %v1288
    %v5209 = vunpack.c.l.b16 %v1289
    %v5210 = vunpack.c.h.b16 %v1289
    %v5211 = vunpack.c.l.b16 %v1290
    %v5212 = vunpack.c.h.b16 %v1290
    %v5213 = vunpack.c.l.b16 %v1291
    %v5214 = vunpack.c.h.b16 %v1291
    %v5215 = vunpack.c.l.b16 %v1292
    %v5216 = vunpack.c.h.b16 %v1292
    %v5217 = vunpack.c.l.b16 %v1293
    %v5218 = vunpack.c.h.b16 %v1293
    %v5219 = vunpack.c.l.b16 %v1294
    %v5220 = vunpack.c.h.b16 %v1294
    %v5221 = vunpack.c.l.b16 %v1295
    %v5222 = vunpack.c.h.b16 %v1295
    %v5223 = vunpack.c.l.b16 %v1296
    %v5224 = vunpack.c.h.b16 %v1296
    %v5225 = vunpack.c.l.b16 %v1297
    %v5226 = vunpack.c.h.b16 %v1297
    %v5227 = vunpack.c.l.b16 %v1298
    %v5228 = vunpack.c.h.b16 %v1298
    %v5229 = vunpack.c.l.b16 %v1299
    %v5230 = vunpack.c.h.b16 %v1299
    %v5231 = vunpack.c.l.b16 %v1300
    %v5232 = vunpack.c.h.b16 %v1300
    %v5233 = vunpack.c.l.b16 %v1301
    %v5234 = vunpack.c.h.b16 %v1301
    %v5235 = vunpack.c.l.b16 %v1302
    %v5236 = vunpack.c.h.b16 %v1302
    %v5237 = vunpack.c.l.b16 %v1303
    %v5238 = vunpack.c.h.b16 %v1303
    %v5239 = vunpack.c.l.b16 %v1304
    %v5240 = vunpack.c.h.b16 %v1304
    %v5241 = vunpack.c.l.b16 %v1305
    %v5242 = vunpack.c.h.b16 %v1305
    %v5243 = vunpack.c.l.b16 %v1306
    %v5244 = vunpack.c.h.b16 %v1306
    %v5245 = vunpack.c.l.b16 %v1307
    %v5246 = vunpack.c.h.b16 %v1307
    %v5247 = vunpack.c.l.b16 %v1308
    %v5248 = vunpack.c.h.b16 %v1308
    %v5249 = vunpack.c.l.b16 %v1309
    %v5250 = vunpack.c.h.b16 %v1309
    %v5251 = vunpack.c.l.b16 %v1310
    %v5252 = vunpack.c.h.b16 %v1310
    %v5253 = vunpack.c.l.b16 %v1311
    %v5254 = vunpack.c.h.b16 %v1311
    %v5255 = vunpack.c.l.b16 %v1312
    %v5256 = vunpack.c.h.b16 %v1312
    %v5257 = vunpack.c.l.b16 %v1313
    %v5258 = vunpack.c.h.b16 %v1313
    %v5259 = vunpack.c.l.b16 %v1314
    %v5260 = vunpack.c.h.b16 %v1314
    %v5261 = vunpack.c.l.b16 %v1315
    %v5262 = vunpack.c.h.b16 %v1315
    %v5263 = vunpack.c.l.b16 %v1316
    %v5264 = vunpack.c.h.b16 %v1316
    %v5265 = vunpack.c.l.b16 %v1317
    %v5266 = vunpack.c.h.b16 %v1317
    %v5267 = vunpack.c.l.b16 %v1318
    %v5268 = vunpack.c.h.b16 %v1318
    %v5269 = vunpack.c.l.b16 %v1319
    %v5270 = vunpack.c.h.b16 %v1319
    %v5271 = vunpack.c.l.b16 %v1320
    %v5272 = vunpack.c.h.b16 %v1320
    %v5273 = vunpack.c.l.b16 %v1321
    %v5274 = vunpack.c.h.b16 %v1321
    %v5275 = vunpack.c.l.b16 %v1322
    %v5276 = vunpack.c.h.b16 %v1322
    %v5277 = vunpack.c.l.b16 %v1323
    %v5278 = vunpack.c.h.b16 %v1323
    %v5279 = vunpack.c.l.b16 %v1324
    %v5280 = vunpack.c.h.b16 %v1324
    %v5281 = vunpack.c.l.b16 %v1325
    %v5282 = vunpack.c.h.b16 %v1325
    %v5283 = vunpack.c.l.b16 %v1326
    %v5284 = vunpack.c.h.b16 %v1326
    %v5285 = vunpack.c.l.b16 %v1327
    %v5286 = vunpack.c.h.b16 %v1327
    %v5287 = vunpack.c.l.b16 %v1328
    %v5288 = vunpack.c.h.b16 %v1328
    %v5289 = vunpack.c.l.b16 %v1329
    %v5290 = vunpack.c.h.b16 %v1329
    %v5291 = vunpack.c.l.b16 %v1330
    %v5292 = vunpack.c.h.b16 %v1330
    %v5293 = vunpack.c.l.b16 %v1331
    %v5294 = vunpack.c.h.b16 %v1331
    %v5295 = vunpack.c.l.b16 %v1332
    %v5296 = vunpack.c.h.b16 %v1332
    %v5297 = vunpack.c.l.b16 %v1333
    %v5298 = vunpack.c.h.b16 %v1333
    %v5299 = vunpack.c.l.b16 %v1334
    %v5300 = vunpack.c.h.b16 %v1334
    %v5301 = vunpack.c.l.b16 %v1335
    %v5302 = vunpack.c.h.b16 %v1335
    %v5303 = vunpack.c.l.b16 %v1336
    %v5304 = vunpack.c.h.b16 %v1336
    %v5305 = vunpack.c.l.b16 %v1337
    %v5306 = vunpack.c.h.b16 %v1337
    %v5307 = vunpack.c.l.b16 %v1338
    %v5308 = vunpack.c.h.b16 %v1338
    %v5309 = vunpack.c.l.b16 %v1339
    %v5310 = vunpack.c.h.b16 %v1339
    %v5311 = vunpack.c.l.b16 %v1340
    %v5312 = vunpack.c.h.b16 %v1340
    %v5313 = vunpack.c.l.b16 %v1341
    %v5314 = vunpack.c.h.b16 %v1341
    %v5315 = vunpack.c.l.b16 %v1342
    %v5316 = vunpack.c.h.b16 %v1342
    %v5317 = vunpack.c.l.b16 %v1343
    %v5318 = vunpack.c.h.b16 %v1343
    %v5319 = vunpack.c.l.b16 %v1344
    %v5320 = vunpack.c.h.b16 %v1344
    %v5321 = vunpack.c.l.b16 %v1345
    %v5322 = vunpack.c.h.b16 %v1345
    %v5323 = vunpack.c.l.b16 %v1346
    %v5324 = vunpack.c.h.b16 %v1346
    %v5325 = vunpack.c.l.b16 %v1347
    %v5326 = vunpack.c.h.b16 %v1347
    %v5327 = vunpack.c.l.b16 %v1348
    %v5328 = vunpack.c.h.b16 %v1348
    %v5329 = vunpack.c.l.b16 %v1349
    %v5330 = vunpack.c.h.b16 %v1349
    %v5331 = vunpack.c.l.b16 %v1350
    %v5332 = vunpack.c.h.b16 %v1350
    %v5333 = vunpack.c.l.b16 %v1351
    %v5334 = vunpack.c.h.b16 %v1351
    %v5335 = vunpack.c.l.b16 %v1352
    %v5336 = vunpack.c.h.b16 %v1352
    %v5337 = vunpack.c.l.b16 %v1353
    %v5338 = vunpack.c.h.b16 %v1353
    %v5339 = vunpack.c.l.b16 %v1354
    %v5340 = vunpack.c.h.b16 %v1354
    %v5341 = vunpack.c.l.b16 %v1355
    %v5342 = vunpack.c.h.b16 %v1355
    %v5343 = vunpack.c.l.b16 %v1356
    %v5344 = vunpack.c.h.b16 %v1356
    %v5345 = vunpack.c.l.b16 %v1357
    %v5346 = vunpack.c.h.b16 %v1357
    %v5347 = vunpack.c.l.b16 %v1358
    %v5348 = vunpack.c.h.b16 %v1358
    %v5349 = vunpack.c.l.b16 %v1359
    %v5350 = vunpack.c.h.b16 %v1359
    %v5351 = vunpack.c.l.b16 %v1360
    %v5352 = vunpack.c.h.b16 %v1360
    %v5353 = vunpack.c.l.b16 %v1361
    %v5354 = vunpack.c.h.b16 %v1361
    %v5355 = vunpack.c.l.b16 %v1362
    %v5356 = vunpack.c.h.b16 %v1362
    %v5357 = vunpack.c.l.b16 %v1363
    %v5358 = vunpack.c.h.b16 %v1363
    %v5359 = vunpack.c.l.b16 %v1364
    %v5360 = vunpack.c.h.b16 %v1364
    %v5361 = vunpack.c.l.b16 %v1365
    %v5362 = vunpack.c.h.b16 %v1365
    %v5363 = vunpack.c.l.b16 %v1366
    %v5364 = vunpack.c.h.b16 %v1366
    %v5365 = vunpack.c.l.b16 %v1367
    %v5366 = vunpack.c.h.b16 %v1367
    %v5367 = vunpack.c.l.b16 %v1368
    %v5368 = vunpack.c.h.b16 %v1368
    %v5369 = vunpack.c.l.b16 %v1369
    %v5370 = vunpack.c.h.b16 %v1369
    %v5371 = vunpack.c.l.b16 %v1370
    %v5372 = vunpack.c.h.b16 %v1370
    %v5373 = vunpack.c.l.b16 %v1371
    %v5374 = vunpack.c.h.b16 %v1371
    %v5375 = vunpack.c.l.b16 %v1372
    %v5376 = vunpack.c.h.b16 %v1372
    %v5377 = vunpack.c.l.b16 %v1373
    %v5378 = vunpack.c.h.b16 %v1373
    %v5379 = vunpack.c.l.b16 %v1374
    %v5380 = vunpack.c.h.b16 %v1374
    %v5381 = vunpack.c.l.b16 %v1375
    %v5382 = vunpack.c.h.b16 %v1375
    %v5383 = vunpack.c.l.b16 %v1376
    %v5384 = vunpack.c.h.b16 %v1376
    %v5385 = vunpack.c.l.b16 %v1377
    %v5386 = vunpack.c.h.b16 %v1377
    %v5387 = vunpack.c.l.b16 %v1378
    %v5388 = vunpack.c.h.b16 %v1378
    %v5389 = vunpack.c.l.b16 %v1379
    %v5390 = vunpack.c.h.b16 %v1379
    %v5391 = vunpack.c.l.b16 %v1380
    %v5392 = vunpack.c.h.b16 %v1380
    %v5393 = vunpack.c.l.b16 %v1381
    %v5394 = vunpack.c.h.b16 %v1381
    %v5395 = vunpack.c.l.b16 %v1382
    %v5396 = vunpack.c.h.b16 %v1382
    %v5397 = vunpack.c.l.b16 %v1383
    %v5398 = vunpack.c.h.b16 %v1383
    %v5399 = vunpack.c.l.b16 %v1384
    %v5400 = vunpack.c.h.b16 %v1384
    %v5401 = vunpack.c.l.b16 %v1385
    %v5402 = vunpack.c.h.b16 %v1385
    %v5403 = vunpack.c.l.b16 %v1386
    %v5404 = vunpack.c.h.b16 %v1386
    %v5405 = vunpack.c.l.b16 %v1387
    %v5406 = vunpack.c.h.b16 %v1387
    %v5407 = vunpack.c.l.b16 %v1388
    %v5408 = vunpack.c.h.b16 %v1388
    %v5409 = vunpack.c.l.b16 %v1389
    %v5410 = vunpack.c.h.b16 %v1389
    %v5411 = vunpack.c.l.b16 %v1390
    %v5412 = vunpack.c.h.b16 %v1390
    %v5413 = vunpack.c.l.b16 %v1391
    %v5414 = vunpack.c.h.b16 %v1391
    %v5415 = vunpack.c.l.b16 %v1392
    %v5416 = vunpack.c.h.b16 %v1392
    %v5417 = vunpack.c.l.b16 %v1393
    %v5418 = vunpack.c.h.b16 %v1393
    %v5419 = vunpack.c.l.b16 %v1394
    %v5420 = vunpack.c.h.b16 %v1394
    %v5421 = vunpack.c.l.b16 %v1395
    %v5422 = vunpack.c.h.b16 %v1395
    %v5423 = vunpack.c.l.b16 %v1396
    %v5424 = vunpack.c.h.b16 %v1396
    %v5425 = vunpack.c.l.b16 %v1397
    %v5426 = vunpack.c.h.b16 %v1397
    %v5427 = vunpack.c.l.b16 %v1398
    %v5428 = vunpack.c.h.b16 %v1398
    %v5429 = vunpack.c.l.b16 %v1399
    %v5430 = vunpack.c.h.b16 %v1399
    %v5431 = vunpack.c.l.b16 %v1400
    %v5432 = vunpack.c.h.b16 %v1400
    %v5433 = vunpack.c.l.b16 %v1401
    %v5434 = vunpack.c.h.b16 %v1401
    %v5435 = vunpack.c.l.b16 %v1402
    %v5436 = vunpack.c.h.b16 %v1402
    %v5437 = vunpack.c.l.b16 %v1403
    %v5438 = vunpack.c.h.b16 %v1403
    %v5439 = vunpack.c.l.b16 %v1404
    %v5440 = vunpack.c.h.b16 %v1404
    %v5441 = vunpack.c.l.b16 %v1405
    %v5442 = vunpack.c.h.b16 %v1405
    %v5443 = vunpack.c.l.b16 %v1406
    %v5444 = vunpack.c.h.b16 %v1406
    %v5445 = vunpack.c.l.b16 %v1407
    %v5446 = vunpack.c.h.b16 %v1407
    %v5447 = vunpack.c.l.b16 %v1408
    %v5448 = vunpack.c.h.b16 %v1408
    %v5449 = vunpack.c.l.b16 %v1409
    %v5450 = vunpack.c.h.b16 %v1409
    %v5451 = vunpack.c.l.b16 %v1410
    %v5452 = vunpack.c.h.b16 %v1410
    %v5453 = vunpack.c.l.b16 %v1411
    %v5454 = vunpack.c.h.b16 %v1411
    %v5455 = vunpack.c.l.b16 %v1412
    %v5456 = vunpack.c.h.b16 %v1412
    %v5457 = vunpack.c.l.b16 %v1413
    %v5458 = vunpack.c.h.b16 %v1413
    %v5459 = vunpack.c.l.b16 %v1414
    %v5460 = vunpack.c.h.b16 %v1414
    %v5461 = vunpack.c.l.b16 %v1415
    %v5462 = vunpack.c.h.b16 %v1415
    %v5463 = vunpack.c.l.b16 %v1416
    %v5464 = vunpack.c.h.b16 %v1416
    %v5465 = vunpack.c.l.b16 %v1417
    %v5466 = vunpack.c.h.b16 %v1417
    %v5467 = vunpack.c.l.b16 %v1418
    %v5468 = vunpack.c.h.b16 %v1418
    %v5469 = vunpack.c.l.b16 %v1419
    %v5470 = vunpack.c.h.b16 %v1419
    %v5471 = vunpack.c.l.b16 %v1420
    %v5472 = vunpack.c.h.b16 %v1420
    %v5473 = vunpack.c.l.b16 %v1421
    %v5474 = vunpack.c.h.b16 %v1421
    %v5475 = vunpack.c.l.b16 %v1422
    %v5476 = vunpack.c.h.b16 %v1422
    %v5477 = vunpack.c.l.b16 %v1423
    %v5478 = vunpack.c.h.b16 %v1423
    %v5479 = vunpack.c.l.b16 %v1424
    %v5480 = vunpack.c.h.b16 %v1424
    %v5481 = vunpack.c.l.b16 %v1425
    %v5482 = vunpack.c.h.b16 %v1425
    %v5483 = vunpack.c.l.b16 %v1426
    %v5484 = vunpack.c.h.b16 %v1426
    %v5485 = vunpack.c.l.b16 %v1427
    %v5486 = vunpack.c.h.b16 %v1427
    %v5487 = vunpack.c.l.b16 %v1428
    %v5488 = vunpack.c.h.b16 %v1428
    %v5489 = vunpack.c.l.b16 %v1429
    %v5490 = vunpack.c.h.b16 %v1429
    %v5491 = vunpack.c.l.b16 %v1430
    %v5492 = vunpack.c.h.b16 %v1430
    %v5493 = vunpack.c.l.b16 %v1431
    %v5494 = vunpack.c.h.b16 %v1431
    %v5495 = vunpack.c.l.b16 %v1432
    %v5496 = vunpack.c.h.b16 %v1432
    %v5497 = vunpack.c.l.b16 %v1433
    %v5498 = vunpack.c.h.b16 %v1433
    %v5499 = vunpack.c.l.b16 %v1434
    %v5500 = vunpack.c.h.b16 %v1434
    %v5501 = vunpack.c.l.b16 %v1435
    %v5502 = vunpack.c.h.b16 %v1435
    %v5503 = vunpack.c.l.b16 %v1436
    %v5504 = vunpack.c.h.b16 %v1436
    %v5505 = vunpack.c.l.b16 %v1437
    %v5506 = vunpack.c.h.b16 %v1437
    %v5507 = vunpack.c.l.b16 %v1438
    %v5508 = vunpack.c.h.b16 %v1438
    %v5509 = vunpack.c.l.b16 %v1439
    %v5510 = vunpack.c.h.b16 %v1439
    %v5511 = vunpack.c.l.b16 %v1440
    %v5512 = vunpack.c.h.b16 %v1440
    %v5513 = vunpack.c.l.b16 %v1441
    %v5514 = vunpack.c.h.b16 %v1441
    %v5515 = vunpack.c.l.b16 %v1442
    %v5516 = vunpack.c.h.b16 %v1442
    %v5517 = vunpack.c.l.b16 %v1443
    %v5518 = vunpack.c.h.b16 %v1443
    %v5519 = vunpack.c.l.b16 %v1444
    %v5520 = vunpack.c.h.b16 %v1444
    %v5521 = vunpack.c.l.b16 %v1445
    %v5522 = vunpack.c.h.b16 %v1445
    %v5523 = vunpack.c.l.b16 %v1446
    %v5524 = vunpack.c.h.b16 %v1446
    %v5525 = vunpack.c.l.b16 %v1447
    %v5526 = vunpack.c.h.b16 %v1447
    %v5527 = vunpack.c.l.b16 %v1448
    %v5528 = vunpack.c.h.b16 %v1448
    %v5529 = vunpack.c.l.b16 %v1449
    %v5530 = vunpack.c.h.b16 %v1449
    %v5531 = vunpack.c.l.b16 %v1450
    %v5532 = vunpack.c.h.b16 %v1450
    %v5533 = vunpack.c.l.b16 %v1451
    %v5534 = vunpack.c.h.b16 %v1451
    %v5535 = vunpack.c.l.b16 %v1452
    %v5536 = vunpack.c.h.b16 %v1452
    %v5537 = vunpack.c.l.b16 %v1453
    %v5538 = vunpack.c.h.b16 %v1453
    %v5539 = vunpack.c.l.b16 %v1454
    %v5540 = vunpack.c.h.b16 %v1454
    %v5541 = vunpack.c.l.b16 %v1455
    %v5542 = vunpack.c.h.b16 %v1455
    %v5543 = vunpack.c.l.b16 %v1456
    %v5544 = vunpack.c.h.b16 %v1456
    %v5545 = vunpack.c.l.b16 %v1457
    %v5546 = vunpack.c.h.b16 %v1457
    %v5547 = vunpack.c.l.b16 %v1458
    %v5548 = vunpack.c.h.b16 %v1458
    %v5549 = vunpack.c.l.b16 %v1459
    %v5550 = vunpack.c.h.b16 %v1459
    %v5551 = vunpack.c.l.b16 %v1460
    %v5552 = vunpack.c.h.b16 %v1460
    %v5553 = vunpack.c.l.b16 %v1461
    %v5554 = vunpack.c.h.b16 %v1461
    %v5555 = vunpack.c.l.b16 %v1462
    %v5556 = vunpack.c.h.b16 %v1462
    %v5557 = vunpack.c.l.b16 %v1463
    %v5558 = vunpack.c.h.b16 %v1463
    %v5559 = vunpack.c.l.b16 %v1464
    %v5560 = vunpack.c.h.b16 %v1464
    %v5561 = vunpack.c.l.b16 %v1465
    %v5562 = vunpack.c.h.b16 %v1465
    %v5563 = vunpack.c.l.b16 %v1466
    %v5564 = vunpack.c.h.b16 %v1466
    %v5565 = vunpack.c.l.b16 %v1467
    %v5566 = vunpack.c.h.b16 %v1467
    %v5567 = vunpack.c.l.b16 %v1468
    %v5568 = vunpack.c.h.b16 %v1468
    %v5569 = vunpack.c.l.b16 %v1469
    %v5570 = vunpack.c.h.b16 %v1469
    %v5571 = vunpack.c.l.b16 %v1470
    %v5572 = vunpack.c.h.b16 %v1470
    %v5573 = vunpack.c.l.b16 %v1471
    %v5574 = vunpack.c.h.b16 %v1471
    %v5575 = vunpack.c.l.b16 %v1472
    %v5576 = vunpack.c.h.b16 %v1472
    %v5577 = vunpack.c.l.b16 %v1473
    %v5578 = vunpack.c.h.b16 %v1473
    %v5579 = vunpack.c.l.b16 %v1474
    %v5580 = vunpack.c.h.b16 %v1474
    %v5581 = vunpack.c.l.b16 %v1475
    %v5582 = vunpack.c.h.b16 %v1475
    %v5583 = vunpack.c.l.b16 %v1476
    %v5584 = vunpack.c.h.b16 %v1476
    %v5585 = vunpack.c.l.b16 %v1477
    %v5586 = vunpack.c.h.b16 %v1477
    %v5587 = vunpack.c.l.b16 %v1478
    %v5588 = vunpack.c.h.b16 %v1478
    %v5589 = vunpack.c.l.b16 %v1479
    %v5590 = vunpack.c.h.b16 %v1479
    %v5591 = vunpack.c.l.b16 %v1480
    %v5592 = vunpack.c.h.b16 %v1480
    %v5593 = vunpack.c.l.b16 %v1481
    %v5594 = vunpack.c.h.b16 %v1481
    %v5595 = vunpack.c.l.b16 %v1482
    %v5596 = vunpack.c.h.b16 %v1482
    %v5597 = vunpack.c.l.b16 %v1483
    %v5598 = vunpack.c.h.b16 %v1483
    %v5599 = vunpack.c.l.b16 %v1484
    %v5600 = vunpack.c.h.b16 %v1484
    %v5601 = vunpack.c.l.b16 %v1485
    %v5602 = vunpack.c.h.b16 %v1485
    %v5603 = vunpack.c.l.b16 %v1486
    %v5604 = vunpack.c.h.b16 %v1486
    %v5605 = vunpack.c.l.b16 %v1487
    %v5606 = vunpack.c.h.b16 %v1487
    %v5607 = vunpack.c.l.b16 %v1488
    %v5608 = vunpack.c.h.b16 %v1488
    %v5609 = vunpack.c.l.b16 %v1489
    %v5610 = vunpack.c.h.b16 %v1489
    %v5611 = vunpack.c.l.b16 %v1490
    %v5612 = vunpack.c.h.b16 %v1490
    %v5613 = vunpack.c.l.b16 %v1491
    %v5614 = vunpack.c.h.b16 %v1491
    %v5615 = vunpack.c.l.b16 %v1492
    %v5616 = vunpack.c.h.b16 %v1492
    %v5617 = vunpack.c.l.b16 %v1493
    %v5618 = vunpack.c.h.b16 %v1493
    %v5619 = vunpack.c.l.b16 %v1494
    %v5620 = vunpack.c.h.b16 %v1494
    %v5621 = vunpack.c.l.b16 %v1495
    %v5622 = vunpack.c.h.b16 %v1495
    %v5623 = vunpack.c.l.b16 %v1496
    %v5624 = vunpack.c.h.b16 %v1496
    %v5625 = vunpack.c.l.b16 %v1497
    %v5626 = vunpack.c.h.b16 %v1497
    %v5627 = vunpack.c.l.b16 %v1498
    %v5628 = vunpack.c.h.b16 %v1498
    %v5629 = vunpack.c.l.b16 %v1499
    %v5630 = vunpack.c.h.b16 %v1499
    %v5631 = vunpack.c.l.b16 %v1500
    %v5632 = vunpack.c.h.b16 %v1500
    %v5633 = vunpack.c.l.b16 %v1501
    %v5634 = vunpack.c.h.b16 %v1501
    %v5635 = vunpack.c.l.b16 %v1502
    %v5636 = vunpack.c.h.b16 %v1502
    %v5637 = vunpack.c.l.b16 %v1503
    %v5638 = vunpack.c.h.b16 %v1503
    %v5639 = vunpack.c.l.b16 %v1504
    %v5640 = vunpack.c.h.b16 %v1504
    %v5641 = vunpack.c.l.b16 %v1505
    %v5642 = vunpack.c.h.b16 %v1505
    %v5643 = vunpack.c.l.b16 %v1506
    %v5644 = vunpack.c.h.b16 %v1506
    %v5645 = vunpack.c.l.b16 %v1507
    %v5646 = vunpack.c.h.b16 %v1507
    %v5647 = vunpack.c.l.b16 %v1508
    %v5648 = vunpack.c.h.b16 %v1508
    %v5649 = vunpack.c.l.b16 %v1509
    %v5650 = vunpack.c.h.b16 %v1509
    %v5651 = vunpack.c.l.b16 %v1510
    %v5652 = vunpack.c.h.b16 %v1510
    %v5653 = vunpack.c.l.b16 %v1511
    %v5654 = vunpack.c.h.b16 %v1511
    %v5655 = vunpack.c.l.b16 %v1512
    %v5656 = vunpack.c.h.b16 %v1512
    %v5657 = vunpack.c.l.b16 %v1513
    %v5658 = vunpack.c.h.b16 %v1513
    %v5659 = vunpack.c.l.b16 %v1514
    %v5660 = vunpack.c.h.b16 %v1514
    %v5661 = vunpack.c.l.b16 %v1515
    %v5662 = vunpack.c.h.b16 %v1515
    %v5663 = vunpack.c.l.b16 %v1516
    %v5664 = vunpack.c.h.b16 %v1516
    %v5665 = vunpack.c.l.b16 %v1517
    %v5666 = vunpack.c.h.b16 %v1517
    %v5667 = vunpack.c.l.b16 %v1518
    %v5668 = vunpack.c.h.b16 %v1518
    %v5669 = vunpack.c.l.b16 %v1519
    %v5670 = vunpack.c.h.b16 %v1519
    %v5671 = vunpack.c.l.b16 %v1520
    %v5672 = vunpack.c.h.b16 %v1520
    %v5673 = vunpack.c.l.b16 %v1521
    %v5674 = vunpack.c.h.b16 %v1521
    %v5675 = vunpack.c.l.b16 %v1522
    %v5676 = vunpack.c.h.b16 %v1522
    %v5677 = vunpack.c.l.b16 %v1523
    %v5678 = vunpack.c.h.b16 %v1523
    %v5679 = vunpack.c.l.b16 %v1524
    %v5680 = vunpack.c.h.b16 %v1524
    %v5681 = vunpack.c.l.b16 %v1525
    %v5682 = vunpack.c.h.b16 %v1525
    %v5683 = vunpack.c.l.b16 %v1526
    %v5684 = vunpack.c.h.b16 %v1526
    %v5685 = vunpack.c.l.b16 %v1527
    %v5686 = vunpack.c.h.b16 %v1527
    %v5687 = vunpack.c.l.b16 %v1528
    %v5688 = vunpack.c.h.b16 %v1528
    %v5689 = vunpack.c.l.b16 %v1529
    %v5690 = vunpack.c.h.b16 %v1529
    %v5691 = vunpack.c.l.b16 %v1530
    %v5692 = vunpack.c.h.b16 %v1530
    %v5693 = vunpack.c.l.b16 %v1531
    %v5694 = vunpack.c.h.b16 %v1531
    %v5695 = vunpack.c.l.b16 %v1532
    %v5696 = vunpack.c.h.b16 %v1532
    %v5697 = vunpack.c.l.b16 %v1533
    %v5698 = vunpack.c.h.b16 %v1533
    %v5699 = vunpack.c.l.b16 %v1534
    %v5700 = vunpack.c.h.b16 %v1534
    %v5701 = vunpack.c.l.b16 %v1535
    %v5702 = vunpack.c.h.b16 %v1535
    %v5703 = vunpack.c.l.b16 %v1536
    %v5704 = vunpack.c.h.b16 %v1536
    %v5705 = vunpack.c.l.b16 %v1537
    %v5706 = vunpack.c.h.b16 %v1537
    %v5707 = vunpack.c.l.b16 %v1538
    %v5708 = vunpack.c.h.b16 %v1538
    %v5709 = vunpack.c.l.b16 %v1539
    %v5710 = vunpack.c.h.b16 %v1539
    %v5711 = vunpack.c.l.b16 %v1540
    %v5712 = vunpack.c.h.b16 %v1540
    %v5713 = vunpack.c.l.b16 %v1541
    %v5714 = vunpack.c.h.b16 %v1541
    %v5715 = vunpack.c.l.b16 %v1542
    %v5716 = vunpack.c.h.b16 %v1542
    %v5717 = vunpack.c.l.b16 %v1543
    %v5718 = vunpack.c.h.b16 %v1543
    %v5719 = vunpack.c.l.b16 %v1544
    %v5720 = vunpack.c.h.b16 %v1544
    %v5721 = vunpack.c.l.b16 %v1545
    %v5722 = vunpack.c.h.b16 %v1545
    %v5723 = vunpack.c.l.b16 %v1546
    %v5724 = vunpack.c.h.b16 %v1546
    %v5725 = vunpack.c.l.b16 %v1547
    %v5726 = vunpack.c.h.b16 %v1547
    %v5727 = vunpack.c.l.b16 %v1548
    %v5728 = vunpack.c.h.b16 %v1548
    %v5729 = vunpack.c.l.b16 %v1549
    %v5730 = vunpack.c.h.b16 %v1549
    %v5731 = vunpack.c.l.b16 %v1550
    %v5732 = vunpack.c.h.b16 %v1550
    %v5733 = vunpack.c.l.b16 %v1551
    %v5734 = vunpack.c.h.b16 %v1551
    %v5735 = vunpack.c.l.b16 %v1552
    %v5736 = vunpack.c.h.b16 %v1552
    %v5737 = vunpack.c.l.b16 %v1553
    %v5738 = vunpack.c.h.b16 %v1553
    %v5739 = vunpack.c.l.b16 %v1554
    %v5740 = vunpack.c.h.b16 %v1554
    %v5741 = vunpack.c.l.b16 %v1555
    %v5742 = vunpack.c.h.b16 %v1555
    %v5743 = vunpack.c.l.b16 %v1556
    %v5744 = vunpack.c.h.b16 %v1556
    %v5745 = vunpack.c.l.b16 %v1557
    %v5746 = vunpack.c.h.b16 %v1557
    %v5747 = vunpack.c.l.b16 %v1558
    %v5748 = vunpack.c.h.b16 %v1558
    %v5749 = vunpack.c.l.b16 %v1559
    %v5750 = vunpack.c.h.b16 %v1559
    %v5751 = vunpack.c.l.b16 %v1560
    %v5752 = vunpack.c.h.b16 %v1560
    %v5753 = vunpack.c.l.b16 %v1561
    %v5754 = vunpack.c.h.b16 %v1561
    %v5755 = vunpack.c.l.b16 %v1562
    %v5756 = vunpack.c.h.b16 %v1562
    %v5757 = vunpack.c.l.b16 %v1563
    %v5758 = vunpack.c.h.b16 %v1563
    %v5759 = vunpack.c.l.b16 %v1564
    %v5760 = vunpack.c.h.b16 %v1564
    %v5761 = vunpack.c.l.b16 %v1565
    %v5762 = vunpack.c.h.b16 %v1565
    %v5763 = vunpack.c.l.b16 %v1566
    %v5764 = vunpack.c.h.b16 %v1566
    %v5765 = vunpack.c.l.b16 %v1567
    %v5766 = vunpack.c.h.b16 %v1567
    %v5767 = vunpack.c.l.b16 %v1568
    %v5768 = vunpack.c.h.b16 %v1568
    %v5769 = vunpack.c.l.b16 %v1569
    %v5770 = vunpack.c.h.b16 %v1569
    %v5771 = vunpack.c.l.b16 %v1570
    %v5772 = vunpack.c.h.b16 %v1570
    %v5773 = vunpack.c.l.b16 %v1571
    %v5774 = vunpack.c.h.b16 %v1571
    %v5775 = vunpack.c.l.b16 %v1572
    %v5776 = vunpack.c.h.b16 %v1572
    %v5777 = vunpack.c.l.b16 %v1573
    %v5778 = vunpack.c.h.b16 %v1573
    %v5779 = vunpack.c.l.b16 %v1574
    %v5780 = vunpack.c.h.b16 %v1574
    %v5781 = vunpack.c.l.b16 %v1575
    %v5782 = vunpack.c.h.b16 %v1575
    %v5783 = vunpack.c.l.b16 %v1576
    %v5784 = vunpack.c.h.b16 %v1576
    %v5785 = vunpack.c.l.b16 %v1577
    %v5786 = vunpack.c.h.b16 %v1577
    %v5787 = vunpack.c.l.b16 %v1578
    %v5788 = vunpack.c.h.b16 %v1578
    %v5789 = vunpack.c.l.b16 %v1579
    %v5790 = vunpack.c.h.b16 %v1579
    %v5791 = vunpack.c.l.b16 %v1580
    %v5792 = vunpack.c.h.b16 %v1580
    %v5793 = vunpack.c.l.b16 %v1581
    %v5794 = vunpack.c.h.b16 %v1581
    %v5795 = vunpack.c.l.b16 %v1582
    %v5796 = vunpack.c.h.b16 %v1582
    %v5797 = vunpack.c.l.b16 %v1583
    %v5798 = vunpack.c.h.b16 %v1583
    %v5799 = vunpack.c.l.b16 %v1584
    %v5800 = vunpack.c.h.b16 %v1584
    %v5801 = vunpack.c.l.b16 %v1585
    %v5802 = vunpack.c.h.b16 %v1585
    %v5803 = vunpack.c.l.b16 %v1586
    %v5804 = vunpack.c.h.b16 %v1586
    %v5805 = vunpack.c.l.b16 %v1587
    %v5806 = vunpack.c.h.b16 %v1587
    %v5807 = vunpack.c.l.b16 %v1588
    %v5808 = vunpack.c.h.b16 %v1588
    %v5809 = vunpack.c.l.b16 %v1589
    %v5810 = vunpack.c.h.b16 %v1589
    %v5811 = vunpack.c.l.b16 %v1590
    %v5812 = vunpack.c.h.b16 %v1590
    %v5813 = vunpack.c.l.b16 %v1591
    %v5814 = vunpack.c.h.b16 %v1591
    %v5815 = vunpack.c.l.b16 %v1592
    %v5816 = vunpack.c.h.b16 %v1592
    %v5817 = vunpack.c.l.b16 %v1593
    %v5818 = vunpack.c.h.b16 %v1593
    %v5819 = vunpack.c.l.b16 %v1594
    %v5820 = vunpack.c.h.b16 %v1594
    %v5821 = vunpack.c.l.b16 %v1595
    %v5822 = vunpack.c.h.b16 %v1595
    %v5823 = vunpack.c.l.b16 %v1596
    %v5824 = vunpack.c.h.b16 %v1596
    %v5825 = vunpack.c.l.b16 %v1597
    %v5826 = vunpack.c.h.b16 %v1597
    %v5827 = vunpack.c.l.b16 %v1598
    %v5828 = vunpack.c.h.b16 %v1598
    %v5829 = vunpack.c.l.b16 %v1599
    %v5830 = vunpack.c.h.b16 %v1599
    %v5831 = vunpack.c.l.b16 %v1600
    %v5832 = vunpack.c.h.b16 %v1600
    %v5833 = vunpack.c.l.b16 %v1601
    %v5834 = vunpack.c.h.b16 %v1601
    %v5835 = vunpack.c.l.b16 %v1602
    %v5836 = vunpack.c.h.b16 %v1602
    %v5837 = vunpack.c.l.b16 %v1603
    %v5838 = vunpack.c.h.b16 %v1603
    %v5839 = vunpack.c.l.b16 %v1604
    %v5840 = vunpack.c.h.b16 %v1604
    %v5841 = vunpack.c.l.b16 %v1605
    %v5842 = vunpack.c.h.b16 %v1605
    %v5843 = vunpack.c.l.b16 %v1606
    %v5844 = vunpack.c.h.b16 %v1606
    %v5845 = vunpack.c.l.b16 %v1607
    %v5846 = vunpack.c.h.b16 %v1607
    %v5847 = vunpack.c.l.b16 %v1608
    %v5848 = vunpack.c.h.b16 %v1608
    %v5849 = vunpack.c.l.b16 %v1609
    %v5850 = vunpack.c.h.b16 %v1609
    %v5851 = vunpack.c.l.b16 %v1610
    %v5852 = vunpack.c.h.b16 %v1610
    %v5853 = vunpack.c.l.b16 %v1611
    %v5854 = vunpack.c.h.b16 %v1611
    %v5855 = vunpack.c.l.b16 %v1612
    %v5856 = vunpack.c.h.b16 %v1612
    %v5857 = vunpack.c.l.b16 %v1613
    %v5858 = vunpack.c.h.b16 %v1613
    %v5859 = vunpack.c.l.b16 %v1614
    %v5860 = vunpack.c.h.b16 %v1614
    %v5861 = vunpack.c.l.b16 %v1615
    %v5862 = vunpack.c.h.b16 %v1615
    %v5863 = vunpack.c.l.b16 %v1616
    %v5864 = vunpack.c.h.b16 %v1616
    %v5865 = vunpack.c.l.b16 %v1617
    %v5866 = vunpack.c.h.b16 %v1617
    %v5867 = vunpack.c.l.b16 %v1618
    %v5868 = vunpack.c.h.b16 %v1618
    %v5869 = vunpack.c.l.b16 %v1619
    %v5870 = vunpack.c.h.b16 %v1619
    %v5871 = vunpack.c.l.b16 %v1620
    %v5872 = vunpack.c.h.b16 %v1620
    %v5873 = vunpack.c.l.b16 %v1621
    %v5874 = vunpack.c.h.b16 %v1621
    %v5875 = vunpack.c.l.b16 %v1622
    %v5876 = vunpack.c.h.b16 %v1622
    %v5877 = vunpack.c.l.b16 %v1623
    %v5878 = vunpack.c.h.b16 %v1623
    %v5879 = vunpack.c.l.b16 %v1624
    %v5880 = vunpack.c.h.b16 %v1624
    %v5881 = vunpack.c.l.b16 %v1625
    %v5882 = vunpack.c.h.b16 %v1625
    %v5883 = vunpack.c.l.b16 %v1626
    %v5884 = vunpack.c.h.b16 %v1626
    %v5885 = vunpack.c.l.b16 %v1627
    %v5886 = vunpack.c.h.b16 %v1627
    %v5887 = vunpack.c.l.b16 %v1628
    %v5888 = vunpack.c.h.b16 %v1628
    %v5889 = vunpack.c.l.b16 %v1629
    %v5890 = vunpack.c.h.b16 %v1629
    %v5891 = vunpack.c.l.b16 %v1630
    %v5892 = vunpack.c.h.b16 %v1630
    %v5893 = vunpack.c.l.b16 %v1631
    %v5894 = vunpack.c.h.b16 %v1631
    %v5895 = vunpack.c.l.b16 %v1632
    %v5896 = vunpack.c.h.b16 %v1632
    %v5897 = vunpack.c.l.b16 %v1633
    %v5898 = vunpack.c.h.b16 %v1633
    %v5899 = vunpack.c.l.b16 %v1634
    %v5900 = vunpack.c.h.b16 %v1634
    %v5901 = vunpack.c.l.b16 %v1635
    %v5902 = vunpack.c.h.b16 %v1635
    %v5903 = vunpack.c.l.b16 %v1636
    %v5904 = vunpack.c.h.b16 %v1636
    %v5905 = vunpack.c.l.b16 %v1637
    %v5906 = vunpack.c.h.b16 %v1637
    %v5907 = vunpack.c.l.b16 %v1638
    %v5908 = vunpack.c.h.b16 %v1638
    %v5909 = vunpack.c.l.b16 %v1639
    %v5910 = vunpack.c.h.b16 %v1639
    %v5911 = vunpack.c.l.b16 %v1640
    %v5912 = vunpack.c.h.b16 %v1640
    %v5913 = vunpack.c.l.b16 %v1641
    %v5914 = vunpack.c.h.b16 %v1641
    %v5915 = vunpack.c.l.b16 %v1642
    %v5916 = vunpack.c.h.b16 %v1642
    %v5917 = vunpack.c.l.b16 %v1643
    %v5918 = vunpack.c.h.b16 %v1643
    %v5919 = vunpack.c.l.b16 %v1644
    %v5920 = vunpack.c.h.b16 %v1644
    %v5921 = vunpack.c.l.b16 %v1645
    %v5922 = vunpack.c.h.b16 %v1645
    %v5923 = vunpack.c.l.b16 %v1646
    %v5924 = vunpack.c.h.b16 %v1646
    %v5925 = vunpack.c.l.b16 %v1647
    %v5926 = vunpack.c.h.b16 %v1647
    %v5927 = vunpack.c.l.b16 %v1648
    %v5928 = vunpack.c.h.b16 %v1648
    %v5929 = vunpack.c.l.b16 %v1649
    %v5930 = vunpack.c.h.b16 %v1649
    %v5931 = vunpack.c.l.b16 %v1650
    %v5932 = vunpack.c.h.b16 %v1650
    %v5933 = vunpack.c.l.b16 %v1651
    %v5934 = vunpack.c.h.b16 %v1651
    %v5935 = vunpack.c.l.b16 %v1652
    %v5936 = vunpack.c.h.b16 %v1652
    %v5937 = vunpack.c.l.b16 %v1653
    %v5938 = vunpack.c.h.b16 %v1653
    %v5939 = vunpack.c.l.b16 %v1654
    %v5940 = vunpack.c.h.b16 %v1654
    %v5941 = vunpack.c.l.b16 %v1655
    %v5942 = vunpack.c.h.b16 %v1655
    %v5943 = vunpack.c.l.b16 %v1656
    %v5944 = vunpack.c.h.b16 %v1656
    %v5945 = vpack.c.b16 %v3137, %v3129
    %v5946 = vpack.c.b16 %v3138, %v3130
    %v5947 = vpack.c.b16 %v3139, %v3131
    %v5948 = vpack.c.b16 %v3140, %v3132
    %v5949 = vpack.c.b16 %v3141, %v3133
    %v5950 = vpack.c.b16 %v3142, %v3134
    %v5951 = vpack.c.b16 %v3143, %v3135
    %v5952 = vpack.c.b16 %v3144, %v3136
    %v5953 = vpack.c.b16 %v3153, %v3145
    %v5954 = vpack.c.b16 %v3154, %v3146
    %v5955 = vpack.c.b16 %v3155, %v3147
    %v5956 = vpack.c.b16 %v3156, %v3148
    %v5957 = vpack.c.b16 %v3157, %v3149
    %v5958 = vpack.c.b16 %v3158, %v3150
    %v5959 = vpack.c.b16 %v3159, %v3151
    %v5960 = vpack.c.b16 %v3160, %v3152
    %v5961 = vpack.c.b16 %v3169, %v3161
    %v5962 = vpack.c.b16 %v3170, %v3162
    %v5963 = vpack.c.b16 %v3171, %v3163
    %v5964 = vpack.c.b16 %v3172, %v3164
    %v5965 = vpack.c.b16 %v3173, %v3165
    %v5966 = vpack.c.b16 %v3174, %v3166
    %v5967 = vpack.c.b16 %v3175, %v3167
    %v5968 = vpack.c.b16 %v3176, %v3168
    %v5969 = vpack.c.b16 %v3185, %v3177
    %v5970 = vpack.c.b16 %v3186, %v3178
    %v5971 = vpack.c.b16 %v3187, %v3179
    %v5972 = vpack.c.b16 %v3188, %v3180
    %v5973 = vpack.c.b16 %v3189, %v3181
    %v5974 = vpack.c.b16 %v3190, %v3182
    %v5975 = vpack.c.b16 %v3191, %v3183
    %v5976 = vpack.c.b16 %v3192, %v3184
    %v5977 = vpack.c.b16 %v3201, %v3193
    %v5978 = vpack.c.b16 %v3202, %v3194
    %v5979 = vpack.c.b16 %v3203, %v3195
    %v5980 = vpack.c.b16 %v3204, %v3196
    %v5981 = vpack.c.b16 %v3205, %v3197
    %v5982 = vpack.c.b16 %v3206, %v3198
    %v5983 = vpack.c.b16 %v3207, %v3199
    %v5984 = vpack.c.b16 %v3208, %v3200
    %v5985 = vpack.c.b16 %v3217, %v3209
    %v5986 = vpack.c.b16 %v3218, %v3210
    %v5987 = vpack.c.b16 %v3219, %v3211
    %v5988 = vpack.c.b16 %v3220, %v3212
    %v5989 = vpack.c.b16 %v3221, %v3213
    %v5990 = vpack.c.b16 %v3222, %v3214
    %v5991 = vpack.c.b16 %v3223, %v3215
    %v5992 = vpack.c.b16 %v3224, %v3216
    %v5993 = vpack.c.b16 %v3233, %v3225
    %v5994 = vpack.c.b16 %v3234, %v3226
    %v5995 = vpack.c.b16 %v3235, %v3227
    %v5996 = vpack.c.b16 %v3236, %v3228
    %v5997 = vpack.c.b16 %v3237, %v3229
    %v5998 = vpack.c.b16 %v3238, %v3230
    %v5999 = vpack.c.b16 %v3239, %v3231
    %v6000 = vpack.c.b16 %v3240, %v3232
    %v6001 = vpack.c.b16 %v3249, %v3241
    %v6002 = vpack.c.b16 %v3250, %v3242
    %v6003 = vpack.c.b16 %v3251, %v3243
    %v6004 = vpack.c.b16 %v3252, %v3244
    %v6005 = vpack.c.b16 %v3253, %v3245
    %v6006 = vpack.c.b16 %v3254, %v3246
    %v6007 = vpack.c.b16 %v3255, %v3247
    %v6008 = vpack.c.b16 %v3256, %v3248
    %v6009 = vpack.c.b16 %v3265, %v3257
    %v6010 = vpack.c.b16 %v3266, %v3258
    %v6011 = vpack.c.b16 %v3267, %v3259
    %v6012 = vpack.c.b16 %v3268, %v3260
    %v6013 = vpack.c.b16 %v3269, %v3261
    %v6014 = vpack.c.b16 %v3270, %v3262
    %v6015 = vpack.c.b16 %v3271, %v3263
    %v6016 = vpack.c.b16 %v3272, %v3264
    %v6017 = vpack.c.b16 %v3281, %v3273
    %v6018 = vpack.c.b16 %v3282, %v3274
    %v6019 = vpack.c.b16 %v3283, %v3275
    %v6020 = vpack.c.b16 %v3284, %v3276
    %v6021 = vpack.c.b16 %v3285, %v3277
    %v6022 = vpack.c.b16 %v3286, %v3278
    %v6023 = vpack.c.b16 %v3287, %v3279
    %v6024 = vpack.c.b16 %v3288, %v3280
    %v6025 = vpack.c.b16 %v3297, %v3289
    %v6026 = vpack.c.b16 %v3298, %v3290
    %v6027 = vpack.c.b16 %v3299, %v3291
    %v6028 = vpack.c.b16 %v3300, %v3292
    %v6029 = vpack.c.b16 %v3301, %v3293
    %v6030 = vpack.c.b16 %v3302, %v3294
    %v6031 = vpack.c.b16 %v3303, %v3295
    %v6032 = vpack.c.b16 %v3304, %v3296
    %v6033 = vpack.c.b16 %v3313, %v3305
    %v6034 = vpack.c.b16 %v3314, %v3306
    %v6035 = vpack.c.b16 %v3315, %v3307
    %v6036 = vpack.c.b16 %v3316, %v3308
    %v6037 = vpack.c.b16 %v3317, %v3309
    %v6038 = vpack.c.b16 %v3318, %v3310
    %v6039 = vpack.c.b16 %v3319, %v3311
    %v6040 = vpack.c.b16 %v3320, %v3312
    %v6041 = vpack.c.b16 %v3329, %v3321
    %v6042 = vpack.c.b16 %v3330, %v3322
    %v6043 = vpack.c.b16 %v3331, %v3323
    %v6044 = vpack.c.b16 %v3332, %v3324
    %v6045 = vpack.c.b16 %v3333, %v3325
    %v6046 = vpack.c.b16 %v3334, %v3326
    %v6047 = vpack.c.b16 %v3335, %v3327
    %v6048 = vpack.c.b16 %v3336, %v3328
    %v6049 = vpack.c.b16 %v3345, %v3337
    %v6050 = vpack.c.b16 %v3346, %v3338
    %v6051 = vpack.c.b16 %v3347, %v3339
    %v6052 = vpack.c.b16 %v3348, %v3340
    %v6053 = vpack.c.b16 %v3349, %v3341
    %v6054 = vpack.c.b16 %v3350, %v3342
    %v6055 = vpack.c.b16 %v3351, %v3343
    %v6056 = vpack.c.b16 %v3352, %v3344
    %v6057 = vpack.c.b16 %v3361, %v3353
    %v6058 = vpack.c.b16 %v3362, %v3354
    %v6059 = vpack.c.b16 %v3363, %v3355
    %v6060 = vpack.c.b16 %v3364, %v3356
    %v6061 = vpack.c.b16 %v3365, %v3357
    %v6062 = vpack.c.b16 %v3366, %v3358
    %v6063 = vpack.c.b16 %v3367, %v3359
    %v6064 = vpack.c.b16 %v3368, %v3360
    %v6065 = vpack.c.b16 %v3377, %v3369
    %v6066 = vpack.c.b16 %v3378, %v3370
    %v6067 = vpack.c.b16 %v3379, %v3371
    %v6068 = vpack.c.b16 %v3380, %v3372
    %v6069 = vpack.c.b16 %v3381, %v3373
    %v6070 = vpack.c.b16 %v3382, %v3374
    %v6071 = vpack.c.b16 %v3383, %v3375
    %v6072 = vpack.c.b16 %v3384, %v3376
    %v6073 = vpack.c.b16 %v3393, %v3385
    %v6074 = vpack.c.b16 %v3394, %v3386
    %v6075 = vpack.c.b16 %v3395, %v3387
    %v6076 = vpack.c.b16 %v3396, %v3388
    %v6077 = vpack.c.b16 %v3397, %v3389
    %v6078 = vpack.c.b16 %v3398, %v3390
    %v6079 = vpack.c.b16 %v3399, %v3391
    %v6080 = vpack.c.b16 %v3400, %v3392
    %v6081 = vpack.c.b16 %v3409, %v3401
    %v6082 = vpack.c.b16 %v3410, %v3402
    %v6083 = vpack.c.b16 %v3411, %v3403
    %v6084 = vpack.c.b16 %v3412, %v3404
    %v6085 = vpack.c.b16 %v3413, %v3405
    %v6086 = vpack.c.b16 %v3414, %v3406
    %v6087 = vpack.c.b16 %v3415, %v3407
    %v6088 = vpack.c.b16 %v3416, %v3408
    %v6089 = vpack.c.b16 %v3425, %v3417
    %v6090 = vpack.c.b16 %v3426, %v3418
    %v6091 = vpack.c.b16 %v3427, %v3419
    %v6092 = vpack.c.b16 %v3428, %v3420
    %v6093 = vpack.c.b16 %v3429, %v3421
    %v6094 = vpack.c.b16 %v3430, %v3422
    %v6095 = vpack.c.b16 %v3431, %v3423
    %v6096 = vpack.c.b16 %v3432, %v3424
    %v6097 = vpack.c.b16 %v3441, %v3433
    %v6098 = vpack.c.b16 %v3442, %v3434
    %v6099 = vpack.c.b16 %v3443, %v3435
    %v6100 = vpack.c.b16 %v3444, %v3436
    %v6101 = vpack.c.b16 %v3445, %v3437
    %v6102 = vpack.c.b16 %v3446, %v3438
    %v6103 = vpack.c.b16 %v3447, %v3439
    %v6104 = vpack.c.b16 %v3448, %v3440
    %v6105 = vpack.c.b16 %v3457, %v3449
    %v6106 = vpack.c.b16 %v3458, %v3450
    %v6107 = vpack.c.b16 %v3459, %v3451
    %v6108 = vpack.c.b16 %v3460, %v3452
    %v6109 = vpack.c.b16 %v3461, %v3453
    %v6110 = vpack.c.b16 %v3462, %v3454
    %v6111 = vpack.c.b16 %v3463, %v3455
    %v6112 = vpack.c.b16 %v3464, %v3456
    %v6113 = vpack.c.b16 %v3473, %v3465
    %v6114 = vpack.c.b16 %v3474, %v3466
    %v6115 = vpack.c.b16 %v3475, %v3467
    %v6116 = vpack.c.b16 %v3476, %v3468
    %v6117 = vpack.c.b16 %v3477, %v3469
    %v6118 = vpack.c.b16 %v3478, %v3470
    %v6119 = vpack.c.b16 %v3479, %v3471
    %v6120 = vpack.c.b16 %v3480, %v3472
    %v6121 = vpack.c.b16 %v3489, %v3481
    %v6122 = vpack.c.b16 %v3490, %v3482
    %v6123 = vpack.c.b16 %v3491, %v3483
    %v6124 = vpack.c.b16 %v3492, %v3484
    %v6125 = vpack.c.b16 %v3493, %v3485
    %v6126 = vpack.c.b16 %v3494, %v3486
    %v6127 = vpack.c.b16 %v3495, %v3487
    %v6128 = vpack.c.b16 %v3496, %v3488
    %v6129 = vpack.c.b16 %v3505, %v3497
    %v6130 = vpack.c.b16 %v3506, %v3498
    %v6131 = vpack.c.b16 %v3507, %v3499
    %v6132 = vpack.c.b16 %v3508, %v3500
    %v6133 = vpack.c.b16 %v3509, %v3501
    %v6134 = vpack.c.b16 %v3510, %v3502
    %v6135 = vpack.c.b16 %v3511, %v3503
    %v6136 = vpack.c.b16 %v3512, %v3504
    %v6137 = vpack.c.b16 %v3521, %v3513
    %v6138 = vpack.c.b16 %v3522, %v3514
    %v6139 = vpack.c.b16 %v3523, %v3515
    %v6140 = vpack.c.b16 %v3524, %v3516
    %v6141 = vpack.c.b16 %v3525, %v3517
    %v6142 = vpack.c.b16 %v3526, %v3518
    %v6143 = vpack.c.b16 %v3527, %v3519
    %v6144 = vpack.c.b16 %v3528, %v3520
    %v6145 = vpack.c.b16 %v3537, %v3529
    %v6146 = vpack.c.b16 %v3538, %v3530
    %v6147 = vpack.c.b16 %v3539, %v3531
    %v6148 = vpack.c.b16 %v3540, %v3532
    %v6149 = vpack.c.b16 %v3541, %v3533
    %v6150 = vpack.c.b16 %v3542, %v3534
    %v6151 = vpack.c.b16 %v3543, %v3535
    %v6152 = vpack.c.b16 %v3544, %v3536
    %v6153 = vpack.c.b16 %v3553, %v3545
    %v6154 = vpack.c.b16 %v3554, %v3546
    %v6155 = vpack.c.b16 %v3555, %v3547
    %v6156 = vpack.c.b16 %v3556, %v3548
    %v6157 = vpack.c.b16 %v3557, %v3549
    %v6158 = vpack.c.b16 %v3558, %v3550
    %v6159 = vpack.c.b16 %v3559, %v3551
    %v6160 = vpack.c.b16 %v3560, %v3552
    %v6161 = vpack.c.b16 %v3569, %v3561
    %v6162 = vpack.c.b16 %v3570, %v3562
    %v6163 = vpack.c.b16 %v3571, %v3563
    %v6164 = vpack.c.b16 %v3572, %v3564
    %v6165 = vpack.c.b16 %v3573, %v3565
    %v6166 = vpack.c.b16 %v3574, %v3566
    %v6167 = vpack.c.b16 %v3575, %v3567
    %v6168 = vpack.c.b16 %v3576, %v3568
    %v6169 = vpack.c.b16 %v3585, %v3577
    %v6170 = vpack.c.b16 %v3586, %v3578
    %v6171 = vpack.c.b16 %v3587, %v3579
    %v6172 = vpack.c.b16 %v3588, %v3580
    %v6173 = vpack.c.b16 %v3589, %v3581
    %v6174 = vpack.c.b16 %v3590, %v3582
    %v6175 = vpack.c.b16 %v3591, %v3583
    %v6176 = vpack.c.b16 %v3592, %v3584
    %v6177 = vpack.c.b16 %v3601, %v3593
    %v6178 = vpack.c.b16 %v3602, %v3594
    %v6179 = vpack.c.b16 %v3603, %v3595
    %v6180 = vpack.c.b16 %v3604, %v3596
    %v6181 = vpack.c.b16 %v3605, %v3597
    %v6182 = vpack.c.b16 %v3606, %v3598
    %v6183 = vpack.c.b16 %v3607, %v3599
    %v6184 = vpack.c.b16 %v3608, %v3600
    %v6185 = vpack.c.b16 %v3617, %v3609
    %v6186 = vpack.c.b16 %v3618, %v3610
    %v6187 = vpack.c.b16 %v3619, %v3611
    %v6188 = vpack.c.b16 %v3620, %v3612
    %v6189 = vpack.c.b16 %v3621, %v3613
    %v6190 = vpack.c.b16 %v3622, %v3614
    %v6191 = vpack.c.b16 %v3623, %v3615
    %v6192 = vpack.c.b16 %v3624, %v3616
    %v6193 = vpack.c.b16 %v3633, %v3625
    %v6194 = vpack.c.b16 %v3634, %v3626
    %v6195 = vpack.c.b16 %v3635, %v3627
    %v6196 = vpack.c.b16 %v3636, %v3628
    %v6197 = vpack.c.b16 %v3637, %v3629
    %v6198 = vpack.c.b16 %v3638, %v3630
    %v6199 = vpack.c.b16 %v3639, %v3631
    %v6200 = vpack.c.b16 %v3640, %v3632
    %v6201 = vpack.c.b16 %v3649, %v3641
    %v6202 = vpack.c.b16 %v3650, %v3642
    %v6203 = vpack.c.b16 %v3651, %v3643
    %v6204 = vpack.c.b16 %v3652, %v3644
    %v6205 = vpack.c.b16 %v3653, %v3645
    %v6206 = vpack.c.b16 %v3654, %v3646
    %v6207 = vpack.c.b16 %v3655, %v3647
    %v6208 = vpack.c.b16 %v3656, %v3648
    %v6209 = vpack.c.b16 %v3665, %v3657
    %v6210 = vpack.c.b16 %v3666, %v3658
    %v6211 = vpack.c.b16 %v3667, %v3659
    %v6212 = vpack.c.b16 %v3668, %v3660
    %v6213 = vpack.c.b16 %v3669, %v3661
    %v6214 = vpack.c.b16 %v3670, %v3662
    %v6215 = vpack.c.b16 %v3671, %v3663
    %v6216 = vpack.c.b16 %v3672, %v3664
    %v6217 = vpack.c.b16 %v3681, %v3673
    %v6218 = vpack.c.b16 %v3682, %v3674
    %v6219 = vpack.c.b16 %v3683, %v3675
    %v6220 = vpack.c.b16 %v3684, %v3676
    %v6221 = vpack.c.b16 %v3685, %v3677
    %v6222 = vpack.c.b16 %v3686, %v3678
    %v6223 = vpack.c.b16 %v3687, %v3679
    %v6224 = vpack.c.b16 %v3688, %v3680
    %v6225 = vpack.c.b16 %v3697, %v3689
    %v6226 = vpack.c.b16 %v3698, %v3690
    %v6227 = vpack.c.b16 %v3699, %v3691
    %v6228 = vpack.c.b16 %v3700, %v3692
    %v6229 = vpack.c.b16 %v3701, %v3693
    %v6230 = vpack.c.b16 %v3702, %v3694
    %v6231 = vpack.c.b16 %v3703, %v3695
    %v6232 = vpack.c.b16 %v3704, %v3696
    %v6233 = vpack.c.b16 %v3713, %v3705
    %v6234 = vpack.c.b16 %v3714, %v3706
    %v6235 = vpack.c.b16 %v3715, %v3707
    %v6236 = vpack.c.b16 %v3716, %v3708
    %v6237 = vpack.c.b16 %v3717, %v3709
    %v6238 = vpack.c.b16 %v3718, %v3710
    %v6239 = vpack.c.b16 %v3719, %v3711
    %v6240 = vpack.c.b16 %v3720, %v3712
    %v6241 = vpack.c.b16 %v3729, %v3721
    %v6242 = vpack.c.b16 %v3730, %v3722
    %v6243 = vpack.c.b16 %v3731, %v3723
    %v6244 = vpack.c.b16 %v3732, %v3724
    %v6245 = vpack.c.b16 %v3733, %v3725
    %v6246 = vpack.c.b16 %v3734, %v3726
    %v6247 = vpack.c.b16 %v3735, %v3727
    %v6248 = vpack.c.b16 %v3736, %v3728
    %v6249 = vpack.c.b16 %v3745, %v3737
    %v6250 = vpack.c.b16 %v3746, %v3738
    %v6251 = vpack.c.b16 %v3747, %v3739
    %v6252 = vpack.c.b16 %v3748, %v3740
    %v6253 = vpack.c.b16 %v3749, %v3741
    %v6254 = vpack.c.b16 %v3750, %v3742
    %v6255 = vpack.c.b16 %v3751, %v3743
    %v6256 = vpack.c.b16 %v3752, %v3744
    %v6257 = vpack.c.b16 %v3761, %v3753
    %v6258 = vpack.c.b16 %v3762, %v3754
    %v6259 = vpack.c.b16 %v3763, %v3755
    %v6260 = vpack.c.b16 %v3764, %v3756
    %v6261 = vpack.c.b16 %v3765, %v3757
    %v6262 = vpack.c.b16 %v3766, %v3758
    %v6263 = vpack.c.b16 %v3767, %v3759
    %v6264 = vpack.c.b16 %v3768, %v3760
    %v6265 = vpack.c.b16 %v3777, %v3769
    %v6266 = vpack.c.b16 %v3778, %v3770
    %v6267 = vpack.c.b16 %v3779, %v3771
    %v6268 = vpack.c.b16 %v3780, %v3772
    %v6269 = vpack.c.b16 %v3781, %v3773
    %v6270 = vpack.c.b16 %v3782, %v3774
    %v6271 = vpack.c.b16 %v3783, %v3775
    %v6272 = vpack.c.b16 %v3784, %v3776
    %v6273 = vpack.c.b16 %v3793, %v3785
    %v6274 = vpack.c.b16 %v3794, %v3786
    %v6275 = vpack.c.b16 %v3795, %v3787
    %v6276 = vpack.c.b16 %v3796, %v3788
    %v6277 = vpack.c.b16 %v3797, %v3789
    %v6278 = vpack.c.b16 %v3798, %v3790
    %v6279 = vpack.c.b16 %v3799, %v3791
    %v6280 = vpack.c.b16 %v3800, %v3792
    %v6281 = vpack.c.b16 %v3809, %v3801
    %v6282 = vpack.c.b16 %v3810, %v3802
    %v6283 = vpack.c.b16 %v3811, %v3803
    %v6284 = vpack.c.b16 %v3812, %v3804
    %v6285 = vpack.c.b16 %v3813, %v3805
    %v6286 = vpack.c.b16 %v3814, %v3806
    %v6287 = vpack.c.b16 %v3815, %v3807
    %v6288 = vpack.c.b16 %v3816, %v3808
    %v6289 = vpack.c.b16 %v3825, %v3817
    %v6290 = vpack.c.b16 %v3826, %v3818
    %v6291 = vpack.c.b16 %v3827, %v3819
    %v6292 = vpack.c.b16 %v3828, %v3820
    %v6293 = vpack.c.b16 %v3829, %v3821
    %v6294 = vpack.c.b16 %v3830, %v3822
    %v6295 = vpack.c.b16 %v3831, %v3823
    %v6296 = vpack.c.b16 %v3832, %v3824
    %v6297 = vpack.c.b16 %v3841, %v3833
    %v6298 = vpack.c.b16 %v3842, %v3834
    %v6299 = vpack.c.b16 %v3843, %v3835
    %v6300 = vpack.c.b16 %v3844, %v3836
    %v6301 = vpack.c.b16 %v3845, %v3837
    %v6302 = vpack.c.b16 %v3846, %v3838
    %v6303 = vpack.c.b16 %v3847, %v3839
    %v6304 = vpack.c.b16 %v3848, %v3840
    %v6305 = vpack.c.b16 %v3857, %v3849
    %v6306 = vpack.c.b16 %v3858, %v3850
    %v6307 = vpack.c.b16 %v3859, %v3851
    %v6308 = vpack.c.b16 %v3860, %v3852
    %v6309 = vpack.c.b16 %v3861, %v3853
    %v6310 = vpack.c.b16 %v3862, %v3854
    %v6311 = vpack.c.b16 %v3863, %v3855
    %v6312 = vpack.c.b16 %v3864, %v3856
    %v6313 = vpack.c.b16 %v3873, %v3865
    %v6314 = vpack.c.b16 %v3874, %v3866
    %v6315 = vpack.c.b16 %v3875, %v3867
    %v6316 = vpack.c.b16 %v3876, %v3868
    %v6317 = vpack.c.b16 %v3877, %v3869
    %v6318 = vpack.c.b16 %v3878, %v3870
    %v6319 = vpack.c.b16 %v3879, %v3871
    %v6320 = vpack.c.b16 %v3880, %v3872
    %v6321 = vpack.c.b16 %v3889, %v3881
    %v6322 = vpack.c.b16 %v3890, %v3882
    %v6323 = vpack.c.b16 %v3891, %v3883
    %v6324 = vpack.c.b16 %v3892, %v3884
    %v6325 = vpack.c.b16 %v3893, %v3885
    %v6326 = vpack.c.b16 %v3894, %v3886
    %v6327 = vpack.c.b16 %v3895, %v3887
    %v6328 = vpack.c.b16 %v3896, %v3888
    %v6329 = vpack.c.b16 %v3905, %v3897
    %v6330 = vpack.c.b16 %v3906, %v3898
    %v6331 = vpack.c.b16 %v3907, %v3899
    %v6332 = vpack.c.b16 %v3908, %v3900
    %v6333 = vpack.c.b16 %v3909, %v3901
    %v6334 = vpack.c.b16 %v3910, %v3902
    %v6335 = vpack.c.b16 %v3911, %v3903
    %v6336 = vpack.c.b16 %v3912, %v3904
    %v6337 = vpack.c.b16 %v3921, %v3913
    %v6338 = vpack.c.b16 %v3922, %v3914
    %v6339 = vpack.c.b16 %v3923, %v3915
    %v6340 = vpack.c.b16 %v3924, %v3916
    %v6341 = vpack.c.b16 %v3925, %v3917
    %v6342 = vpack.c.b16 %v3926, %v3918
    %v6343 = vpack.c.b16 %v3927, %v3919
    %v6344 = vpack.c.b16 %v3928, %v3920
    %v6345 = vpack.c.b16 %v3937, %v3929
    %v6346 = vpack.c.b16 %v3938, %v3930
    %v6347 = vpack.c.b16 %v3939, %v3931
    %v6348 = vpack.c.b16 %v3940, %v3932
    %v6349 = vpack.c.b16 %v3941, %v3933
    %v6350 = vpack.c.b16 %v3942, %v3934
    %v6351 = vpack.c.b16 %v3943, %v3935
    %v6352 = vpack.c.b16 %v3944, %v3936
    %v6353 = vpack.c.b16 %v3953, %v3945
    %v6354 = vpack.c.b16 %v3954, %v3946
    %v6355 = vpack.c.b16 %v3955, %v3947
    %v6356 = vpack.c.b16 %v3956, %v3948
    %v6357 = vpack.c.b16 %v3957, %v3949
    %v6358 = vpack.c.b16 %v3958, %v3950
    %v6359 = vpack.c.b16 %v3959, %v3951
    %v6360 = vpack.c.b16 %v3960, %v3952
    %v6361 = vpack.c.b16 %v3969, %v3961
    %v6362 = vpack.c.b16 %v3970, %v3962
    %v6363 = vpack.c.b16 %v3971, %v3963
    %v6364 = vpack.c.b16 %v3972, %v3964
    %v6365 = vpack.c.b16 %v3973, %v3965
    %v6366 = vpack.c.b16 %v3974, %v3966
    %v6367 = vpack.c.b16 %v3975, %v3967
    %v6368 = vpack.c.b16 %v3976, %v3968
    %v6369 = vpack.c.b16 %v3985, %v3977
    %v6370 = vpack.c.b16 %v3986, %v3978
    %v6371 = vpack.c.b16 %v3987, %v3979
    %v6372 = vpack.c.b16 %v3988, %v3980
    %v6373 = vpack.c.b16 %v3989, %v3981
    %v6374 = vpack.c.b16 %v3990, %v3982
    %v6375 = vpack.c.b16 %v3991, %v3983
    %v6376 = vpack.c.b16 %v3992, %v3984
    %v6377 = vpack.c.b16 %v4001, %v3993
    %v6378 = vpack.c.b16 %v4002, %v3994
    %v6379 = vpack.c.b16 %v4003, %v3995
    %v6380 = vpack.c.b16 %v4004, %v3996
    %v6381 = vpack.c.b16 %v4005, %v3997
    %v6382 = vpack.c.b16 %v4006, %v3998
    %v6383 = vpack.c.b16 %v4007, %v3999
    %v6384 = vpack.c.b16 %v4008, %v4000
    %v6385 = vpack.c.b16 %v4017, %v4009
    %v6386 = vpack.c.b16 %v4018, %v4010
    %v6387 = vpack.c.b16 %v4019, %v4011
    %v6388 = vpack.c.b16 %v4020, %v4012
    %v6389 = vpack.c.b16 %v4021, %v4013
    %v6390 = vpack.c.b16 %v4022, %v4014
    %v6391 = vpack.c.b16 %v4023, %v4015
    %v6392 = vpack.c.b16 %v4024, %v4016
    %v6393 = vpack.c.b16 %v4033, %v4025
    %v6394 = vpack.c.b16 %v4034, %v4026
    %v6395 = vpack.c.b16 %v4035, %v4027
    %v6396 = vpack.c.b16 %v4036, %v4028
    %v6397 = vpack.c.b16 %v4037, %v4029
    %v6398 = vpack.c.b16 %v4038, %v4030
    %v6399 = vpack.c.b16 %v4039, %v4031
    %v6400 = vpack.c.b16 %v4040, %v4032
    %v6401 = vpack.c.b16 %v4049, %v4041
    %v6402 = vpack.c.b16 %v4050, %v4042
    %v6403 = vpack.c.b16 %v4051, %v4043
    %v6404 = vpack.c.b16 %v4052, %v4044
    %v6405 = vpack.c.b16 %v4053, %v4045
    %v6406 = vpack.c.b16 %v4054, %v4046
    %v6407 = vpack.c.b16 %v4055, %v4047
    %v6408 = vpack.c.b16 %v4056, %v4048
    %v6409 = vpack.c.b16 %v4065, %v4057
    %v6410 = vpack.c.b16 %v4066, %v4058
    %v6411 = vpack.c.b16 %v4067, %v4059
    %v6412 = vpack.c.b16 %v4068, %v4060
    %v6413 = vpack.c.b16 %v4069, %v4061
    %v6414 = vpack.c.b16 %v4070, %v4062
    %v6415 = vpack.c.b16 %v4071, %v4063
    %v6416 = vpack.c.b16 %v4072, %v4064
    %v6417 = vpack.c.b16 %v4081, %v4073
    %v6418 = vpack.c.b16 %v4082, %v4074
    %v6419 = vpack.c.b16 %v4083, %v4075
    %v6420 = vpack.c.b16 %v4084, %v4076
    %v6421 = vpack.c.b16 %v4085, %v4077
    %v6422 = vpack.c.b16 %v4086, %v4078
    %v6423 = vpack.c.b16 %v4087, %v4079
    %v6424 = vpack.c.b16 %v4088, %v4080
    %v6425 = vpack.c.b16 %v4097, %v4089
    %v6426 = vpack.c.b16 %v4098, %v4090
    %v6427 = vpack.c.b16 %v4099, %v4091
    %v6428 = vpack.c.b16 %v4100, %v4092
    %v6429 = vpack.c.b16 %v4101, %v4093
    %v6430 = vpack.c.b16 %v4102, %v4094
    %v6431 = vpack.c.b16 %v4103, %v4095
    %v6432 = vpack.c.b16 %v4104, %v4096
    %v6433 = vpack.c.b16 %v4113, %v4105
    %v6434 = vpack.c.b16 %v4114, %v4106
    %v6435 = vpack.c.b16 %v4115, %v4107
    %v6436 = vpack.c.b16 %v4116, %v4108
    %v6437 = vpack.c.b16 %v4117, %v4109
    %v6438 = vpack.c.b16 %v4118, %v4110
    %v6439 = vpack.c.b16 %v4119, %v4111
    %v6440 = vpack.c.b16 %v4120, %v4112
    %v6441 = vpack.c.b16 %v4129, %v4121
    %v6442 = vpack.c.b16 %v4130, %v4122
    %v6443 = vpack.c.b16 %v4131, %v4123
    %v6444 = vpack.c.b16 %v4132, %v4124
    %v6445 = vpack.c.b16 %v4133, %v4125
    %v6446 = vpack.c.b16 %v4134, %v4126
    %v6447 = vpack.c.b16 %v4135, %v4127
    %v6448 = vpack.c.b16 %v4136, %v4128
    %v6449 = vpack.c.b16 %v4145, %v4137
    %v6450 = vpack.c.b16 %v4146, %v4138
    %v6451 = vpack.c.b16 %v4147, %v4139
    %v6452 = vpack.c.b16 %v4148, %v4140
    %v6453 = vpack.c.b16 %v4149, %v4141
    %v6454 = vpack.c.b16 %v4150, %v4142
    %v6455 = vpack.c.b16 %v4151, %v4143
    %v6456 = vpack.c.b16 %v4152, %v4144
    %v6457 = vpack.c.b16 %v4161, %v4153
    %v6458 = vpack.c.b16 %v4162, %v4154
    %v6459 = vpack.c.b16 %v4163, %v4155
    %v6460 = vpack.c.b16 %v4164, %v4156
    %v6461 = vpack.c.b16 %v4165, %v4157
    %v6462 = vpack.c.b16 %v4166, %v4158
    %v6463 = vpack.c.b16 %v4167, %v4159
    %v6464 = vpack.c.b16 %v4168, %v4160
    %v6465 = vpack.c.b16 %v4177, %v4169
    %v6466 = vpack.c.b16 %v4178, %v4170
    %v6467 = vpack.c.b16 %v4179, %v4171
    %v6468 = vpack.c.b16 %v4180, %v4172
    %v6469 = vpack.c.b16 %v4181, %v4173
    %v6470 = vpack.c.b16 %v4182, %v4174
    %v6471 = vpack.c.b16 %v4183, %v4175
    %v6472 = vpack.c.b16 %v4184, %v4176
    %v6473 = vpack.c.b16 %v4193, %v4185
    %v6474 = vpack.c.b16 %v4194, %v4186
    %v6475 = vpack.c.b16 %v4195, %v4187
    %v6476 = vpack.c.b16 %v4196, %v4188
    %v6477 = vpack.c.b16 %v4197, %v4189
    %v6478 = vpack.c.b16 %v4198, %v4190
    %v6479 = vpack.c.b16 %v4199, %v4191
    %v6480 = vpack.c.b16 %v4200, %v4192
    %v6481 = vpack.c.b16 %v4209, %v4201
    %v6482 = vpack.c.b16 %v4210, %v4202
    %v6483 = vpack.c.b16 %v4211, %v4203
    %v6484 = vpack.c.b16 %v4212, %v4204
    %v6485 = vpack.c.b16 %v4213, %v4205
    %v6486 = vpack.c.b16 %v4214, %v4206
    %v6487 = vpack.c.b16 %v4215, %v4207
    %v6488 = vpack.c.b16 %v4216, %v4208
    %v6489 = vpack.c.b16 %v4225, %v4217
    %v6490 = vpack.c.b16 %v4226, %v4218
    %v6491 = vpack.c.b16 %v4227, %v4219
    %v6492 = vpack.c.b16 %v4228, %v4220
    %v6493 = vpack.c.b16 %v4229, %v4221
    %v6494 = vpack.c.b16 %v4230, %v4222
    %v6495 = vpack.c.b16 %v4231, %v4223
    %v6496 = vpack.c.b16 %v4232, %v4224
    %v6497 = vpack.c.b16 %v4241, %v4233
    %v6498 = vpack.c.b16 %v4242, %v4234
    %v6499 = vpack.c.b16 %v4243, %v4235
    %v6500 = vpack.c.b16 %v4244, %v4236
    %v6501 = vpack.c.b16 %v4245, %v4237
    %v6502 = vpack.c.b16 %v4246, %v4238
    %v6503 = vpack.c.b16 %v4247, %v4239
    %v6504 = vpack.c.b16 %v4248, %v4240
    %v6505 = vpack.c.b16 %v4257, %v4249
    %v6506 = vpack.c.b16 %v4258, %v4250
    %v6507 = vpack.c.b16 %v4259, %v4251
    %v6508 = vpack.c.b16 %v4260, %v4252
    %v6509 = vpack.c.b16 %v4261, %v4253
    %v6510 = vpack.c.b16 %v4262, %v4254
    %v6511 = vpack.c.b16 %v4263, %v4255
    %v6512 = vpack.c.b16 %v4264, %v4256
    %v6513 = vpack.c.b16 %v4273, %v4265
    %v6514 = vpack.c.b16 %v4274, %v4266
    %v6515 = vpack.c.b16 %v4275, %v4267
    %v6516 = vpack.c.b16 %v4276, %v4268
    %v6517 = vpack.c.b16 %v4277, %v4269
    %v6518 = vpack.c.b16 %v4278, %v4270
    %v6519 = vpack.c.b16 %v4279, %v4271
    %v6520 = vpack.c.b16 %v4280, %v4272
    %v6521 = vpack.c.b16 %v4289, %v4281
    %v6522 = vpack.c.b16 %v4290, %v4282
    %v6523 = vpack.c.b16 %v4291, %v4283
    %v6524 = vpack.c.b16 %v4292, %v4284
    %v6525 = vpack.c.b16 %v4293, %v4285
    %v6526 = vpack.c.b16 %v4294, %v4286
    %v6527 = vpack.c.b16 %v4295, %v4287
    %v6528 = vpack.c.b16 %v4296, %v4288
    %v6529 = vpack.c.b16 %v4305, %v4297
    %v6530 = vpack.c.b16 %v4306, %v4298
    %v6531 = vpack.c.b16 %v4307, %v4299
    %v6532 = vpack.c.b16 %v4308, %v4300
    %v6533 = vpack.c.b16 %v4309, %v4301
    %v6534 = vpack.c.b16 %v4310, %v4302
    %v6535 = vpack.c.b16 %v4311, %v4303
    %v6536 = vpack.c.b16 %v4312, %v4304
    %v6537 = vpack.c.b16 %v4321, %v4313
    %v6538 = vpack.c.b16 %v4322, %v4314
    %v6539 = vpack.c.b16 %v4323, %v4315
    %v6540 = vpack.c.b16 %v4324, %v4316
    %v6541 = vpack.c.b16 %v4325, %v4317
    %v6542 = vpack.c.b16 %v4326, %v4318
    %v6543 = vpack.c.b16 %v4327, %v4319
    %v6544 = vpack.c.b16 %v4328, %v4320
    %v6545 = vpack.c.b16 %v4337, %v4329
    %v6546 = vpack.c.b16 %v4338, %v4330
    %v6547 = vpack.c.b16 %v4339, %v4331
    %v6548 = vpack.c.b16 %v4340, %v4332
    %v6549 = vpack.c.b16 %v4341, %v4333
    %v6550 = vpack.c.b16 %v4342, %v4334
    %v6551 = vpack.c.b16 %v4343, %v4335
    %v6552 = vpack.c.b16 %v4344, %v4336
    %v6553 = vpack.c.b16 %v4353, %v4345
    %v6554 = vpack.c.b16 %v4354, %v4346
    %v6555 = vpack.c.b16 %v4355, %v4347
    %v6556 = vpack.c.b16 %v4356, %v4348
    %v6557 = vpack.c.b16 %v4357, %v4349
    %v6558 = vpack.c.b16 %v4358, %v4350
    %v6559 = vpack.c.b16 %v4359, %v4351
    %v6560 = vpack.c.b16 %v4360, %v4352
    %v6561 = vpack.c.b16 %v4369, %v4361
    %v6562 = vpack.c.b16 %v4370, %v4362
    %v6563 = vpack.c.b16 %v4371, %v4363
    %v6564 = vpack.c.b16 %v4372, %v4364
    %v6565 = vpack.c.b16 %v4373, %v4365
    %v6566 = vpack.c.b16 %v4374, %v4366
    %v6567 = vpack.c.b16 %v4375, %v4367
    %v6568 = vpack.c.b16 %v4376, %v4368
    %v6569 = vpack.c.b16 %v4385, %v4377
    %v6570 = vpack.c.b16 %v4386, %v4378
    %v6571 = vpack.c.b16 %v4387, %v4379
    %v6572 = vpack.c.b16 %v4388, %v4380
    %v6573 = vpack.c.b16 %v4389, %v4381
    %v6574 = vpack.c.b16 %v4390, %v4382
    %v6575 = vpack.c.b16 %v4391, %v4383
    %v6576 = vpack.c.b16 %v4392, %v4384
    %v6577 = vpack.c.b16 %v4401, %v4393
    %v6578 = vpack.c.b16 %v4402, %v4394
    %v6579 = vpack.c.b16 %v4403, %v4395
    %v6580 = vpack.c.b16 %v4404, %v4396
    %v6581 = vpack.c.b16 %v4405, %v4397
    %v6582 = vpack.c.b16 %v4406, %v4398
    %v6583 = vpack.c.b16 %v4407, %v4399
    %v6584 = vpack.c.b16 %v4408, %v4400
    %v6585 = vpack.c.b16 %v4417, %v4409
    %v6586 = vpack.c.b16 %v4418, %v4410
    %v6587 = vpack.c.b16 %v4419, %v4411
    %v6588 = vpack.c.b16 %v4420, %v4412
    %v6589 = vpack.c.b16 %v4421, %v4413
    %v6590 = vpack.c.b16 %v4422, %v4414
    %v6591 = vpack.c.b16 %v4423, %v4415
    %v6592 = vpack.c.b16 %v4424, %v4416
    %v6593 = vpack.c.b16 %v4433, %v4425
    %v6594 = vpack.c.b16 %v4434, %v4426
    %v6595 = vpack.c.b16 %v4435, %v4427
    %v6596 = vpack.c.b16 %v4436, %v4428
    %v6597 = vpack.c.b16 %v4437, %v4429
    %v6598 = vpack.c.b16 %v4438, %v4430
    %v6599 = vpack.c.b16 %v4439, %v4431
    %v6600 = vpack.c.b16 %v4440, %v4432
    %v6601 = vpack.c.b16 %v4449, %v4441
    %v6602 = vpack.c.b16 %v4450, %v4442
    %v6603 = vpack.c.b16 %v4451, %v4443
    %v6604 = vpack.c.b16 %v4452, %v4444
    %v6605 = vpack.c.b16 %v4453, %v4445
    %v6606 = vpack.c.b16 %v4454, %v4446
    %v6607 = vpack.c.b16 %v4455, %v4447
    %v6608 = vpack.c.b16 %v4456, %v4448
    %v6609 = vpack.c.b16 %v4465, %v4457
    %v6610 = vpack.c.b16 %v4466, %v4458
    %v6611 = vpack.c.b16 %v4467, %v4459
    %v6612 = vpack.c.b16 %v4468, %v4460
    %v6613 = vpack.c.b16 %v4469, %v4461
    %v6614 = vpack.c.b16 %v4470, %v4462
    %v6615 = vpack.c.b16 %v4471, %v4463
    %v6616 = vpack.c.b16 %v4472, %v4464
    %v6617 = vpack.c.b16 %v4481, %v4473
    %v6618 = vpack.c.b16 %v4482, %v4474
    %v6619 = vpack.c.b16 %v4483, %v4475
    %v6620 = vpack.c.b16 %v4484, %v4476
    %v6621 = vpack.c.b16 %v4485, %v4477
    %v6622 = vpack.c.b16 %v4486, %v4478
    %v6623 = vpack.c.b16 %v4487, %v4479
    %v6624 = vpack.c.b16 %v4488, %v4480
    %v6625 = vpack.c.b16 %v4497, %v4489
    %v6626 = vpack.c.b16 %v4498, %v4490
    %v6627 = vpack.c.b16 %v4499, %v4491
    %v6628 = vpack.c.b16 %v4500, %v4492
    %v6629 = vpack.c.b16 %v4501, %v4493
    %v6630 = vpack.c.b16 %v4502, %v4494
    %v6631 = vpack.c.b16 %v4503, %v4495
    %v6632 = vpack.c.b16 %v4504, %v4496
    %v6633 = vpack.c.b16 %v4513, %v4505
    %v6634 = vpack.c.b16 %v4514, %v4506
    %v6635 = vpack.c.b16 %v4515, %v4507
    %v6636 = vpack.c.b16 %v4516, %v4508
    %v6637 = vpack.c.b16 %v4517, %v4509
    %v6638 = vpack.c.b16 %v4518, %v4510
    %v6639 = vpack.c.b16 %v4519, %v4511
    %v6640 = vpack.c.b16 %v4520, %v4512
    %v6641 = vpack.c.b16 %v4529, %v4521
    %v6642 = vpack.c.b16 %v4530, %v4522
    %v6643 = vpack.c.b16 %v4531, %v4523
    %v6644 = vpack.c.b16 %v4532, %v4524
    %v6645 = vpack.c.b16 %v4533, %v4525
    %v6646 = vpack.c.b16 %v4534, %v4526
    %v6647 = vpack.c.b16 %v4535, %v4527
    %v6648 = vpack.c.b16 %v4536, %v4528
    %v6649 = vpack.c.b16 %v4545, %v4537
    %v6650 = vpack.c.b16 %v4546, %v4538
    %v6651 = vpack.c.b16 %v4547, %v4539
    %v6652 = vpack.c.b16 %v4548, %v4540
    %v6653 = vpack.c.b16 %v4549, %v4541
    %v6654 = vpack.c.b16 %v4550, %v4542
    %v6655 = vpack.c.b16 %v4551, %v4543
    %v6656 = vpack.c.b16 %v4552, %v4544
    %v6657 = vpack.c.b16 %v4561, %v4553
    %v6658 = vpack.c.b16 %v4562, %v4554
    %v6659 = vpack.c.b16 %v4563, %v4555
    %v6660 = vpack.c.b16 %v4564, %v4556
    %v6661 = vpack.c.b16 %v4565, %v4557
    %v6662 = vpack.c.b16 %v4566, %v4558
    %v6663 = vpack.c.b16 %v4567, %v4559
    %v6664 = vpack.c.b16 %v4568, %v4560
    %v6665 = vpack.c.b16 %v4577, %v4569
    %v6666 = vpack.c.b16 %v4578, %v4570
    %v6667 = vpack.c.b16 %v4579, %v4571
    %v6668 = vpack.c.b16 %v4580, %v4572
    %v6669 = vpack.c.b16 %v4581, %v4573
    %v6670 = vpack.c.b16 %v4582, %v4574
    %v6671 = vpack.c.b16 %v4583, %v4575
    %v6672 = vpack.c.b16 %v4584, %v4576
    %v6673 = vpack.c.b16 %v4593, %v4585
    %v6674 = vpack.c.b16 %v4594, %v4586
    %v6675 = vpack.c.b16 %v4595, %v4587
    %v6676 = vpack.c.b16 %v4596, %v4588
    %v6677 = vpack.c.b16 %v4597, %v4589
    %v6678 = vpack.c.b16 %v4598, %v4590
    %v6679 = vpack.c.b16 %v4599, %v4591
    %v6680 = vpack.c.b16 %v4600, %v4592
    %v6681 = vpack.c.b16 %v4609, %v4601
    %v6682 = vpack.c.b16 %v4610, %v4602
    %v6683 = vpack.c.b16 %v4611, %v4603
    %v6684 = vpack.c.b16 %v4612, %v4604
    %v6685 = vpack.c.b16 %v4613, %v4605
    %v6686 = vpack.c.b16 %v4614, %v4606
    %v6687 = vpack.c.b16 %v4615, %v4607
    %v6688 = vpack.c.b16 %v4616, %v4608
    %v6689 = vpack.c.b16 %v4625, %v4617
    %v6690 = vpack.c.b16 %v4626, %v4618
    %v6691 = vpack.c.b16 %v4627, %v4619
    %v6692 = vpack.c.b16 %v4628, %v4620
    %v6693 = vpack.c.b16 %v4629, %v4621
    %v6694 = vpack.c.b16 %v4630, %v4622
    %v6695 = vpack.c.b16 %v4631, %v4623
    %v6696 = vpack.c.b16 %v4632, %v4624
    %v6697 = vpack.c.b16 %v4641, %v4633
    %v6698 = vpack.c.b16 %v4642, %v4634
    %v6699 = vpack.c.b16 %v4643, %v4635
    %v6700 = vpack.c.b16 %v4644, %v4636
    %v6701 = vpack.c.b16 %v4645, %v4637
    %v6702 = vpack.c.b16 %v4646, %v4638
    %v6703 = vpack.c.b16 %v4647, %v4639
    %v6704 = vpack.c.b16 %v4648, %v4640
    %v6705 = vpack.c.b16 %v4657, %v4649
    %v6706 = vpack.c.b16 %v4658, %v4650
    %v6707 = vpack.c.b16 %v4659, %v4651
    %v6708 = vpack.c.b16 %v4660, %v4652
    %v6709 = vpack.c.b16 %v4661, %v4653
    %v6710 = vpack.c.b16 %v4662, %v4654
    %v6711 = vpack.c.b16 %v4663, %v4655
    %v6712 = vpack.c.b16 %v4664, %v4656
    %v6713 = vpack.c.b16 %v4673, %v4665
    %v6714 = vpack.c.b16 %v4674, %v4666
    %v6715 = vpack.c.b16 %v4675, %v4667
    %v6716 = vpack.c.b16 %v4676, %v4668
    %v6717 = vpack.c.b16 %v4677, %v4669
    %v6718 = vpack.c.b16 %v4678, %v4670
    %v6719 = vpack.c.b16 %v4679, %v4671
    %v6720 = vpack.c.b16 %v4680, %v4672
    %v6721 = vpack.c.b16 %v4689, %v4681
    %v6722 = vpack.c.b16 %v4690, %v4682
    %v6723 = vpack.c.b16 %v4691, %v4683
    %v6724 = vpack.c.b16 %v4692, %v4684
    %v6725 = vpack.c.b16 %v4693, %v4685
    %v6726 = vpack.c.b16 %v4694, %v4686
    %v6727 = vpack.c.b16 %v4695, %v4687
    %v6728 = vpack.c.b16 %v4696, %v4688
    %v6729 = vpack.c.b16 %v4705, %v4697
    %v6730 = vpack.c.b16 %v4706, %v4698
    %v6731 = vpack.c.b16 %v4707, %v4699
    %v6732 = vpack.c.b16 %v4708, %v4700
    %v6733 = vpack.c.b16 %v4709, %v4701
    %v6734 = vpack.c.b16 %v4710, %v4702
    %v6735 = vpack.c.b16 %v4711, %v4703
    %v6736 = vpack.c.b16 %v4712, %v4704
    %v6737 = vpack.c.b16 %v4721, %v4713
    %v6738 = vpack.c.b16 %v4722, %v4714
    %v6739 = vpack.c.b16 %v4723, %v4715
    %v6740 = vpack.c.b16 %v4724, %v4716
    %v6741 = vpack.c.b16 %v4725, %v4717
    %v6742 = vpack.c.b16 %v4726, %v4718
    %v6743 = vpack.c.b16 %v4727, %v4719
    %v6744 = vpack.c.b16 %v4728, %v4720
    %v6745 = vpack.c.b16 %v4737, %v4729
    %v6746 = vpack.c.b16 %v4738, %v4730
    %v6747 = vpack.c.b16 %v4739, %v4731
    %v6748 = vpack.c.b16 %v4740, %v4732
    %v6749 = vpack.c.b16 %v4741, %v4733
    %v6750 = vpack.c.b16 %v4742, %v4734
    %v6751 = vpack.c.b16 %v4743, %v4735
    %v6752 = vpack.c.b16 %v4744, %v4736
    %v6753 = vpack.c.b16 %v4753, %v4745
    %v6754 = vpack.c.b16 %v4754, %v4746
    %v6755 = vpack.c.b16 %v4755, %v4747
    %v6756 = vpack.c.b16 %v4756, %v4748
    %v6757 = vpack.c.b16 %v4757, %v4749
    %v6758 = vpack.c.b16 %v4758, %v4750
    %v6759 = vpack.c.b16 %v4759, %v4751
    %v6760 = vpack.c.b16 %v4760, %v4752
    %v6761 = vpack.c.b16 %v4769, %v4761
    %v6762 = vpack.c.b16 %v4770, %v4762
    %v6763 = vpack.c.b16 %v4771, %v4763
    %v6764 = vpack.c.b16 %v4772, %v4764
    %v6765 = vpack.c.b16 %v4773, %v4765
    %v6766 = vpack.c.b16 %v4774, %v4766
    %v6767 = vpack.c.b16 %v4775, %v4767
    %v6768 = vpack.c.b16 %v4776, %v4768
    %v6769 = vpack.c.b16 %v4785, %v4777
    %v6770 = vpack.c.b16 %v4786, %v4778
    %v6771 = vpack.c.b16 %v4787, %v4779
    %v6772 = vpack.c.b16 %v4788, %v4780
    %v6773 = vpack.c.b16 %v4789, %v4781
    %v6774 = vpack.c.b16 %v4790, %v4782
    %v6775 = vpack.c.b16 %v4791, %v4783
    %v6776 = vpack.c.b16 %v4792, %v4784
    %v6777 = vpack.c.b16 %v4801, %v4793
    %v6778 = vpack.c.b16 %v4802, %v4794
    %v6779 = vpack.c.b16 %v4803, %v4795
    %v6780 = vpack.c.b16 %v4804, %v4796
    %v6781 = vpack.c.b16 %v4805, %v4797
    %v6782 = vpack.c.b16 %v4806, %v4798
    %v6783 = vpack.c.b16 %v4807, %v4799
    %v6784 = vpack.c.b16 %v4808, %v4800
    %v6785 = vpack.c.b16 %v4817, %v4809
    %v6786 = vpack.c.b16 %v4818, %v4810
    %v6787 = vpack.c.b16 %v4819, %v4811
    %v6788 = vpack.c.b16 %v4820, %v4812
    %v6789 = vpack.c.b16 %v4821, %v4813
    %v6790 = vpack.c.b16 %v4822, %v4814
    %v6791 = vpack.c.b16 %v4823, %v4815
    %v6792 = vpack.c.b16 %v4824, %v4816
    %v6793 = vpack.c.b16 %v4833, %v4825
    %v6794 = vpack.c.b16 %v4834, %v4826
    %v6795 = vpack.c.b16 %v4835, %v4827
    %v6796 = vpack.c.b16 %v4836, %v4828
    %v6797 = vpack.c.b16 %v4837, %v4829
    %v6798 = vpack.c.b16 %v4838, %v4830
    %v6799 = vpack.c.b16 %v4839, %v4831
    %v6800 = vpack.c.b16 %v4840, %v4832
    %v6801 = vpack.c.b16 %v4849, %v4841
    %v6802 = vpack.c.b16 %v4850, %v4842
    %v6803 = vpack.c.b16 %v4851, %v4843
    %v6804 = vpack.c.b16 %v4852, %v4844
    %v6805 = vpack.c.b16 %v4853, %v4845
    %v6806 = vpack.c.b16 %v4854, %v4846
    %v6807 = vpack.c.b16 %v4855, %v4847
    %v6808 = vpack.c.b16 %v4856, %v4848
    %v6809 = vpack.c.b16 %v4865, %v4857
    %v6810 = vpack.c.b16 %v4866, %v4858
    %v6811 = vpack.c.b16 %v4867, %v4859
    %v6812 = vpack.c.b16 %v4868, %v4860
    %v6813 = vpack.c.b16 %v4869, %v4861
    %v6814 = vpack.c.b16 %v4870, %v4862
    %v6815 = vpack.c.b16 %v4871, %v4863
    %v6816 = vpack.c.b16 %v4872, %v4864
    %v6817 = vpack.c.b16 %v4881, %v4873
    %v6818 = vpack.c.b16 %v4882, %v4874
    %v6819 = vpack.c.b16 %v4883, %v4875
    %v6820 = vpack.c.b16 %v4884, %v4876
    %v6821 = vpack.c.b16 %v4885, %v4877
    %v6822 = vpack.c.b16 %v4886, %v4878
    %v6823 = vpack.c.b16 %v4887, %v4879
    %v6824 = vpack.c.b16 %v4888, %v4880
    %v6825 = vpack.c.b16 %v4897, %v4889
    %v6826 = vpack.c.b16 %v4898, %v4890
    %v6827 = vpack.c.b16 %v4899, %v4891
    %v6828 = vpack.c.b16 %v4900, %v4892
    %v6829 = vpack.c.b16 %v4901, %v4893
    %v6830 = vpack.c.b16 %v4902, %v4894
    %v6831 = vpack.c.b16 %v4903, %v4895
    %v6832 = vpack.c.b16 %v4904, %v4896
    %v6833 = vpack.c.b16 %v4913, %v4905
    %v6834 = vpack.c.b16 %v4914, %v4906
    %v6835 = vpack.c.b16 %v4915, %v4907
    %v6836 = vpack.c.b16 %v4916, %v4908
    %v6837 = vpack.c.b16 %v4917, %v4909
    %v6838 = vpack.c.b16 %v4918, %v4910
    %v6839 = vpack.c.b16 %v4919, %v4911
    %v6840 = vpack.c.b16 %v4920, %v4912
    %v6841 = vpack.c.b16 %v4929, %v4921
    %v6842 = vpack.c.b16 %v4930, %v4922
    %v6843 = vpack.c.b16 %v4931, %v4923
    %v6844 = vpack.c.b16 %v4932, %v4924
    %v6845 = vpack.c.b16 %v4933, %v4925
    %v6846 = vpack.c.b16 %v4934, %v4926
    %v6847 = vpack.c.b16 %v4935, %v4927
    %v6848 = vpack.c.b16 %v4936, %v4928
    %v6849 = vpack.c.b16 %v4945, %v4937
    %v6850 = vpack.c.b16 %v4946, %v4938
    %v6851 = vpack.c.b16 %v4947, %v4939
    %v6852 = vpack.c.b16 %v4948, %v4940
    %v6853 = vpack.c.b16 %v4949, %v4941
    %v6854 = vpack.c.b16 %v4950, %v4942
    %v6855 = vpack.c.b16 %v4951, %v4943
    %v6856 = vpack.c.b16 %v4952, %v4944
    %v6857 = vpack.c.b16 %v4961, %v4953
    %v6858 = vpack.c.b16 %v4962, %v4954
    %v6859 = vpack.c.b16 %v4963, %v4955
    %v6860 = vpack.c.b16 %v4964, %v4956
    %v6861 = vpack.c.b16 %v4965, %v4957
    %v6862 = vpack.c.b16 %v4966, %v4958
    %v6863 = vpack.c.b16 %v4967, %v4959
    %v6864 = vpack.c.b16 %v4968, %v4960
    %v6865 = vpack.c.b16 %v4977, %v4969
    %v6866 = vpack.c.b16 %v4978, %v4970
    %v6867 = vpack.c.b16 %v4979, %v4971
    %v6868 = vpack.c.b16 %v4980, %v4972
    %v6869 = vpack.c.b16 %v4981, %v4973
    %v6870 = vpack.c.b16 %v4982, %v4974
    %v6871 = vpack.c.b16 %v4983, %v4975
    %v6872 = vpack.c.b16 %v4984, %v4976
    %v6873 = vpack.c.b16 %v4993, %v4985
    %v6874 = vpack.c.b16 %v4994, %v4986
    %v6875 = vpack.c.b16 %v4995, %v4987
    %v6876 = vpack.c.b16 %v4996, %v4988
    %v6877 = vpack.c.b16 %v4997, %v4989
    %v6878 = vpack.c.b16 %v4998, %v4990
    %v6879 = vpack.c.b16 %v4999, %v4991
    %v6880 = vpack.c.b16 %v5000, %v4992
    %v6881 = vpack.c.b16 %v5009, %v5001
    %v6882 = vpack.c.b16 %v5010, %v5002
    %v6883 = vpack.c.b16 %v5011, %v5003
    %v6884 = vpack.c.b16 %v5012, %v5004
    %v6885 = vpack.c.b16 %v5013, %v5005
    %v6886 = vpack.c.b16 %v5014, %v5006
    %v6887 = vpack.c.b16 %v5015, %v5007
    %v6888 = vpack.c.b16 %v5016, %v5008
    %v6889 = vpack.c.b16 %v5025, %v5017
    %v6890 = vpack.c.b16 %v5026, %v5018
    %v6891 = vpack.c.b16 %v5027, %v5019
    %v6892 = vpack.c.b16 %v5028, %v5020
    %v6893 = vpack.c.b16 %v5029, %v5021
    %v6894 = vpack.c.b16 %v5030, %v5022
    %v6895 = vpack.c.b16 %v5031, %v5023
    %v6896 = vpack.c.b16 %v5032, %v5024
    %v6897 = vpack.c.b16 %v5041, %v5033
    %v6898 = vpack.c.b16 %v5042, %v5034
    %v6899 = vpack.c.b16 %v5043, %v5035
    %v6900 = vpack.c.b16 %v5044, %v5036
    %v6901 = vpack.c.b16 %v5045, %v5037
    %v6902 = vpack.c.b16 %v5046, %v5038
    %v6903 = vpack.c.b16 %v5047, %v5039
    %v6904 = vpack.c.b16 %v5048, %v5040
    %v6905 = vpack.c.b16 %v5057, %v5049
    %v6906 = vpack.c.b16 %v5058, %v5050
    %v6907 = vpack.c.b16 %v5059, %v5051
    %v6908 = vpack.c.b16 %v5060, %v5052
    %v6909 = vpack.c.b16 %v5061, %v5053
    %v6910 = vpack.c.b16 %v5062, %v5054
    %v6911 = vpack.c.b16 %v5063, %v5055
    %v6912 = vpack.c.b16 %v5064, %v5056
    %v6913 = vpack.c.b16 %v5073, %v5065
    %v6914 = vpack.c.b16 %v5074, %v5066
    %v6915 = vpack.c.b16 %v5075, %v5067
    %v6916 = vpack.c.b16 %v5076, %v5068
    %v6917 = vpack.c.b16 %v5077, %v5069
    %v6918 = vpack.c.b16 %v5078, %v5070
    %v6919 = vpack.c.b16 %v5079, %v5071
    %v6920 = vpack.c.b16 %v5080, %v5072
    %v6921 = vpack.c.b16 %v5089, %v5081
    %v6922 = vpack.c.b16 %v5090, %v5082
    %v6923 = vpack.c.b16 %v5091, %v5083
    %v6924 = vpack.c.b16 %v5092, %v5084
    %v6925 = vpack.c.b16 %v5093, %v5085
    %v6926 = vpack.c.b16 %v5094, %v5086
    %v6927 = vpack.c.b16 %v5095, %v5087
    %v6928 = vpack.c.b16 %v5096, %v5088
    %v6929 = vpack.c.b16 %v5105, %v5097
    %v6930 = vpack.c.b16 %v5106, %v5098
    %v6931 = vpack.c.b16 %v5107, %v5099
    %v6932 = vpack.c.b16 %v5108, %v5100
    %v6933 = vpack.c.b16 %v5109, %v5101
    %v6934 = vpack.c.b16 %v5110, %v5102
    %v6935 = vpack.c.b16 %v5111, %v5103
    %v6936 = vpack.c.b16 %v5112, %v5104
    %v6937 = vpack.c.b16 %v5121, %v5113
    %v6938 = vpack.c.b16 %v5122, %v5114
    %v6939 = vpack.c.b16 %v5123, %v5115
    %v6940 = vpack.c.b16 %v5124, %v5116
    %v6941 = vpack.c.b16 %v5125, %v5117
    %v6942 = vpack.c.b16 %v5126, %v5118
    %v6943 = vpack.c.b16 %v5127, %v5119
    %v6944 = vpack.c.b16 %v5128, %v5120
    %v6945 = vpack.c.b16 %v5137, %v5129
    %v6946 = vpack.c.b16 %v5138, %v5130
    %v6947 = vpack.c.b16 %v5139, %v5131
    %v6948 = vpack.c.b16 %v5140, %v5132
    %v6949 = vpack.c.b16 %v5141, %v5133
    %v6950 = vpack.c.b16 %v5142, %v5134
    %v6951 = vpack.c.b16 %v5143, %v5135
    %v6952 = vpack.c.b16 %v5144, %v5136
    %v6953 = vpack.c.b16 %v5153, %v5145
    %v6954 = vpack.c.b16 %v5154, %v5146
    %v6955 = vpack.c.b16 %v5155, %v5147
    %v6956 = vpack.c.b16 %v5156, %v5148
    %v6957 = vpack.c.b16 %v5157, %v5149
    %v6958 = vpack.c.b16 %v5158, %v5150
    %v6959 = vpack.c.b16 %v5159, %v5151
    %v6960 = vpack.c.b16 %v5160, %v5152
    %v6961 = vpack.c.b16 %v5169, %v5161
    %v6962 = vpack.c.b16 %v5170, %v5162
    %v6963 = vpack.c.b16 %v5171, %v5163
    %v6964 = vpack.c.b16 %v5172, %v5164
    %v6965 = vpack.c.b16 %v5173, %v5165
    %v6966 = vpack.c.b16 %v5174, %v5166
    %v6967 = vpack.c.b16 %v5175, %v5167
    %v6968 = vpack.c.b16 %v5176, %v5168
    %v6969 = vpack.c.b16 %v5185, %v5177
    %v6970 = vpack.c.b16 %v5186, %v5178
    %v6971 = vpack.c.b16 %v5187, %v5179
    %v6972 = vpack.c.b16 %v5188, %v5180
    %v6973 = vpack.c.b16 %v5189, %v5181
    %v6974 = vpack.c.b16 %v5190, %v5182
    %v6975 = vpack.c.b16 %v5191, %v5183
    %v6976 = vpack.c.b16 %v5192, %v5184
    %v6977 = vpack.c.b16 %v5201, %v5193
    %v6978 = vpack.c.b16 %v5202, %v5194
    %v6979 = vpack.c.b16 %v5203, %v5195
    %v6980 = vpack.c.b16 %v5204, %v5196
    %v6981 = vpack.c.b16 %v5205, %v5197
    %v6982 = vpack.c.b16 %v5206, %v5198
    %v6983 = vpack.c.b16 %v5207, %v5199
    %v6984 = vpack.c.b16 %v5208, %v5200
    %v6985 = vpack.c.b16 %v5217, %v5209
    %v6986 = vpack.c.b16 %v5218, %v5210
    %v6987 = vpack.c.b16 %v5219, %v5211
    %v6988 = vpack.c.b16 %v5220, %v5212
    %v6989 = vpack.c.b16 %v5221, %v5213
    %v6990 = vpack.c.b16 %v5222, %v5214
    %v6991 = vpack.c.b16 %v5223, %v5215
    %v6992 = vpack.c.b16 %v5224, %v5216
    %v6993 = vpack.c.b16 %v5233, %v5225
    %v6994 = vpack.c.b16 %v5234, %v5226
    %v6995 = vpack.c.b16 %v5235, %v5227
    %v6996 = vpack.c.b16 %v5236, %v5228
    %v6997 = vpack.c.b16 %v5237, %v5229
    %v6998 = vpack.c.b16 %v5238, %v5230
    %v6999 = vpack.c.b16 %v5239, %v5231
    %v7000 = vpack.c.b16 %v5240, %v5232
    %v7001 = vpack.c.b16 %v5249, %v5241
    %v7002 = vpack.c.b16 %v5250, %v5242
    %v7003 = vpack.c.b16 %v5251, %v5243
    %v7004 = vpack.c.b16 %v5252, %v5244
    %v7005 = vpack.c.b16 %v5253, %v5245
    %v7006 = vpack.c.b16 %v5254, %v5246
    %v7007 = vpack.c.b16 %v5255, %v5247
    %v7008 = vpack.c.b16 %v5256, %v5248
    %v7009 = vpack.c.b16 %v5265, %v5257
    %v7010 = vpack.c.b16 %v5266, %v5258
    %v7011 = vpack.c.b16 %v5267, %v5259
    %v7012 = vpack.c.b16 %v5268, %v5260
    %v7013 = vpack.c.b16 %v5269, %v5261
    %v7014 = vpack.c.b16 %v5270, %v5262
    %v7015 = vpack.c.b16 %v5271, %v5263
    %v7016 = vpack.c.b16 %v5272, %v5264
    %v7017 = vpack.c.b16 %v5281, %v5273
    %v7018 = vpack.c.b16 %v5282, %v5274
    %v7019 = vpack.c.b16 %v5283, %v5275
    %v7020 = vpack.c.b16 %v5284, %v5276
    %v7021 = vpack.c.b16 %v5285, %v5277
    %v7022 = vpack.c.b16 %v5286, %v5278
    %v7023 = vpack.c.b16 %v5287, %v5279
    %v7024 = vpack.c.b16 %v5288, %v5280
    %v7025 = vpack.c.b16 %v5297, %v5289
    %v7026 = vpack.c.b16 %v5298, %v5290
    %v7027 = vpack.c.b16 %v5299, %v5291
    %v7028 = vpack.c.b16 %v5300, %v5292
    %v7029 = vpack.c.b16 %v5301, %v5293
    %v7030 = vpack.c.b16 %v5302, %v5294
    %v7031 = vpack.c.b16 %v5303, %v5295
    %v7032 = vpack.c.b16 %v5304, %v5296
    %v7033 = vpack.c.b16 %v5313, %v5305
    %v7034 = vpack.c.b16 %v5314, %v5306
    %v7035 = vpack.c.b16 %v5315, %v5307
    %v7036 = vpack.c.b16 %v5316, %v5308
    %v7037 = vpack.c.b16 %v5317, %v5309
    %v7038 = vpack.c.b16 %v5318, %v5310
    %v7039 = vpack.c.b16 %v5319, %v5311
    %v7040 = vpack.c.b16 %v5320, %v5312
    %v7041 = vpack.c.b16 %v5329, %v5321
    %v7042 = vpack.c.b16 %v5330, %v5322
    %v7043 = vpack.c.b16 %v5331, %v5323
    %v7044 = vpack.c.b16 %v5332, %v5324
    %v7045 = vpack.c.b16 %v5333, %v5325
    %v7046 = vpack.c.b16 %v5334, %v5326
    %v7047 = vpack.c.b16 %v5335, %v5327
    %v7048 = vpack.c.b16 %v5336, %v5328
    %v7049 = vpack.c.b16 %v5345, %v5337
    %v7050 = vpack.c.b16 %v5346, %v5338
    %v7051 = vpack.c.b16 %v5347, %v5339
    %v7052 = vpack.c.b16 %v5348, %v5340
    %v7053 = vpack.c.b16 %v5349, %v5341
    %v7054 = vpack.c.b16 %v5350, %v5342
    %v7055 = vpack.c.b16 %v5351, %v5343
    %v7056 = vpack.c.b16 %v5352, %v5344
    %v7057 = vpack.c.b16 %v5361, %v5353
    %v7058 = vpack.c.b16 %v5362, %v5354
    %v7059 = vpack.c.b16 %v5363, %v5355
    %v7060 = vpack.c.b16 %v5364, %v5356
    %v7061 = vpack.c.b16 %v5365, %v5357
    %v7062 = vpack.c.b16 %v5366, %v5358
    %v7063 = vpack.c.b16 %v5367, %v5359
    %v7064 = vpack.c.b16 %v5368, %v5360
    %v7065 = vpack.c.b16 %v5377, %v5369
    %v7066 = vpack.c.b16 %v5378, %v5370
    %v7067 = vpack.c.b16 %v5379, %v5371
    %v7068 = vpack.c.b16 %v5380, %v5372
    %v7069 = vpack.c.b16 %v5381, %v5373
    %v7070 = vpack.c.b16 %v5382, %v5374
    %v7071 = vpack.c.b16 %v5383, %v5375
    %v7072 = vpack.c.b16 %v5384, %v5376
    %v7073 = vpack.c.b16 %v5393, %v5385
    %v7074 = vpack.c.b16 %v5394, %v5386
    %v7075 = vpack.c.b16 %v5395, %v5387
    %v7076 = vpack.c.b16 %v5396, %v5388
    %v7077 = vpack.c.b16 %v5397, %v5389
    %v7078 = vpack.c.b16 %v5398, %v5390
    %v7079 = vpack.c.b16 %v5399, %v5391
    %v7080 = vpack.c.b16 %v5400, %v5392
    %v7081 = vpack.c.b16 %v5409, %v5401
    %v7082 = vpack.c.b16 %v5410, %v5402
    %v7083 = vpack.c.b16 %v5411, %v5403
    %v7084 = vpack.c.b16 %v5412, %v5404
    %v7085 = vpack.c.b16 %v5413, %v5405
    %v7086 = vpack.c.b16 %v5414, %v5406
    %v7087 = vpack.c.b16 %v5415, %v5407
    %v7088 = vpack.c.b16 %v5416, %v5408
    %v7089 = vpack.c.b16 %v5425, %v5417
    %v7090 = vpack.c.b16 %v5426, %v5418
    %v7091 = vpack.c.b16 %v5427, %v5419
    %v7092 = vpack.c.b16 %v5428, %v5420
    %v7093 = vpack.c.b16 %v5429, %v5421
    %v7094 = vpack.c.b16 %v5430, %v5422
    %v7095 = vpack.c.b16 %v5431, %v5423
    %v7096 = vpack.c.b16 %v5432, %v5424
    %v7097 = vpack.c.b16 %v5441, %v5433
    %v7098 = vpack.c.b16 %v5442, %v5434
    %v7099 = vpack.c.b16 %v5443, %v5435
    %v7100 = vpack.c.b16 %v5444, %v5436
    %v7101 = vpack.c.b16 %v5445, %v5437
    %v7102 = vpack.c.b16 %v5446, %v5438
    %v7103 = vpack.c.b16 %v5447, %v5439
    %v7104 = vpack.c.b16 %v5448, %v5440
    %v7105 = vpack.c.b16 %v5457, %v5449
    %v7106 = vpack.c.b16 %v5458, %v5450
    %v7107 = vpack.c.b16 %v5459, %v5451
    %v7108 = vpack.c.b16 %v5460, %v5452
    %v7109 = vpack.c.b16 %v5461, %v5453
    %v7110 = vpack.c.b16 %v5462, %v5454
    %v7111 = vpack.c.b16 %v5463, %v5455
    %v7112 = vpack.c.b16 %v5464, %v5456
    %v7113 = vpack.c.b16 %v5473, %v5465
    %v7114 = vpack.c.b16 %v5474, %v5466
    %v7115 = vpack.c.b16 %v5475, %v5467
    %v7116 = vpack.c.b16 %v5476, %v5468
    %v7117 = vpack.c.b16 %v5477, %v5469
    %v7118 = vpack.c.b16 %v5478, %v5470
    %v7119 = vpack.c.b16 %v5479, %v5471
    %v7120 = vpack.c.b16 %v5480, %v5472
    %v7121 = vpack.c.b16 %v5489, %v5481
    %v7122 = vpack.c.b16 %v5490, %v5482
    %v7123 = vpack.c.b16 %v5491, %v5483
    %v7124 = vpack.c.b16 %v5492, %v5484
    %v7125 = vpack.c.b16 %v5493, %v5485
    %v7126 = vpack.c.b16 %v5494, %v5486
    %v7127 = vpack.c.b16 %v5495, %v5487
    %v7128 = vpack.c.b16 %v5496, %v5488
    %v7129 = vpack.c.b16 %v5505, %v5497
    %v7130 = vpack.c.b16 %v5506, %v5498
    %v7131 = vpack.c.b16 %v5507, %v5499
    %v7132 = vpack.c.b16 %v5508, %v5500
    %v7133 = vpack.c.b16 %v5509, %v5501
    %v7134 = vpack.c.b16 %v5510, %v5502
    %v7135 = vpack.c.b16 %v5511, %v5503
    %v7136 = vpack.c.b16 %v5512, %v5504
    %v7137 = vpack.c.b16 %v5521, %v5513
    %v7138 = vpack.c.b16 %v5522, %v5514
    %v7139 = vpack.c.b16 %v5523, %v5515
    %v7140 = vpack.c.b16 %v5524, %v5516
    %v7141 = vpack.c.b16 %v5525, %v5517
    %v7142 = vpack.c.b16 %v5526, %v5518
    %v7143 = vpack.c.b16 %v5527, %v5519
    %v7144 = vpack.c.b16 %v5528, %v5520
    %v7145 = vpack.c.b16 %v5537, %v5529
    %v7146 = vpack.c.b16 %v5538, %v5530
    %v7147 = vpack.c.b16 %v5539, %v5531
    %v7148 = vpack.c.b16 %v5540, %v5532
    %v7149 = vpack.c.b16 %v5541, %v5533
    %v7150 = vpack.c.b16 %v5542, %v5534
    %v7151 = vpack.c.b16 %v5543, %v5535
    %v7152 = vpack.c.b16 %v5544, %v5536
    %v7153 = vpack.c.b16 %v5553, %v5545
    %v7154 = vpack.c.b16 %v5554, %v5546
    %v7155 = vpack.c.b16 %v5555, %v5547
    %v7156 = vpack.c.b16 %v5556, %v5548
    %v7157 = vpack.c.b16 %v5557, %v5549
    %v7158 = vpack.c.b16 %v5558, %v5550
    %v7159 = vpack.c.b16 %v5559, %v5551
    %v7160 = vpack.c.b16 %v5560, %v5552
    %v7161 = vpack.c.b16 %v5569, %v5561
    %v7162 = vpack.c.b16 %v5570, %v5562
    %v7163 = vpack.c.b16 %v5571, %v5563
    %v7164 = vpack.c.b16 %v5572, %v5564
    %v7165 = vpack.c.b16 %v5573, %v5565
    %v7166 = vpack.c.b16 %v5574, %v5566
    %v7167 = vpack.c.b16 %v5575, %v5567
    %v7168 = vpack.c.b16 %v5576, %v5568
    %v7169 = vpack.c.b16 %v5585, %v5577
    %v7170 = vpack.c.b16 %v5586, %v5578
    %v7171 = vpack.c.b16 %v5587, %v5579
    %v7172 = vpack.c.b16 %v5588, %v5580
    %v7173 = vpack.c.b16 %v5589, %v5581
    %v7174 = vpack.c.b16 %v5590, %v5582
    %v7175 = vpack.c.b16 %v5591, %v5583
    %v7176 = vpack.c.b16 %v5592, %v5584
    %v7177 = vpack.c.b16 %v5601, %v5593
    %v7178 = vpack.c.b16 %v5602, %v5594
    %v7179 = vpack.c.b16 %v5603, %v5595
    %v7180 = vpack.c.b16 %v5604, %v5596
    %v7181 = vpack.c.b16 %v5605, %v5597
    %v7182 = vpack.c.b16 %v5606, %v5598
    %v7183 = vpack.c.b16 %v5607, %v5599
    %v7184 = vpack.c.b16 %v5608, %v5600
    %v7185 = vpack.c.b16 %v5617, %v5609
    %v7186 = vpack.c.b16 %v5618, %v5610
    %v7187 = vpack.c.b16 %v5619, %v5611
    %v7188 = vpack.c.b16 %v5620, %v5612
    %v7189 = vpack.c.b16 %v5621, %v5613
    %v7190 = vpack.c.b16 %v5622, %v5614
    %v7191 = vpack.c.b16 %v5623, %v5615
    %v7192 = vpack.c.b16 %v5624, %v5616
    %v7193 = vpack.c.b16 %v5633, %v5625
    %v7194 = vpack.c.b16 %v5634, %v5626
    %v7195 = vpack.c.b16 %v5635, %v5627
    %v7196 = vpack.c.b16 %v5636, %v5628
    %v7197 = vpack.c.b16 %v5637, %v5629
    %v7198 = vpack.c.b16 %v5638, %v5630
    %v7199 = vpack.c.b16 %v5639, %v5631
    %v7200 = vpack.c.b16 %v5640, %v5632
    %v7201 = vpack.c.b16 %v5649, %v5641
    %v7202 = vpack.c.b16 %v5650, %v5642
    %v7203 = vpack.c.b16 %v5651, %v5643
    %v7204 = vpack.c.b16 %v5652, %v5644
    %v7205 = vpack.c.b16 %v5653, %v5645
    %v7206 = vpack.c.b16 %v5654, %v5646
    %v7207 = vpack.c.b16 %v5655, %v5647
    %v7208 = vpack.c.b16 %v5656, %v5648
    %v7209 = vpack.c.b16 %v5665, %v5657
    %v7210 = vpack.c.b16 %v5666, %v5658
    %v7211 = vpack.c.b16 %v5667, %v5659
    %v7212 = vpack.c.b16 %v5668, %v5660
    %v7213 = vpack.c.b16 %v5669, %v5661
    %v7214 = vpack.c.b16 %v5670, %v5662
    %v7215 = vpack.c.b16 %v5671, %v5663
    %v7216 = vpack.c.b16 %v5672, %v5664
    %v7217 = vpack.c.b16 %v5681, %v5673
    %v7218 = vpack.c.b16 %v5682, %v5674
    %v7219 = vpack.c.b16 %v5683, %v5675
    %v7220 = vpack.c.b16 %v5684, %v5676
    %v7221 = vpack.c.b16 %v5685, %v5677
    %v7222 = vpack.c.b16 %v5686, %v5678
    %v7223 = vpack.c.b16 %v5687, %v5679
    %v7224 = vpack.c.b16 %v5688, %v5680
    %v7225 = vpack.c.b16 %v5697, %v5689
    %v7226 = vpack.c.b16 %v5698, %v5690
    %v7227 = vpack.c.b16 %v5699, %v5691
    %v7228 = vpack.c.b16 %v5700, %v5692
    %v7229 = vpack.c.b16 %v5701, %v5693
    %v7230 = vpack.c.b16 %v5702, %v5694
    %v7231 = vpack.c.b16 %v5703, %v5695
    %v7232 = vpack.c.b16 %v5704, %v5696
    %v7233 = vpack.c.b16 %v5713, %v5705
    %v7234 = vpack.c.b16 %v5714, %v5706
    %v7235 = vpack.c.b16 %v5715, %v5707
    %v7236 = vpack.c.b16 %v5716, %v5708
    %v7237 = vpack.c.b16 %v5717, %v5709
    %v7238 = vpack.c.b16 %v5718, %v5710
    %v7239 = vpack.c.b16 %v5719, %v5711
    %v7240 = vpack.c.b16 %v5720, %v5712
    %v7241 = vpack.c.b16 %v5729, %v5721
    %v7242 = vpack.c.b16 %v5730, %v5722
    %v7243 = vpack.c.b16 %v5731, %v5723
    %v7244 = vpack.c.b16 %v5732, %v5724
    %v7245 = vpack.c.b16 %v5733, %v5725
    %v7246 = vpack.c.b16 %v5734, %v5726
    %v7247 = vpack.c.b16 %v5735, %v5727
    %v7248 = vpack.c.b16 %v5736, %v5728
    %v7249 = vpack.c.b16 %v5745, %v5737
    %v7250 = vpack.c.b16 %v5746, %v5738
    %v7251 = vpack.c.b16 %v5747, %v5739
    %v7252 = vpack.c.b16 %v5748, %v5740
    %v7253 = vpack.c.b16 %v5749, %v5741
    %v7254 = vpack.c.b16 %v5750, %v5742
    %v7255 = vpack.c.b16 %v5751, %v5743
    %v7256 = vpack.c.b16 %v5752, %v5744
    %v7257 = vpack.c.b16 %v5761, %v5753
    %v7258 = vpack.c.b16 %v5762, %v5754
    %v7259 = vpack.c.b16 %v5763, %v5755
    %v7260 = vpack.c.b16 %v5764, %v5756
    %v7261 = vpack.c.b16 %v5765, %v5757
    %v7262 = vpack.c.b16 %v5766, %v5758
    %v7263 = vpack.c.b16 %v5767, %v5759
    %v7264 = vpack.c.b16 %v5768, %v5760
    %v7265 = vpack.c.b16 %v5777, %v5769
    %v7266 = vpack.c.b16 %v5778, %v5770
    %v7267 = vpack.c.b16 %v5779, %v5771
    %v7268 = vpack.c.b16 %v5780, %v5772
    %v7269 = vpack.c.b16 %v5781, %v5773
    %v7270 = vpack.c.b16 %v5782, %v5774
    %v7271 = vpack.c.b16 %v5783, %v5775
    %v7272 = vpack.c.b16 %v5784, %v5776
    %v7273 = vpack.c.b16 %v5793, %v5785
    %v7274 = vpack.c.b16 %v5794, %v5786
    %v7275 = vpack.c.b16 %v5795, %v5787
    %v7276 = vpack.c.b16 %v5796, %v5788
    %v7277 = vpack.c.b16 %v5797, %v5789
    %v7278 = vpack.c.b16 %v5798, %v5790
    %v7279 = vpack.c.b16 %v5799, %v5791
    %v7280 = vpack.c.b16 %v5800, %v5792
    %v7281 = vpack.c.b16 %v5809, %v5801
    %v7282 = vpack.c.b16 %v5810, %v5802
    %v7283 = vpack.c.b16 %v5811, %v5803
    %v7284 = vpack.c.b16 %v5812, %v5804
    %v7285 = vpack.c.b16 %v5813, %v5805
    %v7286 = vpack.c.b16 %v5814, %v5806
    %v7287 = vpack.c.b16 %v5815, %v5807
    %v7288 = vpack.c.b16 %v5816, %v5808
    %v7289 = vpack.c.b16 %v5825, %v5817
    %v7290 = vpack.c.b16 %v5826, %v5818
    %v7291 = vpack.c.b16 %v5827, %v5819
    %v7292 = vpack.c.b16 %v5828, %v5820
    %v7293 = vpack.c.b16 %v5829, %v5821
    %v7294 = vpack.c.b16 %v5830, %v5822
    %v7295 = vpack.c.b16 %v5831, %v5823
    %v7296 = vpack.c.b16 %v5832, %v5824
    %v7297 = vpack.c.b16 %v5841, %v5833
    %v7298 = vpack.c.b16 %v5842, %v5834
    %v7299 = vpack.c.b16 %v5843, %v5835
    %v7300 = vpack.c.b16 %v5844, %v5836
    %v7301 = vpack.c.b16 %v5845, %v5837
    %v7302 = vpack.c.b16 %v5846, %v5838
    %v7303 = vpack.c.b16 %v5847, %v5839
    %v7304 = vpack.c.b16 %v5848, %v5840
    %v7305 = vpack.c.b16 %v5857, %v5849
    %v7306 = vpack.c.b16 %v5858, %v5850
    %v7307 = vpack.c.b16 %v5859, %v5851
    %v7308 = vpack.c.b16 %v5860, %v5852
    %v7309 = vpack.c.b16 %v5861, %v5853
    %v7310 = vpack.c.b16 %v5862, %v5854
    %v7311 = vpack.c.b16 %v5863, %v5855
    %v7312 = vpack.c.b16 %v5864, %v5856
    %v7313 = vpack.c.b16 %v5873, %v5865
    %v7314 = vpack.c.b16 %v5874, %v5866
    %v7315 = vpack.c.b16 %v5875, %v5867
    %v7316 = vpack.c.b16 %v5876, %v5868
    %v7317 = vpack.c.b16 %v5877, %v5869
    %v7318 = vpack.c.b16 %v5878, %v5870
    %v7319 = vpack.c.b16 %v5879, %v5871
    %v7320 = vpack.c.b16 %v5880, %v5872
    %v7321 = vpack.c.b16 %v5889, %v5881
    %v7322 = vpack.c.b16 %v5890, %v5882
    %v7323 = vpack.c.b16 %v5891, %v5883
    %v7324 = vpack.c.b16 %v5892, %v5884
    %v7325 = vpack.c.b16 %v5893, %v5885
    %v7326 = vpack.c.b16 %v5894, %v5886
    %v7327 = vpack.c.b16 %v5895, %v5887
    %v7328 = vpack.c.b16 %v5896, %v5888
    %v7329 = vpack.c.b16 %v5905, %v5897
    %v7330 = vpack.c.b16 %v5906, %v5898
    %v7331 = vpack.c.b16 %v5907, %v5899
    %v7332 = vpack.c.b16 %v5908, %v5900
    %v7333 = vpack.c.b16 %v5909, %v5901
    %v7334 = vpack.c.b16 %v5910, %v5902
    %v7335 = vpack.c.b16 %v5911, %v5903
    %v7336 = vpack.c.b16 %v5912, %v5904
    %v7337 = vpack.c.b16 %v5921, %v5913
    %v7338 = vpack.c.b16 %v5922, %v5914
    %v7339 = vpack.c.b16 %v5923, %v5915
    %v7340 = vpack.c.b16 %v5924, %v5916
    %v7341 = vpack.c.b16 %v5925, %v5917
    %v7342 = vpack.c.b16 %v5926, %v5918
    %v7343 = vpack.c.b16 %v5927, %v5919
    %v7344 = vpack.c.b16 %v5928, %v5920
    %v7345 = vpack.c.b16 %v5937, %v5929
    %v7346 = vpack.c.b16 %v5938, %v5930
    %v7347 = vpack.c.b16 %v5939, %v5931
    %v7348 = vpack.c.b16 %v5940, %v5932
    %v7349 = vpack.c.b16 %v5941, %v5933
    %v7350 = vpack.c.b16 %v5942, %v5934
    %v7351 = vpack.c.b16 %v5943, %v5935
    %v7352 = vpack.c.b16 %v5944, %v5936
    %8761 = vmatprep.subr.bf16.mxu0 %v5946
    %8762 = vmatpush1.bf16.msra.mxu0 %v5945
    %8763 = vmatprep.subr.bf16.mxu0 %v5954
    %8764 = vmatpush1.bf16.msra.mxu0 %v5953
    %8765 = vmatprep.subr.bf16.mxu0 %v5962
    %8766 = vmatpush1.bf16.msra.mxu0 %v5961
    %8767 = vmatprep.subr.bf16.mxu0 %v5970
    %8768 = vmatpush1.bf16.msra.mxu0 %v5969
    %8769 = vmatprep.subr.bf16.mxu0 %v5978
    %8770 = vmatpush1.bf16.msra.mxu0 %v5977
    %8771 = vmatprep.subr.bf16.mxu0 %v5986
    %8772 = vmatpush1.bf16.msra.mxu0 %v5985
    %8773 = vmatprep.subr.bf16.mxu0 %v5994
    %8774 = vmatpush1.bf16.msra.mxu0 %v5993
    %8775 = vmatprep.subr.bf16.mxu0 %v6002
    %8776 = vmatpush1.bf16.msra.mxu0 %v6001
    %8777 = vmatprep.subr.bf16.mxu0 %v6010
    %8778 = vmatpush1.bf16.msra.mxu0 %v6009
    %8779 = vmatprep.subr.bf16.mxu0 %v6018
    %8780 = vmatpush1.bf16.msra.mxu0 %v6017
    %8781 = vmatprep.subr.bf16.mxu0 %v6026
    %8782 = vmatpush1.bf16.msra.mxu0 %v6025
    %8783 = vmatprep.subr.bf16.mxu0 %v6034
    %8784 = vmatpush1.bf16.msra.mxu0 %v6033
    %8785 = vmatprep.subr.bf16.mxu0 %v6042
    %8786 = vmatpush1.bf16.msra.mxu0 %v6041
    %8787 = vmatprep.subr.bf16.mxu0 %v6050
    %8788 = vmatpush1.bf16.msra.mxu0 %v6049
    %8789 = vmatprep.subr.bf16.mxu0 %v6058
    %8790 = vmatpush1.bf16.msra.mxu0 %v6057
    %8791 = vmatprep.subr.bf16.mxu0 %v6066
    %8792 = vmatpush1.bf16.msra.mxu0 %v6065
    %8793 = vmatprep.mubr.bf16.mxu0 %v1659
    %8794 = vmatmul.mubr.bf16.gmra.mrb[0].mxu0 %v1658
    %v8795 = vpop.f32.mrb[0].mxu0
    %v8796 = vadd.f32 %v1684, %v8795
    %v8797 = vpop.f32.mrb[0].mxu0
    %v8798 = vadd.f32 %v1688, %v8797
    %v8799 = vpop.f32.mrb[0].mxu0
    %v8800 = vpop.f32.mrb[0].mxu0
    %8801 = vdwg.mxu0
    %8802 = vmatprep.subr.bf16.mxu0 %v6074
    %8803 = vmatpush1.bf16.msra.mxu0 %v6073
    %8804 = vmatprep.subr.bf16.mxu0 %v6082
    %8805 = vmatpush1.bf16.msra.mxu0 %v6081
    %8806 = vmatprep.subr.bf16.mxu0 %v6090
    %8807 = vmatpush1.bf16.msra.mxu0 %v6089
    %8808 = vmatprep.subr.bf16.mxu0 %v6098
    %8809 = vmatpush1.bf16.msra.mxu0 %v6097
    %8810 = vmatprep.subr.bf16.mxu0 %v6106
    %8811 = vmatpush1.bf16.msra.mxu0 %v6105
    %8812 = vmatprep.subr.bf16.mxu0 %v6114
    %8813 = vmatpush1.bf16.msra.mxu0 %v6113
    %8814 = vmatprep.subr.bf16.mxu0 %v6122
    %8815 = vmatpush1.bf16.msra.mxu0 %v6121
    %8816 = vmatprep.subr.bf16.mxu0 %v6130
    %8817 = vmatpush1.bf16.msra.mxu0 %v6129
    %8818 = vmatprep.subr.bf16.mxu0 %v6138
    %8819 = vmatpush1.bf16.msra.mxu0 %v6137
    %8820 = vmatprep.subr.bf16.mxu0 %v6146
    %8821 = vmatpush1.bf16.msra.mxu0 %v6145
    %8822 = vmatprep.subr.bf16.mxu0 %v6154
    %8823 = vmatpush1.bf16.msra.mxu0 %v6153
    %8824 = vmatprep.subr.bf16.mxu0 %v6162
    %8825 = vmatpush1.bf16.msra.mxu0 %v6161
    %8826 = vmatprep.subr.bf16.mxu0 %v6170
    %8827 = vmatpush1.bf16.msra.mxu0 %v6169
    %8828 = vmatprep.subr.bf16.mxu0 %v6178
    %8829 = vmatpush1.bf16.msra.mxu0 %v6177
    %8830 = vmatprep.subr.bf16.mxu0 %v6186
    %8831 = vmatpush1.bf16.msra.mxu0 %v6185
    %8832 = vmatprep.subr.bf16.mxu0 %v6194
    %8833 = vmatpush1.bf16.msra.mxu0 %v6193
    %8834 = vmatprep.mubr.bf16.mxu0 %v1661
    %8835 = vmatmul.mubr.bf16.gmra.mrb[0].mxu0 %v1660
    %v8836 = vpop.f32.mrb[0].mxu0
    %v8837 = vadd.f32 %v8796, %v8836
    %v8838 = vpop.f32.mrb[0].mxu0
    %v8839 = vadd.f32 %v8798, %v8838
    %v8840 = vpop.f32.mrb[0].mxu0
    %v8841 = vpop.f32.mrb[0].mxu0
    %8842 = vdwg.mxu0
    %8843 = vmatprep.subr.bf16.mxu0 %v6202
    %8844 = vmatpush1.bf16.msra.mxu0 %v6201
    %8845 = vmatprep.subr.bf16.mxu0 %v6210
    %8846 = vmatpush1.bf16.msra.mxu0 %v6209
    %8847 = vmatprep.subr.bf16.mxu0 %v6218
    %8848 = vmatpush1.bf16.msra.mxu0 %v6217
    %8849 = vmatprep.subr.bf16.mxu0 %v6226
    %8850 = vmatpush1.bf16.msra.mxu0 %v6225
    %8851 = vmatprep.subr.bf16.mxu0 %v6234
    %8852 = vmatpush1.bf16.msra.mxu0 %v6233
    %8853 = vmatprep.subr.bf16.mxu0 %v6242
    %8854 = vmatpush1.bf16.msra.mxu0 %v6241
    %8855 = vmatprep.subr.bf16.mxu0 %v6250
    %8856 = vmatpush1.bf16.msra.mxu0 %v6249
    %8857 = vmatprep.subr.bf16.mxu0 %v6258
    %8858 = vmatpush1.bf16.msra.mxu0 %v6257
    %8859 = vmatprep.subr.bf16.mxu0 %v6266
    %8860 = vmatpush1.bf16.msra.mxu0 %v6265
    %8861 = vmatprep.subr.bf16.mxu0 %v6274
    %8862 = vmatpush1.bf16.msra.mxu0 %v6273
    %8863 = vmatprep.subr.bf16.mxu0 %v6282
    %8864 = vmatpush1.bf16.msra.mxu0 %v6281
    %8865 = vmatprep.subr.bf16.mxu0 %v6290
    %8866 = vmatpush1.bf16.msra.mxu0 %v6289
    %8867 = vmatprep.subr.bf16.mxu0 %v6298
    %8868 = vmatpush1.bf16.msra.mxu0 %v6297
    %8869 = vmatprep.subr.bf16.mxu0 %v6306
    %8870 = vmatpush1.bf16.msra.mxu0 %v6305
    %8871 = vmatprep.subr.bf16.mxu0 %v6314
    %8872 = vmatpush1.bf16.msra.mxu0 %v6313
    %8873 = vmatprep.subr.bf16.mxu0 %v6322
    %8874 = vmatpush1.bf16.msra.mxu0 %v6321
    %8875 = vmatprep.mubr.bf16.mxu0 %v1663
    %8876 = vmatmul.mubr.bf16.gmra.mrb[0].mxu0 %v1662
    %v8877 = vpop.f32.mrb[0].mxu0
    %v8878 = vadd.f32 %v8837, %v8877
    %v8879 = vpop.f32.mrb[0].mxu0
    %v8880 = vadd.f32 %v8839, %v8879
    %v8881 = vpop.f32.mrb[0].mxu0
    %v8882 = vpop.f32.mrb[0].mxu0
    %8883 = vdwg.mxu0
    %8884 = vmatprep.subr.bf16.mxu0 %v6330
    %8885 = vmatpush1.bf16.msra.mxu0 %v6329
    %8886 = vmatprep.subr.bf16.mxu0 %v6338
    %8887 = vmatpush1.bf16.msra.mxu0 %v6337
    %8888 = vmatprep.subr.bf16.mxu0 %v6346
    %8889 = vmatpush1.bf16.msra.mxu0 %v6345
    %8890 = vmatprep.subr.bf16.mxu0 %v6354
    %8891 = vmatpush1.bf16.msra.mxu0 %v6353
    %8892 = vmatprep.subr.bf16.mxu0 %v6362
    %8893 = vmatpush1.bf16.msra.mxu0 %v6361
    %8894 = vmatprep.subr.bf16.mxu0 %v6370
    %8895 = vmatpush1.bf16.msra.mxu0 %v6369
    %8896 = vmatprep.subr.bf16.mxu0 %v6378
    %8897 = vmatpush1.bf16.msra.mxu0 %v6377
    %8898 = vmatprep.subr.bf16.mxu0 %v6386
    %8899 = vmatpush1.bf16.msra.mxu0 %v6385
    %8900 = vmatprep.subr.bf16.mxu0 %v6394
    %8901 = vmatpush1.bf16.msra.mxu0 %v6393
    %8902 = vmatprep.subr.bf16.mxu0 %v6402
    %8903 = vmatpush1.bf16.msra.mxu0 %v6401
    %8904 = vmatprep.subr.bf16.mxu0 %v6410
    %8905 = vmatpush1.bf16.msra.mxu0 %v6409
    %8906 = vmatprep.subr.bf16.mxu0 %v6418
    %8907 = vmatpush1.bf16.msra.mxu0 %v6417
    %8908 = vmatprep.subr.bf16.mxu0 %v6426
    %8909 = vmatpush1.bf16.msra.mxu0 %v6425
    %8910 = vmatprep.subr.bf16.mxu0 %v6434
    %8911 = vmatpush1.bf16.msra.mxu0 %v6433
    %8912 = vmatprep.subr.bf16.mxu0 %v6442
    %8913 = vmatpush1.bf16.msra.mxu0 %v6441
    %8914 = vmatprep.subr.bf16.mxu0 %v6450
    %8915 = vmatpush1.bf16.msra.mxu0 %v6449
    %8916 = vmatprep.mubr.bf16.mxu0 %v1665
    %8917 = vmatmul.mubr.bf16.gmra.mrb[0].mxu0 %v1664
    %v8918 = vpop.f32.mrb[0].mxu0
    %v8919 = vadd.f32 %v8878, %v8918
    %v8920 = vpop.f32.mrb[0].mxu0
    %v8921 = vadd.f32 %v8880, %v8920
    %v8922 = vpop.f32.mrb[0].mxu0
    %v8923 = vpop.f32.mrb[0].mxu0
    %8924 = vdwg.mxu0
    %8925 = vmatprep.subr.bf16.mxu0 %v6458
    %8926 = vmatpush1.bf16.msra.mxu0 %v6457
    %8927 = vmatprep.subr.bf16.mxu0 %v6466
    %8928 = vmatpush1.bf16.msra.mxu0 %v6465
    %8929 = vmatprep.subr.bf16.mxu0 %v6474
    %8930 = vmatpush1.bf16.msra.mxu0 %v6473
    %8931 = vmatprep.subr.bf16.mxu0 %v6482
    %8932 = vmatpush1.bf16.msra.mxu0 %v6481
    %8933 = vmatprep.subr.bf16.mxu0 %v6490
    %8934 = vmatpush1.bf16.msra.mxu0 %v6489
    %8935 = vmatprep.subr.bf16.mxu0 %v6498
    %8936 = vmatpush1.bf16.msra.mxu0 %v6497
    %8937 = vmatprep.subr.bf16.mxu0 %v6506
    %8938 = vmatpush1.bf16.msra.mxu0 %v6505
    %8939 = vmatprep.subr.bf16.mxu0 %v6514
    %8940 = vmatpush1.bf16.msra.mxu0 %v6513
    %8941 = vmatprep.subr.bf16.mxu0 %v6522
    %8942 = vmatpush1.bf16.msra.mxu0 %v6521
    %8943 = vmatprep.subr.bf16.mxu0 %v6530
    %8944 = vmatpush1.bf16.msra.mxu0 %v6529
    %8945 = vmatprep.subr.bf16.mxu0 %v6538
    %8946 = vmatpush1.bf16.msra.mxu0 %v6537
    %8947 = vmatprep.subr.bf16.mxu0 %v6546
    %8948 = vmatpush1.bf16.msra.mxu0 %v6545
    %8949 = vmatprep.subr.bf16.mxu0 %v6554
    %8950 = vmatpush1.bf16.msra.mxu0 %v6553
    %8951 = vmatprep.subr.bf16.mxu0 %v6562
    %8952 = vmatpush1.bf16.msra.mxu0 %v6561
    %8953 = vmatprep.subr.bf16.mxu0 %v6570
    %8954 = vmatpush1.bf16.msra.mxu0 %v6569
    %8955 = vmatprep.subr.bf16.mxu0 %v6578
    %8956 = vmatpush1.bf16.msra.mxu0 %v6577
    %8957 = vmatprep.mubr.bf16.mxu0 %v1667
    %8958 = vmatmul.mubr.bf16.gmra.mrb[0].mxu0 %v1666
    %v8959 = vpop.f32.mrb[0].mxu0
    %v8960 = vadd.f32 %v8919, %v8959
    %v8961 = vpop.f32.mrb[0].mxu0
    %v8962 = vadd.f32 %v8921, %v8961
    %v8963 = vpop.f32.mrb[0].mxu0
    %v8964 = vpop.f32.mrb[0].mxu0
    %8965 = vdwg.mxu0
    %8966 = vmatprep.subr.bf16.mxu0 %v6586
    %8967 = vmatpush1.bf16.msra.mxu0 %v6585
    %8968 = vmatprep.subr.bf16.mxu0 %v6594
    %8969 = vmatpush1.bf16.msra.mxu0 %v6593
    %8970 = vmatprep.subr.bf16.mxu0 %v6602
    %8971 = vmatpush1.bf16.msra.mxu0 %v6601
    %8972 = vmatprep.subr.bf16.mxu0 %v6610
    %8973 = vmatpush1.bf16.msra.mxu0 %v6609
    %8974 = vmatprep.subr.bf16.mxu0 %v6618
    %8975 = vmatpush1.bf16.msra.mxu0 %v6617
    %8976 = vmatprep.subr.bf16.mxu0 %v6626
    %8977 = vmatpush1.bf16.msra.mxu0 %v6625
    %8978 = vmatprep.subr.bf16.mxu0 %v6634
    %8979 = vmatpush1.bf16.msra.mxu0 %v6633
    %8980 = vmatprep.subr.bf16.mxu0 %v6642
    %8981 = vmatpush1.bf16.msra.mxu0 %v6641
    %8982 = vmatprep.subr.bf16.mxu0 %v6650
    %8983 = vmatpush1.bf16.msra.mxu0 %v6649
    %8984 = vmatprep.subr.bf16.mxu0 %v6658
    %8985 = vmatpush1.bf16.msra.mxu0 %v6657
    %8986 = vmatprep.subr.bf16.mxu0 %v6666
    %8987 = vmatpush1.bf16.msra.mxu0 %v6665
    %8988 = vmatprep.subr.bf16.mxu0 %v6674
    %8989 = vmatpush1.bf16.msra.mxu0 %v6673
    %8990 = vmatprep.subr.bf16.mxu0 %v6682
    %8991 = vmatpush1.bf16.msra.mxu0 %v6681
    %8992 = vmatprep.subr.bf16.mxu0 %v6690
    %8993 = vmatpush1.bf16.msra.mxu0 %v6689
    %8994 = vmatprep.subr.bf16.mxu0 %v6698
    %8995 = vmatpush1.bf16.msra.mxu0 %v6697
    %8996 = vmatprep.subr.bf16.mxu0 %v6706
    %8997 = vmatpush1.bf16.msra.mxu0 %v6705
    %8998 = vmatprep.mubr.bf16.mxu0 %v1669
    %8999 = vmatmul.mubr.bf16.gmra.mrb[0].mxu0 %v1668
    %v9000 = vpop.f32.mrb[0].mxu0
    %v9001 = vadd.f32 %v8960, %v9000
    %v9002 = vpop.f32.mrb[0].mxu0
    %v9003 = vadd.f32 %v8962, %v9002
    %v9004 = vpop.f32.mrb[0].mxu0
    %v9005 = vpop.f32.mrb[0].mxu0
    %9006 = vdwg.mxu0
    %9007 = vmatprep.subr.bf16.mxu0 %v6714
    %9008 = vmatpush1.bf16.msra.mxu0 %v6713
    %9009 = vmatprep.subr.bf16.mxu0 %v6722
    %9010 = vmatpush1.bf16.msra.mxu0 %v6721
    %9011 = vmatprep.subr.bf16.mxu0 %v6730
    %9012 = vmatpush1.bf16.msra.mxu0 %v6729
    %9013 = vmatprep.subr.bf16.mxu0 %v6738
    %9014 = vmatpush1.bf16.msra.mxu0 %v6737
    %9015 = vmatprep.subr.bf16.mxu0 %v6746
    %9016 = vmatpush1.bf16.msra.mxu0 %v6745
    %9017 = vmatprep.subr.bf16.mxu0 %v6754
    %9018 = vmatpush1.bf16.msra.mxu0 %v6753
    %9019 = vmatprep.subr.bf16.mxu0 %v6762
    %9020 = vmatpush1.bf16.msra.mxu0 %v6761
    %9021 = vmatprep.subr.bf16.mxu0 %v6770
    %9022 = vmatpush1.bf16.msra.mxu0 %v6769
    %9023 = vmatprep.subr.bf16.mxu0 %v6778
    %9024 = vmatpush1.bf16.msra.mxu0 %v6777
    %9025 = vmatprep.subr.bf16.mxu0 %v6786
    %9026 = vmatpush1.bf16.msra.mxu0 %v6785
    %9027 = vmatprep.subr.bf16.mxu0 %v6794
    %9028 = vmatpush1.bf16.msra.mxu0 %v6793
    %9029 = vmatprep.subr.bf16.mxu0 %v6802
    %9030 = vmatpush1.bf16.msra.mxu0 %v6801
    %9031 = vmatprep.subr.bf16.mxu0 %v6810
    %9032 = vmatpush1.bf16.msra.mxu0 %v6809
    %9033 = vmatprep.subr.bf16.mxu0 %v6818
    %9034 = vmatpush1.bf16.msra.mxu0 %v6817
    %9035 = vmatprep.subr.bf16.mxu0 %v6826
    %9036 = vmatpush1.bf16.msra.mxu0 %v6825
    %9037 = vmatprep.subr.bf16.mxu0 %v6834
    %9038 = vmatpush1.bf16.msra.mxu0 %v6833
    %9039 = vmatprep.mubr.bf16.mxu0 %v1671
    %9040 = vmatmul.mubr.bf16.gmra.mrb[0].mxu0 %v1670
    %v9041 = vpop.f32.mrb[0].mxu0
    %v9042 = vadd.f32 %v9001, %v9041
    %v9043 = vpop.f32.mrb[0].mxu0
    %v9044 = vadd.f32 %v9003, %v9043
    %v9045 = vpop.f32.mrb[0].mxu0
    %v9046 = vpop.f32.mrb[0].mxu0
    %9047 = vdwg.mxu0
    %9048 = vmatprep.subr.bf16.mxu0 %v6842
    %9049 = vmatpush1.bf16.msra.mxu0 %v6841
    %9050 = vmatprep.subr.bf16.mxu0 %v6850
    %9051 = vmatpush1.bf16.msra.mxu0 %v6849
    %9052 = vmatprep.subr.bf16.mxu0 %v6858
    %9053 = vmatpush1.bf16.msra.mxu0 %v6857
    %9054 = vmatprep.subr.bf16.mxu0 %v6866
    %9055 = vmatpush1.bf16.msra.mxu0 %v6865
    %9056 = vmatprep.subr.bf16.mxu0 %v6874
    %9057 = vmatpush1.bf16.msra.mxu0 %v6873
    %9058 = vmatprep.subr.bf16.mxu0 %v6882
    %9059 = vmatpush1.bf16.msra.mxu0 %v6881
    %9060 = vmatprep.subr.bf16.mxu0 %v6890
    %9061 = vmatpush1.bf16.msra.mxu0 %v6889
    %9062 = vmatprep.subr.bf16.mxu0 %v6898
    %9063 = vmatpush1.bf16.msra.mxu0 %v6897
    %9064 = vmatprep.subr.bf16.mxu0 %v6906
    %9065 = vmatpush1.bf16.msra.mxu0 %v6905
    %9066 = vmatprep.subr.bf16.mxu0 %v6914
    %9067 = vmatpush1.bf16.msra.mxu0 %v6913
    %9068 = vmatprep.subr.bf16.mxu0 %v6922
    %9069 = vmatpush1.bf16.msra.mxu0 %v6921
    %9070 = vmatprep.subr.bf16.mxu0 %v6930
    %9071 = vmatpush1.bf16.msra.mxu0 %v6929
    %9072 = vmatprep.subr.bf16.mxu0 %v6938
    %9073 = vmatpush1.bf16.msra.mxu0 %v6937
    %9074 = vmatprep.subr.bf16.mxu0 %v6946
    %9075 = vmatpush1.bf16.msra.mxu0 %v6945
    %9076 = vmatprep.subr.bf16.mxu0 %v6954
    %9077 = vmatpush1.bf16.msra.mxu0 %v6953
    %9078 = vmatprep.subr.bf16.mxu0 %v6962
    %9079 = vmatpush1.bf16.msra.mxu0 %v6961
    %9080 = vmatprep.mubr.bf16.mxu0 %v1673
    %9081 = vmatmul.mubr.bf16.gmra.mrb[0].mxu0 %v1672
    %v9082 = vpop.f32.mrb[0].mxu0
    %v9083 = vadd.f32 %v9042, %v9082
    %v9084 = vpop.f32.mrb[0].mxu0
    %v9085 = vadd.f32 %v9044, %v9084
    %v9086 = vpop.f32.mrb[0].mxu0
    %v9087 = vpop.f32.mrb[0].mxu0
    %9088 = vdwg.mxu0
    %9089 = vmatprep.subr.bf16.mxu0 %v6970
    %9090 = vmatpush1.bf16.msra.mxu0 %v6969
    %9091 = vmatprep.subr.bf16.mxu0 %v6978
    %9092 = vmatpush1.bf16.msra.mxu0 %v6977
    %9093 = vmatprep.subr.bf16.mxu0 %v6986
    %9094 = vmatpush1.bf16.msra.mxu0 %v6985
    %9095 = vmatprep.subr.bf16.mxu0 %v6994
    %9096 = vmatpush1.bf16.msra.mxu0 %v6993
    %9097 = vmatprep.subr.bf16.mxu0 %v7002
    %9098 = vmatpush1.bf16.msra.mxu0 %v7001
    %9099 = vmatprep.subr.bf16.mxu0 %v7010
    %9100 = vmatpush1.bf16.msra.mxu0 %v7009
    %9101 = vmatprep.subr.bf16.mxu0 %v7018
    %9102 = vmatpush1.bf16.msra.mxu0 %v7017
    %9103 = vmatprep.subr.bf16.mxu0 %v7026
    %9104 = vmatpush1.bf16.msra.mxu0 %v7025
    %9105 = vmatprep.subr.bf16.mxu0 %v7034
    %9106 = vmatpush1.bf16.msra.mxu0 %v7033
    %9107 = vmatprep.subr.bf16.mxu0 %v7042
    %9108 = vmatpush1.bf16.msra.mxu0 %v7041
    %9109 = vmatprep.subr.bf16.mxu0 %v7050
    %9110 = vmatpush1.bf16.msra.mxu0 %v7049
    %9111 = vmatprep.subr.bf16.mxu0 %v7058
    %9112 = vmatpush1.bf16.msra.mxu0 %v7057
    %9113 = vmatprep.subr.bf16.mxu0 %v7066
    %9114 = vmatpush1.bf16.msra.mxu0 %v7065
    %9115 = vmatprep.subr.bf16.mxu0 %v7074
    %9116 = vmatpush1.bf16.msra.mxu0 %v7073
    %9117 = vmatprep.subr.bf16.mxu0 %v7082
    %9118 = vmatpush1.bf16.msra.mxu0 %v7081
    %9119 = vmatprep.subr.bf16.mxu0 %v7090
    %9120 = vmatpush1.bf16.msra.mxu0 %v7089
    %9121 = vmatprep.mubr.bf16.mxu0 %v1675
    %9122 = vmatmul.mubr.bf16.gmra.mrb[0].mxu0 %v1674
    %v9123 = vpop.f32.mrb[0].mxu0
    %v9124 = vadd.f32 %v9083, %v9123
    %v9125 = vpop.f32.mrb[0].mxu0
    %v9126 = vadd.f32 %v9085, %v9125
    %v9127 = vpop.f32.mrb[0].mxu0
    %v9128 = vpop.f32.mrb[0].mxu0
    %9129 = vdwg.mxu0
    %9130 = vmatprep.subr.bf16.mxu0 %v7098
    %9131 = vmatpush1.bf16.msra.mxu0 %v7097
    %9132 = vmatprep.subr.bf16.mxu0 %v7106
    %9133 = vmatpush1.bf16.msra.mxu0 %v7105
    %9134 = vmatprep.subr.bf16.mxu0 %v7114
    %9135 = vmatpush1.bf16.msra.mxu0 %v7113
    %9136 = vmatprep.subr.bf16.mxu0 %v7122
    %9137 = vmatpush1.bf16.msra.mxu0 %v7121
    %9138 = vmatprep.subr.bf16.mxu0 %v7130
    %9139 = vmatpush1.bf16.msra.mxu0 %v7129
    %9140 = vmatprep.subr.bf16.mxu0 %v7138
    %9141 = vmatpush1.bf16.msra.mxu0 %v7137
    %9142 = vmatprep.subr.bf16.mxu0 %v7146
    %9143 = vmatpush1.bf16.msra.mxu0 %v7145
    %9144 = vmatprep.subr.bf16.mxu0 %v7154
    %9145 = vmatpush1.bf16.msra.mxu0 %v7153
    %9146 = vmatprep.subr.bf16.mxu0 %v7162
    %9147 = vmatpush1.bf16.msra.mxu0 %v7161
    %9148 = vmatprep.subr.bf16.mxu0 %v7170
    %9149 = vmatpush1.bf16.msra.mxu0 %v7169
    %9150 = vmatprep.subr.bf16.mxu0 %v7178
    %9151 = vmatpush1.bf16.msra.mxu0 %v7177
    %9152 = vmatprep.subr.bf16.mxu0 %v7186
    %9153 = vmatpush1.bf16.msra.mxu0 %v7185
    %9154 = vmatprep.subr.bf16.mxu0 %v7194
    %9155 = vmatpush1.bf16.msra.mxu0 %v7193
    %9156 = vmatprep.subr.bf16.mxu0 %v7202
    %9157 = vmatpush1.bf16.msra.mxu0 %v7201
    %9158 = vmatprep.subr.bf16.mxu0 %v7210
    %9159 = vmatpush1.bf16.msra.mxu0 %v7209
    %9160 = vmatprep.subr.bf16.mxu0 %v7218
    %9161 = vmatpush1.bf16.msra.mxu0 %v7217
    %9162 = vmatprep.mubr.bf16.mxu0 %v1677
    %9163 = vmatmul.mubr.bf16.gmra.mrb[0].mxu0 %v1676
    %v9164 = vpop.f32.mrb[0].mxu0
    %v9165 = vadd.f32 %v9124, %v9164
    %v9166 = vpop.f32.mrb[0].mxu0
    %v9167 = vadd.f32 %v9126, %v9166
    %v9168 = vpop.f32.mrb[0].mxu0
    %v9169 = vpop.f32.mrb[0].mxu0
    %9170 = vdwg.mxu0
    %9171 = vmatprep.subr.bf16.mxu0 %v7226
    %9172 = vmatpush1.bf16.msra.mxu0 %v7225
    %9173 = vmatprep.subr.bf16.mxu0 %v7234
    %9174 = vmatpush1.bf16.msra.mxu0 %v7233
    %9175 = vmatprep.subr.bf16.mxu0 %v7242
    %9176 = vmatpush1.bf16.msra.mxu0 %v7241
    %9177 = vmatprep.subr.bf16.mxu0 %v7250
    %9178 = vmatpush1.bf16.msra.mxu0 %v7249
    %9179 = vmatprep.subr.bf16.mxu0 %v7258
    %9180 = vmatpush1.bf16.msra.mxu0 %v7257
    %9181 = vmatprep.subr.bf16.mxu0 %v7266
    %9182 = vmatpush1.bf16.msra.mxu0 %v7265
    %9183 = vmatprep.subr.bf16.mxu0 %v7274
    %9184 = vmatpush1.bf16.msra.mxu0 %v7273
    %9185 = vmatprep.subr.bf16.mxu0 %v7282
    %9186 = vmatpush1.bf16.msra.mxu0 %v7281
    %9187 = vmatprep.subr.bf16.mxu0 %v7290
    %9188 = vmatpush1.bf16.msra.mxu0 %v7289
    %9189 = vmatprep.subr.bf16.mxu0 %v7298
    %9190 = vmatpush1.bf16.msra.mxu0 %v7297
    %9191 = vmatprep.subr.bf16.mxu0 %v7306
    %9192 = vmatpush1.bf16.msra.mxu0 %v7305
    %9193 = vmatprep.subr.bf16.mxu0 %v7314
    %9194 = vmatpush1.bf16.msra.mxu0 %v7313
    %9195 = vmatprep.subr.bf16.mxu0 %v7322
    %9196 = vmatpush1.bf16.msra.mxu0 %v7321
    %9197 = vmatprep.subr.bf16.mxu0 %v7330
    %9198 = vmatpush1.bf16.msra.mxu0 %v7329
    %9199 = vmatprep.subr.bf16.mxu0 %v7338
    %9200 = vmatpush1.bf16.msra.mxu0 %v7337
    %9201 = vmatprep.subr.bf16.mxu0 %v7346
    %9202 = vmatpush1.bf16.msra.mxu0 %v7345
    %9203 = vmatprep.mubr.bf16.mxu0 %v1679
    %9204 = vmatmul.mubr.bf16.gmra.mrb[0].mxu0 %v1678
    %v9205 = vpop.f32.mrb[0].mxu0
    %v9206 = vadd.f32 %v9165, %v9205
    %v9207 = vpop.f32.mrb[0].mxu0
    %v9208 = vadd.f32 %v9167, %v9207
    %v9209 = vpop.f32.mrb[0].mxu0
    %v9210 = vpop.f32.mrb[0].mxu0
    %9211 = vdwg.mxu0
    %9212 = vmatprep.subr.bf16.mxu0 %v5948
    %9213 = vmatpush1.bf16.msra.mxu0 %v5947
    %9214 = vmatprep.subr.bf16.mxu0 %v5956
    %9215 = vmatpush1.bf16.msra.mxu0 %v5955
    %9216 = vmatprep.subr.bf16.mxu0 %v5964
    %9217 = vmatpush1.bf16.msra.mxu0 %v5963
    %9218 = vmatprep.subr.bf16.mxu0 %v5972
    %9219 = vmatpush1.bf16.msra.mxu0 %v5971
    %9220 = vmatprep.subr.bf16.mxu0 %v5980
    %9221 = vmatpush1.bf16.msra.mxu0 %v5979
    %9222 = vmatprep.subr.bf16.mxu0 %v5988
    %9223 = vmatpush1.bf16.msra.mxu0 %v5987
    %9224 = vmatprep.subr.bf16.mxu0 %v5996
    %9225 = vmatpush1.bf16.msra.mxu0 %v5995
    %9226 = vmatprep.subr.bf16.mxu0 %v6004
    %9227 = vmatpush1.bf16.msra.mxu0 %v6003
    %9228 = vmatprep.subr.bf16.mxu0 %v6012
    %9229 = vmatpush1.bf16.msra.mxu0 %v6011
    %9230 = vmatprep.subr.bf16.mxu0 %v6020
    %9231 = vmatpush1.bf16.msra.mxu0 %v6019
    %9232 = vmatprep.subr.bf16.mxu0 %v6028
    %9233 = vmatpush1.bf16.msra.mxu0 %v6027
    %9234 = vmatprep.subr.bf16.mxu0 %v6036
    %9235 = vmatpush1.bf16.msra.mxu0 %v6035
    %9236 = vmatprep.subr.bf16.mxu0 %v6044
    %9237 = vmatpush1.bf16.msra.mxu0 %v6043
    %9238 = vmatprep.subr.bf16.mxu0 %v6052
    %9239 = vmatpush1.bf16.msra.mxu0 %v6051
    %9240 = vmatprep.subr.bf16.mxu0 %v6060
    %9241 = vmatpush1.bf16.msra.mxu0 %v6059
    %9242 = vmatprep.subr.bf16.mxu0 %v6068
    %9243 = vmatpush1.bf16.msra.mxu0 %v6067
    %9244 = vmatprep.mubr.bf16.mxu0 %v1659
    %9245 = vmatmul.mubr.bf16.gmra.mrb[0].mxu0 %v1658
    %v9246 = vpop.f32.mrb[0].mxu0
    %v9247 = vadd.f32 %v1692, %v9246
    %v9248 = vpop.f32.mrb[0].mxu0
    %v9249 = vadd.f32 %v1696, %v9248
    %v9250 = vpop.f32.mrb[0].mxu0
    %v9251 = vpop.f32.mrb[0].mxu0
    %9252 = vdwg.mxu0
    %9253 = vmatprep.subr.bf16.mxu0 %v6076
    %9254 = vmatpush1.bf16.msra.mxu0 %v6075
    %9255 = vmatprep.subr.bf16.mxu0 %v6084
    %9256 = vmatpush1.bf16.msra.mxu0 %v6083
    %9257 = vmatprep.subr.bf16.mxu0 %v6092
    %9258 = vmatpush1.bf16.msra.mxu0 %v6091
    %9259 = vmatprep.subr.bf16.mxu0 %v6100
    %9260 = vmatpush1.bf16.msra.mxu0 %v6099
    %9261 = vmatprep.subr.bf16.mxu0 %v6108
    %9262 = vmatpush1.bf16.msra.mxu0 %v6107
    %9263 = vmatprep.subr.bf16.mxu0 %v6116
    %9264 = vmatpush1.bf16.msra.mxu0 %v6115
    %9265 = vmatprep.subr.bf16.mxu0 %v6124
    %9266 = vmatpush1.bf16.msra.mxu0 %v6123
    %9267 = vmatprep.subr.bf16.mxu0 %v6132
    %9268 = vmatpush1.bf16.msra.mxu0 %v6131
    %9269 = vmatprep.subr.bf16.mxu0 %v6140
    %9270 = vmatpush1.bf16.msra.mxu0 %v6139
    %9271 = vmatprep.subr.bf16.mxu0 %v6148
    %9272 = vmatpush1.bf16.msra.mxu0 %v6147
    %9273 = vmatprep.subr.bf16.mxu0 %v6156
    %9274 = vmatpush1.bf16.msra.mxu0 %v6155
    %9275 = vmatprep.subr.bf16.mxu0 %v6164
    %9276 = vmatpush1.bf16.msra.mxu0 %v6163
    %9277 = vmatprep.subr.bf16.mxu0 %v6172
    %9278 = vmatpush1.bf16.msra.mxu0 %v6171
    %9279 = vmatprep.subr.bf16.mxu0 %v6180
    %9280 = vmatpush1.bf16.msra.mxu0 %v6179
    %9281 = vmatprep.subr.bf16.mxu0 %v6188
    %9282 = vmatpush1.bf16.msra.mxu0 %v6187
    %9283 = vmatprep.subr.bf16.mxu0 %v6196
    %9284 = vmatpush1.bf16.msra.mxu0 %v6195
    %9285 = vmatprep.mubr.bf16.mxu0 %v1661
    %9286 = vmatmul.mubr.bf16.gmra.mrb[0].mxu0 %v1660
    %v9287 = vpop.f32.mrb[0].mxu0
    %v9288 = vadd.f32 %v9247, %v9287
    %v9289 = vpop.f32.mrb[0].mxu0
    %v9290 = vadd.f32 %v9249, %v9289
    %v9291 = vpop.f32.mrb[0].mxu0
    %v9292 = vpop.f32.mrb[0].mxu0
    %9293 = vdwg.mxu0
    %9294 = vmatprep.subr.bf16.mxu0 %v6204
    %9295 = vmatpush1.bf16.msra.mxu0 %v6203
    %9296 = vmatprep.subr.bf16.mxu0 %v6212
    %9297 = vmatpush1.bf16.msra.mxu0 %v6211
    %9298 = vmatprep.subr.bf16.mxu0 %v6220
    %9299 = vmatpush1.bf16.msra.mxu0 %v6219
    %9300 = vmatprep.subr.bf16.mxu0 %v6228
    %9301 = vmatpush1.bf16.msra.mxu0 %v6227
    %9302 = vmatprep.subr.bf16.mxu0 %v6236
    %9303 = vmatpush1.bf16.msra.mxu0 %v6235
    %9304 = vmatprep.subr.bf16.mxu0 %v6244
    %9305 = vmatpush1.bf16.msra.mxu0 %v6243
    %9306 = vmatprep.subr.bf16.mxu0 %v6252
    %9307 = vmatpush1.bf16.msra.mxu0 %v6251
    %9308 = vmatprep.subr.bf16.mxu0 %v6260
    %9309 = vmatpush1.bf16.msra.mxu0 %v6259
    %9310 = vmatprep.subr.bf16.mxu0 %v6268
    %9311 = vmatpush1.bf16.msra.mxu0 %v6267
    %9312 = vmatprep.subr.bf16.mxu0 %v6276
    %9313 = vmatpush1.bf16.msra.mxu0 %v6275
    %9314 = vmatprep.subr.bf16.mxu0 %v6284
    %9315 = vmatpush1.bf16.msra.mxu0 %v6283
    %9316 = vmatprep.subr.bf16.mxu0 %v6292
    %9317 = vmatpush1.bf16.msra.mxu0 %v6291
    %9318 = vmatprep.subr.bf16.mxu0 %v6300
    %9319 = vmatpush1.bf16.msra.mxu0 %v6299
    %9320 = vmatprep.subr.bf16.mxu0 %v6308
    %9321 = vmatpush1.bf16.msra.mxu0 %v6307
    %9322 = vmatprep.subr.bf16.mxu0 %v6316
    %9323 = vmatpush1.bf16.msra.mxu0 %v6315
    %9324 = vmatprep.subr.bf16.mxu0 %v6324
    %9325 = vmatpush1.bf16.msra.mxu0 %v6323
    %9326 = vmatprep.mubr.bf16.mxu0 %v1663
    %9327 = vmatmul.mubr.bf16.gmra.mrb[0].mxu0 %v1662
    %v9328 = vpop.f32.mrb[0].mxu0
    %v9329 = vadd.f32 %v9288, %v9328
    %v9330 = vpop.f32.mrb[0].mxu0
    %v9331 = vadd.f32 %v9290, %v9330
    %v9332 = vpop.f32.mrb[0].mxu0
    %v9333 = vpop.f32.mrb[0].mxu0
    %9334 = vdwg.mxu0
    %9335 = vmatprep.subr.bf16.mxu0 %v6332
    %9336 = vmatpush1.bf16.msra.mxu0 %v6331
    %9337 = vmatprep.subr.bf16.mxu0 %v6340
    %9338 = vmatpush1.bf16.msra.mxu0 %v6339
    %9339 = vmatprep.subr.bf16.mxu0 %v6348
    %9340 = vmatpush1.bf16.msra.mxu0 %v6347
    %9341 = vmatprep.subr.bf16.mxu0 %v6356
    %9342 = vmatpush1.bf16.msra.mxu0 %v6355
    %9343 = vmatprep.subr.bf16.mxu0 %v6364
    %9344 = vmatpush1.bf16.msra.mxu0 %v6363
    %9345 = vmatprep.subr.bf16.mxu0 %v6372
    %9346 = vmatpush1.bf16.msra.mxu0 %v6371
    %9347 = vmatprep.subr.bf16.mxu0 %v6380
    %9348 = vmatpush1.bf16.msra.mxu0 %v6379
    %9349 = vmatprep.subr.bf16.mxu0 %v6388
    %9350 = vmatpush1.bf16.msra.mxu0 %v6387
    %9351 = vmatprep.subr.bf16.mxu0 %v6396
    %9352 = vmatpush1.bf16.msra.mxu0 %v6395
    %9353 = vmatprep.subr.bf16.mxu0 %v6404
    %9354 = vmatpush1.bf16.msra.mxu0 %v6403
    %9355 = vmatprep.subr.bf16.mxu0 %v6412
    %9356 = vmatpush1.bf16.msra.mxu0 %v6411
    %9357 = vmatprep.subr.bf16.mxu0 %v6420
    %9358 = vmatpush1.bf16.msra.mxu0 %v6419
    %9359 = vmatprep.subr.bf16.mxu0 %v6428
    %9360 = vmatpush1.bf16.msra.mxu0 %v6427
    %9361 = vmatprep.subr.bf16.mxu0 %v6436
    %9362 = vmatpush1.bf16.msra.mxu0 %v6435
    %9363 = vmatprep.subr.bf16.mxu0 %v6444
    %9364 = vmatpush1.bf16.msra.mxu0 %v6443
    %9365 = vmatprep.subr.bf16.mxu0 %v6452
    %9366 = vmatpush1.bf16.msra.mxu0 %v6451
    %9367 = vmatprep.mubr.bf16.mxu0 %v1665
    %9368 = vmatmul.mubr.bf16.gmra.mrb[0].mxu0 %v1664
    %v9369 = vpop.f32.mrb[0].mxu0
    %v9370 = vadd.f32 %v9329, %v9369
    %v9371 = vpop.f32.mrb[0].mxu0
    %v9372 = vadd.f32 %v9331, %v9371
    %v9373 = vpop.f32.mrb[0].mxu0
    %v9374 = vpop.f32.mrb[0].mxu0
    %9375 = vdwg.mxu0
    %9376 = vmatprep.subr.bf16.mxu0 %v6460
    %9377 = vmatpush1.bf16.msra.mxu0 %v6459
    %9378 = vmatprep.subr.bf16.mxu0 %v6468
    %9379 = vmatpush1.bf16.msra.mxu0 %v6467
    %9380 = vmatprep.subr.bf16.mxu0 %v6476
    %9381 = vmatpush1.bf16.msra.mxu0 %v6475
    %9382 = vmatprep.subr.bf16.mxu0 %v6484
    %9383 = vmatpush1.bf16.msra.mxu0 %v6483
    %9384 = vmatprep.subr.bf16.mxu0 %v6492
    %9385 = vmatpush1.bf16.msra.mxu0 %v6491
    %9386 = vmatprep.subr.bf16.mxu0 %v6500
    %9387 = vmatpush1.bf16.msra.mxu0 %v6499
    %9388 = vmatprep.subr.bf16.mxu0 %v6508
    %9389 = vmatpush1.bf16.msra.mxu0 %v6507
    %9390 = vmatprep.subr.bf16.mxu0 %v6516
    %9391 = vmatpush1.bf16.msra.mxu0 %v6515
    %9392 = vmatprep.subr.bf16.mxu0 %v6524
    %9393 = vmatpush1.bf16.msra.mxu0 %v6523
    %9394 = vmatprep.subr.bf16.mxu0 %v6532
    %9395 = vmatpush1.bf16.msra.mxu0 %v6531
    %9396 = vmatprep.subr.bf16.mxu0 %v6540
    %9397 = vmatpush1.bf16.msra.mxu0 %v6539
    %9398 = vmatprep.subr.bf16.mxu0 %v6548
    %9399 = vmatpush1.bf16.msra.mxu0 %v6547
    %9400 = vmatprep.subr.bf16.mxu0 %v6556
    %9401 = vmatpush1.bf16.msra.mxu0 %v6555
    %9402 = vmatprep.subr.bf16.mxu0 %v6564
    %9403 = vmatpush1.bf16.msra.mxu0 %v6563
    %9404 = vmatprep.subr.bf16.mxu0 %v6572
    %9405 = vmatpush1.bf16.msra.mxu0 %v6571
    %9406 = vmatprep.subr.bf16.mxu0 %v6580
    %9407 = vmatpush1.bf16.msra.mxu0 %v6579
    %9408 = vmatprep.mubr.bf16.mxu0 %v1667
    %9409 = vmatmul.mubr.bf16.gmra.mrb[0].mxu0 %v1666
    %v9410 = vpop.f32.mrb[0].mxu0
    %v9411 = vadd.f32 %v9370, %v9410
    %v9412 = vpop.f32.mrb[0].mxu0
    %v9413 = vadd.f32 %v9372, %v9412
    %v9414 = vpop.f32.mrb[0].mxu0
    %v9415 = vpop.f32.mrb[0].mxu0
    %9416 = vdwg.mxu0
    %9417 = vmatprep.subr.bf16.mxu0 %v6588
    %9418 = vmatpush1.bf16.msra.mxu0 %v6587
    %9419 = vmatprep.subr.bf16.mxu0 %v6596
    %9420 = vmatpush1.bf16.msra.mxu0 %v6595
    %9421 = vmatprep.subr.bf16.mxu0 %v6604
    %9422 = vmatpush1.bf16.msra.mxu0 %v6603
    %9423 = vmatprep.subr.bf16.mxu0 %v6612
    %9424 = vmatpush1.bf16.msra.mxu0 %v6611
    %9425 = vmatprep.subr.bf16.mxu0 %v6620
    %9426 = vmatpush1.bf16.msra.mxu0 %v6619
    %9427 = vmatprep.subr.bf16.mxu0 %v6628
    %9428 = vmatpush1.bf16.msra.mxu0 %v6627
    %9429 = vmatprep.subr.bf16.mxu0 %v6636
    %9430 = vmatpush1.bf16.msra.mxu0 %v6635
    %9431 = vmatprep.subr.bf16.mxu0 %v6644
    %9432 = vmatpush1.bf16.msra.mxu0 %v6643
    %9433 = vmatprep.subr.bf16.mxu0 %v6652
    %9434 = vmatpush1.bf16.msra.mxu0 %v6651
    %9435 = vmatprep.subr.bf16.mxu0 %v6660
    %9436 = vmatpush1.bf16.msra.mxu0 %v6659
    %9437 = vmatprep.subr.bf16.mxu0 %v6668
    %9438 = vmatpush1.bf16.msra.mxu0 %v6667
    %9439 = vmatprep.subr.bf16.mxu0 %v6676
    %9440 = vmatpush1.bf16.msra.mxu0 %v6675
    %9441 = vmatprep.subr.bf16.mxu0 %v6684
    %9442 = vmatpush1.bf16.msra.mxu0 %v6683
    %9443 = vmatprep.subr.bf16.mxu0 %v6692
    %9444 = vmatpush1.bf16.msra.mxu0 %v6691
    %9445 = vmatprep.subr.bf16.mxu0 %v6700
    %9446 = vmatpush1.bf16.msra.mxu0 %v6699
    %9447 = vmatprep.subr.bf16.mxu0 %v6708
    %9448 = vmatpush1.bf16.msra.mxu0 %v6707
    %9449 = vmatprep.mubr.bf16.mxu0 %v1669
    %9450 = vmatmul.mubr.bf16.gmra.mrb[0].mxu0 %v1668
    %v9451 = vpop.f32.mrb[0].mxu0
    %v9452 = vadd.f32 %v9411, %v9451
    %v9453 = vpop.f32.mrb[0].mxu0
    %v9454 = vadd.f32 %v9413, %v9453
    %v9455 = vpop.f32.mrb[0].mxu0
    %v9456 = vpop.f32.mrb[0].mxu0
    %9457 = vdwg.mxu0
    %9458 = vmatprep.subr.bf16.mxu0 %v6716
    %9459 = vmatpush1.bf16.msra.mxu0 %v6715
    %9460 = vmatprep.subr.bf16.mxu0 %v6724
    %9461 = vmatpush1.bf16.msra.mxu0 %v6723
    %9462 = vmatprep.subr.bf16.mxu0 %v6732
    %9463 = vmatpush1.bf16.msra.mxu0 %v6731
    %9464 = vmatprep.subr.bf16.mxu0 %v6740
    %9465 = vmatpush1.bf16.msra.mxu0 %v6739
    %9466 = vmatprep.subr.bf16.mxu0 %v6748
    %9467 = vmatpush1.bf16.msra.mxu0 %v6747
    %9468 = vmatprep.subr.bf16.mxu0 %v6756
    %9469 = vmatpush1.bf16.msra.mxu0 %v6755
    %9470 = vmatprep.subr.bf16.mxu0 %v6764
    %9471 = vmatpush1.bf16.msra.mxu0 %v6763
    %9472 = vmatprep.subr.bf16.mxu0 %v6772
    %9473 = vmatpush1.bf16.msra.mxu0 %v6771
    %9474 = vmatprep.subr.bf16.mxu0 %v6780
    %9475 = vmatpush1.bf16.msra.mxu0 %v6779
    %9476 = vmatprep.subr.bf16.mxu0 %v6788
    %9477 = vmatpush1.bf16.msra.mxu0 %v6787
    %9478 = vmatprep.subr.bf16.mxu0 %v6796
    %9479 = vmatpush1.bf16.msra.mxu0 %v6795
    %9480 = vmatprep.subr.bf16.mxu0 %v6804
    %9481 = vmatpush1.bf16.msra.mxu0 %v6803
    %9482 = vmatprep.subr.bf16.mxu0 %v6812
    %9483 = vmatpush1.bf16.msra.mxu0 %v6811
    %9484 = vmatprep.subr.bf16.mxu0 %v6820
    %9485 = vmatpush1.bf16.msra.mxu0 %v6819
    %9486 = vmatprep.subr.bf16.mxu0 %v6828
    %9487 = vmatpush1.bf16.msra.mxu0 %v6827
    %9488 = vmatprep.subr.bf16.mxu0 %v6836
    %9489 = vmatpush1.bf16.msra.mxu0 %v6835
    %9490 = vmatprep.mubr.bf16.mxu0 %v1671
    %9491 = vmatmul.mubr.bf16.gmra.mrb[0].mxu0 %v1670
    %v9492 = vpop.f32.mrb[0].mxu0
    %v9493 = vadd.f32 %v9452, %v9492
    %v9494 = vpop.f32.mrb[0].mxu0
    %v9495 = vadd.f32 %v9454, %v9494
    %v9496 = vpop.f32.mrb[0].mxu0
    %v9497 = vpop.f32.mrb[0].mxu0
    %9498 = vdwg.mxu0
    %9499 = vmatprep.subr.bf16.mxu0 %v6844
    %9500 = vmatpush1.bf16.msra.mxu0 %v6843
    %9501 = vmatprep.subr.bf16.mxu0 %v6852
    %9502 = vmatpush1.bf16.msra.mxu0 %v6851
    %9503 = vmatprep.subr.bf16.mxu0 %v6860
    %9504 = vmatpush1.bf16.msra.mxu0 %v6859
    %9505 = vmatprep.subr.bf16.mxu0 %v6868
    %9506 = vmatpush1.bf16.msra.mxu0 %v6867
    %9507 = vmatprep.subr.bf16.mxu0 %v6876
    %9508 = vmatpush1.bf16.msra.mxu0 %v6875
    %9509 = vmatprep.subr.bf16.mxu0 %v6884
    %9510 = vmatpush1.bf16.msra.mxu0 %v6883
    %9511 = vmatprep.subr.bf16.mxu0 %v6892
    %9512 = vmatpush1.bf16.msra.mxu0 %v6891
    %9513 = vmatprep.subr.bf16.mxu0 %v6900
    %9514 = vmatpush1.bf16.msra.mxu0 %v6899
    %9515 = vmatprep.subr.bf16.mxu0 %v6908
    %9516 = vmatpush1.bf16.msra.mxu0 %v6907
    %9517 = vmatprep.subr.bf16.mxu0 %v6916
    %9518 = vmatpush1.bf16.msra.mxu0 %v6915
    %9519 = vmatprep.subr.bf16.mxu0 %v6924
    %9520 = vmatpush1.bf16.msra.mxu0 %v6923
    %9521 = vmatprep.subr.bf16.mxu0 %v6932
    %9522 = vmatpush1.bf16.msra.mxu0 %v6931
    %9523 = vmatprep.subr.bf16.mxu0 %v6940
    %9524 = vmatpush1.bf16.msra.mxu0 %v6939
    %9525 = vmatprep.subr.bf16.mxu0 %v6948
    %9526 = vmatpush1.bf16.msra.mxu0 %v6947
    %9527 = vmatprep.subr.bf16.mxu0 %v6956
    %9528 = vmatpush1.bf16.msra.mxu0 %v6955
    %9529 = vmatprep.subr.bf16.mxu0 %v6964
    %9530 = vmatpush1.bf16.msra.mxu0 %v6963
    %9531 = vmatprep.mubr.bf16.mxu0 %v1673
    %9532 = vmatmul.mubr.bf16.gmra.mrb[0].mxu0 %v1672
    %v9533 = vpop.f32.mrb[0].mxu0
    %v9534 = vadd.f32 %v9493, %v9533
    %v9535 = vpop.f32.mrb[0].mxu0
    %v9536 = vadd.f32 %v9495, %v9535
    %v9537 = vpop.f32.mrb[0].mxu0
    %v9538 = vpop.f32.mrb[0].mxu0
    %9539 = vdwg.mxu0
    %9540 = vmatprep.subr.bf16.mxu0 %v6972
    %9541 = vmatpush1.bf16.msra.mxu0 %v6971
    %9542 = vmatprep.subr.bf16.mxu0 %v6980
    %9543 = vmatpush1.bf16.msra.mxu0 %v6979
    %9544 = vmatprep.subr.bf16.mxu0 %v6988
    %9545 = vmatpush1.bf16.msra.mxu0 %v6987
    %9546 = vmatprep.subr.bf16.mxu0 %v6996
    %9547 = vmatpush1.bf16.msra.mxu0 %v6995
    %9548 = vmatprep.subr.bf16.mxu0 %v7004
    %9549 = vmatpush1.bf16.msra.mxu0 %v7003
    %9550 = vmatprep.subr.bf16.mxu0 %v7012
    %9551 = vmatpush1.bf16.msra.mxu0 %v7011
    %9552 = vmatprep.subr.bf16.mxu0 %v7020
    %9553 = vmatpush1.bf16.msra.mxu0 %v7019
    %9554 = vmatprep.subr.bf16.mxu0 %v7028
    %9555 = vmatpush1.bf16.msra.mxu0 %v7027
    %9556 = vmatprep.subr.bf16.mxu0 %v7036
    %9557 = vmatpush1.bf16.msra.mxu0 %v7035
    %9558 = vmatprep.subr.bf16.mxu0 %v7044
    %9559 = vmatpush1.bf16.msra.mxu0 %v7043
    %9560 = vmatprep.subr.bf16.mxu0 %v7052
    %9561 = vmatpush1.bf16.msra.mxu0 %v7051
    %9562 = vmatprep.subr.bf16.mxu0 %v7060
    %9563 = vmatpush1.bf16.msra.mxu0 %v7059
    %9564 = vmatprep.subr.bf16.mxu0 %v7068
    %9565 = vmatpush1.bf16.msra.mxu0 %v7067
    %9566 = vmatprep.subr.bf16.mxu0 %v7076
    %9567 = vmatpush1.bf16.msra.mxu0 %v7075
    %9568 = vmatprep.subr.bf16.mxu0 %v7084
    %9569 = vmatpush1.bf16.msra.mxu0 %v7083
    %9570 = vmatprep.subr.bf16.mxu0 %v7092
    %9571 = vmatpush1.bf16.msra.mxu0 %v7091
    %9572 = vmatprep.mubr.bf16.mxu0 %v1675
    %9573 = vmatmul.mubr.bf16.gmra.mrb[0].mxu0 %v1674
    %v9574 = vpop.f32.mrb[0].mxu0
    %v9575 = vadd.f32 %v9534, %v9574
    %v9576 = vpop.f32.mrb[0].mxu0
    %v9577 = vadd.f32 %v9536, %v9576
    %v9578 = vpop.f32.mrb[0].mxu0
    %v9579 = vpop.f32.mrb[0].mxu0
    %9580 = vdwg.mxu0
    %9581 = vmatprep.subr.bf16.mxu0 %v7100
    %9582 = vmatpush1.bf16.msra.mxu0 %v7099
    %9583 = vmatprep.subr.bf16.mxu0 %v7108
    %9584 = vmatpush1.bf16.msra.mxu0 %v7107
    %9585 = vmatprep.subr.bf16.mxu0 %v7116
    %9586 = vmatpush1.bf16.msra.mxu0 %v7115
    %9587 = vmatprep.subr.bf16.mxu0 %v7124
    %9588 = vmatpush1.bf16.msra.mxu0 %v7123
    %9589 = vmatprep.subr.bf16.mxu0 %v7132
    %9590 = vmatpush1.bf16.msra.mxu0 %v7131
    %9591 = vmatprep.subr.bf16.mxu0 %v7140
    %9592 = vmatpush1.bf16.msra.mxu0 %v7139
    %9593 = vmatprep.subr.bf16.mxu0 %v7148
    %9594 = vmatpush1.bf16.msra.mxu0 %v7147
    %9595 = vmatprep.subr.bf16.mxu0 %v7156
    %9596 = vmatpush1.bf16.msra.mxu0 %v7155
    %9597 = vmatprep.subr.bf16.mxu0 %v7164
    %9598 = vmatpush1.bf16.msra.mxu0 %v7163
    %9599 = vmatprep.subr.bf16.mxu0 %v7172
    %9600 = vmatpush1.bf16.msra.mxu0 %v7171
    %9601 = vmatprep.subr.bf16.mxu0 %v7180
    %9602 = vmatpush1.bf16.msra.mxu0 %v7179
    %9603 = vmatprep.subr.bf16.mxu0 %v7188
    %9604 = vmatpush1.bf16.msra.mxu0 %v7187
    %9605 = vmatprep.subr.bf16.mxu0 %v7196
    %9606 = vmatpush1.bf16.msra.mxu0 %v7195
    %9607 = vmatprep.subr.bf16.mxu0 %v7204
    %9608 = vmatpush1.bf16.msra.mxu0 %v7203
    %9609 = vmatprep.subr.bf16.mxu0 %v7212
    %9610 = vmatpush1.bf16.msra.mxu0 %v7211
    %9611 = vmatprep.subr.bf16.mxu0 %v7220
    %9612 = vmatpush1.bf16.msra.mxu0 %v7219
    %9613 = vmatprep.mubr.bf16.mxu0 %v1677
    %9614 = vmatmul.mubr.bf16.gmra.mrb[0].mxu0 %v1676
    %v9615 = vpop.f32.mrb[0].mxu0
    %v9616 = vadd.f32 %v9575, %v9615
    %v9617 = vpop.f32.mrb[0].mxu0
    %v9618 = vadd.f32 %v9577, %v9617
    %v9619 = vpop.f32.mrb[0].mxu0
    %v9620 = vpop.f32.mrb[0].mxu0
    %9621 = vdwg.mxu0
    %9622 = vmatprep.subr.bf16.mxu0 %v7228
    %9623 = vmatpush1.bf16.msra.mxu0 %v7227
    %9624 = vmatprep.subr.bf16.mxu0 %v7236
    %9625 = vmatpush1.bf16.msra.mxu0 %v7235
    %9626 = vmatprep.subr.bf16.mxu0 %v7244
    %9627 = vmatpush1.bf16.msra.mxu0 %v7243
    %9628 = vmatprep.subr.bf16.mxu0 %v7252
    %9629 = vmatpush1.bf16.msra.mxu0 %v7251
    %9630 = vmatprep.subr.bf16.mxu0 %v7260
    %9631 = vmatpush1.bf16.msra.mxu0 %v7259
    %9632 = vmatprep.subr.bf16.mxu0 %v7268
    %9633 = vmatpush1.bf16.msra.mxu0 %v7267
    %9634 = vmatprep.subr.bf16.mxu0 %v7276
    %9635 = vmatpush1.bf16.msra.mxu0 %v7275
    %9636 = vmatprep.subr.bf16.mxu0 %v7284
    %9637 = vmatpush1.bf16.msra.mxu0 %v7283
    %9638 = vmatprep.subr.bf16.mxu0 %v7292
    %9639 = vmatpush1.bf16.msra.mxu0 %v7291
    %9640 = vmatprep.subr.bf16.mxu0 %v7300
    %9641 = vmatpush1.bf16.msra.mxu0 %v7299
    %9642 = vmatprep.subr.bf16.mxu0 %v7308
    %9643 = vmatpush1.bf16.msra.mxu0 %v7307
    %9644 = vmatprep.subr.bf16.mxu0 %v7316
    %9645 = vmatpush1.bf16.msra.mxu0 %v7315
    %9646 = vmatprep.subr.bf16.mxu0 %v7324
    %9647 = vmatpush1.bf16.msra.mxu0 %v7323
    %9648 = vmatprep.subr.bf16.mxu0 %v7332
    %9649 = vmatpush1.bf16.msra.mxu0 %v7331
    %9650 = vmatprep.subr.bf16.mxu0 %v7340
    %9651 = vmatpush1.bf16.msra.mxu0 %v7339
    %9652 = vmatprep.subr.bf16.mxu0 %v7348
    %9653 = vmatpush1.bf16.msra.mxu0 %v7347
    %9654 = vmatprep.mubr.bf16.mxu0 %v1679
    %9655 = vmatmul.mubr.bf16.gmra.mrb[0].mxu0 %v1678
    %v9656 = vpop.f32.mrb[0].mxu0
    %v9657 = vadd.f32 %v9616, %v9656
    %v9658 = vpop.f32.mrb[0].mxu0
    %v9659 = vadd.f32 %v9618, %v9658
    %v9660 = vpop.f32.mrb[0].mxu0
    %v9661 = vpop.f32.mrb[0].mxu0
    %9662 = vdwg.mxu0
    %9663 = vmatprep.subr.bf16.mxu0 %v5950
    %9664 = vmatpush1.bf16.msra.mxu0 %v5949
    %9665 = vmatprep.subr.bf16.mxu0 %v5958
    %9666 = vmatpush1.bf16.msra.mxu0 %v5957
    %9667 = vmatprep.subr.bf16.mxu0 %v5966
    %9668 = vmatpush1.bf16.msra.mxu0 %v5965
    %9669 = vmatprep.subr.bf16.mxu0 %v5974
    %9670 = vmatpush1.bf16.msra.mxu0 %v5973
    %9671 = vmatprep.subr.bf16.mxu0 %v5982
    %9672 = vmatpush1.bf16.msra.mxu0 %v5981
    %9673 = vmatprep.subr.bf16.mxu0 %v5990
    %9674 = vmatpush1.bf16.msra.mxu0 %v5989
    %9675 = vmatprep.subr.bf16.mxu0 %v5998
    %9676 = vmatpush1.bf16.msra.mxu0 %v5997
    %9677 = vmatprep.subr.bf16.mxu0 %v6006
    %9678 = vmatpush1.bf16.msra.mxu0 %v6005
    %9679 = vmatprep.subr.bf16.mxu0 %v6014
    %9680 = vmatpush1.bf16.msra.mxu0 %v6013
    %9681 = vmatprep.subr.bf16.mxu0 %v6022
    %9682 = vmatpush1.bf16.msra.mxu0 %v6021
    %9683 = vmatprep.subr.bf16.mxu0 %v6030
    %9684 = vmatpush1.bf16.msra.mxu0 %v6029
    %9685 = vmatprep.subr.bf16.mxu0 %v6038
    %9686 = vmatpush1.bf16.msra.mxu0 %v6037
    %9687 = vmatprep.subr.bf16.mxu0 %v6046
    %9688 = vmatpush1.bf16.msra.mxu0 %v6045
    %9689 = vmatprep.subr.bf16.mxu0 %v6054
    %9690 = vmatpush1.bf16.msra.mxu0 %v6053
    %9691 = vmatprep.subr.bf16.mxu0 %v6062
    %9692 = vmatpush1.bf16.msra.mxu0 %v6061
    %9693 = vmatprep.subr.bf16.mxu0 %v6070
    %9694 = vmatpush1.bf16.msra.mxu0 %v6069
    %9695 = vmatprep.mubr.bf16.mxu0 %v1659
    %9696 = vmatmul.mubr.bf16.gmra.mrb[0].mxu0 %v1658
    %v9697 = vpop.f32.mrb[0].mxu0
    %v9698 = vadd.f32 %v1700, %v9697
    %v9699 = vpop.f32.mrb[0].mxu0
    %v9700 = vadd.f32 %v1704, %v9699
    %v9701 = vpop.f32.mrb[0].mxu0
    %v9702 = vpop.f32.mrb[0].mxu0
    %9703 = vdwg.mxu0
    %9704 = vmatprep.subr.bf16.mxu0 %v6078
    %9705 = vmatpush1.bf16.msra.mxu0 %v6077
    %9706 = vmatprep.subr.bf16.mxu0 %v6086
    %9707 = vmatpush1.bf16.msra.mxu0 %v6085
    %9708 = vmatprep.subr.bf16.mxu0 %v6094
    %9709 = vmatpush1.bf16.msra.mxu0 %v6093
    %9710 = vmatprep.subr.bf16.mxu0 %v6102
    %9711 = vmatpush1.bf16.msra.mxu0 %v6101
    %9712 = vmatprep.subr.bf16.mxu0 %v6110
    %9713 = vmatpush1.bf16.msra.mxu0 %v6109
    %9714 = vmatprep.subr.bf16.mxu0 %v6118
    %9715 = vmatpush1.bf16.msra.mxu0 %v6117
    %9716 = vmatprep.subr.bf16.mxu0 %v6126
    %9717 = vmatpush1.bf16.msra.mxu0 %v6125
    %9718 = vmatprep.subr.bf16.mxu0 %v6134
    %9719 = vmatpush1.bf16.msra.mxu0 %v6133
    %9720 = vmatprep.subr.bf16.mxu0 %v6142
    %9721 = vmatpush1.bf16.msra.mxu0 %v6141
    %9722 = vmatprep.subr.bf16.mxu0 %v6150
    %9723 = vmatpush1.bf16.msra.mxu0 %v6149
    %9724 = vmatprep.subr.bf16.mxu0 %v6158
    %9725 = vmatpush1.bf16.msra.mxu0 %v6157
    %9726 = vmatprep.subr.bf16.mxu0 %v6166
    %9727 = vmatpush1.bf16.msra.mxu0 %v6165
    %9728 = vmatprep.subr.bf16.mxu0 %v6174
    %9729 = vmatpush1.bf16.msra.mxu0 %v6173
    %9730 = vmatprep.subr.bf16.mxu0 %v6182
    %9731 = vmatpush1.bf16.msra.mxu0 %v6181
    %9732 = vmatprep.subr.bf16.mxu0 %v6190
    %9733 = vmatpush1.bf16.msra.mxu0 %v6189
    %9734 = vmatprep.subr.bf16.mxu0 %v6198
    %9735 = vmatpush1.bf16.msra.mxu0 %v6197
    %9736 = vmatprep.mubr.bf16.mxu0 %v1661
    %9737 = vmatmul.mubr.bf16.gmra.mrb[0].mxu0 %v1660
    %v9738 = vpop.f32.mrb[0].mxu0
    %v9739 = vadd.f32 %v9698, %v9738
    %v9740 = vpop.f32.mrb[0].mxu0
    %v9741 = vadd.f32 %v9700, %v9740
    %v9742 = vpop.f32.mrb[0].mxu0
    %v9743 = vpop.f32.mrb[0].mxu0
    %9744 = vdwg.mxu0
    %9745 = vmatprep.subr.bf16.mxu0 %v6206
    %9746 = vmatpush1.bf16.msra.mxu0 %v6205
    %9747 = vmatprep.subr.bf16.mxu0 %v6214
    %9748 = vmatpush1.bf16.msra.mxu0 %v6213
    %9749 = vmatprep.subr.bf16.mxu0 %v6222
    %9750 = vmatpush1.bf16.msra.mxu0 %v6221
    %9751 = vmatprep.subr.bf16.mxu0 %v6230
    %9752 = vmatpush1.bf16.msra.mxu0 %v6229
    %9753 = vmatprep.subr.bf16.mxu0 %v6238
    %9754 = vmatpush1.bf16.msra.mxu0 %v6237
    %9755 = vmatprep.subr.bf16.mxu0 %v6246
    %9756 = vmatpush1.bf16.msra.mxu0 %v6245
    %9757 = vmatprep.subr.bf16.mxu0 %v6254
    %9758 = vmatpush1.bf16.msra.mxu0 %v6253
    %9759 = vmatprep.subr.bf16.mxu0 %v6262
    %9760 = vmatpush1.bf16.msra.mxu0 %v6261
    %9761 = vmatprep.subr.bf16.mxu0 %v6270
    %9762 = vmatpush1.bf16.msra.mxu0 %v6269
    %9763 = vmatprep.subr.bf16.mxu0 %v6278
    %9764 = vmatpush1.bf16.msra.mxu0 %v6277
    %9765 = vmatprep.subr.bf16.mxu0 %v6286
    %9766 = vmatpush1.bf16.msra.mxu0 %v6285
    %9767 = vmatprep.subr.bf16.mxu0 %v6294
    %9768 = vmatpush1.bf16.msra.mxu0 %v6293
    %9769 = vmatprep.subr.bf16.mxu0 %v6302
    %9770 = vmatpush1.bf16.msra.mxu0 %v6301
    %9771 = vmatprep.subr.bf16.mxu0 %v6310
    %9772 = vmatpush1.bf16.msra.mxu0 %v6309
    %9773 = vmatprep.subr.bf16.mxu0 %v6318
    %9774 = vmatpush1.bf16.msra.mxu0 %v6317
    %9775 = vmatprep.subr.bf16.mxu0 %v6326
    %9776 = vmatpush1.bf16.msra.mxu0 %v6325
    %9777 = vmatprep.mubr.bf16.mxu0 %v1663
    %9778 = vmatmul.mubr.bf16.gmra.mrb[0].mxu0 %v1662
    %v9779 = vpop.f32.mrb[0].mxu0
    %v9780 = vadd.f32 %v9739, %v9779
    %v9781 = vpop.f32.mrb[0].mxu0
    %v9782 = vadd.f32 %v9741, %v9781
    %v9783 = vpop.f32.mrb[0].mxu0
    %v9784 = vpop.f32.mrb[0].mxu0
    %9785 = vdwg.mxu0
    %9786 = vmatprep.subr.bf16.mxu0 %v6334
    %9787 = vmatpush1.bf16.msra.mxu0 %v6333
    %9788 = vmatprep.subr.bf16.mxu0 %v6342
    %9789 = vmatpush1.bf16.msra.mxu0 %v6341
    %9790 = vmatprep.subr.bf16.mxu0 %v6350
    %9791 = vmatpush1.bf16.msra.mxu0 %v6349
    %9792 = vmatprep.subr.bf16.mxu0 %v6358
    %9793 = vmatpush1.bf16.msra.mxu0 %v6357
    %9794 = vmatprep.subr.bf16.mxu0 %v6366
    %9795 = vmatpush1.bf16.msra.mxu0 %v6365
    %9796 = vmatprep.subr.bf16.mxu0 %v6374
    %9797 = vmatpush1.bf16.msra.mxu0 %v6373
    %9798 = vmatprep.subr.bf16.mxu0 %v6382
    %9799 = vmatpush1.bf16.msra.mxu0 %v6381
    %9800 = vmatprep.subr.bf16.mxu0 %v6390
    %9801 = vmatpush1.bf16.msra.mxu0 %v6389
    %9802 = vmatprep.subr.bf16.mxu0 %v6398
    %9803 = vmatpush1.bf16.msra.mxu0 %v6397
    %9804 = vmatprep.subr.bf16.mxu0 %v6406
    %9805 = vmatpush1.bf16.msra.mxu0 %v6405
    %9806 = vmatprep.subr.bf16.mxu0 %v6414
    %9807 = vmatpush1.bf16.msra.mxu0 %v6413
    %9808 = vmatprep.subr.bf16.mxu0 %v6422
    %9809 = vmatpush1.bf16.msra.mxu0 %v6421
    %9810 = vmatprep.subr.bf16.mxu0 %v6430
    %9811 = vmatpush1.bf16.msra.mxu0 %v6429
    %9812 = vmatprep.subr.bf16.mxu0 %v6438
    %9813 = vmatpush1.bf16.msra.mxu0 %v6437
    %9814 = vmatprep.subr.bf16.mxu0 %v6446
    %9815 = vmatpush1.bf16.msra.mxu0 %v6445
    %9816 = vmatprep.subr.bf16.mxu0 %v6454
    %9817 = vmatpush1.bf16.msra.mxu0 %v6453
    %9818 = vmatprep.mubr.bf16.mxu0 %v1665
    %9819 = vmatmul.mubr.bf16.gmra.mrb[0].mxu0 %v1664
    %v9820 = vpop.f32.mrb[0].mxu0
    %v9821 = vadd.f32 %v9780, %v9820
    %v9822 = vpop.f32.mrb[0].mxu0
    %v9823 = vadd.f32 %v9782, %v9822
    %v9824 = vpop.f32.mrb[0].mxu0
    %v9825 = vpop.f32.mrb[0].mxu0
    %9826 = vdwg.mxu0
    %9827 = vmatprep.subr.bf16.mxu0 %v6462
    %9828 = vmatpush1.bf16.msra.mxu0 %v6461
    %9829 = vmatprep.subr.bf16.mxu0 %v6470
    %9830 = vmatpush1.bf16.msra.mxu0 %v6469
    %9831 = vmatprep.subr.bf16.mxu0 %v6478
    %9832 = vmatpush1.bf16.msra.mxu0 %v6477
    %9833 = vmatprep.subr.bf16.mxu0 %v6486
    %9834 = vmatpush1.bf16.msra.mxu0 %v6485
    %9835 = vmatprep.subr.bf16.mxu0 %v6494
    %9836 = vmatpush1.bf16.msra.mxu0 %v6493
    %9837 = vmatprep.subr.bf16.mxu0 %v6502
    %9838 = vmatpush1.bf16.msra.mxu0 %v6501
    %9839 = vmatprep.subr.bf16.mxu0 %v6510
    %9840 = vmatpush1.bf16.msra.mxu0 %v6509
    %9841 = vmatprep.subr.bf16.mxu0 %v6518
    %9842 = vmatpush1.bf16.msra.mxu0 %v6517
    %9843 = vmatprep.subr.bf16.mxu0 %v6526
    %9844 = vmatpush1.bf16.msra.mxu0 %v6525
    %9845 = vmatprep.subr.bf16.mxu0 %v6534
    %9846 = vmatpush1.bf16.msra.mxu0 %v6533
    %9847 = vmatprep.subr.bf16.mxu0 %v6542
    %9848 = vmatpush1.bf16.msra.mxu0 %v6541
    %9849 = vmatprep.subr.bf16.mxu0 %v6550
    %9850 = vmatpush1.bf16.msra.mxu0 %v6549
    %9851 = vmatprep.subr.bf16.mxu0 %v6558
    %9852 = vmatpush1.bf16.msra.mxu0 %v6557
    %9853 = vmatprep.subr.bf16.mxu0 %v6566
    %9854 = vmatpush1.bf16.msra.mxu0 %v6565
    %9855 = vmatprep.subr.bf16.mxu0 %v6574
    %9856 = vmatpush1.bf16.msra.mxu0 %v6573
    %9857 = vmatprep.subr.bf16.mxu0 %v6582
    %9858 = vmatpush1.bf16.msra.mxu0 %v6581
    %9859 = vmatprep.mubr.bf16.mxu0 %v1667
    %9860 = vmatmul.mubr.bf16.gmra.mrb[0].mxu0 %v1666
    %v9861 = vpop.f32.mrb[0].mxu0
    %v9862 = vadd.f32 %v9821, %v9861
    %v9863 = vpop.f32.mrb[0].mxu0
    %v9864 = vadd.f32 %v9823, %v9863
    %v9865 = vpop.f32.mrb[0].mxu0
    %v9866 = vpop.f32.mrb[0].mxu0
    %9867 = vdwg.mxu0
    %9868 = vmatprep.subr.bf16.mxu0 %v6590
    %9869 = vmatpush1.bf16.msra.mxu0 %v6589
    %9870 = vmatprep.subr.bf16.mxu0 %v6598
    %9871 = vmatpush1.bf16.msra.mxu0 %v6597
    %9872 = vmatprep.subr.bf16.mxu0 %v6606
    %9873 = vmatpush1.bf16.msra.mxu0 %v6605
    %9874 = vmatprep.subr.bf16.mxu0 %v6614
    %9875 = vmatpush1.bf16.msra.mxu0 %v6613
    %9876 = vmatprep.subr.bf16.mxu0 %v6622
    %9877 = vmatpush1.bf16.msra.mxu0 %v6621
    %9878 = vmatprep.subr.bf16.mxu0 %v6630
    %9879 = vmatpush1.bf16.msra.mxu0 %v6629
    %9880 = vmatprep.subr.bf16.mxu0 %v6638
    %9881 = vmatpush1.bf16.msra.mxu0 %v6637
    %9882 = vmatprep.subr.bf16.mxu0 %v6646
    %9883 = vmatpush1.bf16.msra.mxu0 %v6645
    %9884 = vmatprep.subr.bf16.mxu0 %v6654
    %9885 = vmatpush1.bf16.msra.mxu0 %v6653
    %9886 = vmatprep.subr.bf16.mxu0 %v6662
    %9887 = vmatpush1.bf16.msra.mxu0 %v6661
    %9888 = vmatprep.subr.bf16.mxu0 %v6670
    %9889 = vmatpush1.bf16.msra.mxu0 %v6669
    %9890 = vmatprep.subr.bf16.mxu0 %v6678
    %9891 = vmatpush1.bf16.msra.mxu0 %v6677
    %9892 = vmatprep.subr.bf16.mxu0 %v6686
    %9893 = vmatpush1.bf16.msra.mxu0 %v6685
    %9894 = vmatprep.subr.bf16.mxu0 %v6694
    %9895 = vmatpush1.bf16.msra.mxu0 %v6693
    %9896 = vmatprep.subr.bf16.mxu0 %v6702
    %9897 = vmatpush1.bf16.msra.mxu0 %v6701
    %9898 = vmatprep.subr.bf16.mxu0 %v6710
    %9899 = vmatpush1.bf16.msra.mxu0 %v6709
    %9900 = vmatprep.mubr.bf16.mxu0 %v1669
    %9901 = vmatmul.mubr.bf16.gmra.mrb[0].mxu0 %v1668
    %v9902 = vpop.f32.mrb[0].mxu0
    %v9903 = vadd.f32 %v9862, %v9902
    %v9904 = vpop.f32.mrb[0].mxu0
    %v9905 = vadd.f32 %v9864, %v9904
    %v9906 = vpop.f32.mrb[0].mxu0
    %v9907 = vpop.f32.mrb[0].mxu0
    %9908 = vdwg.mxu0
    %9909 = vmatprep.subr.bf16.mxu0 %v6718
    %9910 = vmatpush1.bf16.msra.mxu0 %v6717
    %9911 = vmatprep.subr.bf16.mxu0 %v6726
    %9912 = vmatpush1.bf16.msra.mxu0 %v6725
    %9913 = vmatprep.subr.bf16.mxu0 %v6734
    %9914 = vmatpush1.bf16.msra.mxu0 %v6733
    %9915 = vmatprep.subr.bf16.mxu0 %v6742
    %9916 = vmatpush1.bf16.msra.mxu0 %v6741
    %9917 = vmatprep.subr.bf16.mxu0 %v6750
    %9918 = vmatpush1.bf16.msra.mxu0 %v6749
    %9919 = vmatprep.subr.bf16.mxu0 %v6758
    %9920 = vmatpush1.bf16.msra.mxu0 %v6757
    %9921 = vmatprep.subr.bf16.mxu0 %v6766
    %9922 = vmatpush1.bf16.msra.mxu0 %v6765
    %9923 = vmatprep.subr.bf16.mxu0 %v6774
    %9924 = vmatpush1.bf16.msra.mxu0 %v6773
    %9925 = vmatprep.subr.bf16.mxu0 %v6782
    %9926 = vmatpush1.bf16.msra.mxu0 %v6781
    %9927 = vmatprep.subr.bf16.mxu0 %v6790
    %9928 = vmatpush1.bf16.msra.mxu0 %v6789
    %9929 = vmatprep.subr.bf16.mxu0 %v6798
    %9930 = vmatpush1.bf16.msra.mxu0 %v6797
    %9931 = vmatprep.subr.bf16.mxu0 %v6806
    %9932 = vmatpush1.bf16.msra.mxu0 %v6805
    %9933 = vmatprep.subr.bf16.mxu0 %v6814
    %9934 = vmatpush1.bf16.msra.mxu0 %v6813
    %9935 = vmatprep.subr.bf16.mxu0 %v6822
    %9936 = vmatpush1.bf16.msra.mxu0 %v6821
    %9937 = vmatprep.subr.bf16.mxu0 %v6830
    %9938 = vmatpush1.bf16.msra.mxu0 %v6829
    %9939 = vmatprep.subr.bf16.mxu0 %v6838
    %9940 = vmatpush1.bf16.msra.mxu0 %v6837
    %9941 = vmatprep.mubr.bf16.mxu0 %v1671
    %9942 = vmatmul.mubr.bf16.gmra.mrb[0].mxu0 %v1670
    %v9943 = vpop.f32.mrb[0].mxu0
    %v9944 = vadd.f32 %v9903, %v9943
    %v9945 = vpop.f32.mrb[0].mxu0
    %v9946 = vadd.f32 %v9905, %v9945
    %v9947 = vpop.f32.mrb[0].mxu0
    %v9948 = vpop.f32.mrb[0].mxu0
    %9949 = vdwg.mxu0
    %9950 = vmatprep.subr.bf16.mxu0 %v6846
    %9951 = vmatpush1.bf16.msra.mxu0 %v6845
    %9952 = vmatprep.subr.bf16.mxu0 %v6854
    %9953 = vmatpush1.bf16.msra.mxu0 %v6853
    %9954 = vmatprep.subr.bf16.mxu0 %v6862
    %9955 = vmatpush1.bf16.msra.mxu0 %v6861
    %9956 = vmatprep.subr.bf16.mxu0 %v6870
    %9957 = vmatpush1.bf16.msra.mxu0 %v6869
    %9958 = vmatprep.subr.bf16.mxu0 %v6878
    %9959 = vmatpush1.bf16.msra.mxu0 %v6877
    %9960 = vmatprep.subr.bf16.mxu0 %v6886
    %9961 = vmatpush1.bf16.msra.mxu0 %v6885
    %9962 = vmatprep.subr.bf16.mxu0 %v6894
    %9963 = vmatpush1.bf16.msra.mxu0 %v6893
    %9964 = vmatprep.subr.bf16.mxu0 %v6902
    %9965 = vmatpush1.bf16.msra.mxu0 %v6901
    %9966 = vmatprep.subr.bf16.mxu0 %v6910
    %9967 = vmatpush1.bf16.msra.mxu0 %v6909
    %9968 = vmatprep.subr.bf16.mxu0 %v6918
    %9969 = vmatpush1.bf16.msra.mxu0 %v6917
    %9970 = vmatprep.subr.bf16.mxu0 %v6926
    %9971 = vmatpush1.bf16.msra.mxu0 %v6925
    %9972 = vmatprep.subr.bf16.mxu0 %v6934
    %9973 = vmatpush1.bf16.msra.mxu0 %v6933
    %9974 = vmatprep.subr.bf16.mxu0 %v6942
    %9975 = vmatpush1.bf16.msra.mxu0 %v6941
    %9976 = vmatprep.subr.bf16.mxu0 %v6950
    %9977 = vmatpush1.bf16.msra.mxu0 %v6949
    %9978 = vmatprep.subr.bf16.mxu0 %v6958
    %9979 = vmatpush1.bf16.msra.mxu0 %v6957
    %9980 = vmatprep.subr.bf16.mxu0 %v6966
    %9981 = vmatpush1.bf16.msra.mxu0 %v6965
    %9982 = vmatprep.mubr.bf16.mxu0 %v1673
    %9983 = vmatmul.mubr.bf16.gmra.mrb[0].mxu0 %v1672
    %v9984 = vpop.f32.mrb[0].mxu0
    %v9985 = vadd.f32 %v9944, %v9984
    %v9986 = vpop.f32.mrb[0].mxu0
    %v9987 = vadd.f32 %v9946, %v9986
    %v9988 = vpop.f32.mrb[0].mxu0
    %v9989 = vpop.f32.mrb[0].mxu0
    %9990 = vdwg.mxu0
    %9991 = vmatprep.subr.bf16.mxu0 %v6974
    %9992 = vmatpush1.bf16.msra.mxu0 %v6973
    %9993 = vmatprep.subr.bf16.mxu0 %v6982
    %9994 = vmatpush1.bf16.msra.mxu0 %v6981
    %9995 = vmatprep.subr.bf16.mxu0 %v6990
    %9996 = vmatpush1.bf16.msra.mxu0 %v6989
    %9997 = vmatprep.subr.bf16.mxu0 %v6998
    %9998 = vmatpush1.bf16.msra.mxu0 %v6997
    %9999 = vmatprep.subr.bf16.mxu0 %v7006
    %10000 = vmatpush1.bf16.msra.mxu0 %v7005
    %10001 = vmatprep.subr.bf16.mxu0 %v7014
    %10002 = vmatpush1.bf16.msra.mxu0 %v7013
    %10003 = vmatprep.subr.bf16.mxu0 %v7022
    %10004 = vmatpush1.bf16.msra.mxu0 %v7021
    %10005 = vmatprep.subr.bf16.mxu0 %v7030
    %10006 = vmatpush1.bf16.msra.mxu0 %v7029
    %10007 = vmatprep.subr.bf16.mxu0 %v7038
    %10008 = vmatpush1.bf16.msra.mxu0 %v7037
    %10009 = vmatprep.subr.bf16.mxu0 %v7046
    %10010 = vmatpush1.bf16.msra.mxu0 %v7045
    %10011 = vmatprep.subr.bf16.mxu0 %v7054
    %10012 = vmatpush1.bf16.msra.mxu0 %v7053
    %10013 = vmatprep.subr.bf16.mxu0 %v7062
    %10014 = vmatpush1.bf16.msra.mxu0 %v7061
    %10015 = vmatprep.subr.bf16.mxu0 %v7070
    %10016 = vmatpush1.bf16.msra.mxu0 %v7069
    %10017 = vmatprep.subr.bf16.mxu0 %v7078
    %10018 = vmatpush1.bf16.msra.mxu0 %v7077
    %10019 = vmatprep.subr.bf16.mxu0 %v7086
    %10020 = vmatpush1.bf16.msra.mxu0 %v7085
    %10021 = vmatprep.subr.bf16.mxu0 %v7094
    %10022 = vmatpush1.bf16.msra.mxu0 %v7093
    %10023 = vmatprep.mubr.bf16.mxu0 %v1675
    %10024 = vmatmul.mubr.bf16.gmra.mrb[0].mxu0 %v1674
    %v10025 = vpop.f32.mrb[0].mxu0
    %v10026 = vadd.f32 %v9985, %v10025
    %v10027 = vpop.f32.mrb[0].mxu0
    %v10028 = vadd.f32 %v9987, %v10027
    %v10029 = vpop.f32.mrb[0].mxu0
    %v10030 = vpop.f32.mrb[0].mxu0
    %10031 = vdwg.mxu0
    %10032 = vmatprep.subr.bf16.mxu0 %v7102
    %10033 = vmatpush1.bf16.msra.mxu0 %v7101
    %10034 = vmatprep.subr.bf16.mxu0 %v7110
    %10035 = vmatpush1.bf16.msra.mxu0 %v7109
    %10036 = vmatprep.subr.bf16.mxu0 %v7118
    %10037 = vmatpush1.bf16.msra.mxu0 %v7117
    %10038 = vmatprep.subr.bf16.mxu0 %v7126
    %10039 = vmatpush1.bf16.msra.mxu0 %v7125
    %10040 = vmatprep.subr.bf16.mxu0 %v7134
    %10041 = vmatpush1.bf16.msra.mxu0 %v7133
    %10042 = vmatprep.subr.bf16.mxu0 %v7142
    %10043 = vmatpush1.bf16.msra.mxu0 %v7141
    %10044 = vmatprep.subr.bf16.mxu0 %v7150
    %10045 = vmatpush1.bf16.msra.mxu0 %v7149
    %10046 = vmatprep.subr.bf16.mxu0 %v7158
    %10047 = vmatpush1.bf16.msra.mxu0 %v7157
    %10048 = vmatprep.subr.bf16.mxu0 %v7166
    %10049 = vmatpush1.bf16.msra.mxu0 %v7165
    %10050 = vmatprep.subr.bf16.mxu0 %v7174
    %10051 = vmatpush1.bf16.msra.mxu0 %v7173
    %10052 = vmatprep.subr.bf16.mxu0 %v7182
    %10053 = vmatpush1.bf16.msra.mxu0 %v7181
    %10054 = vmatprep.subr.bf16.mxu0 %v7190
    %10055 = vmatpush1.bf16.msra.mxu0 %v7189
    %10056 = vmatprep.subr.bf16.mxu0 %v7198
    %10057 = vmatpush1.bf16.msra.mxu0 %v7197
    %10058 = vmatprep.subr.bf16.mxu0 %v7206
    %10059 = vmatpush1.bf16.msra.mxu0 %v7205
    %10060 = vmatprep.subr.bf16.mxu0 %v7214
    %10061 = vmatpush1.bf16.msra.mxu0 %v7213
    %10062 = vmatprep.subr.bf16.mxu0 %v7222
    %10063 = vmatpush1.bf16.msra.mxu0 %v7221
    %10064 = vmatprep.mubr.bf16.mxu0 %v1677
    %10065 = vmatmul.mubr.bf16.gmra.mrb[0].mxu0 %v1676
    %v10066 = vpop.f32.mrb[0].mxu0
    %v10067 = vadd.f32 %v10026, %v10066
    %v10068 = vpop.f32.mrb[0].mxu0
    %v10069 = vadd.f32 %v10028, %v10068
    %v10070 = vpop.f32.mrb[0].mxu0
    %v10071 = vpop.f32.mrb[0].mxu0
    %10072 = vdwg.mxu0
    %10073 = vmatprep.subr.bf16.mxu0 %v7230
    %10074 = vmatpush1.bf16.msra.mxu0 %v7229
    %10075 = vmatprep.subr.bf16.mxu0 %v7238
    %10076 = vmatpush1.bf16.msra.mxu0 %v7237
    %10077 = vmatprep.subr.bf16.mxu0 %v7246
    %10078 = vmatpush1.bf16.msra.mxu0 %v7245
    %10079 = vmatprep.subr.bf16.mxu0 %v7254
    %10080 = vmatpush1.bf16.msra.mxu0 %v7253
    %10081 = vmatprep.subr.bf16.mxu0 %v7262
    %10082 = vmatpush1.bf16.msra.mxu0 %v7261
    %10083 = vmatprep.subr.bf16.mxu0 %v7270
    %10084 = vmatpush1.bf16.msra.mxu0 %v7269
    %10085 = vmatprep.subr.bf16.mxu0 %v7278
    %10086 = vmatpush1.bf16.msra.mxu0 %v7277
    %10087 = vmatprep.subr.bf16.mxu0 %v7286
    %10088 = vmatpush1.bf16.msra.mxu0 %v7285
    %10089 = vmatprep.subr.bf16.mxu0 %v7294
    %10090 = vmatpush1.bf16.msra.mxu0 %v7293
    %10091 = vmatprep.subr.bf16.mxu0 %v7302
    %10092 = vmatpush1.bf16.msra.mxu0 %v7301
    %10093 = vmatprep.subr.bf16.mxu0 %v7310
    %10094 = vmatpush1.bf16.msra.mxu0 %v7309
    %10095 = vmatprep.subr.bf16.mxu0 %v7318
    %10096 = vmatpush1.bf16.msra.mxu0 %v7317
    %10097 = vmatprep.subr.bf16.mxu0 %v7326
    %10098 = vmatpush1.bf16.msra.mxu0 %v7325
    %10099 = vmatprep.subr.bf16.mxu0 %v7334
    %10100 = vmatpush1.bf16.msra.mxu0 %v7333
    %10101 = vmatprep.subr.bf16.mxu0 %v7342
    %10102 = vmatpush1.bf16.msra.mxu0 %v7341
    %10103 = vmatprep.subr.bf16.mxu0 %v7350
    %10104 = vmatpush1.bf16.msra.mxu0 %v7349
    %10105 = vmatprep.mubr.bf16.mxu0 %v1679
    %10106 = vmatmul.mubr.bf16.gmra.mrb[0].mxu0 %v1678
    %v10107 = vpop.f32.mrb[0].mxu0
    %v10108 = vadd.f32 %v10067, %v10107
    %v10109 = vpop.f32.mrb[0].mxu0
    %v10110 = vadd.f32 %v10069, %v10109
    %v10111 = vpop.f32.mrb[0].mxu0
    %v10112 = vpop.f32.mrb[0].mxu0
    %10113 = vdwg.mxu0
    %10114 = vmatprep.subr.bf16.mxu0 %v5952
    %10115 = vmatpush1.bf16.msra.mxu0 %v5951
    %10116 = vmatprep.subr.bf16.mxu0 %v5960
    %10117 = vmatpush1.bf16.msra.mxu0 %v5959
    %10118 = vmatprep.subr.bf16.mxu0 %v5968
    %10119 = vmatpush1.bf16.msra.mxu0 %v5967
    %10120 = vmatprep.subr.bf16.mxu0 %v5976
    %10121 = vmatpush1.bf16.msra.mxu0 %v5975
    %10122 = vmatprep.subr.bf16.mxu0 %v5984
    %10123 = vmatpush1.bf16.msra.mxu0 %v5983
    %10124 = vmatprep.subr.bf16.mxu0 %v5992
    %10125 = vmatpush1.bf16.msra.mxu0 %v5991
    %10126 = vmatprep.subr.bf16.mxu0 %v6000
    %10127 = vmatpush1.bf16.msra.mxu0 %v5999
    %10128 = vmatprep.subr.bf16.mxu0 %v6008
    %10129 = vmatpush1.bf16.msra.mxu0 %v6007
    %10130 = vmatprep.subr.bf16.mxu0 %v6016
    %10131 = vmatpush1.bf16.msra.mxu0 %v6015
    %10132 = vmatprep.subr.bf16.mxu0 %v6024
    %10133 = vmatpush1.bf16.msra.mxu0 %v6023
    %10134 = vmatprep.subr.bf16.mxu0 %v6032
    %10135 = vmatpush1.bf16.msra.mxu0 %v6031
    %10136 = vmatprep.subr.bf16.mxu0 %v6040
    %10137 = vmatpush1.bf16.msra.mxu0 %v6039
    %10138 = vmatprep.subr.bf16.mxu0 %v6048
    %10139 = vmatpush1.bf16.msra.mxu0 %v6047
    %10140 = vmatprep.subr.bf16.mxu0 %v6056
    %10141 = vmatpush1.bf16.msra.mxu0 %v6055
    %10142 = vmatprep.subr.bf16.mxu0 %v6064
    %10143 = vmatpush1.bf16.msra.mxu0 %v6063
    %10144 = vmatprep.subr.bf16.mxu0 %v6072
    %10145 = vmatpush1.bf16.msra.mxu0 %v6071
    %10146 = vmatprep.mubr.bf16.mxu0 %v1659
    %10147 = vmatmul.mubr.bf16.gmra.mrb[0].mxu0 %v1658
    %v10148 = vpop.f32.mrb[0].mxu0
    %v10149 = vadd.f32 %v1708, %v10148
    %v10150 = vpop.f32.mrb[0].mxu0
    %v10151 = vadd.f32 %v1712, %v10150
    %v10152 = vpop.f32.mrb[0].mxu0
    %v10153 = vpop.f32.mrb[0].mxu0
    %10154 = vdwg.mxu0
    %10155 = vmatprep.subr.bf16.mxu0 %v6080
    %10156 = vmatpush1.bf16.msra.mxu0 %v6079
    %10157 = vmatprep.subr.bf16.mxu0 %v6088
    %10158 = vmatpush1.bf16.msra.mxu0 %v6087
    %10159 = vmatprep.subr.bf16.mxu0 %v6096
    %10160 = vmatpush1.bf16.msra.mxu0 %v6095
    %10161 = vmatprep.subr.bf16.mxu0 %v6104
    %10162 = vmatpush1.bf16.msra.mxu0 %v6103
    %10163 = vmatprep.subr.bf16.mxu0 %v6112
    %10164 = vmatpush1.bf16.msra.mxu0 %v6111
    %10165 = vmatprep.subr.bf16.mxu0 %v6120
    %10166 = vmatpush1.bf16.msra.mxu0 %v6119
    %10167 = vmatprep.subr.bf16.mxu0 %v6128
    %10168 = vmatpush1.bf16.msra.mxu0 %v6127
    %10169 = vmatprep.subr.bf16.mxu0 %v6136
    %10170 = vmatpush1.bf16.msra.mxu0 %v6135
    %10171 = vmatprep.subr.bf16.mxu0 %v6144
    %10172 = vmatpush1.bf16.msra.mxu0 %v6143
    %10173 = vmatprep.subr.bf16.mxu0 %v6152
    %10174 = vmatpush1.bf16.msra.mxu0 %v6151
    %10175 = vmatprep.subr.bf16.mxu0 %v6160
    %10176 = vmatpush1.bf16.msra.mxu0 %v6159
    %10177 = vmatprep.subr.bf16.mxu0 %v6168
    %10178 = vmatpush1.bf16.msra.mxu0 %v6167
    %10179 = vmatprep.subr.bf16.mxu0 %v6176
    %10180 = vmatpush1.bf16.msra.mxu0 %v6175
    %10181 = vmatprep.subr.bf16.mxu0 %v6184
    %10182 = vmatpush1.bf16.msra.mxu0 %v6183
    %10183 = vmatprep.subr.bf16.mxu0 %v6192
    %10184 = vmatpush1.bf16.msra.mxu0 %v6191
    %10185 = vmatprep.subr.bf16.mxu0 %v6200
    %10186 = vmatpush1.bf16.msra.mxu0 %v6199
    %10187 = vmatprep.mubr.bf16.mxu0 %v1661
    %10188 = vmatmul.mubr.bf16.gmra.mrb[0].mxu0 %v1660
    %v10189 = vpop.f32.mrb[0].mxu0
    %v10190 = vadd.f32 %v10149, %v10189
    %v10191 = vpop.f32.mrb[0].mxu0
    %v10192 = vadd.f32 %v10151, %v10191
    %v10193 = vpop.f32.mrb[0].mxu0
    %v10194 = vpop.f32.mrb[0].mxu0
    %10195 = vdwg.mxu0
    %10196 = vmatprep.subr.bf16.mxu0 %v6208
    %10197 = vmatpush1.bf16.msra.mxu0 %v6207
    %10198 = vmatprep.subr.bf16.mxu0 %v6216
    %10199 = vmatpush1.bf16.msra.mxu0 %v6215
    %10200 = vmatprep.subr.bf16.mxu0 %v6224
    %10201 = vmatpush1.bf16.msra.mxu0 %v6223
    %10202 = vmatprep.subr.bf16.mxu0 %v6232
    %10203 = vmatpush1.bf16.msra.mxu0 %v6231
    %10204 = vmatprep.subr.bf16.mxu0 %v6240
    %10205 = vmatpush1.bf16.msra.mxu0 %v6239
    %10206 = vmatprep.subr.bf16.mxu0 %v6248
    %10207 = vmatpush1.bf16.msra.mxu0 %v6247
    %10208 = vmatprep.subr.bf16.mxu0 %v6256
    %10209 = vmatpush1.bf16.msra.mxu0 %v6255
    %10210 = vmatprep.subr.bf16.mxu0 %v6264
    %10211 = vmatpush1.bf16.msra.mxu0 %v6263
    %10212 = vmatprep.subr.bf16.mxu0 %v6272
    %10213 = vmatpush1.bf16.msra.mxu0 %v6271
    %10214 = vmatprep.subr.bf16.mxu0 %v6280
    %10215 = vmatpush1.bf16.msra.mxu0 %v6279
    %10216 = vmatprep.subr.bf16.mxu0 %v6288
    %10217 = vmatpush1.bf16.msra.mxu0 %v6287
    %10218 = vmatprep.subr.bf16.mxu0 %v6296
    %10219 = vmatpush1.bf16.msra.mxu0 %v6295
    %10220 = vmatprep.subr.bf16.mxu0 %v6304
    %10221 = vmatpush1.bf16.msra.mxu0 %v6303
    %10222 = vmatprep.subr.bf16.mxu0 %v6312
    %10223 = vmatpush1.bf16.msra.mxu0 %v6311
    %10224 = vmatprep.subr.bf16.mxu0 %v6320
    %10225 = vmatpush1.bf16.msra.mxu0 %v6319
    %10226 = vmatprep.subr.bf16.mxu0 %v6328
    %10227 = vmatpush1.bf16.msra.mxu0 %v6327
    %10228 = vmatprep.mubr.bf16.mxu0 %v1663
    %10229 = vmatmul.mubr.bf16.gmra.mrb[0].mxu0 %v1662
    %v10230 = vpop.f32.mrb[0].mxu0
    %v10231 = vadd.f32 %v10190, %v10230
    %v10232 = vpop.f32.mrb[0].mxu0
    %v10233 = vadd.f32 %v10192, %v10232
    %v10234 = vpop.f32.mrb[0].mxu0
    %v10235 = vpop.f32.mrb[0].mxu0
    %10236 = vdwg.mxu0
    %10237 = vmatprep.subr.bf16.mxu0 %v6336
    %10238 = vmatpush1.bf16.msra.mxu0 %v6335
    %10239 = vmatprep.subr.bf16.mxu0 %v6344
    %10240 = vmatpush1.bf16.msra.mxu0 %v6343
    %10241 = vmatprep.subr.bf16.mxu0 %v6352
    %10242 = vmatpush1.bf16.msra.mxu0 %v6351
    %10243 = vmatprep.subr.bf16.mxu0 %v6360
    %10244 = vmatpush1.bf16.msra.mxu0 %v6359
    %10245 = vmatprep.subr.bf16.mxu0 %v6368
    %10246 = vmatpush1.bf16.msra.mxu0 %v6367
    %10247 = vmatprep.subr.bf16.mxu0 %v6376
    %10248 = vmatpush1.bf16.msra.mxu0 %v6375
    %10249 = vmatprep.subr.bf16.mxu0 %v6384
    %10250 = vmatpush1.bf16.msra.mxu0 %v6383
    %10251 = vmatprep.subr.bf16.mxu0 %v6392
    %10252 = vmatpush1.bf16.msra.mxu0 %v6391
    %10253 = vmatprep.subr.bf16.mxu0 %v6400
    %10254 = vmatpush1.bf16.msra.mxu0 %v6399
    %10255 = vmatprep.subr.bf16.mxu0 %v6408
    %10256 = vmatpush1.bf16.msra.mxu0 %v6407
    %10257 = vmatprep.subr.bf16.mxu0 %v6416
    %10258 = vmatpush1.bf16.msra.mxu0 %v6415
    %10259 = vmatprep.subr.bf16.mxu0 %v6424
    %10260 = vmatpush1.bf16.msra.mxu0 %v6423
    %10261 = vmatprep.subr.bf16.mxu0 %v6432
    %10262 = vmatpush1.bf16.msra.mxu0 %v6431
    %10263 = vmatprep.subr.bf16.mxu0 %v6440
    %10264 = vmatpush1.bf16.msra.mxu0 %v6439
    %10265 = vmatprep.subr.bf16.mxu0 %v6448
    %10266 = vmatpush1.bf16.msra.mxu0 %v6447
    %10267 = vmatprep.subr.bf16.mxu0 %v6456
    %10268 = vmatpush1.bf16.msra.mxu0 %v6455
    %10269 = vmatprep.mubr.bf16.mxu0 %v1665
    %10270 = vmatmul.mubr.bf16.gmra.mrb[0].mxu0 %v1664
    %v10271 = vpop.f32.mrb[0].mxu0
    %v10272 = vadd.f32 %v10231, %v10271
    %v10273 = vpop.f32.mrb[0].mxu0
    %v10274 = vadd.f32 %v10233, %v10273
    %v10275 = vpop.f32.mrb[0].mxu0
    %v10276 = vpop.f32.mrb[0].mxu0
    %10277 = vdwg.mxu0
    %10278 = vmatprep.subr.bf16.mxu0 %v6464
    %10279 = vmatpush1.bf16.msra.mxu0 %v6463
    %10280 = vmatprep.subr.bf16.mxu0 %v6472
    %10281 = vmatpush1.bf16.msra.mxu0 %v6471
    %10282 = vmatprep.subr.bf16.mxu0 %v6480
    %10283 = vmatpush1.bf16.msra.mxu0 %v6479
    %10284 = vmatprep.subr.bf16.mxu0 %v6488
    %10285 = vmatpush1.bf16.msra.mxu0 %v6487
    %10286 = vmatprep.subr.bf16.mxu0 %v6496
    %10287 = vmatpush1.bf16.msra.mxu0 %v6495
    %10288 = vmatprep.subr.bf16.mxu0 %v6504
    %10289 = vmatpush1.bf16.msra.mxu0 %v6503
    %10290 = vmatprep.subr.bf16.mxu0 %v6512
    %10291 = vmatpush1.bf16.msra.mxu0 %v6511
    %10292 = vmatprep.subr.bf16.mxu0 %v6520
    %10293 = vmatpush1.bf16.msra.mxu0 %v6519
    %10294 = vmatprep.subr.bf16.mxu0 %v6528
    %10295 = vmatpush1.bf16.msra.mxu0 %v6527
    %10296 = vmatprep.subr.bf16.mxu0 %v6536
    %10297 = vmatpush1.bf16.msra.mxu0 %v6535
    %10298 = vmatprep.subr.bf16.mxu0 %v6544
    %10299 = vmatpush1.bf16.msra.mxu0 %v6543
    %10300 = vmatprep.subr.bf16.mxu0 %v6552
    %10301 = vmatpush1.bf16.msra.mxu0 %v6551
    %10302 = vmatprep.subr.bf16.mxu0 %v6560
    %10303 = vmatpush1.bf16.msra.mxu0 %v6559
    %10304 = vmatprep.subr.bf16.mxu0 %v6568
    %10305 = vmatpush1.bf16.msra.mxu0 %v6567
    %10306 = vmatprep.subr.bf16.mxu0 %v6576
    %10307 = vmatpush1.bf16.msra.mxu0 %v6575
    %10308 = vmatprep.subr.bf16.mxu0 %v6584
    %10309 = vmatpush1.bf16.msra.mxu0 %v6583
    %10310 = vmatprep.mubr.bf16.mxu0 %v1667
    %10311 = vmatmul.mubr.bf16.gmra.mrb[0].mxu0 %v1666
    %v10312 = vpop.f32.mrb[0].mxu0
    %v10313 = vadd.f32 %v10272, %v10312
    %v10314 = vpop.f32.mrb[0].mxu0
    %v10315 = vadd.f32 %v10274, %v10314
    %v10316 = vpop.f32.mrb[0].mxu0
    %v10317 = vpop.f32.mrb[0].mxu0
    %10318 = vdwg.mxu0
    %10319 = vmatprep.subr.bf16.mxu0 %v6592
    %10320 = vmatpush1.bf16.msra.mxu0 %v6591
    %10321 = vmatprep.subr.bf16.mxu0 %v6600
    %10322 = vmatpush1.bf16.msra.mxu0 %v6599
    %10323 = vmatprep.subr.bf16.mxu0 %v6608
    %10324 = vmatpush1.bf16.msra.mxu0 %v6607
    %10325 = vmatprep.subr.bf16.mxu0 %v6616
    %10326 = vmatpush1.bf16.msra.mxu0 %v6615
    %10327 = vmatprep.subr.bf16.mxu0 %v6624
    %10328 = vmatpush1.bf16.msra.mxu0 %v6623
    %10329 = vmatprep.subr.bf16.mxu0 %v6632
    %10330 = vmatpush1.bf16.msra.mxu0 %v6631
    %10331 = vmatprep.subr.bf16.mxu0 %v6640
    %10332 = vmatpush1.bf16.msra.mxu0 %v6639
    %10333 = vmatprep.subr.bf16.mxu0 %v6648
    %10334 = vmatpush1.bf16.msra.mxu0 %v6647
    %10335 = vmatprep.subr.bf16.mxu0 %v6656
    %10336 = vmatpush1.bf16.msra.mxu0 %v6655
    %10337 = vmatprep.subr.bf16.mxu0 %v6664
    %10338 = vmatpush1.bf16.msra.mxu0 %v6663
    %10339 = vmatprep.subr.bf16.mxu0 %v6672
    %10340 = vmatpush1.bf16.msra.mxu0 %v6671
    %10341 = vmatprep.subr.bf16.mxu0 %v6680
    %10342 = vmatpush1.bf16.msra.mxu0 %v6679
    %10343 = vmatprep.subr.bf16.mxu0 %v6688
    %10344 = vmatpush1.bf16.msra.mxu0 %v6687
    %10345 = vmatprep.subr.bf16.mxu0 %v6696
    %10346 = vmatpush1.bf16.msra.mxu0 %v6695
    %10347 = vmatprep.subr.bf16.mxu0 %v6704
    %10348 = vmatpush1.bf16.msra.mxu0 %v6703
    %10349 = vmatprep.subr.bf16.mxu0 %v6712
    %10350 = vmatpush1.bf16.msra.mxu0 %v6711
    %10351 = vmatprep.mubr.bf16.mxu0 %v1669
    %10352 = vmatmul.mubr.bf16.gmra.mrb[0].mxu0 %v1668
    %v10353 = vpop.f32.mrb[0].mxu0
    %v10354 = vadd.f32 %v10313, %v10353
    %v10355 = vpop.f32.mrb[0].mxu0
    %v10356 = vadd.f32 %v10315, %v10355
    %v10357 = vpop.f32.mrb[0].mxu0
    %v10358 = vpop.f32.mrb[0].mxu0
    %10359 = vdwg.mxu0
    %10360 = vmatprep.subr.bf16.mxu0 %v6720
    %10361 = vmatpush1.bf16.msra.mxu0 %v6719
    %10362 = vmatprep.subr.bf16.mxu0 %v6728
    %10363 = vmatpush1.bf16.msra.mxu0 %v6727
    %10364 = vmatprep.subr.bf16.mxu0 %v6736
    %10365 = vmatpush1.bf16.msra.mxu0 %v6735
    %10366 = vmatprep.subr.bf16.mxu0 %v6744
    %10367 = vmatpush1.bf16.msra.mxu0 %v6743
    %10368 = vmatprep.subr.bf16.mxu0 %v6752
    %10369 = vmatpush1.bf16.msra.mxu0 %v6751
    %10370 = vmatprep.subr.bf16.mxu0 %v6760
    %10371 = vmatpush1.bf16.msra.mxu0 %v6759
    %10372 = vmatprep.subr.bf16.mxu0 %v6768
    %10373 = vmatpush1.bf16.msra.mxu0 %v6767
    %10374 = vmatprep.subr.bf16.mxu0 %v6776
    %10375 = vmatpush1.bf16.msra.mxu0 %v6775
    %10376 = vmatprep.subr.bf16.mxu0 %v6784
    %10377 = vmatpush1.bf16.msra.mxu0 %v6783
    %10378 = vmatprep.subr.bf16.mxu0 %v6792
    %10379 = vmatpush1.bf16.msra.mxu0 %v6791
    %10380 = vmatprep.subr.bf16.mxu0 %v6800
    %10381 = vmatpush1.bf16.msra.mxu0 %v6799
    %10382 = vmatprep.subr.bf16.mxu0 %v6808
    %10383 = vmatpush1.bf16.msra.mxu0 %v6807
    %10384 = vmatprep.subr.bf16.mxu0 %v6816
    %10385 = vmatpush1.bf16.msra.mxu0 %v6815
    %10386 = vmatprep.subr.bf16.mxu0 %v6824
    %10387 = vmatpush1.bf16.msra.mxu0 %v6823
    %10388 = vmatprep.subr.bf16.mxu0 %v6832
    %10389 = vmatpush1.bf16.msra.mxu0 %v6831
    %10390 = vmatprep.subr.bf16.mxu0 %v6840
    %10391 = vmatpush1.bf16.msra.mxu0 %v6839
    %10392 = vmatprep.mubr.bf16.mxu0 %v1671
    %10393 = vmatmul.mubr.bf16.gmra.mrb[0].mxu0 %v1670
    %v10394 = vpop.f32.mrb[0].mxu0
    %v10395 = vadd.f32 %v10354, %v10394
    %v10396 = vpop.f32.mrb[0].mxu0
    %v10397 = vadd.f32 %v10356, %v10396
    %v10398 = vpop.f32.mrb[0].mxu0
    %v10399 = vpop.f32.mrb[0].mxu0
    %10400 = vdwg.mxu0
    %10401 = vmatprep.subr.bf16.mxu0 %v6848
    %10402 = vmatpush1.bf16.msra.mxu0 %v6847
    %10403 = vmatprep.subr.bf16.mxu0 %v6856
    %10404 = vmatpush1.bf16.msra.mxu0 %v6855
    %10405 = vmatprep.subr.bf16.mxu0 %v6864
    %10406 = vmatpush1.bf16.msra.mxu0 %v6863
    %10407 = vmatprep.subr.bf16.mxu0 %v6872
    %10408 = vmatpush1.bf16.msra.mxu0 %v6871
    %10409 = vmatprep.subr.bf16.mxu0 %v6880
    %10410 = vmatpush1.bf16.msra.mxu0 %v6879
    %10411 = vmatprep.subr.bf16.mxu0 %v6888
    %10412 = vmatpush1.bf16.msra.mxu0 %v6887
    %10413 = vmatprep.subr.bf16.mxu0 %v6896
    %10414 = vmatpush1.bf16.msra.mxu0 %v6895
    %10415 = vmatprep.subr.bf16.mxu0 %v6904
    %10416 = vmatpush1.bf16.msra.mxu0 %v6903
    %10417 = vmatprep.subr.bf16.mxu0 %v6912
    %10418 = vmatpush1.bf16.msra.mxu0 %v6911
    %10419 = vmatprep.subr.bf16.mxu0 %v6920
    %10420 = vmatpush1.bf16.msra.mxu0 %v6919
    %10421 = vmatprep.subr.bf16.mxu0 %v6928
    %10422 = vmatpush1.bf16.msra.mxu0 %v6927
    %10423 = vmatprep.subr.bf16.mxu0 %v6936
    %10424 = vmatpush1.bf16.msra.mxu0 %v6935
    %10425 = vmatprep.subr.bf16.mxu0 %v6944
    %10426 = vmatpush1.bf16.msra.mxu0 %v6943
    %10427 = vmatprep.subr.bf16.mxu0 %v6952
    %10428 = vmatpush1.bf16.msra.mxu0 %v6951
    %10429 = vmatprep.subr.bf16.mxu0 %v6960
    %10430 = vmatpush1.bf16.msra.mxu0 %v6959
    %10431 = vmatprep.subr.bf16.mxu0 %v6968
    %10432 = vmatpush1.bf16.msra.mxu0 %v6967
    %10433 = vmatprep.mubr.bf16.mxu0 %v1673
    %10434 = vmatmul.mubr.bf16.gmra.mrb[0].mxu0 %v1672
    %v10435 = vpop.f32.mrb[0].mxu0
    %v10436 = vadd.f32 %v10395, %v10435
    %v10437 = vpop.f32.mrb[0].mxu0
    %v10438 = vadd.f32 %v10397, %v10437
    %v10439 = vpop.f32.mrb[0].mxu0
    %v10440 = vpop.f32.mrb[0].mxu0
    %10441 = vdwg.mxu0
    %10442 = vmatprep.subr.bf16.mxu0 %v6976
    %10443 = vmatpush1.bf16.msra.mxu0 %v6975
    %10444 = vmatprep.subr.bf16.mxu0 %v6984
    %10445 = vmatpush1.bf16.msra.mxu0 %v6983
    %10446 = vmatprep.subr.bf16.mxu0 %v6992
    %10447 = vmatpush1.bf16.msra.mxu0 %v6991
    %10448 = vmatprep.subr.bf16.mxu0 %v7000
    %10449 = vmatpush1.bf16.msra.mxu0 %v6999
    %10450 = vmatprep.subr.bf16.mxu0 %v7008
    %10451 = vmatpush1.bf16.msra.mxu0 %v7007
    %10452 = vmatprep.subr.bf16.mxu0 %v7016
    %10453 = vmatpush1.bf16.msra.mxu0 %v7015
    %10454 = vmatprep.subr.bf16.mxu0 %v7024
    %10455 = vmatpush1.bf16.msra.mxu0 %v7023
    %10456 = vmatprep.subr.bf16.mxu0 %v7032
    %10457 = vmatpush1.bf16.msra.mxu0 %v7031
    %10458 = vmatprep.subr.bf16.mxu0 %v7040
    %10459 = vmatpush1.bf16.msra.mxu0 %v7039
    %10460 = vmatprep.subr.bf16.mxu0 %v7048
    %10461 = vmatpush1.bf16.msra.mxu0 %v7047
    %10462 = vmatprep.subr.bf16.mxu0 %v7056
    %10463 = vmatpush1.bf16.msra.mxu0 %v7055
    %10464 = vmatprep.subr.bf16.mxu0 %v7064
    %10465 = vmatpush1.bf16.msra.mxu0 %v7063
    %10466 = vmatprep.subr.bf16.mxu0 %v7072
    %10467 = vmatpush1.bf16.msra.mxu0 %v7071
    %10468 = vmatprep.subr.bf16.mxu0 %v7080
    %10469 = vmatpush1.bf16.msra.mxu0 %v7079
    %10470 = vmatprep.subr.bf16.mxu0 %v7088
    %10471 = vmatpush1.bf16.msra.mxu0 %v7087
    %10472 = vmatprep.subr.bf16.mxu0 %v7096
    %10473 = vmatpush1.bf16.msra.mxu0 %v7095
    %10474 = vmatprep.mubr.bf16.mxu0 %v1675
    %10475 = vmatmul.mubr.bf16.gmra.mrb[0].mxu0 %v1674
    %v10476 = vpop.f32.mrb[0].mxu0
    %v10477 = vadd.f32 %v10436, %v10476
    %v10478 = vpop.f32.mrb[0].mxu0
    %v10479 = vadd.f32 %v10438, %v10478
    %v10480 = vpop.f32.mrb[0].mxu0
    %v10481 = vpop.f32.mrb[0].mxu0
    %10482 = vdwg.mxu0
    %10483 = vmatprep.subr.bf16.mxu0 %v7104
    %10484 = vmatpush1.bf16.msra.mxu0 %v7103
    %10485 = vmatprep.subr.bf16.mxu0 %v7112
    %10486 = vmatpush1.bf16.msra.mxu0 %v7111
    %10487 = vmatprep.subr.bf16.mxu0 %v7120
    %10488 = vmatpush1.bf16.msra.mxu0 %v7119
    %10489 = vmatprep.subr.bf16.mxu0 %v7128
    %10490 = vmatpush1.bf16.msra.mxu0 %v7127
    %10491 = vmatprep.subr.bf16.mxu0 %v7136
    %10492 = vmatpush1.bf16.msra.mxu0 %v7135
    %10493 = vmatprep.subr.bf16.mxu0 %v7144
    %10494 = vmatpush1.bf16.msra.mxu0 %v7143
    %10495 = vmatprep.subr.bf16.mxu0 %v7152
    %10496 = vmatpush1.bf16.msra.mxu0 %v7151
    %10497 = vmatprep.subr.bf16.mxu0 %v7160
    %10498 = vmatpush1.bf16.msra.mxu0 %v7159
    %10499 = vmatprep.subr.bf16.mxu0 %v7168
    %10500 = vmatpush1.bf16.msra.mxu0 %v7167
    %10501 = vmatprep.subr.bf16.mxu0 %v7176
    %10502 = vmatpush1.bf16.msra.mxu0 %v7175
    %10503 = vmatprep.subr.bf16.mxu0 %v7184
    %10504 = vmatpush1.bf16.msra.mxu0 %v7183
    %10505 = vmatprep.subr.bf16.mxu0 %v7192
    %10506 = vmatpush1.bf16.msra.mxu0 %v7191
    %10507 = vmatprep.subr.bf16.mxu0 %v7200
    %10508 = vmatpush1.bf16.msra.mxu0 %v7199
    %10509 = vmatprep.subr.bf16.mxu0 %v7208
    %10510 = vmatpush1.bf16.msra.mxu0 %v7207
    %10511 = vmatprep.subr.bf16.mxu0 %v7216
    %10512 = vmatpush1.bf16.msra.mxu0 %v7215
    %10513 = vmatprep.subr.bf16.mxu0 %v7224
    %10514 = vmatpush1.bf16.msra.mxu0 %v7223
    %10515 = vmatprep.mubr.bf16.mxu0 %v1677
    %10516 = vmatmul.mubr.bf16.gmra.mrb[0].mxu0 %v1676
    %v10517 = vpop.f32.mrb[0].mxu0
    %v10518 = vadd.f32 %v10477, %v10517
    %v10519 = vpop.f32.mrb[0].mxu0
    %v10520 = vadd.f32 %v10479, %v10519
    %v10521 = vpop.f32.mrb[0].mxu0
    %v10522 = vpop.f32.mrb[0].mxu0
    %10523 = vdwg.mxu0
    %10524 = vmatprep.subr.bf16.mxu0 %v7232
    %10525 = vmatpush1.bf16.msra.mxu0 %v7231
    %10526 = vmatprep.subr.bf16.mxu0 %v7240
    %10527 = vmatpush1.bf16.msra.mxu0 %v7239
    %10528 = vmatprep.subr.bf16.mxu0 %v7248
    %10529 = vmatpush1.bf16.msra.mxu0 %v7247
    %10530 = vmatprep.subr.bf16.mxu0 %v7256
    %10531 = vmatpush1.bf16.msra.mxu0 %v7255
    %10532 = vmatprep.subr.bf16.mxu0 %v7264
    %10533 = vmatpush1.bf16.msra.mxu0 %v7263
    %10534 = vmatprep.subr.bf16.mxu0 %v7272
    %10535 = vmatpush1.bf16.msra.mxu0 %v7271
    %10536 = vmatprep.subr.bf16.mxu0 %v7280
    %10537 = vmatpush1.bf16.msra.mxu0 %v7279
    %10538 = vmatprep.subr.bf16.mxu0 %v7288
    %10539 = vmatpush1.bf16.msra.mxu0 %v7287
    %10540 = vmatprep.subr.bf16.mxu0 %v7296
    %10541 = vmatpush1.bf16.msra.mxu0 %v7295
    %10542 = vmatprep.subr.bf16.mxu0 %v7304
    %10543 = vmatpush1.bf16.msra.mxu0 %v7303
    %10544 = vmatprep.subr.bf16.mxu0 %v7312
    %10545 = vmatpush1.bf16.msra.mxu0 %v7311
    %10546 = vmatprep.subr.bf16.mxu0 %v7320
    %10547 = vmatpush1.bf16.msra.mxu0 %v7319
    %10548 = vmatprep.subr.bf16.mxu0 %v7328
    %10549 = vmatpush1.bf16.msra.mxu0 %v7327
    %10550 = vmatprep.subr.bf16.mxu0 %v7336
    %10551 = vmatpush1.bf16.msra.mxu0 %v7335
    %10552 = vmatprep.subr.bf16.mxu0 %v7344
    %10553 = vmatpush1.bf16.msra.mxu0 %v7343
    %10554 = vmatprep.subr.bf16.mxu0 %v7352
    %10555 = vmatpush1.bf16.msra.mxu0 %v7351
    %10556 = vmatprep.mubr.bf16.mxu0 %v1679
    %10557 = vmatmul.mubr.bf16.gmra.mrb[0].mxu0 %v1678
    %v10558 = vpop.f32.mrb[0].mxu0
    %v10559 = vadd.f32 %v10518, %v10558
    %v10560 = vpop.f32.mrb[0].mxu0
    %v10561 = vadd.f32 %v10520, %v10560
    %v10562 = vpop.f32.mrb[0].mxu0
    %v10563 = vpop.f32.mrb[0].mxu0
    %10564 = vdwg.mxu0
    %v10565 = vmax.f32 %v9206, 0.0
    %v10566 = vmax.f32 %v9208, 0.0
    %v10567 = vmax.f32 %v9657, 0.0
    %v10568 = vmax.f32 %v9659, 0.0
    %v10569 = vmax.f32 %v10108, 0.0
    %v10570 = vmax.f32 %v10110, 0.0
    %v10571 = vmax.f32 %v10559, 0.0
    %v10572 = vmax.f32 %v10561, 0.0
    %v10573 = vld [vmem:[#allocation6] sm:$0xff]
    %v10574 = vld [vmem:[#allocation6 + $0x8] sm:$0xff]
    %v10575 = vld [vmem:[#allocation6 + $0x10] sm:$0xff]
    %v10576 = vld [vmem:[#allocation6 + $0x18] sm:$0xff]
    %v10577 = vld [vmem:[#allocation6 + $0x20] sm:$0xff]
    %v10578 = vld [vmem:[#allocation6 + $0x28] sm:$0xff]
    %v10579 = vld [vmem:[#allocation6 + $0x30] sm:$0xff]
    %v10580 = vld [vmem:[#allocation6 + $0x38] sm:$0xff]
    %v10581 = vld [vmem:[#allocation6 + $0x40] sm:$0xff]
    %v10582 = vld [vmem:[#allocation6 + $0x48] sm:$0xff]
    %v10583 = vld [vmem:[#allocation6 + $0x50] sm:$0xff]
    %v10584 = vld [vmem:[#allocation6 + $0x58] sm:$0xff]
    %v10585 = vld [vmem:[#allocation6 + $0x60] sm:$0xff]
    %v10586 = vld [vmem:[#allocation6 + $0x68] sm:$0xff]
    %v10587 = vld [vmem:[#allocation6 + $0x70] sm:$0xff]
    %v10588 = vld [vmem:[#allocation6 + $0x78] sm:$0xff]
    %v10589 = vld [vmem:[#allocation6 + $0x80] sm:$0xff]
    %v10590 = vld [vmem:[#allocation6 + $0x88] sm:$0xff]
    %v10591 = vld [vmem:[#allocation6 + $0x90] sm:$0xff]
    %v10592 = vld [vmem:[#allocation6 + $0x98] sm:$0xff]
    %v10593 = vld [vmem:[#allocation6 + $0xa0] sm:$0xff]
    %v10594 = vld [vmem:[#allocation6 + $0xa8] sm:$0xff]
    %v10595 = vld [vmem:[#allocation6 + $0xb0] sm:$0xff]
    %v10596 = vld [vmem:[#allocation6 + $0xb8] sm:$0xff]
    %v10597 = vld [vmem:[#allocation6 + $0xc0] sm:$0xff]
    %v10598 = vld [vmem:[#allocation6 + $0xc8] sm:$0xff]
    %v10599 = vld [vmem:[#allocation6 + $0xd0] sm:$0xff]
    %v10600 = vld [vmem:[#allocation6 + $0xd8] sm:$0xff]
    %v10601 = vld [vmem:[#allocation6 + $0xe0] sm:$0xff]
    %v10602 = vld [vmem:[#allocation6 + $0xe8] sm:$0xff]
    %v10603 = vld [vmem:[#allocation6 + $0xf0] sm:$0xff]
    %v10604 = vld [vmem:[#allocation6 + $0xf8] sm:$0xff]
    %v10605 = vld [vmem:[#allocation6 + $0x100] sm:$0xff]
    %v10606 = vld [vmem:[#allocation6 + $0x108] sm:$0xff]
    %v10607 = vld [vmem:[#allocation6 + $0x110] sm:$0xff]
    %v10608 = vld [vmem:[#allocation6 + $0x118] sm:$0xff]
    %v10609 = vld [vmem:[#allocation6 + $0x120] sm:$0xff]
    %v10610 = vld [vmem:[#allocation6 + $0x128] sm:$0xff]
    %v10611 = vld [vmem:[#allocation6 + $0x130] sm:$0xff]
    %v10612 = vld [vmem:[#allocation6 + $0x138] sm:$0xff]
    %v10613 = vld [vmem:[#allocation6 + $0x140] sm:$0xff]
    %v10614 = vld [vmem:[#allocation6 + $0x148] sm:$0xff]
    %v10615 = vld [vmem:[#allocation6 + $0x150] sm:$0xff]
    %v10616 = vld [vmem:[#allocation6 + $0x158] sm:$0xff]
    %v10617 = vld [vmem:[#allocation6 + $0x160] sm:$0xff]
    %v10618 = vld [vmem:[#allocation6 + $0x168] sm:$0xff]
    %v10619 = vld [vmem:[#allocation6 + $0x170] sm:$0xff]
    %v10620 = vld [vmem:[#allocation6 + $0x178] sm:$0xff]
    %v10621 = vld [vmem:[#allocation6 + $0x180] sm:$0xff]
    %v10622 = vld [vmem:[#allocation6 + $0x188] sm:$0xff]
    %v10623 = vld [vmem:[#allocation6 + $0x190] sm:$0xff]
    %v10624 = vld [vmem:[#allocation6 + $0x198] sm:$0xff]
    %v10625 = vld [vmem:[#allocation6 + $0x1a0] sm:$0xff]
    %v10626 = vld [vmem:[#allocation6 + $0x1a8] sm:$0xff]
    %v10627 = vld [vmem:[#allocation6 + $0x1b0] sm:$0xff]
    %v10628 = vld [vmem:[#allocation6 + $0x1b8] sm:$0xff]
    %v10629 = vld [vmem:[#allocation6 + $0x1c0] sm:$0xff]
    %v10630 = vld [vmem:[#allocation6 + $0x1c8] sm:$0xff]
    %v10631 = vld [vmem:[#allocation6 + $0x1d0] sm:$0xff]
    %v10632 = vld [vmem:[#allocation6 + $0x1d8] sm:$0xff]
    %v10633 = vld [vmem:[#allocation6 + $0x1e0] sm:$0xff]
    %v10634 = vld [vmem:[#allocation6 + $0x1e8] sm:$0xff]
    %v10635 = vld [vmem:[#allocation6 + $0x1f0] sm:$0xff]
    %v10636 = vld [vmem:[#allocation6 + $0x1f8] sm:$0xff]
    %v10637 = vld [vmem:[#allocation6 + $0x200] sm:$0xff]
    %v10638 = vld [vmem:[#allocation6 + $0x208] sm:$0xff]
    %v10639 = vld [vmem:[#allocation6 + $0x210] sm:$0xff]
    %v10640 = vld [vmem:[#allocation6 + $0x218] sm:$0xff]
    %v10641 = vld [vmem:[#allocation6 + $0x220] sm:$0xff]
    %v10642 = vld [vmem:[#allocation6 + $0x228] sm:$0xff]
    %v10643 = vld [vmem:[#allocation6 + $0x230] sm:$0xff]
    %v10644 = vld [vmem:[#allocation6 + $0x238] sm:$0xff]
    %v10645 = vld [vmem:[#allocation6 + $0x240] sm:$0xff]
    %v10646 = vld [vmem:[#allocation6 + $0x248] sm:$0xff]
    %v10647 = vld [vmem:[#allocation6 + $0x250] sm:$0xff]
    %v10648 = vld [vmem:[#allocation6 + $0x258] sm:$0xff]
    %v10649 = vld [vmem:[#allocation6 + $0x260] sm:$0xff]
    %v10650 = vld [vmem:[#allocation6 + $0x268] sm:$0xff]
    %v10651 = vld [vmem:[#allocation6 + $0x270] sm:$0xff]
    %v10652 = vld [vmem:[#allocation6 + $0x278] sm:$0xff]
    %v10653 = vld [vmem:[#allocation6 + $0x280] sm:$0xff]
    %v10654 = vld [vmem:[#allocation6 + $0x288] sm:$0xff]
    %v10655 = vld [vmem:[#allocation6 + $0x290] sm:$0xff]
    %v10656 = vld [vmem:[#allocation6 + $0x298] sm:$0xff]
    %v10657 = vld [vmem:[#allocation6 + $0x2a0] sm:$0xff]
    %v10658 = vld [vmem:[#allocation6 + $0x2a8] sm:$0xff]
    %v10659 = vld [vmem:[#allocation6 + $0x2b0] sm:$0xff]
    %v10660 = vld [vmem:[#allocation6 + $0x2b8] sm:$0xff]
    %v10661 = vld [vmem:[#allocation6 + $0x2c0] sm:$0xff]
    %v10662 = vld [vmem:[#allocation6 + $0x2c8] sm:$0xff]
    %v10663 = vld [vmem:[#allocation6 + $0x2d0] sm:$0xff]
    %v10664 = vld [vmem:[#allocation6 + $0x2d8] sm:$0xff]
    %v10665 = vld [vmem:[#allocation6 + $0x2e0] sm:$0xff]
    %v10666 = vld [vmem:[#allocation6 + $0x2e8] sm:$0xff]
    %v10667 = vld [vmem:[#allocation6 + $0x2f0] sm:$0xff]
    %v10668 = vld [vmem:[#allocation6 + $0x2f8] sm:$0xff]
    %v10669 = vld [vmem:[#allocation6 + $0x300] sm:$0xff]
    %v10670 = vld [vmem:[#allocation6 + $0x308] sm:$0xff]
    %v10671 = vld [vmem:[#allocation6 + $0x310] sm:$0xff]
    %v10672 = vld [vmem:[#allocation6 + $0x318] sm:$0xff]
    %v10673 = vld [vmem:[#allocation6 + $0x320] sm:$0xff]
    %v10674 = vld [vmem:[#allocation6 + $0x328] sm:$0xff]
    %v10675 = vld [vmem:[#allocation6 + $0x330] sm:$0xff]
    %v10676 = vld [vmem:[#allocation6 + $0x338] sm:$0xff]
    %v10677 = vld [vmem:[#allocation6 + $0x340] sm:$0xff]
    %v10678 = vld [vmem:[#allocation6 + $0x348] sm:$0xff]
    %v10679 = vld [vmem:[#allocation6 + $0x350] sm:$0xff]
    %v10680 = vld [vmem:[#allocation6 + $0x358] sm:$0xff]
    %v10681 = vld [vmem:[#allocation6 + $0x360] sm:$0xff]
    %v10682 = vld [vmem:[#allocation6 + $0x368] sm:$0xff]
    %v10683 = vld [vmem:[#allocation6 + $0x370] sm:$0xff]
    %v10684 = vld [vmem:[#allocation6 + $0x378] sm:$0xff]
    %v10685 = vld [vmem:[#allocation6 + $0x380] sm:$0xff]
    %v10686 = vld [vmem:[#allocation6 + $0x388] sm:$0xff]
    %v10687 = vld [vmem:[#allocation6 + $0x390] sm:$0xff]
    %v10688 = vld [vmem:[#allocation6 + $0x398] sm:$0xff]
    %v10689 = vld [vmem:[#allocation6 + $0x3a0] sm:$0xff]
    %v10690 = vld [vmem:[#allocation6 + $0x3a8] sm:$0xff]
    %v10691 = vld [vmem:[#allocation6 + $0x3b0] sm:$0xff]
    %v10692 = vld [vmem:[#allocation6 + $0x3b8] sm:$0xff]
    %v10693 = vld [vmem:[#allocation6 + $0x3c0] sm:$0xff]
    %v10694 = vld [vmem:[#allocation6 + $0x3c8] sm:$0xff]
    %v10695 = vld [vmem:[#allocation6 + $0x3d0] sm:$0xff]
    %v10696 = vld [vmem:[#allocation6 + $0x3d8] sm:$0xff]
    %v10697 = vld [vmem:[#allocation6 + $0x3e0] sm:$0xff]
    %v10698 = vld [vmem:[#allocation6 + $0x3e8] sm:$0xff]
    %v10699 = vld [vmem:[#allocation6 + $0x3f0] sm:$0xff]
    %v10700 = vld [vmem:[#allocation6 + $0x3f8] sm:$0xff]
    %v10701 = vld [vmem:[#allocation6 + $0x400] sm:$0xff]
    %v10702 = vld [vmem:[#allocation6 + $0x408] sm:$0xff]
    %v10703 = vld [vmem:[#allocation6 + $0x410] sm:$0xff]
    %v10704 = vld [vmem:[#allocation6 + $0x418] sm:$0xff]
    %v10705 = vld [vmem:[#allocation6 + $0x420] sm:$0xff]
    %v10706 = vld [vmem:[#allocation6 + $0x428] sm:$0xff]
    %v10707 = vld [vmem:[#allocation6 + $0x430] sm:$0xff]
    %v10708 = vld [vmem:[#allocation6 + $0x438] sm:$0xff]
    %v10709 = vld [vmem:[#allocation6 + $0x440] sm:$0xff]
    %v10710 = vld [vmem:[#allocation6 + $0x448] sm:$0xff]
    %v10711 = vld [vmem:[#allocation6 + $0x450] sm:$0xff]
    %v10712 = vld [vmem:[#allocation6 + $0x458] sm:$0xff]
    %v10713 = vld [vmem:[#allocation6 + $0x460] sm:$0xff]
    %v10714 = vld [vmem:[#allocation6 + $0x468] sm:$0xff]
    %v10715 = vld [vmem:[#allocation6 + $0x470] sm:$0xff]
    %v10716 = vld [vmem:[#allocation6 + $0x478] sm:$0xff]
    %v10717 = vld [vmem:[#allocation6 + $0x480] sm:$0xff]
    %v10718 = vld [vmem:[#allocation6 + $0x488] sm:$0xff]
    %v10719 = vld [vmem:[#allocation6 + $0x490] sm:$0xff]
    %v10720 = vld [vmem:[#allocation6 + $0x498] sm:$0xff]
    %v10721 = vld [vmem:[#allocation6 + $0x4a0] sm:$0xff]
    %v10722 = vld [vmem:[#allocation6 + $0x4a8] sm:$0xff]
    %v10723 = vld [vmem:[#allocation6 + $0x4b0] sm:$0xff]
    %v10724 = vld [vmem:[#allocation6 + $0x4b8] sm:$0xff]
    %v10725 = vld [vmem:[#allocation6 + $0x4c0] sm:$0xff]
    %v10726 = vld [vmem:[#allocation6 + $0x4c8] sm:$0xff]
    %v10727 = vld [vmem:[#allocation6 + $0x4d0] sm:$0xff]
    %v10728 = vld [vmem:[#allocation6 + $0x4d8] sm:$0xff]
    %v10729 = vld [vmem:[#allocation6 + $0x4e0] sm:$0xff]
    %v10730 = vld [vmem:[#allocation6 + $0x4e8] sm:$0xff]
    %v10731 = vld [vmem:[#allocation6 + $0x4f0] sm:$0xff]
    %v10732 = vld [vmem:[#allocation6 + $0x4f8] sm:$0xff]
    %v10733 = vld [vmem:[#allocation6 + $0x500] sm:$0xff]
    %v10734 = vld [vmem:[#allocation6 + $0x508] sm:$0xff]
    %v10735 = vld [vmem:[#allocation6 + $0x510] sm:$0xff]
    %v10736 = vld [vmem:[#allocation6 + $0x518] sm:$0xff]
    %v10737 = vld [vmem:[#allocation6 + $0x520] sm:$0xff]
    %v10738 = vld [vmem:[#allocation6 + $0x528] sm:$0xff]
    %v10739 = vld [vmem:[#allocation6 + $0x530] sm:$0xff]
    %v10740 = vld [vmem:[#allocation6 + $0x538] sm:$0xff]
    %v10741 = vld [vmem:[#allocation6 + $0x540] sm:$0xff]
    %v10742 = vld [vmem:[#allocation6 + $0x548] sm:$0xff]
    %v10743 = vld [vmem:[#allocation6 + $0x550] sm:$0xff]
    %v10744 = vld [vmem:[#allocation6 + $0x558] sm:$0xff]
    %v10745 = vld [vmem:[#allocation6 + $0x560] sm:$0xff]
    %v10746 = vld [vmem:[#allocation6 + $0x568] sm:$0xff]
    %v10747 = vld [vmem:[#allocation6 + $0x570] sm:$0xff]
    %v10748 = vld [vmem:[#allocation6 + $0x578] sm:$0xff]
    %v10749 = vld [vmem:[#allocation6 + $0x580] sm:$0xff]
    %v10750 = vld [vmem:[#allocation6 + $0x588] sm:$0xff]
    %v10751 = vld [vmem:[#allocation6 + $0x590] sm:$0xff]
    %v10752 = vld [vmem:[#allocation6 + $0x598] sm:$0xff]
    %v10753 = vld [vmem:[#allocation6 + $0x5a0] sm:$0xff]
    %v10754 = vld [vmem:[#allocation6 + $0x5a8] sm:$0xff]
    %v10755 = vld [vmem:[#allocation6 + $0x5b0] sm:$0xff]
    %v10756 = vld [vmem:[#allocation6 + $0x5b8] sm:$0xff]
    %v10757 = vld [vmem:[#allocation6 + $0x5c0] sm:$0xff]
    %v10758 = vld [vmem:[#allocation6 + $0x5c8] sm:$0xff]
    %v10759 = vld [vmem:[#allocation6 + $0x5d0] sm:$0xff]
    %v10760 = vld [vmem:[#allocation6 + $0x5d8] sm:$0xff]
    %v10761 = vld [vmem:[#allocation6 + $0x5e0] sm:$0xff]
    %v10762 = vld [vmem:[#allocation6 + $0x5e8] sm:$0xff]
    %v10763 = vld [vmem:[#allocation6 + $0x5f0] sm:$0xff]
    %v10764 = vld [vmem:[#allocation6 + $0x5f8] sm:$0xff]
    %v10765 = vld [vmem:[#allocation6 + $0x600] sm:$0xff]
    %v10766 = vld [vmem:[#allocation6 + $0x608] sm:$0xff]
    %v10767 = vld [vmem:[#allocation6 + $0x610] sm:$0xff]
    %v10768 = vld [vmem:[#allocation6 + $0x618] sm:$0xff]
    %v10769 = vld [vmem:[#allocation6 + $0x620] sm:$0xff]
    %v10770 = vld [vmem:[#allocation6 + $0x628] sm:$0xff]
    %v10771 = vld [vmem:[#allocation6 + $0x630] sm:$0xff]
    %v10772 = vld [vmem:[#allocation6 + $0x638] sm:$0xff]
    %v10773 = vld [vmem:[#allocation6 + $0x640] sm:$0xff]
    %v10774 = vld [vmem:[#allocation6 + $0x648] sm:$0xff]
    %v10775 = vld [vmem:[#allocation6 + $0x650] sm:$0xff]
    %v10776 = vld [vmem:[#allocation6 + $0x658] sm:$0xff]
    %v10777 = vld [vmem:[#allocation6 + $0x660] sm:$0xff]
    %v10778 = vld [vmem:[#allocation6 + $0x668] sm:$0xff]
    %v10779 = vld [vmem:[#allocation6 + $0x670] sm:$0xff]
    %v10780 = vld [vmem:[#allocation6 + $0x678] sm:$0xff]
    %v10781 = vld [vmem:[#allocation6 + $0x680] sm:$0xff]
    %v10782 = vld [vmem:[#allocation6 + $0x688] sm:$0xff]
    %v10783 = vld [vmem:[#allocation6 + $0x690] sm:$0xff]
    %v10784 = vld [vmem:[#allocation6 + $0x698] sm:$0xff]
    %v10785 = vld [vmem:[#allocation6 + $0x6a0] sm:$0xff]
    %v10786 = vld [vmem:[#allocation6 + $0x6a8] sm:$0xff]
    %v10787 = vld [vmem:[#allocation6 + $0x6b0] sm:$0xff]
    %v10788 = vld [vmem:[#allocation6 + $0x6b8] sm:$0xff]
    %v10789 = vld [vmem:[#allocation6 + $0x6c0] sm:$0xff]
    %v10790 = vld [vmem:[#allocation6 + $0x6c8] sm:$0xff]
    %v10791 = vld [vmem:[#allocation6 + $0x6d0] sm:$0xff]
    %v10792 = vld [vmem:[#allocation6 + $0x6d8] sm:$0xff]
    %v10793 = vld [vmem:[#allocation6 + $0x6e0] sm:$0xff]
    %v10794 = vld [vmem:[#allocation6 + $0x6e8] sm:$0xff]
    %v10795 = vld [vmem:[#allocation6 + $0x6f0] sm:$0xff]
    %v10796 = vld [vmem:[#allocation6 + $0x6f8] sm:$0xff]
    %v10797 = vld [vmem:[#allocation6 + $0x700] sm:$0xff]
    %v10798 = vld [vmem:[#allocation6 + $0x708] sm:$0xff]
    %v10799 = vld [vmem:[#allocation6 + $0x710] sm:$0xff]
    %v10800 = vld [vmem:[#allocation6 + $0x718] sm:$0xff]
    %v10801 = vld [vmem:[#allocation6 + $0x720] sm:$0xff]
    %v10802 = vld [vmem:[#allocation6 + $0x728] sm:$0xff]
    %v10803 = vld [vmem:[#allocation6 + $0x730] sm:$0xff]
    %v10804 = vld [vmem:[#allocation6 + $0x738] sm:$0xff]
    %v10805 = vld [vmem:[#allocation6 + $0x740] sm:$0xff]
    %v10806 = vld [vmem:[#allocation6 + $0x748] sm:$0xff]
    %v10807 = vld [vmem:[#allocation6 + $0x750] sm:$0xff]
    %v10808 = vld [vmem:[#allocation6 + $0x758] sm:$0xff]
    %v10809 = vld [vmem:[#allocation6 + $0x760] sm:$0xff]
    %v10810 = vld [vmem:[#allocation6 + $0x768] sm:$0xff]
    %v10811 = vld [vmem:[#allocation6 + $0x770] sm:$0xff]
    %v10812 = vld [vmem:[#allocation6 + $0x778] sm:$0xff]
    %v10813 = vld [vmem:[#allocation6 + $0x780] sm:$0xff]
    %v10814 = vld [vmem:[#allocation6 + $0x788] sm:$0xff]
    %v10815 = vld [vmem:[#allocation6 + $0x790] sm:$0xff]
    %v10816 = vld [vmem:[#allocation6 + $0x798] sm:$0xff]
    %v10817 = vld [vmem:[#allocation6 + $0x7a0] sm:$0xff]
    %v10818 = vld [vmem:[#allocation6 + $0x7a8] sm:$0xff]
    %v10819 = vld [vmem:[#allocation6 + $0x7b0] sm:$0xff]
    %v10820 = vld [vmem:[#allocation6 + $0x7b8] sm:$0xff]
    %v10821 = vld [vmem:[#allocation6 + $0x7c0] sm:$0xff]
    %v10822 = vld [vmem:[#allocation6 + $0x7c8] sm:$0xff]
    %v10823 = vld [vmem:[#allocation6 + $0x7d0] sm:$0xff]
    %v10824 = vld [vmem:[#allocation6 + $0x7d8] sm:$0xff]
    %v10825 = vld [vmem:[#allocation6 + $0x7e0] sm:$0xff]
    %v10826 = vld [vmem:[#allocation6 + $0x7e8] sm:$0xff]
    %v10827 = vld [vmem:[#allocation6 + $0x7f0] sm:$0xff]
    %v10828 = vld [vmem:[#allocation6 + $0x7f8] sm:$0xff]
    %v10829 = vld [vmem:[#allocation7] sm:$0xf]
    %v10830 = vpack.c.bf16 %v10565, %v10565
    %v10831 = vpack.c.bf16 %v10566, %v10566
    %v10832 = vpack.c.bf16 %v10567, %v10567
    %v10833 = vpack.c.bf16 %v10568, %v10568
    %v10834 = vpack.c.bf16 %v10569, %v10569
    %v10835 = vpack.c.bf16 %v10570, %v10570
    %v10836 = vpack.c.bf16 %v10571, %v10571
    %v10837 = vpack.c.bf16 %v10572, %v10572
    %v10839 = vlaneseq
    %v10840 = vshrl.u32 %v10839, 7
    %v10841 = vsub.s32 0, %v10840
    %v10842 = vrot.slane %v10829, %v10841
    %v10843 = vlaneseq
    %v10844 = vshrl.u32 %v10843, 7
    %v10845 = vsub.s32 1, %v10844
    %v10846 = vrot.slane %v10829, %v10845
    %v10847 = vlaneseq
    %v10848 = vshrl.u32 %v10847, 7
    %v10849 = vsub.s32 2, %v10848
    %v10850 = vrot.slane %v10829, %v10849
    %v10851 = vlaneseq
    %v10852 = vshrl.u32 %v10851, 7
    %v10853 = vsub.s32 3, %v10852
    %v10854 = vrot.slane %v10829, %v10853
    %v11115 = vunpack.c.l.b16 %v10573
    %v11116 = vunpack.c.h.b16 %v10573
    %v11117 = vunpack.c.l.b16 %v10574
    %v11118 = vunpack.c.h.b16 %v10574
    %v11119 = vunpack.c.l.b16 %v10575
    %v11120 = vunpack.c.h.b16 %v10575
    %v11121 = vunpack.c.l.b16 %v10576
    %v11122 = vunpack.c.h.b16 %v10576
    %v11123 = vunpack.c.l.b16 %v10577
    %v11124 = vunpack.c.h.b16 %v10577
    %v11125 = vunpack.c.l.b16 %v10578
    %v11126 = vunpack.c.h.b16 %v10578
    %v11127 = vunpack.c.l.b16 %v10579
    %v11128 = vunpack.c.h.b16 %v10579
    %v11129 = vunpack.c.l.b16 %v10580
    %v11130 = vunpack.c.h.b16 %v10580
    %v11131 = vunpack.c.l.b16 %v10581
    %v11132 = vunpack.c.h.b16 %v10581
    %v11133 = vunpack.c.l.b16 %v10582
    %v11134 = vunpack.c.h.b16 %v10582
    %v11135 = vunpack.c.l.b16 %v10583
    %v11136 = vunpack.c.h.b16 %v10583
    %v11137 = vunpack.c.l.b16 %v10584
    %v11138 = vunpack.c.h.b16 %v10584
    %v11139 = vunpack.c.l.b16 %v10585
    %v11140 = vunpack.c.h.b16 %v10585
    %v11141 = vunpack.c.l.b16 %v10586
    %v11142 = vunpack.c.h.b16 %v10586
    %v11143 = vunpack.c.l.b16 %v10587
    %v11144 = vunpack.c.h.b16 %v10587
    %v11145 = vunpack.c.l.b16 %v10588
    %v11146 = vunpack.c.h.b16 %v10588
    %v11147 = vunpack.c.l.b16 %v10589
    %v11148 = vunpack.c.h.b16 %v10589
    %v11149 = vunpack.c.l.b16 %v10590
    %v11150 = vunpack.c.h.b16 %v10590
    %v11151 = vunpack.c.l.b16 %v10591
    %v11152 = vunpack.c.h.b16 %v10591
    %v11153 = vunpack.c.l.b16 %v10592
    %v11154 = vunpack.c.h.b16 %v10592
    %v11155 = vunpack.c.l.b16 %v10593
    %v11156 = vunpack.c.h.b16 %v10593
    %v11157 = vunpack.c.l.b16 %v10594
    %v11158 = vunpack.c.h.b16 %v10594
    %v11159 = vunpack.c.l.b16 %v10595
    %v11160 = vunpack.c.h.b16 %v10595
    %v11161 = vunpack.c.l.b16 %v10596
    %v11162 = vunpack.c.h.b16 %v10596
    %v11163 = vunpack.c.l.b16 %v10597
    %v11164 = vunpack.c.h.b16 %v10597
    %v11165 = vunpack.c.l.b16 %v10598
    %v11166 = vunpack.c.h.b16 %v10598
    %v11167 = vunpack.c.l.b16 %v10599
    %v11168 = vunpack.c.h.b16 %v10599
    %v11169 = vunpack.c.l.b16 %v10600
    %v11170 = vunpack.c.h.b16 %v10600
    %v11171 = vunpack.c.l.b16 %v10601
    %v11172 = vunpack.c.h.b16 %v10601
    %v11173 = vunpack.c.l.b16 %v10602
    %v11174 = vunpack.c.h.b16 %v10602
    %v11175 = vunpack.c.l.b16 %v10603
    %v11176 = vunpack.c.h.b16 %v10603
    %v11177 = vunpack.c.l.b16 %v10604
    %v11178 = vunpack.c.h.b16 %v10604
    %v11179 = vunpack.c.l.b16 %v10605
    %v11180 = vunpack.c.h.b16 %v10605
    %v11181 = vunpack.c.l.b16 %v10606
    %v11182 = vunpack.c.h.b16 %v10606
    %v11183 = vunpack.c.l.b16 %v10607
    %v11184 = vunpack.c.h.b16 %v10607
    %v11185 = vunpack.c.l.b16 %v10608
    %v11186 = vunpack.c.h.b16 %v10608
    %v11187 = vunpack.c.l.b16 %v10609
    %v11188 = vunpack.c.h.b16 %v10609
    %v11189 = vunpack.c.l.b16 %v10610
    %v11190 = vunpack.c.h.b16 %v10610
    %v11191 = vunpack.c.l.b16 %v10611
    %v11192 = vunpack.c.h.b16 %v10611
    %v11193 = vunpack.c.l.b16 %v10612
    %v11194 = vunpack.c.h.b16 %v10612
    %v11195 = vunpack.c.l.b16 %v10613
    %v11196 = vunpack.c.h.b16 %v10613
    %v11197 = vunpack.c.l.b16 %v10614
    %v11198 = vunpack.c.h.b16 %v10614
    %v11199 = vunpack.c.l.b16 %v10615
    %v11200 = vunpack.c.h.b16 %v10615
    %v11201 = vunpack.c.l.b16 %v10616
    %v11202 = vunpack.c.h.b16 %v10616
    %v11203 = vunpack.c.l.b16 %v10617
    %v11204 = vunpack.c.h.b16 %v10617
    %v11205 = vunpack.c.l.b16 %v10618
    %v11206 = vunpack.c.h.b16 %v10618
    %v11207 = vunpack.c.l.b16 %v10619
    %v11208 = vunpack.c.h.b16 %v10619
    %v11209 = vunpack.c.l.b16 %v10620
    %v11210 = vunpack.c.h.b16 %v10620
    %v11211 = vunpack.c.l.b16 %v10621
    %v11212 = vunpack.c.h.b16 %v10621
    %v11213 = vunpack.c.l.b16 %v10622
    %v11214 = vunpack.c.h.b16 %v10622
    %v11215 = vunpack.c.l.b16 %v10623
    %v11216 = vunpack.c.h.b16 %v10623
    %v11217 = vunpack.c.l.b16 %v10624
    %v11218 = vunpack.c.h.b16 %v10624
    %v11219 = vunpack.c.l.b16 %v10625
    %v11220 = vunpack.c.h.b16 %v10625
    %v11221 = vunpack.c.l.b16 %v10626
    %v11222 = vunpack.c.h.b16 %v10626
    %v11223 = vunpack.c.l.b16 %v10627
    %v11224 = vunpack.c.h.b16 %v10627
    %v11225 = vunpack.c.l.b16 %v10628
    %v11226 = vunpack.c.h.b16 %v10628
    %v11227 = vunpack.c.l.b16 %v10629
    %v11228 = vunpack.c.h.b16 %v10629
    %v11229 = vunpack.c.l.b16 %v10630
    %v11230 = vunpack.c.h.b16 %v10630
    %v11231 = vunpack.c.l.b16 %v10631
    %v11232 = vunpack.c.h.b16 %v10631
    %v11233 = vunpack.c.l.b16 %v10632
    %v11234 = vunpack.c.h.b16 %v10632
    %v11235 = vunpack.c.l.b16 %v10633
    %v11236 = vunpack.c.h.b16 %v10633
    %v11237 = vunpack.c.l.b16 %v10634
    %v11238 = vunpack.c.h.b16 %v10634
    %v11239 = vunpack.c.l.b16 %v10635
    %v11240 = vunpack.c.h.b16 %v10635
    %v11241 = vunpack.c.l.b16 %v10636
    %v11242 = vunpack.c.h.b16 %v10636
    %v11243 = vunpack.c.l.b16 %v10637
    %v11244 = vunpack.c.h.b16 %v10637
    %v11245 = vunpack.c.l.b16 %v10638
    %v11246 = vunpack.c.h.b16 %v10638
    %v11247 = vunpack.c.l.b16 %v10639
    %v11248 = vunpack.c.h.b16 %v10639
    %v11249 = vunpack.c.l.b16 %v10640
    %v11250 = vunpack.c.h.b16 %v10640
    %v11251 = vunpack.c.l.b16 %v10641
    %v11252 = vunpack.c.h.b16 %v10641
    %v11253 = vunpack.c.l.b16 %v10642
    %v11254 = vunpack.c.h.b16 %v10642
    %v11255 = vunpack.c.l.b16 %v10643
    %v11256 = vunpack.c.h.b16 %v10643
    %v11257 = vunpack.c.l.b16 %v10644
    %v11258 = vunpack.c.h.b16 %v10644
    %v11259 = vunpack.c.l.b16 %v10645
    %v11260 = vunpack.c.h.b16 %v10645
    %v11261 = vunpack.c.l.b16 %v10646
    %v11262 = vunpack.c.h.b16 %v10646
    %v11263 = vunpack.c.l.b16 %v10647
    %v11264 = vunpack.c.h.b16 %v10647
    %v11265 = vunpack.c.l.b16 %v10648
    %v11266 = vunpack.c.h.b16 %v10648
    %v11267 = vunpack.c.l.b16 %v10649
    %v11268 = vunpack.c.h.b16 %v10649
    %v11269 = vunpack.c.l.b16 %v10650
    %v11270 = vunpack.c.h.b16 %v10650
    %v11271 = vunpack.c.l.b16 %v10651
    %v11272 = vunpack.c.h.b16 %v10651
    %v11273 = vunpack.c.l.b16 %v10652
    %v11274 = vunpack.c.h.b16 %v10652
    %v11275 = vunpack.c.l.b16 %v10653
    %v11276 = vunpack.c.h.b16 %v10653
    %v11277 = vunpack.c.l.b16 %v10654
    %v11278 = vunpack.c.h.b16 %v10654
    %v11279 = vunpack.c.l.b16 %v10655
    %v11280 = vunpack.c.h.b16 %v10655
    %v11281 = vunpack.c.l.b16 %v10656
    %v11282 = vunpack.c.h.b16 %v10656
    %v11283 = vunpack.c.l.b16 %v10657
    %v11284 = vunpack.c.h.b16 %v10657
    %v11285 = vunpack.c.l.b16 %v10658
    %v11286 = vunpack.c.h.b16 %v10658
    %v11287 = vunpack.c.l.b16 %v10659
    %v11288 = vunpack.c.h.b16 %v10659
    %v11289 = vunpack.c.l.b16 %v10660
    %v11290 = vunpack.c.h.b16 %v10660
    %v11291 = vunpack.c.l.b16 %v10661
    %v11292 = vunpack.c.h.b16 %v10661
    %v11293 = vunpack.c.l.b16 %v10662
    %v11294 = vunpack.c.h.b16 %v10662
    %v11295 = vunpack.c.l.b16 %v10663
    %v11296 = vunpack.c.h.b16 %v10663
    %v11297 = vunpack.c.l.b16 %v10664
    %v11298 = vunpack.c.h.b16 %v10664
    %v11299 = vunpack.c.l.b16 %v10665
    %v11300 = vunpack.c.h.b16 %v10665
    %v11301 = vunpack.c.l.b16 %v10666
    %v11302 = vunpack.c.h.b16 %v10666
    %v11303 = vunpack.c.l.b16 %v10667
    %v11304 = vunpack.c.h.b16 %v10667
    %v11305 = vunpack.c.l.b16 %v10668
    %v11306 = vunpack.c.h.b16 %v10668
    %v11307 = vunpack.c.l.b16 %v10669
    %v11308 = vunpack.c.h.b16 %v10669
    %v11309 = vunpack.c.l.b16 %v10670
    %v11310 = vunpack.c.h.b16 %v10670
    %v11311 = vunpack.c.l.b16 %v10671
    %v11312 = vunpack.c.h.b16 %v10671
    %v11313 = vunpack.c.l.b16 %v10672
    %v11314 = vunpack.c.h.b16 %v10672
    %v11315 = vunpack.c.l.b16 %v10673
    %v11316 = vunpack.c.h.b16 %v10673
    %v11317 = vunpack.c.l.b16 %v10674
    %v11318 = vunpack.c.h.b16 %v10674
    %v11319 = vunpack.c.l.b16 %v10675
    %v11320 = vunpack.c.h.b16 %v10675
    %v11321 = vunpack.c.l.b16 %v10676
    %v11322 = vunpack.c.h.b16 %v10676
    %v11323 = vunpack.c.l.b16 %v10677
    %v11324 = vunpack.c.h.b16 %v10677
    %v11325 = vunpack.c.l.b16 %v10678
    %v11326 = vunpack.c.h.b16 %v10678
    %v11327 = vunpack.c.l.b16 %v10679
    %v11328 = vunpack.c.h.b16 %v10679
    %v11329 = vunpack.c.l.b16 %v10680
    %v11330 = vunpack.c.h.b16 %v10680
    %v11331 = vunpack.c.l.b16 %v10681
    %v11332 = vunpack.c.h.b16 %v10681
    %v11333 = vunpack.c.l.b16 %v10682
    %v11334 = vunpack.c.h.b16 %v10682
    %v11335 = vunpack.c.l.b16 %v10683
    %v11336 = vunpack.c.h.b16 %v10683
    %v11337 = vunpack.c.l.b16 %v10684
    %v11338 = vunpack.c.h.b16 %v10684
    %v11339 = vunpack.c.l.b16 %v10685
    %v11340 = vunpack.c.h.b16 %v10685
    %v11341 = vunpack.c.l.b16 %v10686
    %v11342 = vunpack.c.h.b16 %v10686
    %v11343 = vunpack.c.l.b16 %v10687
    %v11344 = vunpack.c.h.b16 %v10687
    %v11345 = vunpack.c.l.b16 %v10688
    %v11346 = vunpack.c.h.b16 %v10688
    %v11347 = vunpack.c.l.b16 %v10689
    %v11348 = vunpack.c.h.b16 %v10689
    %v11349 = vunpack.c.l.b16 %v10690
    %v11350 = vunpack.c.h.b16 %v10690
    %v11351 = vunpack.c.l.b16 %v10691
    %v11352 = vunpack.c.h.b16 %v10691
    %v11353 = vunpack.c.l.b16 %v10692
    %v11354 = vunpack.c.h.b16 %v10692
    %v11355 = vunpack.c.l.b16 %v10693
    %v11356 = vunpack.c.h.b16 %v10693
    %v11357 = vunpack.c.l.b16 %v10694
    %v11358 = vunpack.c.h.b16 %v10694
    %v11359 = vunpack.c.l.b16 %v10695
    %v11360 = vunpack.c.h.b16 %v10695
    %v11361 = vunpack.c.l.b16 %v10696
    %v11362 = vunpack.c.h.b16 %v10696
    %v11363 = vunpack.c.l.b16 %v10697
    %v11364 = vunpack.c.h.b16 %v10697
    %v11365 = vunpack.c.l.b16 %v10698
    %v11366 = vunpack.c.h.b16 %v10698
    %v11367 = vunpack.c.l.b16 %v10699
    %v11368 = vunpack.c.h.b16 %v10699
    %v11369 = vunpack.c.l.b16 %v10700
    %v11370 = vunpack.c.h.b16 %v10700
    %v11371 = vunpack.c.l.b16 %v10701
    %v11372 = vunpack.c.h.b16 %v10701
    %v11373 = vunpack.c.l.b16 %v10702
    %v11374 = vunpack.c.h.b16 %v10702
    %v11375 = vunpack.c.l.b16 %v10703
    %v11376 = vunpack.c.h.b16 %v10703
    %v11377 = vunpack.c.l.b16 %v10704
    %v11378 = vunpack.c.h.b16 %v10704
    %v11379 = vunpack.c.l.b16 %v10705
    %v11380 = vunpack.c.h.b16 %v10705
    %v11381 = vunpack.c.l.b16 %v10706
    %v11382 = vunpack.c.h.b16 %v10706
    %v11383 = vunpack.c.l.b16 %v10707
    %v11384 = vunpack.c.h.b16 %v10707
    %v11385 = vunpack.c.l.b16 %v10708
    %v11386 = vunpack.c.h.b16 %v10708
    %v11387 = vunpack.c.l.b16 %v10709
    %v11388 = vunpack.c.h.b16 %v10709
    %v11389 = vunpack.c.l.b16 %v10710
    %v11390 = vunpack.c.h.b16 %v10710
    %v11391 = vunpack.c.l.b16 %v10711
    %v11392 = vunpack.c.h.b16 %v10711
    %v11393 = vunpack.c.l.b16 %v10712
    %v11394 = vunpack.c.h.b16 %v10712
    %v11395 = vunpack.c.l.b16 %v10713
    %v11396 = vunpack.c.h.b16 %v10713
    %v11397 = vunpack.c.l.b16 %v10714
    %v11398 = vunpack.c.h.b16 %v10714
    %v11399 = vunpack.c.l.b16 %v10715
    %v11400 = vunpack.c.h.b16 %v10715
    %v11401 = vunpack.c.l.b16 %v10716
    %v11402 = vunpack.c.h.b16 %v10716
    %v11403 = vunpack.c.l.b16 %v10717
    %v11404 = vunpack.c.h.b16 %v10717
    %v11405 = vunpack.c.l.b16 %v10718
    %v11406 = vunpack.c.h.b16 %v10718
    %v11407 = vunpack.c.l.b16 %v10719
    %v11408 = vunpack.c.h.b16 %v10719
    %v11409 = vunpack.c.l.b16 %v10720
    %v11410 = vunpack.c.h.b16 %v10720
    %v11411 = vunpack.c.l.b16 %v10721
    %v11412 = vunpack.c.h.b16 %v10721
    %v11413 = vunpack.c.l.b16 %v10722
    %v11414 = vunpack.c.h.b16 %v10722
    %v11415 = vunpack.c.l.b16 %v10723
    %v11416 = vunpack.c.h.b16 %v10723
    %v11417 = vunpack.c.l.b16 %v10724
    %v11418 = vunpack.c.h.b16 %v10724
    %v11419 = vunpack.c.l.b16 %v10725
    %v11420 = vunpack.c.h.b16 %v10725
    %v11421 = vunpack.c.l.b16 %v10726
    %v11422 = vunpack.c.h.b16 %v10726
    %v11423 = vunpack.c.l.b16 %v10727
    %v11424 = vunpack.c.h.b16 %v10727
    %v11425 = vunpack.c.l.b16 %v10728
    %v11426 = vunpack.c.h.b16 %v10728
    %v11427 = vunpack.c.l.b16 %v10729
    %v11428 = vunpack.c.h.b16 %v10729
    %v11429 = vunpack.c.l.b16 %v10730
    %v11430 = vunpack.c.h.b16 %v10730
    %v11431 = vunpack.c.l.b16 %v10731
    %v11432 = vunpack.c.h.b16 %v10731
    %v11433 = vunpack.c.l.b16 %v10732
    %v11434 = vunpack.c.h.b16 %v10732
    %v11435 = vunpack.c.l.b16 %v10733
    %v11436 = vunpack.c.h.b16 %v10733
    %v11437 = vunpack.c.l.b16 %v10734
    %v11438 = vunpack.c.h.b16 %v10734
    %v11439 = vunpack.c.l.b16 %v10735
    %v11440 = vunpack.c.h.b16 %v10735
    %v11441 = vunpack.c.l.b16 %v10736
    %v11442 = vunpack.c.h.b16 %v10736
    %v11443 = vunpack.c.l.b16 %v10737
    %v11444 = vunpack.c.h.b16 %v10737
    %v11445 = vunpack.c.l.b16 %v10738
    %v11446 = vunpack.c.h.b16 %v10738
    %v11447 = vunpack.c.l.b16 %v10739
    %v11448 = vunpack.c.h.b16 %v10739
    %v11449 = vunpack.c.l.b16 %v10740
    %v11450 = vunpack.c.h.b16 %v10740
    %v11451 = vunpack.c.l.b16 %v10741
    %v11452 = vunpack.c.h.b16 %v10741
    %v11453 = vunpack.c.l.b16 %v10742
    %v11454 = vunpack.c.h.b16 %v10742
    %v11455 = vunpack.c.l.b16 %v10743
    %v11456 = vunpack.c.h.b16 %v10743
    %v11457 = vunpack.c.l.b16 %v10744
    %v11458 = vunpack.c.h.b16 %v10744
    %v11459 = vunpack.c.l.b16 %v10745
    %v11460 = vunpack.c.h.b16 %v10745
    %v11461 = vunpack.c.l.b16 %v10746
    %v11462 = vunpack.c.h.b16 %v10746
    %v11463 = vunpack.c.l.b16 %v10747
    %v11464 = vunpack.c.h.b16 %v10747
    %v11465 = vunpack.c.l.b16 %v10748
    %v11466 = vunpack.c.h.b16 %v10748
    %v11467 = vunpack.c.l.b16 %v10749
    %v11468 = vunpack.c.h.b16 %v10749
    %v11469 = vunpack.c.l.b16 %v10750
    %v11470 = vunpack.c.h.b16 %v10750
    %v11471 = vunpack.c.l.b16 %v10751
    %v11472 = vunpack.c.h.b16 %v10751
    %v11473 = vunpack.c.l.b16 %v10752
    %v11474 = vunpack.c.h.b16 %v10752
    %v11475 = vunpack.c.l.b16 %v10753
    %v11476 = vunpack.c.h.b16 %v10753
    %v11477 = vunpack.c.l.b16 %v10754
    %v11478 = vunpack.c.h.b16 %v10754
    %v11479 = vunpack.c.l.b16 %v10755
    %v11480 = vunpack.c.h.b16 %v10755
    %v11481 = vunpack.c.l.b16 %v10756
    %v11482 = vunpack.c.h.b16 %v10756
    %v11483 = vunpack.c.l.b16 %v10757
    %v11484 = vunpack.c.h.b16 %v10757
    %v11485 = vunpack.c.l.b16 %v10758
    %v11486 = vunpack.c.h.b16 %v10758
    %v11487 = vunpack.c.l.b16 %v10759
    %v11488 = vunpack.c.h.b16 %v10759
    %v11489 = vunpack.c.l.b16 %v10760
    %v11490 = vunpack.c.h.b16 %v10760
    %v11491 = vunpack.c.l.b16 %v10761
    %v11492 = vunpack.c.h.b16 %v10761
    %v11493 = vunpack.c.l.b16 %v10762
    %v11494 = vunpack.c.h.b16 %v10762
    %v11495 = vunpack.c.l.b16 %v10763
    %v11496 = vunpack.c.h.b16 %v10763
    %v11497 = vunpack.c.l.b16 %v10764
    %v11498 = vunpack.c.h.b16 %v10764
    %v11499 = vunpack.c.l.b16 %v10765
    %v11500 = vunpack.c.h.b16 %v10765
    %v11501 = vunpack.c.l.b16 %v10766
    %v11502 = vunpack.c.h.b16 %v10766
    %v11503 = vunpack.c.l.b16 %v10767
    %v11504 = vunpack.c.h.b16 %v10767
    %v11505 = vunpack.c.l.b16 %v10768
    %v11506 = vunpack.c.h.b16 %v10768
    %v11507 = vunpack.c.l.b16 %v10769
    %v11508 = vunpack.c.h.b16 %v10769
    %v11509 = vunpack.c.l.b16 %v10770
    %v11510 = vunpack.c.h.b16 %v10770
    %v11511 = vunpack.c.l.b16 %v10771
    %v11512 = vunpack.c.h.b16 %v10771
    %v11513 = vunpack.c.l.b16 %v10772
    %v11514 = vunpack.c.h.b16 %v10772
    %v11515 = vunpack.c.l.b16 %v10773
    %v11516 = vunpack.c.h.b16 %v10773
    %v11517 = vunpack.c.l.b16 %v10774
    %v11518 = vunpack.c.h.b16 %v10774
    %v11519 = vunpack.c.l.b16 %v10775
    %v11520 = vunpack.c.h.b16 %v10775
    %v11521 = vunpack.c.l.b16 %v10776
    %v11522 = vunpack.c.h.b16 %v10776
    %v11523 = vunpack.c.l.b16 %v10777
    %v11524 = vunpack.c.h.b16 %v10777
    %v11525 = vunpack.c.l.b16 %v10778
    %v11526 = vunpack.c.h.b16 %v10778
    %v11527 = vunpack.c.l.b16 %v10779
    %v11528 = vunpack.c.h.b16 %v10779
    %v11529 = vunpack.c.l.b16 %v10780
    %v11530 = vunpack.c.h.b16 %v10780
    %v11531 = vunpack.c.l.b16 %v10781
    %v11532 = vunpack.c.h.b16 %v10781
    %v11533 = vunpack.c.l.b16 %v10782
    %v11534 = vunpack.c.h.b16 %v10782
    %v11535 = vunpack.c.l.b16 %v10783
    %v11536 = vunpack.c.h.b16 %v10783
    %v11537 = vunpack.c.l.b16 %v10784
    %v11538 = vunpack.c.h.b16 %v10784
    %v11539 = vunpack.c.l.b16 %v10785
    %v11540 = vunpack.c.h.b16 %v10785
    %v11541 = vunpack.c.l.b16 %v10786
    %v11542 = vunpack.c.h.b16 %v10786
    %v11543 = vunpack.c.l.b16 %v10787
    %v11544 = vunpack.c.h.b16 %v10787
    %v11545 = vunpack.c.l.b16 %v10788
    %v11546 = vunpack.c.h.b16 %v10788
    %v11547 = vunpack.c.l.b16 %v10789
    %v11548 = vunpack.c.h.b16 %v10789
    %v11549 = vunpack.c.l.b16 %v10790
    %v11550 = vunpack.c.h.b16 %v10790
    %v11551 = vunpack.c.l.b16 %v10791
    %v11552 = vunpack.c.h.b16 %v10791
    %v11553 = vunpack.c.l.b16 %v10792
    %v11554 = vunpack.c.h.b16 %v10792
    %v11555 = vunpack.c.l.b16 %v10793
    %v11556 = vunpack.c.h.b16 %v10793
    %v11557 = vunpack.c.l.b16 %v10794
    %v11558 = vunpack.c.h.b16 %v10794
    %v11559 = vunpack.c.l.b16 %v10795
    %v11560 = vunpack.c.h.b16 %v10795
    %v11561 = vunpack.c.l.b16 %v10796
    %v11562 = vunpack.c.h.b16 %v10796
    %v11563 = vunpack.c.l.b16 %v10797
    %v11564 = vunpack.c.h.b16 %v10797
    %v11565 = vunpack.c.l.b16 %v10798
    %v11566 = vunpack.c.h.b16 %v10798
    %v11567 = vunpack.c.l.b16 %v10799
    %v11568 = vunpack.c.h.b16 %v10799
    %v11569 = vunpack.c.l.b16 %v10800
    %v11570 = vunpack.c.h.b16 %v10800
    %v11571 = vunpack.c.l.b16 %v10801
    %v11572 = vunpack.c.h.b16 %v10801
    %v11573 = vunpack.c.l.b16 %v10802
    %v11574 = vunpack.c.h.b16 %v10802
    %v11575 = vunpack.c.l.b16 %v10803
    %v11576 = vunpack.c.h.b16 %v10803
    %v11577 = vunpack.c.l.b16 %v10804
    %v11578 = vunpack.c.h.b16 %v10804
    %v11579 = vunpack.c.l.b16 %v10805
    %v11580 = vunpack.c.h.b16 %v10805
    %v11581 = vunpack.c.l.b16 %v10806
    %v11582 = vunpack.c.h.b16 %v10806
    %v11583 = vunpack.c.l.b16 %v10807
    %v11584 = vunpack.c.h.b16 %v10807
    %v11585 = vunpack.c.l.b16 %v10808
    %v11586 = vunpack.c.h.b16 %v10808
    %v11587 = vunpack.c.l.b16 %v10809
    %v11588 = vunpack.c.h.b16 %v10809
    %v11589 = vunpack.c.l.b16 %v10810
    %v11590 = vunpack.c.h.b16 %v10810
    %v11591 = vunpack.c.l.b16 %v10811
    %v11592 = vunpack.c.h.b16 %v10811
    %v11593 = vunpack.c.l.b16 %v10812
    %v11594 = vunpack.c.h.b16 %v10812
    %v11595 = vunpack.c.l.b16 %v10813
    %v11596 = vunpack.c.h.b16 %v10813
    %v11597 = vunpack.c.l.b16 %v10814
    %v11598 = vunpack.c.h.b16 %v10814
    %v11599 = vunpack.c.l.b16 %v10815
    %v11600 = vunpack.c.h.b16 %v10815
    %v11601 = vunpack.c.l.b16 %v10816
    %v11602 = vunpack.c.h.b16 %v10816
    %v11603 = vunpack.c.l.b16 %v10817
    %v11604 = vunpack.c.h.b16 %v10817
    %v11605 = vunpack.c.l.b16 %v10818
    %v11606 = vunpack.c.h.b16 %v10818
    %v11607 = vunpack.c.l.b16 %v10819
    %v11608 = vunpack.c.h.b16 %v10819
    %v11609 = vunpack.c.l.b16 %v10820
    %v11610 = vunpack.c.h.b16 %v10820
    %v11611 = vunpack.c.l.b16 %v10821
    %v11612 = vunpack.c.h.b16 %v10821
    %v11613 = vunpack.c.l.b16 %v10822
    %v11614 = vunpack.c.h.b16 %v10822
    %v11615 = vunpack.c.l.b16 %v10823
    %v11616 = vunpack.c.h.b16 %v10823
    %v11617 = vunpack.c.l.b16 %v10824
    %v11618 = vunpack.c.h.b16 %v10824
    %v11619 = vunpack.c.l.b16 %v10825
    %v11620 = vunpack.c.h.b16 %v10825
    %v11621 = vunpack.c.l.b16 %v10826
    %v11622 = vunpack.c.h.b16 %v10826
    %v11623 = vunpack.c.l.b16 %v10827
    %v11624 = vunpack.c.h.b16 %v10827
    %v11625 = vunpack.c.l.b16 %v10828
    %v11626 = vunpack.c.h.b16 %v10828
    %v11627 = vpack.c.b16 %v11119, %v11115
    %v11628 = vpack.c.b16 %v11120, %v11116
    %v11629 = vpack.c.b16 %v11121, %v11117
    %v11630 = vpack.c.b16 %v11122, %v11118
    %v11631 = vpack.c.b16 %v11127, %v11123
    %v11632 = vpack.c.b16 %v11128, %v11124
    %v11633 = vpack.c.b16 %v11129, %v11125
    %v11634 = vpack.c.b16 %v11130, %v11126
    %v11635 = vpack.c.b16 %v11135, %v11131
    %v11636 = vpack.c.b16 %v11136, %v11132
    %v11637 = vpack.c.b16 %v11137, %v11133
    %v11638 = vpack.c.b16 %v11138, %v11134
    %v11639 = vpack.c.b16 %v11143, %v11139
    %v11640 = vpack.c.b16 %v11144, %v11140
    %v11641 = vpack.c.b16 %v11145, %v11141
    %v11642 = vpack.c.b16 %v11146, %v11142
    %v11643 = vpack.c.b16 %v11151, %v11147
    %v11644 = vpack.c.b16 %v11152, %v11148
    %v11645 = vpack.c.b16 %v11153, %v11149
    %v11646 = vpack.c.b16 %v11154, %v11150
    %v11647 = vpack.c.b16 %v11159, %v11155
    %v11648 = vpack.c.b16 %v11160, %v11156
    %v11649 = vpack.c.b16 %v11161, %v11157
    %v11650 = vpack.c.b16 %v11162, %v11158
    %v11651 = vpack.c.b16 %v11167, %v11163
    %v11652 = vpack.c.b16 %v11168, %v11164
    %v11653 = vpack.c.b16 %v11169, %v11165
    %v11654 = vpack.c.b16 %v11170, %v11166
    %v11655 = vpack.c.b16 %v11175, %v11171
    %v11656 = vpack.c.b16 %v11176, %v11172
    %v11657 = vpack.c.b16 %v11177, %v11173
    %v11658 = vpack.c.b16 %v11178, %v11174
    %v11659 = vpack.c.b16 %v11183, %v11179
    %v11660 = vpack.c.b16 %v11184, %v11180
    %v11661 = vpack.c.b16 %v11185, %v11181
    %v11662 = vpack.c.b16 %v11186, %v11182
    %v11663 = vpack.c.b16 %v11191, %v11187
    %v11664 = vpack.c.b16 %v11192, %v11188
    %v11665 = vpack.c.b16 %v11193, %v11189
    %v11666 = vpack.c.b16 %v11194, %v11190
    %v11667 = vpack.c.b16 %v11199, %v11195
    %v11668 = vpack.c.b16 %v11200, %v11196
    %v11669 = vpack.c.b16 %v11201, %v11197
    %v11670 = vpack.c.b16 %v11202, %v11198
    %v11671 = vpack.c.b16 %v11207, %v11203
    %v11672 = vpack.c.b16 %v11208, %v11204
    %v11673 = vpack.c.b16 %v11209, %v11205
    %v11674 = vpack.c.b16 %v11210, %v11206
    %v11675 = vpack.c.b16 %v11215, %v11211
    %v11676 = vpack.c.b16 %v11216, %v11212
    %v11677 = vpack.c.b16 %v11217, %v11213
    %v11678 = vpack.c.b16 %v11218, %v11214
    %v11679 = vpack.c.b16 %v11223, %v11219
    %v11680 = vpack.c.b16 %v11224, %v11220
    %v11681 = vpack.c.b16 %v11225, %v11221
    %v11682 = vpack.c.b16 %v11226, %v11222
    %v11683 = vpack.c.b16 %v11231, %v11227
    %v11684 = vpack.c.b16 %v11232, %v11228
    %v11685 = vpack.c.b16 %v11233, %v11229
    %v11686 = vpack.c.b16 %v11234, %v11230
    %v11687 = vpack.c.b16 %v11239, %v11235
    %v11688 = vpack.c.b16 %v11240, %v11236
    %v11689 = vpack.c.b16 %v11241, %v11237
    %v11690 = vpack.c.b16 %v11242, %v11238
    %v11691 = vpack.c.b16 %v11247, %v11243
    %v11692 = vpack.c.b16 %v11248, %v11244
    %v11693 = vpack.c.b16 %v11249, %v11245
    %v11694 = vpack.c.b16 %v11250, %v11246
    %v11695 = vpack.c.b16 %v11255, %v11251
    %v11696 = vpack.c.b16 %v11256, %v11252
    %v11697 = vpack.c.b16 %v11257, %v11253
    %v11698 = vpack.c.b16 %v11258, %v11254
    %v11699 = vpack.c.b16 %v11263, %v11259
    %v11700 = vpack.c.b16 %v11264, %v11260
    %v11701 = vpack.c.b16 %v11265, %v11261
    %v11702 = vpack.c.b16 %v11266, %v11262
    %v11703 = vpack.c.b16 %v11271, %v11267
    %v11704 = vpack.c.b16 %v11272, %v11268
    %v11705 = vpack.c.b16 %v11273, %v11269
    %v11706 = vpack.c.b16 %v11274, %v11270
    %v11707 = vpack.c.b16 %v11279, %v11275
    %v11708 = vpack.c.b16 %v11280, %v11276
    %v11709 = vpack.c.b16 %v11281, %v11277
    %v11710 = vpack.c.b16 %v11282, %v11278
    %v11711 = vpack.c.b16 %v11287, %v11283
    %v11712 = vpack.c.b16 %v11288, %v11284
    %v11713 = vpack.c.b16 %v11289, %v11285
    %v11714 = vpack.c.b16 %v11290, %v11286
    %v11715 = vpack.c.b16 %v11295, %v11291
    %v11716 = vpack.c.b16 %v11296, %v11292
    %v11717 = vpack.c.b16 %v11297, %v11293
    %v11718 = vpack.c.b16 %v11298, %v11294
    %v11719 = vpack.c.b16 %v11303, %v11299
    %v11720 = vpack.c.b16 %v11304, %v11300
    %v11721 = vpack.c.b16 %v11305, %v11301
    %v11722 = vpack.c.b16 %v11306, %v11302
    %v11723 = vpack.c.b16 %v11311, %v11307
    %v11724 = vpack.c.b16 %v11312, %v11308
    %v11725 = vpack.c.b16 %v11313, %v11309
    %v11726 = vpack.c.b16 %v11314, %v11310
    %v11727 = vpack.c.b16 %v11319, %v11315
    %v11728 = vpack.c.b16 %v11320, %v11316
    %v11729 = vpack.c.b16 %v11321, %v11317
    %v11730 = vpack.c.b16 %v11322, %v11318
    %v11731 = vpack.c.b16 %v11327, %v11323
    %v11732 = vpack.c.b16 %v11328, %v11324
    %v11733 = vpack.c.b16 %v11329, %v11325
    %v11734 = vpack.c.b16 %v11330, %v11326
    %v11735 = vpack.c.b16 %v11335, %v11331
    %v11736 = vpack.c.b16 %v11336, %v11332
    %v11737 = vpack.c.b16 %v11337, %v11333
    %v11738 = vpack.c.b16 %v11338, %v11334
    %v11739 = vpack.c.b16 %v11343, %v11339
    %v11740 = vpack.c.b16 %v11344, %v11340
    %v11741 = vpack.c.b16 %v11345, %v11341
    %v11742 = vpack.c.b16 %v11346, %v11342
    %v11743 = vpack.c.b16 %v11351, %v11347
    %v11744 = vpack.c.b16 %v11352, %v11348
    %v11745 = vpack.c.b16 %v11353, %v11349
    %v11746 = vpack.c.b16 %v11354, %v11350
    %v11747 = vpack.c.b16 %v11359, %v11355
    %v11748 = vpack.c.b16 %v11360, %v11356
    %v11749 = vpack.c.b16 %v11361, %v11357
    %v11750 = vpack.c.b16 %v11362, %v11358
    %v11751 = vpack.c.b16 %v11367, %v11363
    %v11752 = vpack.c.b16 %v11368, %v11364
    %v11753 = vpack.c.b16 %v11369, %v11365
    %v11754 = vpack.c.b16 %v11370, %v11366
    %v11755 = vpack.c.b16 %v11375, %v11371
    %v11756 = vpack.c.b16 %v11376, %v11372
    %v11757 = vpack.c.b16 %v11377, %v11373
    %v11758 = vpack.c.b16 %v11378, %v11374
    %v11759 = vpack.c.b16 %v11383, %v11379
    %v11760 = vpack.c.b16 %v11384, %v11380
    %v11761 = vpack.c.b16 %v11385, %v11381
    %v11762 = vpack.c.b16 %v11386, %v11382
    %v11763 = vpack.c.b16 %v11391, %v11387
    %v11764 = vpack.c.b16 %v11392, %v11388
    %v11765 = vpack.c.b16 %v11393, %v11389
    %v11766 = vpack.c.b16 %v11394, %v11390
    %v11767 = vpack.c.b16 %v11399, %v11395
    %v11768 = vpack.c.b16 %v11400, %v11396
    %v11769 = vpack.c.b16 %v11401, %v11397
    %v11770 = vpack.c.b16 %v11402, %v11398
    %v11771 = vpack.c.b16 %v11407, %v11403
    %v11772 = vpack.c.b16 %v11408, %v11404
    %v11773 = vpack.c.b16 %v11409, %v11405
    %v11774 = vpack.c.b16 %v11410, %v11406
    %v11775 = vpack.c.b16 %v11415, %v11411
    %v11776 = vpack.c.b16 %v11416, %v11412
    %v11777 = vpack.c.b16 %v11417, %v11413
    %v11778 = vpack.c.b16 %v11418, %v11414
    %v11779 = vpack.c.b16 %v11423, %v11419
    %v11780 = vpack.c.b16 %v11424, %v11420
    %v11781 = vpack.c.b16 %v11425, %v11421
    %v11782 = vpack.c.b16 %v11426, %v11422
    %v11783 = vpack.c.b16 %v11431, %v11427
    %v11784 = vpack.c.b16 %v11432, %v11428
    %v11785 = vpack.c.b16 %v11433, %v11429
    %v11786 = vpack.c.b16 %v11434, %v11430
    %v11787 = vpack.c.b16 %v11439, %v11435
    %v11788 = vpack.c.b16 %v11440, %v11436
    %v11789 = vpack.c.b16 %v11441, %v11437
    %v11790 = vpack.c.b16 %v11442, %v11438
    %v11791 = vpack.c.b16 %v11447, %v11443
    %v11792 = vpack.c.b16 %v11448, %v11444
    %v11793 = vpack.c.b16 %v11449, %v11445
    %v11794 = vpack.c.b16 %v11450, %v11446
    %v11795 = vpack.c.b16 %v11455, %v11451
    %v11796 = vpack.c.b16 %v11456, %v11452
    %v11797 = vpack.c.b16 %v11457, %v11453
    %v11798 = vpack.c.b16 %v11458, %v11454
    %v11799 = vpack.c.b16 %v11463, %v11459
    %v11800 = vpack.c.b16 %v11464, %v11460
    %v11801 = vpack.c.b16 %v11465, %v11461
    %v11802 = vpack.c.b16 %v11466, %v11462
    %v11803 = vpack.c.b16 %v11471, %v11467
    %v11804 = vpack.c.b16 %v11472, %v11468
    %v11805 = vpack.c.b16 %v11473, %v11469
    %v11806 = vpack.c.b16 %v11474, %v11470
    %v11807 = vpack.c.b16 %v11479, %v11475
    %v11808 = vpack.c.b16 %v11480, %v11476
    %v11809 = vpack.c.b16 %v11481, %v11477
    %v11810 = vpack.c.b16 %v11482, %v11478
    %v11811 = vpack.c.b16 %v11487, %v11483
    %v11812 = vpack.c.b16 %v11488, %v11484
    %v11813 = vpack.c.b16 %v11489, %v11485
    %v11814 = vpack.c.b16 %v11490, %v11486
    %v11815 = vpack.c.b16 %v11495, %v11491
    %v11816 = vpack.c.b16 %v11496, %v11492
    %v11817 = vpack.c.b16 %v11497, %v11493
    %v11818 = vpack.c.b16 %v11498, %v11494
    %v11819 = vpack.c.b16 %v11503, %v11499
    %v11820 = vpack.c.b16 %v11504, %v11500
    %v11821 = vpack.c.b16 %v11505, %v11501
    %v11822 = vpack.c.b16 %v11506, %v11502
    %v11823 = vpack.c.b16 %v11511, %v11507
    %v11824 = vpack.c.b16 %v11512, %v11508
    %v11825 = vpack.c.b16 %v11513, %v11509
    %v11826 = vpack.c.b16 %v11514, %v11510
    %v11827 = vpack.c.b16 %v11519, %v11515
    %v11828 = vpack.c.b16 %v11520, %v11516
    %v11829 = vpack.c.b16 %v11521, %v11517
    %v11830 = vpack.c.b16 %v11522, %v11518
    %v11831 = vpack.c.b16 %v11527, %v11523
    %v11832 = vpack.c.b16 %v11528, %v11524
    %v11833 = vpack.c.b16 %v11529, %v11525
    %v11834 = vpack.c.b16 %v11530, %v11526
    %v11835 = vpack.c.b16 %v11535, %v11531
    %v11836 = vpack.c.b16 %v11536, %v11532
    %v11837 = vpack.c.b16 %v11537, %v11533
    %v11838 = vpack.c.b16 %v11538, %v11534
    %v11839 = vpack.c.b16 %v11543, %v11539
    %v11840 = vpack.c.b16 %v11544, %v11540
    %v11841 = vpack.c.b16 %v11545, %v11541
    %v11842 = vpack.c.b16 %v11546, %v11542
    %v11843 = vpack.c.b16 %v11551, %v11547
    %v11844 = vpack.c.b16 %v11552, %v11548
    %v11845 = vpack.c.b16 %v11553, %v11549
    %v11846 = vpack.c.b16 %v11554, %v11550
    %v11847 = vpack.c.b16 %v11559, %v11555
    %v11848 = vpack.c.b16 %v11560, %v11556
    %v11849 = vpack.c.b16 %v11561, %v11557
    %v11850 = vpack.c.b16 %v11562, %v11558
    %v11851 = vpack.c.b16 %v11567, %v11563
    %v11852 = vpack.c.b16 %v11568, %v11564
    %v11853 = vpack.c.b16 %v11569, %v11565
    %v11854 = vpack.c.b16 %v11570, %v11566
    %v11855 = vpack.c.b16 %v11575, %v11571
    %v11856 = vpack.c.b16 %v11576, %v11572
    %v11857 = vpack.c.b16 %v11577, %v11573
    %v11858 = vpack.c.b16 %v11578, %v11574
    %v11859 = vpack.c.b16 %v11583, %v11579
    %v11860 = vpack.c.b16 %v11584, %v11580
    %v11861 = vpack.c.b16 %v11585, %v11581
    %v11862 = vpack.c.b16 %v11586, %v11582
    %v11863 = vpack.c.b16 %v11591, %v11587
    %v11864 = vpack.c.b16 %v11592, %v11588
    %v11865 = vpack.c.b16 %v11593, %v11589
    %v11866 = vpack.c.b16 %v11594, %v11590
    %v11867 = vpack.c.b16 %v11599, %v11595
    %v11868 = vpack.c.b16 %v11600, %v11596
    %v11869 = vpack.c.b16 %v11601, %v11597
    %v11870 = vpack.c.b16 %v11602, %v11598
    %v11871 = vpack.c.b16 %v11607, %v11603
    %v11872 = vpack.c.b16 %v11608, %v11604
    %v11873 = vpack.c.b16 %v11609, %v11605
    %v11874 = vpack.c.b16 %v11610, %v11606
    %v11875 = vpack.c.b16 %v11615, %v11611
    %v11876 = vpack.c.b16 %v11616, %v11612
    %v11877 = vpack.c.b16 %v11617, %v11613
    %v11878 = vpack.c.b16 %v11618, %v11614
    %v11879 = vpack.c.b16 %v11623, %v11619
    %v11880 = vpack.c.b16 %v11624, %v11620
    %v11881 = vpack.c.b16 %v11625, %v11621
    %v11882 = vpack.c.b16 %v11626, %v11622
    %12139 = vmatprep.subr.bf16.mxu0 %v11628
    %12140 = vmatpush1.bf16.msra.mxu0 %v11627
    %12141 = vmatprep.subr.bf16.mxu0 %v11632
    %12142 = vmatpush1.bf16.msra.mxu0 %v11631
    %12143 = vmatprep.subr.bf16.mxu0 %v11636
    %12144 = vmatpush1.bf16.msra.mxu0 %v11635
    %12145 = vmatprep.subr.bf16.mxu0 %v11640
    %12146 = vmatpush1.bf16.msra.mxu0 %v11639
    %12147 = vmatprep.subr.bf16.mxu0 %v11644
    %12148 = vmatpush1.bf16.msra.mxu0 %v11643
    %12149 = vmatprep.subr.bf16.mxu0 %v11648
    %12150 = vmatpush1.bf16.msra.mxu0 %v11647
    %12151 = vmatprep.subr.bf16.mxu0 %v11652
    %12152 = vmatpush1.bf16.msra.mxu0 %v11651
    %12153 = vmatprep.subr.bf16.mxu0 %v11656
    %12154 = vmatpush1.bf16.msra.mxu0 %v11655
    %12155 = vmatprep.subr.bf16.mxu0 %v11660
    %12156 = vmatpush1.bf16.msra.mxu0 %v11659
    %12157 = vmatprep.subr.bf16.mxu0 %v11664
    %12158 = vmatpush1.bf16.msra.mxu0 %v11663
    %12159 = vmatprep.subr.bf16.mxu0 %v11668
    %12160 = vmatpush1.bf16.msra.mxu0 %v11667
    %12161 = vmatprep.subr.bf16.mxu0 %v11672
    %12162 = vmatpush1.bf16.msra.mxu0 %v11671
    %12163 = vmatprep.subr.bf16.mxu0 %v11676
    %12164 = vmatpush1.bf16.msra.mxu0 %v11675
    %12165 = vmatprep.subr.bf16.mxu0 %v11680
    %12166 = vmatpush1.bf16.msra.mxu0 %v11679
    %12167 = vmatprep.subr.bf16.mxu0 %v11684
    %12168 = vmatpush1.bf16.msra.mxu0 %v11683
    %12169 = vmatprep.subr.bf16.mxu0 %v11688
    %12170 = vmatpush1.bf16.msra.mxu0 %v11687
    %12171 = vmatprep.mubr.bf16.mxu0 %v10831
    %12172 = vmatmul.mubr.bf16.gmra.mrb[0].mxu0 %v10830
    %v12173 = vpop.f32.mrb[0].mxu0
    %v12174 = vadd.f32 %v10842, %v12173
    %v12175 = vpop.f32.mrb[0].mxu0
    %v12176 = vadd.f32 %v10846, %v12175
    %v12177 = vpop.f32.mrb[0].mxu0
    %v12178 = vpop.f32.mrb[0].mxu0
    %12179 = vdwg.mxu0
    %12180 = vmatprep.subr.bf16.mxu0 %v11692
    %12181 = vmatpush1.bf16.msra.mxu0 %v11691
    %12182 = vmatprep.subr.bf16.mxu0 %v11696
    %12183 = vmatpush1.bf16.msra.mxu0 %v11695
    %12184 = vmatprep.subr.bf16.mxu0 %v11700
    %12185 = vmatpush1.bf16.msra.mxu0 %v11699
    %12186 = vmatprep.subr.bf16.mxu0 %v11704
    %12187 = vmatpush1.bf16.msra.mxu0 %v11703
    %12188 = vmatprep.subr.bf16.mxu0 %v11708
    %12189 = vmatpush1.bf16.msra.mxu0 %v11707
    %12190 = vmatprep.subr.bf16.mxu0 %v11712
    %12191 = vmatpush1.bf16.msra.mxu0 %v11711
    %12192 = vmatprep.subr.bf16.mxu0 %v11716
    %12193 = vmatpush1.bf16.msra.mxu0 %v11715
    %12194 = vmatprep.subr.bf16.mxu0 %v11720
    %12195 = vmatpush1.bf16.msra.mxu0 %v11719
    %12196 = vmatprep.subr.bf16.mxu0 %v11724
    %12197 = vmatpush1.bf16.msra.mxu0 %v11723
    %12198 = vmatprep.subr.bf16.mxu0 %v11728
    %12199 = vmatpush1.bf16.msra.mxu0 %v11727
    %12200 = vmatprep.subr.bf16.mxu0 %v11732
    %12201 = vmatpush1.bf16.msra.mxu0 %v11731
    %12202 = vmatprep.subr.bf16.mxu0 %v11736
    %12203 = vmatpush1.bf16.msra.mxu0 %v11735
    %12204 = vmatprep.subr.bf16.mxu0 %v11740
    %12205 = vmatpush1.bf16.msra.mxu0 %v11739
    %12206 = vmatprep.subr.bf16.mxu0 %v11744
    %12207 = vmatpush1.bf16.msra.mxu0 %v11743
    %12208 = vmatprep.subr.bf16.mxu0 %v11748
    %12209 = vmatpush1.bf16.msra.mxu0 %v11747
    %12210 = vmatprep.subr.bf16.mxu0 %v11752
    %12211 = vmatpush1.bf16.msra.mxu0 %v11751
    %12212 = vmatprep.mubr.bf16.mxu0 %v10833
    %12213 = vmatmul.mubr.bf16.gmra.mrb[0].mxu0 %v10832
    %v12214 = vpop.f32.mrb[0].mxu0
    %v12215 = vadd.f32 %v12174, %v12214
    %v12216 = vpop.f32.mrb[0].mxu0
    %v12217 = vadd.f32 %v12176, %v12216
    %v12218 = vpop.f32.mrb[0].mxu0
    %v12219 = vpop.f32.mrb[0].mxu0
    %12220 = vdwg.mxu0
    %12221 = vmatprep.subr.bf16.mxu0 %v11756
    %12222 = vmatpush1.bf16.msra.mxu0 %v11755
    %12223 = vmatprep.subr.bf16.mxu0 %v11760
    %12224 = vmatpush1.bf16.msra.mxu0 %v11759
    %12225 = vmatprep.subr.bf16.mxu0 %v11764
    %12226 = vmatpush1.bf16.msra.mxu0 %v11763
    %12227 = vmatprep.subr.bf16.mxu0 %v11768
    %12228 = vmatpush1.bf16.msra.mxu0 %v11767
    %12229 = vmatprep.subr.bf16.mxu0 %v11772
    %12230 = vmatpush1.bf16.msra.mxu0 %v11771
    %12231 = vmatprep.subr.bf16.mxu0 %v11776
    %12232 = vmatpush1.bf16.msra.mxu0 %v11775
    %12233 = vmatprep.subr.bf16.mxu0 %v11780
    %12234 = vmatpush1.bf16.msra.mxu0 %v11779
    %12235 = vmatprep.subr.bf16.mxu0 %v11784
    %12236 = vmatpush1.bf16.msra.mxu0 %v11783
    %12237 = vmatprep.subr.bf16.mxu0 %v11788
    %12238 = vmatpush1.bf16.msra.mxu0 %v11787
    %12239 = vmatprep.subr.bf16.mxu0 %v11792
    %12240 = vmatpush1.bf16.msra.mxu0 %v11791
    %12241 = vmatprep.subr.bf16.mxu0 %v11796
    %12242 = vmatpush1.bf16.msra.mxu0 %v11795
    %12243 = vmatprep.subr.bf16.mxu0 %v11800
    %12244 = vmatpush1.bf16.msra.mxu0 %v11799
    %12245 = vmatprep.subr.bf16.mxu0 %v11804
    %12246 = vmatpush1.bf16.msra.mxu0 %v11803
    %12247 = vmatprep.subr.bf16.mxu0 %v11808
    %12248 = vmatpush1.bf16.msra.mxu0 %v11807
    %12249 = vmatprep.subr.bf16.mxu0 %v11812
    %12250 = vmatpush1.bf16.msra.mxu0 %v11811
    %12251 = vmatprep.subr.bf16.mxu0 %v11816
    %12252 = vmatpush1.bf16.msra.mxu0 %v11815
    %12253 = vmatprep.mubr.bf16.mxu0 %v10835
    %12254 = vmatmul.mubr.bf16.gmra.mrb[0].mxu0 %v10834
    %v12255 = vpop.f32.mrb[0].mxu0
    %v12256 = vadd.f32 %v12215, %v12255
    %v12257 = vpop.f32.mrb[0].mxu0
    %v12258 = vadd.f32 %v12217, %v12257
    %v12259 = vpop.f32.mrb[0].mxu0
    %v12260 = vpop.f32.mrb[0].mxu0
    %12261 = vdwg.mxu0
    %12262 = vmatprep.subr.bf16.mxu0 %v11820
    %12263 = vmatpush1.bf16.msra.mxu0 %v11819
    %12264 = vmatprep.subr.bf16.mxu0 %v11824
    %12265 = vmatpush1.bf16.msra.mxu0 %v11823
    %12266 = vmatprep.subr.bf16.mxu0 %v11828
    %12267 = vmatpush1.bf16.msra.mxu0 %v11827
    %12268 = vmatprep.subr.bf16.mxu0 %v11832
    %12269 = vmatpush1.bf16.msra.mxu0 %v11831
    %12270 = vmatprep.subr.bf16.mxu0 %v11836
    %12271 = vmatpush1.bf16.msra.mxu0 %v11835
    %12272 = vmatprep.subr.bf16.mxu0 %v11840
    %12273 = vmatpush1.bf16.msra.mxu0 %v11839
    %12274 = vmatprep.subr.bf16.mxu0 %v11844
    %12275 = vmatpush1.bf16.msra.mxu0 %v11843
    %12276 = vmatprep.subr.bf16.mxu0 %v11848
    %12277 = vmatpush1.bf16.msra.mxu0 %v11847
    %12278 = vmatprep.subr.bf16.mxu0 %v11852
    %12279 = vmatpush1.bf16.msra.mxu0 %v11851
    %12280 = vmatprep.subr.bf16.mxu0 %v11856
    %12281 = vmatpush1.bf16.msra.mxu0 %v11855
    %12282 = vmatprep.subr.bf16.mxu0 %v11860
    %12283 = vmatpush1.bf16.msra.mxu0 %v11859
    %12284 = vmatprep.subr.bf16.mxu0 %v11864
    %12285 = vmatpush1.bf16.msra.mxu0 %v11863
    %12286 = vmatprep.subr.bf16.mxu0 %v11868
    %12287 = vmatpush1.bf16.msra.mxu0 %v11867
    %12288 = vmatprep.subr.bf16.mxu0 %v11872
    %12289 = vmatpush1.bf16.msra.mxu0 %v11871
    %12290 = vmatprep.subr.bf16.mxu0 %v11876
    %12291 = vmatpush1.bf16.msra.mxu0 %v11875
    %12292 = vmatprep.subr.bf16.mxu0 %v11880
    %12293 = vmatpush1.bf16.msra.mxu0 %v11879
    %12294 = vmatprep.mubr.bf16.mxu0 %v10837
    %12295 = vmatmul.mubr.bf16.gmra.mrb[0].mxu0 %v10836
    %v12296 = vpop.f32.mrb[0].mxu0
    %v12297 = vadd.f32 %v12256, %v12296
    %v12298 = vpop.f32.mrb[0].mxu0
    %v12299 = vadd.f32 %v12258, %v12298
    %v12300 = vpop.f32.mrb[0].mxu0
    %v12301 = vpop.f32.mrb[0].mxu0
    %12302 = vdwg.mxu0
    %12303 = vmatprep.subr.bf16.mxu0 %v11630
    %12304 = vmatpush1.bf16.msra.mxu0 %v11629
    %12305 = vmatprep.subr.bf16.mxu0 %v11634
    %12306 = vmatpush1.bf16.msra.mxu0 %v11633
    %12307 = vmatprep.subr.bf16.mxu0 %v11638
    %12308 = vmatpush1.bf16.msra.mxu0 %v11637
    %12309 = vmatprep.subr.bf16.mxu0 %v11642
    %12310 = vmatpush1.bf16.msra.mxu0 %v11641
    %12311 = vmatprep.subr.bf16.mxu0 %v11646
    %12312 = vmatpush1.bf16.msra.mxu0 %v11645
    %12313 = vmatprep.subr.bf16.mxu0 %v11650
    %12314 = vmatpush1.bf16.msra.mxu0 %v11649
    %12315 = vmatprep.subr.bf16.mxu0 %v11654
    %12316 = vmatpush1.bf16.msra.mxu0 %v11653
    %12317 = vmatprep.subr.bf16.mxu0 %v11658
    %12318 = vmatpush1.bf16.msra.mxu0 %v11657
    %12319 = vmatprep.subr.bf16.mxu0 %v11662
    %12320 = vmatpush1.bf16.msra.mxu0 %v11661
    %12321 = vmatprep.subr.bf16.mxu0 %v11666
    %12322 = vmatpush1.bf16.msra.mxu0 %v11665
    %12323 = vmatprep.subr.bf16.mxu0 %v11670
    %12324 = vmatpush1.bf16.msra.mxu0 %v11669
    %12325 = vmatprep.subr.bf16.mxu0 %v11674
    %12326 = vmatpush1.bf16.msra.mxu0 %v11673
    %12327 = vmatprep.subr.bf16.mxu0 %v11678
    %12328 = vmatpush1.bf16.msra.mxu0 %v11677
    %12329 = vmatprep.subr.bf16.mxu0 %v11682
    %12330 = vmatpush1.bf16.msra.mxu0 %v11681
    %12331 = vmatprep.subr.bf16.mxu0 %v11686
    %12332 = vmatpush1.bf16.msra.mxu0 %v11685
    %12333 = vmatprep.subr.bf16.mxu0 %v11690
    %12334 = vmatpush1.bf16.msra.mxu0 %v11689
    %12335 = vmatprep.mubr.bf16.mxu0 %v10831
    %12336 = vmatmul.mubr.bf16.gmra.mrb[0].mxu0 %v10830
    %v12337 = vpop.f32.mrb[0].mxu0
    %v12338 = vadd.f32 %v10850, %v12337
    %v12339 = vpop.f32.mrb[0].mxu0
    %v12340 = vadd.f32 %v10854, %v12339
    %v12341 = vpop.f32.mrb[0].mxu0
    %v12342 = vpop.f32.mrb[0].mxu0
    %12343 = vdwg.mxu0
    %12344 = vmatprep.subr.bf16.mxu0 %v11694
    %12345 = vmatpush1.bf16.msra.mxu0 %v11693
    %12346 = vmatprep.subr.bf16.mxu0 %v11698
    %12347 = vmatpush1.bf16.msra.mxu0 %v11697
    %12348 = vmatprep.subr.bf16.mxu0 %v11702
    %12349 = vmatpush1.bf16.msra.mxu0 %v11701
    %12350 = vmatprep.subr.bf16.mxu0 %v11706
    %12351 = vmatpush1.bf16.msra.mxu0 %v11705
    %12352 = vmatprep.subr.bf16.mxu0 %v11710
    %12353 = vmatpush1.bf16.msra.mxu0 %v11709
    %12354 = vmatprep.subr.bf16.mxu0 %v11714
    %12355 = vmatpush1.bf16.msra.mxu0 %v11713
    %12356 = vmatprep.subr.bf16.mxu0 %v11718
    %12357 = vmatpush1.bf16.msra.mxu0 %v11717
    %12358 = vmatprep.subr.bf16.mxu0 %v11722
    %12359 = vmatpush1.bf16.msra.mxu0 %v11721
    %12360 = vmatprep.subr.bf16.mxu0 %v11726
    %12361 = vmatpush1.bf16.msra.mxu0 %v11725
    %12362 = vmatprep.subr.bf16.mxu0 %v11730
    %12363 = vmatpush1.bf16.msra.mxu0 %v11729
    %12364 = vmatprep.subr.bf16.mxu0 %v11734
    %12365 = vmatpush1.bf16.msra.mxu0 %v11733
    %12366 = vmatprep.subr.bf16.mxu0 %v11738
    %12367 = vmatpush1.bf16.msra.mxu0 %v11737
    %12368 = vmatprep.subr.bf16.mxu0 %v11742
    %12369 = vmatpush1.bf16.msra.mxu0 %v11741
    %12370 = vmatprep.subr.bf16.mxu0 %v11746
    %12371 = vmatpush1.bf16.msra.mxu0 %v11745
    %12372 = vmatprep.subr.bf16.mxu0 %v11750
    %12373 = vmatpush1.bf16.msra.mxu0 %v11749
    %12374 = vmatprep.subr.bf16.mxu0 %v11754
    %12375 = vmatpush1.bf16.msra.mxu0 %v11753
    %12376 = vmatprep.mubr.bf16.mxu0 %v10833
    %12377 = vmatmul.mubr.bf16.gmra.mrb[0].mxu0 %v10832
    %v12378 = vpop.f32.mrb[0].mxu0
    %v12379 = vadd.f32 %v12338, %v12378
    %v12380 = vpop.f32.mrb[0].mxu0
    %v12381 = vadd.f32 %v12340, %v12380
    %v12382 = vpop.f32.mrb[0].mxu0
    %v12383 = vpop.f32.mrb[0].mxu0
    %12384 = vdwg.mxu0
    %12385 = vmatprep.subr.bf16.mxu0 %v11758
    %12386 = vmatpush1.bf16.msra.mxu0 %v11757
    %12387 = vmatprep.subr.bf16.mxu0 %v11762
    %12388 = vmatpush1.bf16.msra.mxu0 %v11761
    %12389 = vmatprep.subr.bf16.mxu0 %v11766
    %12390 = vmatpush1.bf16.msra.mxu0 %v11765
    %12391 = vmatprep.subr.bf16.mxu0 %v11770
    %12392 = vmatpush1.bf16.msra.mxu0 %v11769
    %12393 = vmatprep.subr.bf16.mxu0 %v11774
    %12394 = vmatpush1.bf16.msra.mxu0 %v11773
    %12395 = vmatprep.subr.bf16.mxu0 %v11778
    %12396 = vmatpush1.bf16.msra.mxu0 %v11777
    %12397 = vmatprep.subr.bf16.mxu0 %v11782
    %12398 = vmatpush1.bf16.msra.mxu0 %v11781
    %12399 = vmatprep.subr.bf16.mxu0 %v11786
    %12400 = vmatpush1.bf16.msra.mxu0 %v11785
    %12401 = vmatprep.subr.bf16.mxu0 %v11790
    %12402 = vmatpush1.bf16.msra.mxu0 %v11789
    %12403 = vmatprep.subr.bf16.mxu0 %v11794
    %12404 = vmatpush1.bf16.msra.mxu0 %v11793
    %12405 = vmatprep.subr.bf16.mxu0 %v11798
    %12406 = vmatpush1.bf16.msra.mxu0 %v11797
    %12407 = vmatprep.subr.bf16.mxu0 %v11802
    %12408 = vmatpush1.bf16.msra.mxu0 %v11801
    %12409 = vmatprep.subr.bf16.mxu0 %v11806
    %12410 = vmatpush1.bf16.msra.mxu0 %v11805
    %12411 = vmatprep.subr.bf16.mxu0 %v11810
    %12412 = vmatpush1.bf16.msra.mxu0 %v11809
    %12413 = vmatprep.subr.bf16.mxu0 %v11814
    %12414 = vmatpush1.bf16.msra.mxu0 %v11813
    %12415 = vmatprep.subr.bf16.mxu0 %v11818
    %12416 = vmatpush1.bf16.msra.mxu0 %v11817
    %12417 = vmatprep.mubr.bf16.mxu0 %v10835
    %12418 = vmatmul.mubr.bf16.gmra.mrb[0].mxu0 %v10834
    %v12419 = vpop.f32.mrb[0].mxu0
    %v12420 = vadd.f32 %v12379, %v12419
    %v12421 = vpop.f32.mrb[0].mxu0
    %v12422 = vadd.f32 %v12381, %v12421
    %v12423 = vpop.f32.mrb[0].mxu0
    %v12424 = vpop.f32.mrb[0].mxu0
    %12425 = vdwg.mxu0
    %12426 = vmatprep.subr.bf16.mxu0 %v11822
    %12427 = vmatpush1.bf16.msra.mxu0 %v11821
    %12428 = vmatprep.subr.bf16.mxu0 %v11826
    %12429 = vmatpush1.bf16.msra.mxu0 %v11825
    %12430 = vmatprep.subr.bf16.mxu0 %v11830
    %12431 = vmatpush1.bf16.msra.mxu0 %v11829
    %12432 = vmatprep.subr.bf16.mxu0 %v11834
    %12433 = vmatpush1.bf16.msra.mxu0 %v11833
    %12434 = vmatprep.subr.bf16.mxu0 %v11838
    %12435 = vmatpush1.bf16.msra.mxu0 %v11837
    %12436 = vmatprep.subr.bf16.mxu0 %v11842
    %12437 = vmatpush1.bf16.msra.mxu0 %v11841
    %12438 = vmatprep.subr.bf16.mxu0 %v11846
    %12439 = vmatpush1.bf16.msra.mxu0 %v11845
    %12440 = vmatprep.subr.bf16.mxu0 %v11850
    %12441 = vmatpush1.bf16.msra.mxu0 %v11849
    %12442 = vmatprep.subr.bf16.mxu0 %v11854
    %12443 = vmatpush1.bf16.msra.mxu0 %v11853
    %12444 = vmatprep.subr.bf16.mxu0 %v11858
    %12445 = vmatpush1.bf16.msra.mxu0 %v11857
    %12446 = vmatprep.subr.bf16.mxu0 %v11862
    %12447 = vmatpush1.bf16.msra.mxu0 %v11861
    %12448 = vmatprep.subr.bf16.mxu0 %v11866
    %12449 = vmatpush1.bf16.msra.mxu0 %v11865
    %12450 = vmatprep.subr.bf16.mxu0 %v11870
    %12451 = vmatpush1.bf16.msra.mxu0 %v11869
    %12452 = vmatprep.subr.bf16.mxu0 %v11874
    %12453 = vmatpush1.bf16.msra.mxu0 %v11873
    %12454 = vmatprep.subr.bf16.mxu0 %v11878
    %12455 = vmatpush1.bf16.msra.mxu0 %v11877
    %12456 = vmatprep.subr.bf16.mxu0 %v11882
    %12457 = vmatpush1.bf16.msra.mxu0 %v11881
    %12458 = vmatprep.mubr.bf16.mxu0 %v10837
    %12459 = vmatmul.mubr.bf16.gmra.mrb[0].mxu0 %v10836
    %v12460 = vpop.f32.mrb[0].mxu0
    %v12461 = vadd.f32 %v12420, %v12460
    %v12462 = vpop.f32.mrb[0].mxu0
    %v12463 = vadd.f32 %v12422, %v12462
    %v12464 = vpop.f32.mrb[0].mxu0
    %v12465 = vpop.f32.mrb[0].mxu0
    %12466 = vdwg.mxu0
    %v12467 = vmax.f32 %v12297, 0.0
    %v12468 = vmax.f32 %v12299, 0.0
    %v12469 = vmax.f32 %v12461, 0.0
    %v12470 = vmax.f32 %v12463, 0.0
    %v12471 = vld [vmem:[#allocation9] sm:$0xff]
    %v12472 = vld [vmem:[#allocation9 + $0x8] sm:$0xff]
    %v12473 = vld [vmem:[#allocation9 + $0x10] sm:$0xff]
    %v12474 = vld [vmem:[#allocation9 + $0x18] sm:$0xff]
    %v12475 = vld [vmem:[#allocation9 + $0x20] sm:$0xff]
    %v12476 = vld [vmem:[#allocation9 + $0x28] sm:$0xff]
    %v12477 = vld [vmem:[#allocation9 + $0x30] sm:$0xff]
    %v12478 = vld [vmem:[#allocation9 + $0x38] sm:$0xff]
    %v12479 = vld [vmem:[#allocation9 + $0x40] sm:$0xff]
    %v12480 = vld [vmem:[#allocation9 + $0x48] sm:$0xff]
    %v12481 = vld [vmem:[#allocation9 + $0x50] sm:$0xff]
    %v12482 = vld [vmem:[#allocation9 + $0x58] sm:$0xff]
    %v12483 = vld [vmem:[#allocation9 + $0x60] sm:$0xff]
    %v12484 = vld [vmem:[#allocation9 + $0x68] sm:$0xff]
    %v12485 = vld [vmem:[#allocation9 + $0x70] sm:$0xff]
    %v12486 = vld [vmem:[#allocation9 + $0x78] sm:$0xff]
    %v12487 = vld [vmem:[#allocation9 + $0x80] sm:$0xff]
    %v12488 = vld [vmem:[#allocation9 + $0x88] sm:$0xff]
    %v12489 = vld [vmem:[#allocation9 + $0x90] sm:$0xff]
    %v12490 = vld [vmem:[#allocation9 + $0x98] sm:$0xff]
    %v12491 = vld [vmem:[#allocation9 + $0xa0] sm:$0xff]
    %v12492 = vld [vmem:[#allocation9 + $0xa8] sm:$0xff]
    %v12493 = vld [vmem:[#allocation9 + $0xb0] sm:$0xff]
    %v12494 = vld [vmem:[#allocation9 + $0xb8] sm:$0xff]
    %v12495 = vld [vmem:[#allocation9 + $0xc0] sm:$0xff]
    %v12496 = vld [vmem:[#allocation9 + $0xc8] sm:$0xff]
    %v12497 = vld [vmem:[#allocation9 + $0xd0] sm:$0xff]
    %v12498 = vld [vmem:[#allocation9 + $0xd8] sm:$0xff]
    %v12499 = vld [vmem:[#allocation9 + $0xe0] sm:$0xff]
    %v12500 = vld [vmem:[#allocation9 + $0xe8] sm:$0xff]
    %v12501 = vld [vmem:[#allocation9 + $0xf0] sm:$0xff]
    %v12502 = vld [vmem:[#allocation9 + $0xf8] sm:$0xff]
    %v12503 = vld [vmem:[#allocation9 + $0x100] sm:$0xff]
    %v12504 = vld [vmem:[#allocation9 + $0x108] sm:$0xff]
    %v12505 = vld [vmem:[#allocation9 + $0x110] sm:$0xff]
    %v12506 = vld [vmem:[#allocation9 + $0x118] sm:$0xff]
    %v12507 = vld [vmem:[#allocation9 + $0x120] sm:$0xff]
    %v12508 = vld [vmem:[#allocation9 + $0x128] sm:$0xff]
    %v12509 = vld [vmem:[#allocation9 + $0x130] sm:$0xff]
    %v12510 = vld [vmem:[#allocation9 + $0x138] sm:$0xff]
    %v12511 = vld [vmem:[#allocation9 + $0x140] sm:$0xff]
    %v12512 = vld [vmem:[#allocation9 + $0x148] sm:$0xff]
    %v12513 = vld [vmem:[#allocation9 + $0x150] sm:$0xff]
    %v12514 = vld [vmem:[#allocation9 + $0x158] sm:$0xff]
    %v12515 = vld [vmem:[#allocation9 + $0x160] sm:$0xff]
    %v12516 = vld [vmem:[#allocation9 + $0x168] sm:$0xff]
    %v12517 = vld [vmem:[#allocation9 + $0x170] sm:$0xff]
    %v12518 = vld [vmem:[#allocation9 + $0x178] sm:$0xff]
    %v12519 = vld [vmem:[#allocation9 + $0x180] sm:$0xff]
    %v12520 = vld [vmem:[#allocation9 + $0x188] sm:$0xff]
    %v12521 = vld [vmem:[#allocation9 + $0x190] sm:$0xff]
    %v12522 = vld [vmem:[#allocation9 + $0x198] sm:$0xff]
    %v12523 = vld [vmem:[#allocation9 + $0x1a0] sm:$0xff]
    %v12524 = vld [vmem:[#allocation9 + $0x1a8] sm:$0xff]
    %v12525 = vld [vmem:[#allocation9 + $0x1b0] sm:$0xff]
    %v12526 = vld [vmem:[#allocation9 + $0x1b8] sm:$0xff]
    %v12527 = vld [vmem:[#allocation9 + $0x1c0] sm:$0xff]
    %v12528 = vld [vmem:[#allocation9 + $0x1c8] sm:$0xff]
    %v12529 = vld [vmem:[#allocation9 + $0x1d0] sm:$0xff]
    %v12530 = vld [vmem:[#allocation9 + $0x1d8] sm:$0xff]
    %v12531 = vld [vmem:[#allocation9 + $0x1e0] sm:$0xff]
    %v12532 = vld [vmem:[#allocation9 + $0x1e8] sm:$0xff]
    %v12533 = vld [vmem:[#allocation9 + $0x1f0] sm:$0xff]
    %v12534 = vld [vmem:[#allocation9 + $0x1f8] sm:$0xff]
    %v12535 = vld [vmem:[#allocation10] sm:$0x3]
    %v12536 = vpack.c.bf16 %v12467, %v12467
    %v12537 = vpack.c.bf16 %v12468, %v12468
    %v12538 = vpack.c.bf16 %v12469, %v12469
    %v12539 = vpack.c.bf16 %v12470, %v12470
    %v12541 = vlaneseq
    %v12542 = vshrl.u32 %v12541, 7
    %v12543 = vsub.s32 0, %v12542
    %v12544 = vrot.slane %v12535, %v12543
    %v12545 = vlaneseq
    %v12546 = vshrl.u32 %v12545, 7
    %v12547 = vsub.s32 1, %v12546
    %v12548 = vrot.slane %v12535, %v12547
    %v12615 = vunpack.c.l.b16 %v12471
    %v12616 = vunpack.c.h.b16 %v12471
    %v12617 = vunpack.c.l.b16 %v12472
    %v12618 = vunpack.c.h.b16 %v12472
    %v12619 = vunpack.c.l.b16 %v12473
    %v12620 = vunpack.c.h.b16 %v12473
    %v12621 = vunpack.c.l.b16 %v12474
    %v12622 = vunpack.c.h.b16 %v12474
    %v12623 = vunpack.c.l.b16 %v12475
    %v12624 = vunpack.c.h.b16 %v12475
    %v12625 = vunpack.c.l.b16 %v12476
    %v12626 = vunpack.c.h.b16 %v12476
    %v12627 = vunpack.c.l.b16 %v12477
    %v12628 = vunpack.c.h.b16 %v12477
    %v12629 = vunpack.c.l.b16 %v12478
    %v12630 = vunpack.c.h.b16 %v12478
    %v12631 = vunpack.c.l.b16 %v12479
    %v12632 = vunpack.c.h.b16 %v12479
    %v12633 = vunpack.c.l.b16 %v12480
    %v12634 = vunpack.c.h.b16 %v12480
    %v12635 = vunpack.c.l.b16 %v12481
    %v12636 = vunpack.c.h.b16 %v12481
    %v12637 = vunpack.c.l.b16 %v12482
    %v12638 = vunpack.c.h.b16 %v12482
    %v12639 = vunpack.c.l.b16 %v12483
    %v12640 = vunpack.c.h.b16 %v12483
    %v12641 = vunpack.c.l.b16 %v12484
    %v12642 = vunpack.c.h.b16 %v12484
    %v12643 = vunpack.c.l.b16 %v12485
    %v12644 = vunpack.c.h.b16 %v12485
    %v12645 = vunpack.c.l.b16 %v12486
    %v12646 = vunpack.c.h.b16 %v12486
    %v12647 = vunpack.c.l.b16 %v12487
    %v12648 = vunpack.c.h.b16 %v12487
    %v12649 = vunpack.c.l.b16 %v12488
    %v12650 = vunpack.c.h.b16 %v12488
    %v12651 = vunpack.c.l.b16 %v12489
    %v12652 = vunpack.c.h.b16 %v12489
    %v12653 = vunpack.c.l.b16 %v12490
    %v12654 = vunpack.c.h.b16 %v12490
    %v12655 = vunpack.c.l.b16 %v12491
    %v12656 = vunpack.c.h.b16 %v12491
    %v12657 = vunpack.c.l.b16 %v12492
    %v12658 = vunpack.c.h.b16 %v12492
    %v12659 = vunpack.c.l.b16 %v12493
    %v12660 = vunpack.c.h.b16 %v12493
    %v12661 = vunpack.c.l.b16 %v12494
    %v12662 = vunpack.c.h.b16 %v12494
    %v12663 = vunpack.c.l.b16 %v12495
    %v12664 = vunpack.c.h.b16 %v12495
    %v12665 = vunpack.c.l.b16 %v12496
    %v12666 = vunpack.c.h.b16 %v12496
    %v12667 = vunpack.c.l.b16 %v12497
    %v12668 = vunpack.c.h.b16 %v12497
    %v12669 = vunpack.c.l.b16 %v12498
    %v12670 = vunpack.c.h.b16 %v12498
    %v12671 = vunpack.c.l.b16 %v12499
    %v12672 = vunpack.c.h.b16 %v12499
    %v12673 = vunpack.c.l.b16 %v12500
    %v12674 = vunpack.c.h.b16 %v12500
    %v12675 = vunpack.c.l.b16 %v12501
    %v12676 = vunpack.c.h.b16 %v12501
    %v12677 = vunpack.c.l.b16 %v12502
    %v12678 = vunpack.c.h.b16 %v12502
    %v12679 = vunpack.c.l.b16 %v12503
    %v12680 = vunpack.c.h.b16 %v12503
    %v12681 = vunpack.c.l.b16 %v12504
    %v12682 = vunpack.c.h.b16 %v12504
    %v12683 = vunpack.c.l.b16 %v12505
    %v12684 = vunpack.c.h.b16 %v12505
    %v12685 = vunpack.c.l.b16 %v12506
    %v12686 = vunpack.c.h.b16 %v12506
    %v12687 = vunpack.c.l.b16 %v12507
    %v12688 = vunpack.c.h.b16 %v12507
    %v12689 = vunpack.c.l.b16 %v12508
    %v12690 = vunpack.c.h.b16 %v12508
    %v12691 = vunpack.c.l.b16 %v12509
    %v12692 = vunpack.c.h.b16 %v12509
    %v12693 = vunpack.c.l.b16 %v12510
    %v12694 = vunpack.c.h.b16 %v12510
    %v12695 = vunpack.c.l.b16 %v12511
    %v12696 = vunpack.c.h.b16 %v12511
    %v12697 = vunpack.c.l.b16 %v12512
    %v12698 = vunpack.c.h.b16 %v12512
    %v12699 = vunpack.c.l.b16 %v12513
    %v12700 = vunpack.c.h.b16 %v12513
    %v12701 = vunpack.c.l.b16 %v12514
    %v12702 = vunpack.c.h.b16 %v12514
    %v12703 = vunpack.c.l.b16 %v12515
    %v12704 = vunpack.c.h.b16 %v12515
    %v12705 = vunpack.c.l.b16 %v12516
    %v12706 = vunpack.c.h.b16 %v12516
    %v12707 = vunpack.c.l.b16 %v12517
    %v12708 = vunpack.c.h.b16 %v12517
    %v12709 = vunpack.c.l.b16 %v12518
    %v12710 = vunpack.c.h.b16 %v12518
    %v12711 = vunpack.c.l.b16 %v12519
    %v12712 = vunpack.c.h.b16 %v12519
    %v12713 = vunpack.c.l.b16 %v12520
    %v12714 = vunpack.c.h.b16 %v12520
    %v12715 = vunpack.c.l.b16 %v12521
    %v12716 = vunpack.c.h.b16 %v12521
    %v12717 = vunpack.c.l.b16 %v12522
    %v12718 = vunpack.c.h.b16 %v12522
    %v12719 = vunpack.c.l.b16 %v12523
    %v12720 = vunpack.c.h.b16 %v12523
    %v12721 = vunpack.c.l.b16 %v12524
    %v12722 = vunpack.c.h.b16 %v12524
    %v12723 = vunpack.c.l.b16 %v12525
    %v12724 = vunpack.c.h.b16 %v12525
    %v12725 = vunpack.c.l.b16 %v12526
    %v12726 = vunpack.c.h.b16 %v12526
    %v12727 = vunpack.c.l.b16 %v12527
    %v12728 = vunpack.c.h.b16 %v12527
    %v12729 = vunpack.c.l.b16 %v12528
    %v12730 = vunpack.c.h.b16 %v12528
    %v12731 = vunpack.c.l.b16 %v12529
    %v12732 = vunpack.c.h.b16 %v12529
    %v12733 = vunpack.c.l.b16 %v12530
    %v12734 = vunpack.c.h.b16 %v12530
    %v12735 = vunpack.c.l.b16 %v12531
    %v12736 = vunpack.c.h.b16 %v12531
    %v12737 = vunpack.c.l.b16 %v12532
    %v12738 = vunpack.c.h.b16 %v12532
    %v12739 = vunpack.c.l.b16 %v12533
    %v12740 = vunpack.c.h.b16 %v12533
    %v12741 = vunpack.c.l.b16 %v12534
    %v12742 = vunpack.c.h.b16 %v12534
    %v12743 = vpack.c.b16 %v12617, %v12615
    %v12744 = vpack.c.b16 %v12618, %v12616
    %v12745 = vpack.c.b16 %v12621, %v12619
    %v12746 = vpack.c.b16 %v12622, %v12620
    %v12747 = vpack.c.b16 %v12625, %v12623
    %v12748 = vpack.c.b16 %v12626, %v12624
    %v12749 = vpack.c.b16 %v12629, %v12627
    %v12750 = vpack.c.b16 %v12630, %v12628
    %v12751 = vpack.c.b16 %v12633, %v12631
    %v12752 = vpack.c.b16 %v12634, %v12632
    %v12753 = vpack.c.b16 %v12637, %v12635
    %v12754 = vpack.c.b16 %v12638, %v12636
    %v12755 = vpack.c.b16 %v12641, %v12639
    %v12756 = vpack.c.b16 %v12642, %v12640
    %v12757 = vpack.c.b16 %v12645, %v12643
    %v12758 = vpack.c.b16 %v12646, %v12644
    %v12759 = vpack.c.b16 %v12649, %v12647
    %v12760 = vpack.c.b16 %v12650, %v12648
    %v12761 = vpack.c.b16 %v12653, %v12651
    %v12762 = vpack.c.b16 %v12654, %v12652
    %v12763 = vpack.c.b16 %v12657, %v12655
    %v12764 = vpack.c.b16 %v12658, %v12656
    %v12765 = vpack.c.b16 %v12661, %v12659
    %v12766 = vpack.c.b16 %v12662, %v12660
    %v12767 = vpack.c.b16 %v12665, %v12663
    %v12768 = vpack.c.b16 %v12666, %v12664
    %v12769 = vpack.c.b16 %v12669, %v12667
    %v12770 = vpack.c.b16 %v12670, %v12668
    %v12771 = vpack.c.b16 %v12673, %v12671
    %v12772 = vpack.c.b16 %v12674, %v12672
    %v12773 = vpack.c.b16 %v12677, %v12675
    %v12774 = vpack.c.b16 %v12678, %v12676
    %v12775 = vpack.c.b16 %v12681, %v12679
    %v12776 = vpack.c.b16 %v12682, %v12680
    %v12777 = vpack.c.b16 %v12685, %v12683
    %v12778 = vpack.c.b16 %v12686, %v12684
    %v12779 = vpack.c.b16 %v12689, %v12687
    %v12780 = vpack.c.b16 %v12690, %v12688
    %v12781 = vpack.c.b16 %v12693, %v12691
    %v12782 = vpack.c.b16 %v12694, %v12692
    %v12783 = vpack.c.b16 %v12697, %v12695
    %v12784 = vpack.c.b16 %v12698, %v12696
    %v12785 = vpack.c.b16 %v12701, %v12699
    %v12786 = vpack.c.b16 %v12702, %v12700
    %v12787 = vpack.c.b16 %v12705, %v12703
    %v12788 = vpack.c.b16 %v12706, %v12704
    %v12789 = vpack.c.b16 %v12709, %v12707
    %v12790 = vpack.c.b16 %v12710, %v12708
    %v12791 = vpack.c.b16 %v12713, %v12711
    %v12792 = vpack.c.b16 %v12714, %v12712
    %v12793 = vpack.c.b16 %v12717, %v12715
    %v12794 = vpack.c.b16 %v12718, %v12716
    %v12795 = vpack.c.b16 %v12721, %v12719
    %v12796 = vpack.c.b16 %v12722, %v12720
    %v12797 = vpack.c.b16 %v12725, %v12723
    %v12798 = vpack.c.b16 %v12726, %v12724
    %v12799 = vpack.c.b16 %v12729, %v12727
    %v12800 = vpack.c.b16 %v12730, %v12728
    %v12801 = vpack.c.b16 %v12733, %v12731
    %v12802 = vpack.c.b16 %v12734, %v12732
    %v12803 = vpack.c.b16 %v12737, %v12735
    %v12804 = vpack.c.b16 %v12738, %v12736
    %v12805 = vpack.c.b16 %v12741, %v12739
    %v12806 = vpack.c.b16 %v12742, %v12740
    %12871 = vmatprep.subr.bf16.mxu0 %v12744
    %12872 = vmatpush1.bf16.msra.mxu0 %v12743
    %12873 = vmatprep.subr.bf16.mxu0 %v12746
    %12874 = vmatpush1.bf16.msra.mxu0 %v12745
    %12875 = vmatprep.subr.bf16.mxu0 %v12748
    %12876 = vmatpush1.bf16.msra.mxu0 %v12747
    %12877 = vmatprep.subr.bf16.mxu0 %v12750
    %12878 = vmatpush1.bf16.msra.mxu0 %v12749
    %12879 = vmatprep.subr.bf16.mxu0 %v12752
    %12880 = vmatpush1.bf16.msra.mxu0 %v12751
    %12881 = vmatprep.subr.bf16.mxu0 %v12754
    %12882 = vmatpush1.bf16.msra.mxu0 %v12753
    %12883 = vmatprep.subr.bf16.mxu0 %v12756
    %12884 = vmatpush1.bf16.msra.mxu0 %v12755
    %12885 = vmatprep.subr.bf16.mxu0 %v12758
    %12886 = vmatpush1.bf16.msra.mxu0 %v12757
    %12887 = vmatprep.subr.bf16.mxu0 %v12760
    %12888 = vmatpush1.bf16.msra.mxu0 %v12759
    %12889 = vmatprep.subr.bf16.mxu0 %v12762
    %12890 = vmatpush1.bf16.msra.mxu0 %v12761
    %12891 = vmatprep.subr.bf16.mxu0 %v12764
    %12892 = vmatpush1.bf16.msra.mxu0 %v12763
    %12893 = vmatprep.subr.bf16.mxu0 %v12766
    %12894 = vmatpush1.bf16.msra.mxu0 %v12765
    %12895 = vmatprep.subr.bf16.mxu0 %v12768
    %12896 = vmatpush1.bf16.msra.mxu0 %v12767
    %12897 = vmatprep.subr.bf16.mxu0 %v12770
    %12898 = vmatpush1.bf16.msra.mxu0 %v12769
    %12899 = vmatprep.subr.bf16.mxu0 %v12772
    %12900 = vmatpush1.bf16.msra.mxu0 %v12771
    %12901 = vmatprep.subr.bf16.mxu0 %v12774
    %12902 = vmatpush1.bf16.msra.mxu0 %v12773
    %12903 = vmatprep.mubr.bf16.mxu0 %v12537
    %12904 = vmatmul.mubr.bf16.gmra.mrb[0].mxu0 %v12536
    %v12905 = vpop.f32.mrb[0].mxu0
    %v12906 = vadd.f32 %v12544, %v12905
    %v12907 = vpop.f32.mrb[0].mxu0
    %v12908 = vadd.f32 %v12548, %v12907
    %v12909 = vpop.f32.mrb[0].mxu0
    %v12910 = vpop.f32.mrb[0].mxu0
    %12911 = vdwg.mxu0
    %12912 = vmatprep.subr.bf16.mxu0 %v12776
    %12913 = vmatpush1.bf16.msra.mxu0 %v12775
    %12914 = vmatprep.subr.bf16.mxu0 %v12778
    %12915 = vmatpush1.bf16.msra.mxu0 %v12777
    %12916 = vmatprep.subr.bf16.mxu0 %v12780
    %12917 = vmatpush1.bf16.msra.mxu0 %v12779
    %12918 = vmatprep.subr.bf16.mxu0 %v12782
    %12919 = vmatpush1.bf16.msra.mxu0 %v12781
    %12920 = vmatprep.subr.bf16.mxu0 %v12784
    %12921 = vmatpush1.bf16.msra.mxu0 %v12783
    %12922 = vmatprep.subr.bf16.mxu0 %v12786
    %12923 = vmatpush1.bf16.msra.mxu0 %v12785
    %12924 = vmatprep.subr.bf16.mxu0 %v12788
    %12925 = vmatpush1.bf16.msra.mxu0 %v12787
    %12926 = vmatprep.subr.bf16.mxu0 %v12790
    %12927 = vmatpush1.bf16.msra.mxu0 %v12789
    %12928 = vmatprep.subr.bf16.mxu0 %v12792
    %12929 = vmatpush1.bf16.msra.mxu0 %v12791
    %12930 = vmatprep.subr.bf16.mxu0 %v12794
    %12931 = vmatpush1.bf16.msra.mxu0 %v12793
    %12932 = vmatprep.subr.bf16.mxu0 %v12796
    %12933 = vmatpush1.bf16.msra.mxu0 %v12795
    %12934 = vmatprep.subr.bf16.mxu0 %v12798
    %12935 = vmatpush1.bf16.msra.mxu0 %v12797
    %12936 = vmatprep.subr.bf16.mxu0 %v12800
    %12937 = vmatpush1.bf16.msra.mxu0 %v12799
    %12938 = vmatprep.subr.bf16.mxu0 %v12802
    %12939 = vmatpush1.bf16.msra.mxu0 %v12801
    %12940 = vmatprep.subr.bf16.mxu0 %v12804
    %12941 = vmatpush1.bf16.msra.mxu0 %v12803
    %12942 = vmatprep.subr.bf16.mxu0 %v12806
    %12943 = vmatpush1.bf16.msra.mxu0 %v12805
    %12944 = vmatprep.mubr.bf16.mxu0 %v12539
    %12945 = vmatmul.mubr.bf16.gmra.mrb[0].mxu0 %v12538
    %v12946 = vpop.f32.mrb[0].mxu0
    %v12947 = vadd.f32 %v12906, %v12946
    %v12948 = vpop.f32.mrb[0].mxu0
    %v12949 = vadd.f32 %v12908, %v12948
    %v12950 = vpop.f32.mrb[0].mxu0
    %v12951 = vpop.f32.mrb[0].mxu0
    %12952 = vdwg.mxu0
    %v12953 = vmax.f32 %v12947, 0.0
    %v12954 = vmax.f32 %v12949, 0.0
    %v12955 = vld [vmem:[#allocation12] sm:$0xf]
    %v12956 = vld [vmem:[#allocation12 + $0x4] sm:$0xf]
    %v12957 = vld [vmem:[#allocation12 + $0x8] sm:$0xf]
    %v12958 = vld [vmem:[#allocation12 + $0xc] sm:$0xf]
    %v12959 = vld [vmem:[#allocation12 + $0x10] sm:$0xf]
    %v12960 = vld [vmem:[#allocation12 + $0x14] sm:$0xf]
    %v12961 = vld [vmem:[#allocation12 + $0x18] sm:$0xf]
    %v12962 = vld [vmem:[#allocation12 + $0x1c] sm:$0xf]
    %v12963 = vld [vmem:[#allocation12 + $0x20] sm:$0xf]
    %v12964 = vld [vmem:[#allocation12 + $0x24] sm:$0xf]
    %v12965 = vld [vmem:[#allocation12 + $0x28] sm:$0xf]
    %v12966 = vld [vmem:[#allocation12 + $0x2c] sm:$0xf]
    %v12967 = vld [vmem:[#allocation12 + $0x30] sm:$0xf]
    %v12968 = vld [vmem:[#allocation12 + $0x34] sm:$0xf]
    %v12969 = vld [vmem:[#allocation12 + $0x38] sm:$0xf]
    %v12970 = vld [vmem:[#allocation12 + $0x3c] sm:$0xf]
    %v12971 = vld [vmem:[#allocation12 + $0x40] sm:$0xf]
    %v12972 = vld [vmem:[#allocation12 + $0x44] sm:$0xf]
    %v12973 = vld [vmem:[#allocation12 + $0x48] sm:$0xf]
    %v12974 = vld [vmem:[#allocation12 + $0x4c] sm:$0xf]
    %v12975 = vld [vmem:[#allocation12 + $0x50] sm:$0xf]
    %v12976 = vld [vmem:[#allocation12 + $0x54] sm:$0xf]
    %v12977 = vld [vmem:[#allocation12 + $0x58] sm:$0xf]
    %v12978 = vld [vmem:[#allocation12 + $0x5c] sm:$0xf]
    %v12979 = vld [vmem:[#allocation12 + $0x60] sm:$0xf]
    %v12980 = vld [vmem:[#allocation12 + $0x64] sm:$0xf]
    %v12981 = vld [vmem:[#allocation12 + $0x68] sm:$0xf]
    %v12982 = vld [vmem:[#allocation12 + $0x6c] sm:$0xf]
    %v12983 = vld [vmem:[#allocation12 + $0x70] sm:$0xf]
    %v12984 = vld [vmem:[#allocation12 + $0x74] sm:$0xf]
    %v12985 = vld [vmem:[#allocation12 + $0x78] sm:$0xf]
    %v12986 = vld [vmem:[#allocation12 + $0x7c] sm:$0xf]
    %v12987 = vld [vmem:[#allocation13] sm:$0x1]
    %v12988 = vpack.c.bf16 %v12953, %v12953
    %v12989 = vpack.c.bf16 %v12954, %v12954
    %v12991 = vlaneseq
    %v12992 = vshrl.u32 %v12991, 7
    %v12993 = vsub.s32 0, %v12992
    %v12994 = vrot.slane %v12987, %v12993
    %v13028 = vunpack.c.l.b16 %v12955
    %v13029 = vunpack.c.l.b16 %v12956
    %v13030 = vunpack.c.l.b16 %v12957
    %v13031 = vunpack.c.l.b16 %v12958
    %v13032 = vunpack.c.l.b16 %v12959
    %v13033 = vunpack.c.l.b16 %v12960
    %v13034 = vunpack.c.l.b16 %v12961
    %v13035 = vunpack.c.l.b16 %v12962
    %v13036 = vunpack.c.l.b16 %v12963
    %v13037 = vunpack.c.l.b16 %v12964
    %v13038 = vunpack.c.l.b16 %v12965
    %v13039 = vunpack.c.l.b16 %v12966
    %v13040 = vunpack.c.l.b16 %v12967
    %v13041 = vunpack.c.l.b16 %v12968
    %v13042 = vunpack.c.l.b16 %v12969
    %v13043 = vunpack.c.l.b16 %v12970
    %v13044 = vunpack.c.l.b16 %v12971
    %v13045 = vunpack.c.l.b16 %v12972
    %v13046 = vunpack.c.l.b16 %v12973
    %v13047 = vunpack.c.l.b16 %v12974
    %v13048 = vunpack.c.l.b16 %v12975
    %v13049 = vunpack.c.l.b16 %v12976
    %v13050 = vunpack.c.l.b16 %v12977
    %v13051 = vunpack.c.l.b16 %v12978
    %v13052 = vunpack.c.l.b16 %v12979
    %v13053 = vunpack.c.l.b16 %v12980
    %v13054 = vunpack.c.l.b16 %v12981
    %v13055 = vunpack.c.l.b16 %v12982
    %v13056 = vunpack.c.l.b16 %v12983
    %v13057 = vunpack.c.l.b16 %v12984
    %v13058 = vunpack.c.l.b16 %v12985
    %v13059 = vunpack.c.l.b16 %v12986
    %v13060 = vpack.c.b16 %v13029, %v13028
    %v13061 = vpack.c.b16 %v13031, %v13030
    %v13062 = vpack.c.b16 %v13033, %v13032
    %v13063 = vpack.c.b16 %v13035, %v13034
    %v13064 = vpack.c.b16 %v13037, %v13036
    %v13065 = vpack.c.b16 %v13039, %v13038
    %v13066 = vpack.c.b16 %v13041, %v13040
    %v13067 = vpack.c.b16 %v13043, %v13042
    %v13068 = vpack.c.b16 %v13045, %v13044
    %v13069 = vpack.c.b16 %v13047, %v13046
    %v13070 = vpack.c.b16 %v13049, %v13048
    %v13071 = vpack.c.b16 %v13051, %v13050
    %v13072 = vpack.c.b16 %v13053, %v13052
    %v13073 = vpack.c.b16 %v13055, %v13054
    %v13074 = vpack.c.b16 %v13057, %v13056
    %v13075 = vpack.c.b16 %v13059, %v13058
    %13092 = vmatprep.subr.bf16.mxu0 0
    %13093 = vmatpush1.bf16.msra.mxu0 %v13060
    %13094 = vmatprep.subr.bf16.mxu0 0
    %13095 = vmatpush1.bf16.msra.mxu0 %v13061
    %13096 = vmatprep.subr.bf16.mxu0 0
    %13097 = vmatpush1.bf16.msra.mxu0 %v13062
    %13098 = vmatprep.subr.bf16.mxu0 0
    %13099 = vmatpush1.bf16.msra.mxu0 %v13063
    %13100 = vmatprep.subr.bf16.mxu0 0
    %13101 = vmatpush1.bf16.msra.mxu0 %v13064
    %13102 = vmatprep.subr.bf16.mxu0 0
    %13103 = vmatpush1.bf16.msra.mxu0 %v13065
    %13104 = vmatprep.subr.bf16.mxu0 0
    %13105 = vmatpush1.bf16.msra.mxu0 %v13066
    %13106 = vmatprep.subr.bf16.mxu0 0
    %13107 = vmatpush1.bf16.msra.mxu0 %v13067
    %13108 = vmatprep.subr.bf16.mxu0 0
    %13109 = vmatpush1.bf16.msra.mxu0 %v13068
    %13110 = vmatprep.subr.bf16.mxu0 0
    %13111 = vmatpush1.bf16.msra.mxu0 %v13069
    %13112 = vmatprep.subr.bf16.mxu0 0
    %13113 = vmatpush1.bf16.msra.mxu0 %v13070
    %13114 = vmatprep.subr.bf16.mxu0 0
    %13115 = vmatpush1.bf16.msra.mxu0 %v13071
    %13116 = vmatprep.subr.bf16.mxu0 0
    %13117 = vmatpush1.bf16.msra.mxu0 %v13072
    %13118 = vmatprep.subr.bf16.mxu0 0
    %13119 = vmatpush1.bf16.msra.mxu0 %v13073
    %13120 = vmatprep.subr.bf16.mxu0 0
    %13121 = vmatpush1.bf16.msra.mxu0 %v13074
    %13122 = vmatprep.subr.bf16.mxu0 0
    %13123 = vmatpush1.bf16.msra.mxu0 %v13075
    %13124 = vmatprep.mubr.bf16.mxu0 %v12989
    %13125 = vmatmul.mubr.bf16.gmra.mrb[0].mxu0 %v12988
    %v13126 = vpop.f32.mrb[0].mxu0
    %v13127 = vadd.f32 %v12994, %v13126
    %v13128 = vpop.f32.mrb[0].mxu0
    %v13129 = vpop.f32.mrb[0].mxu0
    %v13130 = vpop.f32.mrb[0].mxu0
    %13131 = vdwg.mxu0
    %v13132 = vmax.f32 %v13127, 0.0
    %v13133 = vld [vmem:[#allocation15] sm:$0xf]
    %v13134 = vld [vmem:[#allocation15 + $0x4] sm:$0xf]
    %v13135 = vld [vmem:[#allocation15 + $0x8] sm:$0xf]
    %v13136 = vld [vmem:[#allocation15 + $0xc] sm:$0xf]
    %v13137 = vld [vmem:[#allocation15 + $0x10] sm:$0xf]
    %v13138 = vld [vmem:[#allocation15 + $0x14] sm:$0xf]
    %v13139 = vld [vmem:[#allocation15 + $0x18] sm:$0xf]
    %v13140 = vld [vmem:[#allocation15 + $0x1c] sm:$0xf]
    %v13141 = vld [vmem:[#allocation15 + $0x20] sm:$0xf]
    %v13142 = vld [vmem:[#allocation15 + $0x24] sm:$0xf]
    %v13143 = vld [vmem:[#allocation15 + $0x28] sm:$0xf]
    %v13144 = vld [vmem:[#allocation15 + $0x2c] sm:$0xf]
    %v13145 = vld [vmem:[#allocation15 + $0x30] sm:$0xf]
    %v13146 = vld [vmem:[#allocation15 + $0x34] sm:$0xf]
    %v13147 = vld [vmem:[#allocation15 + $0x38] sm:$0xf]
    %v13148 = vld [vmem:[#allocation15 + $0x3c] sm:$0xf]
    %v13149 = vld [vmem:[#allocation16] sm:$0x1]
    %v13150 = vpack.c.bf16 %v13132, %v13132
    %v13152 = vlaneseq
    %v13153 = vshrl.u32 %v13152, 7
    %v13154 = vsub.s32 0, %v13153
    %v13155 = vrot.slane %v13149, %v13154
    %v13173 = vunpack.c.l.b16 %v13133
    %v13174 = vunpack.c.l.b16 %v13134
    %v13175 = vunpack.c.l.b16 %v13135
    %v13176 = vunpack.c.l.b16 %v13136
    %v13177 = vunpack.c.l.b16 %v13137
    %v13178 = vunpack.c.l.b16 %v13138
    %v13179 = vunpack.c.l.b16 %v13139
    %v13180 = vunpack.c.l.b16 %v13140
    %v13181 = vunpack.c.l.b16 %v13141
    %v13182 = vunpack.c.l.b16 %v13142
    %v13183 = vunpack.c.l.b16 %v13143
    %v13184 = vunpack.c.l.b16 %v13144
    %v13185 = vunpack.c.l.b16 %v13145
    %v13186 = vunpack.c.l.b16 %v13146
    %v13187 = vunpack.c.l.b16 %v13147
    %v13188 = vunpack.c.l.b16 %v13148
    %v13189 = vpack.c.b16 %v13174, %v13173
    %v13190 = vpack.c.b16 %v13176, %v13175
    %v13191 = vpack.c.b16 %v13178, %v13177
    %v13192 = vpack.c.b16 %v13180, %v13179
    %v13193 = vpack.c.b16 %v13182, %v13181
    %v13194 = vpack.c.b16 %v13184, %v13183
    %v13195 = vpack.c.b16 %v13186, %v13185
    %v13196 = vpack.c.b16 %v13188, %v13187
    %13205 = vmatprep.subr.bf16.mxu0 0
    %13206 = vmatpush1.bf16.msra.mxu0 %v13189
    %13207 = vmatprep.subr.bf16.mxu0 0
    %13208 = vmatpush1.bf16.msra.mxu0 %v13190
    %13209 = vmatprep.subr.bf16.mxu0 0
    %13210 = vmatpush1.bf16.msra.mxu0 %v13191
    %13211 = vmatprep.subr.bf16.mxu0 0
    %13212 = vmatpush1.bf16.msra.mxu0 %v13192
    %13213 = vmatprep.subr.bf16.mxu0 0
    %13214 = vmatpush1.bf16.msra.mxu0 %v13193
    %13215 = vmatprep.subr.bf16.mxu0 0
    %13216 = vmatpush1.bf16.msra.mxu0 %v13194
    %13217 = vmatprep.subr.bf16.mxu0 0
    %13218 = vmatpush1.bf16.msra.mxu0 %v13195
    %13219 = vmatprep.subr.bf16.mxu0 0
    %13220 = vmatpush1.bf16.msra.mxu0 %v13196
    %13221 = vmatprep.subr.bf16.mxu0 0
    %13222 = vmatpush1.bf16.msra.mxu0 0
    %13223 = vmatprep.subr.bf16.mxu0 0
    %13224 = vmatpush1.bf16.msra.mxu0 0
    %13225 = vmatprep.subr.bf16.mxu0 0
    %13226 = vmatpush1.bf16.msra.mxu0 0
    %13227 = vmatprep.subr.bf16.mxu0 0
    %13228 = vmatpush1.bf16.msra.mxu0 0
    %13229 = vmatprep.subr.bf16.mxu0 0
    %13230 = vmatpush1.bf16.msra.mxu0 0
    %13231 = vmatprep.subr.bf16.mxu0 0
    %13232 = vmatpush1.bf16.msra.mxu0 0
    %13233 = vmatprep.subr.bf16.mxu0 0
    %13234 = vmatpush1.bf16.msra.mxu0 0
    %13235 = vmatprep.subr.bf16.mxu0 0
    %13236 = vmatpush1.bf16.msra.mxu0 0
    %13237 = vmatprep.mubr.bf16.mxu0 0
    %13238 = vmatmul.mubr.bf16.gmra.mrb[0].mxu0 %v13150
    %v13239 = vpop.f32.mrb[0].mxu0
    %v13240 = vadd.f32 %v13155, %v13239
    %v13241 = vpop.f32.mrb[0].mxu0
    %v13242 = vpop.f32.mrb[0].mxu0
    %v13243 = vpop.f32.mrb[0].mxu0
    %13244 = vdwg.mxu0
    %v13245 = vmax.f32 %v13240, 0.0
    %v13246 = vld [vmem:[#allocation18] sm:$0xf]
    %v13247 = vld [vmem:[#allocation18 + $0x4] sm:$0xf]
    %v13248 = vld [vmem:[#allocation18 + $0x8] sm:$0xf]
    %v13249 = vld [vmem:[#allocation18 + $0xc] sm:$0xf]
    %v13250 = vld [vmem:[#allocation18 + $0x10] sm:$0xf]
    %v13251 = vld [vmem:[#allocation18 + $0x14] sm:$0xf]
    %v13252 = vld [vmem:[#allocation18 + $0x18] sm:$0xf]
    %v13253 = vld [vmem:[#allocation18 + $0x1c] sm:$0xf]
    %v13254 = vld [vmem:[#allocation18 + $0x20] sm:$0xf]
    %v13255 = vld [vmem:[#allocation18 + $0x24] sm:$0xf]
    %v13256 = vld [vmem:[#allocation18 + $0x28] sm:$0xf]
    %v13257 = vld [vmem:[#allocation18 + $0x2c] sm:$0xf]
    %v13258 = vld [vmem:[#allocation18 + $0x30] sm:$0xf]
    %v13259 = vld [vmem:[#allocation18 + $0x34] sm:$0xf]
    %v13260 = vld [vmem:[#allocation18 + $0x38] sm:$0xf]
    %v13261 = vld [vmem:[#allocation18 + $0x3c] sm:$0xf]
    %v13262 = vld [vmem:[#allocation19] sm:$0x1]
    %v13263 = vpack.c.bf16 %v13245, %v13245
    %v13265 = vlaneseq
    %v13266 = vshrl.u32 %v13265, 7
    %v13267 = vsub.s32 0, %v13266
    %v13268 = vrot.slane %v13262, %v13267
    %v13286 = vunpack.c.l.b16 %v13246
    %v13287 = vunpack.c.l.b16 %v13247
    %v13288 = vunpack.c.l.b16 %v13248
    %v13289 = vunpack.c.l.b16 %v13249
    %v13290 = vunpack.c.l.b16 %v13250
    %v13291 = vunpack.c.l.b16 %v13251
    %v13292 = vunpack.c.l.b16 %v13252
    %v13293 = vunpack.c.l.b16 %v13253
    %v13294 = vunpack.c.l.b16 %v13254
    %v13295 = vunpack.c.l.b16 %v13255
    %v13296 = vunpack.c.l.b16 %v13256
    %v13297 = vunpack.c.l.b16 %v13257
    %v13298 = vunpack.c.l.b16 %v13258
    %v13299 = vunpack.c.l.b16 %v13259
    %v13300 = vunpack.c.l.b16 %v13260
    %v13301 = vunpack.c.l.b16 %v13261
    %v13302 = vpack.c.b16 %v13287, %v13286
    %v13303 = vpack.c.b16 %v13289, %v13288
    %v13304 = vpack.c.b16 %v13291, %v13290
    %v13305 = vpack.c.b16 %v13293, %v13292
    %v13306 = vpack.c.b16 %v13295, %v13294
    %v13307 = vpack.c.b16 %v13297, %v13296
    %v13308 = vpack.c.b16 %v13299, %v13298
    %v13309 = vpack.c.b16 %v13301, %v13300
    %13318 = vmatprep.subr.bf16.mxu0 0
    %13319 = vmatpush1.bf16.msra.mxu0 %v13302
    %13320 = vmatprep.subr.bf16.mxu0 0
    %13321 = vmatpush1.bf16.msra.mxu0 %v13303
    %13322 = vmatprep.subr.bf16.mxu0 0
    %13323 = vmatpush1.bf16.msra.mxu0 %v13304
    %13324 = vmatprep.subr.bf16.mxu0 0
    %13325 = vmatpush1.bf16.msra.mxu0 %v13305
    %13326 = vmatprep.subr.bf16.mxu0 0
    %13327 = vmatpush1.bf16.msra.mxu0 %v13306
    %13328 = vmatprep.subr.bf16.mxu0 0
    %13329 = vmatpush1.bf16.msra.mxu0 %v13307
    %13330 = vmatprep.subr.bf16.mxu0 0
    %13331 = vmatpush1.bf16.msra.mxu0 %v13308
    %13332 = vmatprep.subr.bf16.mxu0 0
    %13333 = vmatpush1.bf16.msra.mxu0 %v13309
    %13334 = vmatprep.subr.bf16.mxu0 0
    %13335 = vmatpush1.bf16.msra.mxu0 0
    %13336 = vmatprep.subr.bf16.mxu0 0
    %13337 = vmatpush1.bf16.msra.mxu0 0
    %13338 = vmatprep.subr.bf16.mxu0 0
    %13339 = vmatpush1.bf16.msra.mxu0 0
    %13340 = vmatprep.subr.bf16.mxu0 0
    %13341 = vmatpush1.bf16.msra.mxu0 0
    %13342 = vmatprep.subr.bf16.mxu0 0
    %13343 = vmatpush1.bf16.msra.mxu0 0
    %13344 = vmatprep.subr.bf16.mxu0 0
    %13345 = vmatpush1.bf16.msra.mxu0 0
    %13346 = vmatprep.subr.bf16.mxu0 0
    %13347 = vmatpush1.bf16.msra.mxu0 0
    %13348 = vmatprep.subr.bf16.mxu0 0
    %13349 = vmatpush1.bf16.msra.mxu0 0
    %13350 = vmatprep.mubr.bf16.mxu0 0
    %13351 = vmatmul.mubr.bf16.gmra.mrb[0].mxu0 %v13263
    %v13352 = vpop.f32.mrb[0].mxu0
    %v13353 = vadd.f32 %v13268, %v13352
    %v13354 = vpop.f32.mrb[0].mxu0
    %v13355 = vpop.f32.mrb[0].mxu0
    %v13356 = vpop.f32.mrb[0].mxu0
    %13357 = vdwg.mxu0
    %v13358 = vmax.f32 %v13353, 0.0
    %v13359 = vld [vmem:[#allocation21] sm:$0xf]
    %v13360 = vld [vmem:[#allocation21 + $0x4] sm:$0xf]
    %v13361 = vld [vmem:[#allocation21 + $0x8] sm:$0xf]
    %v13362 = vld [vmem:[#allocation21 + $0xc] sm:$0xf]
    %v13363 = vld [vmem:[#allocation21 + $0x10] sm:$0xf]
    %v13364 = vld [vmem:[#allocation21 + $0x14] sm:$0xf]
    %v13365 = vld [vmem:[#allocation21 + $0x18] sm:$0xf]
    %v13366 = vld [vmem:[#allocation21 + $0x1c] sm:$0xf]
    %v13367 = vld [vmem:[#allocation21 + $0x20] sm:$0xf]
    %v13368 = vld [vmem:[#allocation21 + $0x24] sm:$0xf]
    %v13369 = vld [vmem:[#allocation21 + $0x28] sm:$0xf]
    %v13370 = vld [vmem:[#allocation21 + $0x2c] sm:$0xf]
    %v13371 = vld [vmem:[#allocation21 + $0x30] sm:$0xf]
    %v13372 = vld [vmem:[#allocation21 + $0x34] sm:$0xf]
    %v13373 = vld [vmem:[#allocation21 + $0x38] sm:$0xf]
    %v13374 = vld [vmem:[#allocation21 + $0x3c] sm:$0xf]
    %v13375 = vld [vmem:[#allocation22] sm:$0x1]
    %v13376 = vpack.c.bf16 %v13358, %v13358
    %v13378 = vlaneseq
    %v13379 = vshrl.u32 %v13378, 7
    %v13380 = vsub.s32 0, %v13379
    %v13381 = vrot.slane %v13375, %v13380
    %v13399 = vunpack.c.l.b16 %v13359
    %v13400 = vunpack.c.l.b16 %v13360
    %v13401 = vunpack.c.l.b16 %v13361
    %v13402 = vunpack.c.l.b16 %v13362
    %v13403 = vunpack.c.l.b16 %v13363
    %v13404 = vunpack.c.l.b16 %v13364
    %v13405 = vunpack.c.l.b16 %v13365
    %v13406 = vunpack.c.l.b16 %v13366
    %v13407 = vunpack.c.l.b16 %v13367
    %v13408 = vunpack.c.l.b16 %v13368
    %v13409 = vunpack.c.l.b16 %v13369
    %v13410 = vunpack.c.l.b16 %v13370
    %v13411 = vunpack.c.l.b16 %v13371
    %v13412 = vunpack.c.l.b16 %v13372
    %v13413 = vunpack.c.l.b16 %v13373
    %v13414 = vunpack.c.l.b16 %v13374
    %v13415 = vpack.c.b16 %v13400, %v13399
    %v13416 = vpack.c.b16 %v13402, %v13401
    %v13417 = vpack.c.b16 %v13404, %v13403
    %v13418 = vpack.c.b16 %v13406, %v13405
    %v13419 = vpack.c.b16 %v13408, %v13407
    %v13420 = vpack.c.b16 %v13410, %v13409
    %v13421 = vpack.c.b16 %v13412, %v13411
    %v13422 = vpack.c.b16 %v13414, %v13413
    %13431 = vmatprep.subr.bf16.mxu0 0
    %13432 = vmatpush1.bf16.msra.mxu0 %v13415
    %13433 = vmatprep.subr.bf16.mxu0 0
    %13434 = vmatpush1.bf16.msra.mxu0 %v13416
    %13435 = vmatprep.subr.bf16.mxu0 0
    %13436 = vmatpush1.bf16.msra.mxu0 %v13417
    %13437 = vmatprep.subr.bf16.mxu0 0
    %13438 = vmatpush1.bf16.msra.mxu0 %v13418
    %13439 = vmatprep.subr.bf16.mxu0 0
    %13440 = vmatpush1.bf16.msra.mxu0 %v13419
    %13441 = vmatprep.subr.bf16.mxu0 0
    %13442 = vmatpush1.bf16.msra.mxu0 %v13420
    %13443 = vmatprep.subr.bf16.mxu0 0
    %13444 = vmatpush1.bf16.msra.mxu0 %v13421
    %13445 = vmatprep.subr.bf16.mxu0 0
    %13446 = vmatpush1.bf16.msra.mxu0 %v13422
    %13447 = vmatprep.subr.bf16.mxu0 0
    %13448 = vmatpush1.bf16.msra.mxu0 0
    %13449 = vmatprep.subr.bf16.mxu0 0
    %13450 = vmatpush1.bf16.msra.mxu0 0
    %13451 = vmatprep.subr.bf16.mxu0 0
    %13452 = vmatpush1.bf16.msra.mxu0 0
    %13453 = vmatprep.subr.bf16.mxu0 0
    %13454 = vmatpush1.bf16.msra.mxu0 0
    %13455 = vmatprep.subr.bf16.mxu0 0
    %13456 = vmatpush1.bf16.msra.mxu0 0
    %13457 = vmatprep.subr.bf16.mxu0 0
    %13458 = vmatpush1.bf16.msra.mxu0 0
    %13459 = vmatprep.subr.bf16.mxu0 0
    %13460 = vmatpush1.bf16.msra.mxu0 0
    %13461 = vmatprep.subr.bf16.mxu0 0
    %13462 = vmatpush1.bf16.msra.mxu0 0
    %13463 = vmatprep.mubr.bf16.mxu0 0
    %13464 = vmatmul.mubr.bf16.gmra.mrb[0].mxu0 %v13376
    %v13465 = vpop.f32.mrb[0].mxu0
    %v13466 = vadd.f32 %v13381, %v13465
    %v13467 = vpop.f32.mrb[0].mxu0
    %v13468 = vpop.f32.mrb[0].mxu0
    %v13469 = vpop.f32.mrb[0].mxu0
    %13470 = vdwg.mxu0
    %13471 = vst [vmem:[%s15] sm:$0xff] %v13466
    // Predicated region
    $region118: #{deep_model_forward.1} parent=1 // pred_check
      _
    $region119: #{deep_model_forward.1} parent=1 // pred_check_branch
      %13473 = sbr.rel (0) target = $region121
    $region120: #{deep_model_forward.1} parent=1 // pred_region
      _
    $region121: #{deep_model_forward.1} parent=1 // pred_fallthru
      _
    // Predicated region
    $region122: #{deep_model_forward.1} parent=1 // pred_check
      _
    $region123: #{deep_model_forward.1} parent=1 // pred_check_branch
      %13475 = sbr.rel (0) target = $region125
    $region124: #{deep_model_forward.1} parent=1 // pred_region
      _
    $region125: #{deep_model_forward.1} parent=1 // pred_fallthru
      _
    %13476 = vsyncpa [#allocation3], 1
    %13477 = vsyncpa [#allocation5], 1
    %13478 = vsyncpa [#allocation8], 1
    %13479 = vsyncpa [#allocation11], 1
    %13480 = vsyncpa [#allocation14], 1
    %13481 = vsyncpa [#allocation17], 1
    %13482 = vsyncpa [#allocation20], 1
    %13483 = vsyncpa [#allocation23], 1

</llo_original>
